<compile_context>
chip_gen: v5e
topology: v5e:2x2
jax: 0.10.0
libtpu: 0.0.40
codegen_flags: <defaults>
</compile_context>

<pallas_src>
import functools

import jax
import jax.numpy as jnp
from jax.experimental import pallas as pl
from jax.experimental.pallas import tpu as pltpu

LANE = 128      # TPU lane width; the tiny latent dim (2) is zero-padded to this
SUBLANE = 16    # bf16 packs 16 rows per sublane group; batch padded to this


def _round_up(n, m):
    return ((n + m - 1) // m) * m


# -----------------------------------------------------------------------------
# Fused VAE forward kernel (one batch block per grid step, fully VMEM-resident)
# -----------------------------------------------------------------------------
def _vae_fused_kernel(x_ref, eps_ref,
                      w1_ref, b1_ref, wml_ref, bml_ref,
                      wd1_ref, bd1_ref, wd2_ref, bd2_ref,
                      out_ref, kl_ref, *, valid_rows):
    """recon = sigmoid(relu(z @ Wd1 + bd1) @ Wd2 + bd2),
       z = mu + exp(log_var/2) * eps,
       [mu | log_var] = relu(x @ W1 + b1) @ W_ml + b_ml  (mu in lanes [:128],
       log_var in lanes [128:256] of the fused weight).

    Padded latent lanes carry exact zeros (zero-padded weights/biases), so
    their KL terms are exactly zero and they contribute nothing downstream.
    Padded batch rows are masked out of the in-kernel KL partial sum.
    """
    blk = x_ref.shape[0]

    # ---- Encoder: h = relu(x @ W1 + b1) -------------------------------------
    h = jnp.dot(x_ref[...], w1_ref[...], preferred_element_type=jnp.float32)
    h = jnp.maximum(h + b1_ref[...], 0.0)
    h_bf = h.astype(jnp.bfloat16)

    # ---- Fused to_mean_logvar: single 256-wide MXU pass, lane-split ---------
    ml = jnp.dot(h_bf, wml_ref[...], preferred_element_type=jnp.float32) + bml_ref[...]
    mu = ml[:, :LANE]
    lv = ml[:, LANE:]

    # ---- In-kernel KL partial reduce (padded/garbage rows masked) -----------
    row = pl.program_id(0) * blk + jax.lax.broadcasted_iota(jnp.int32, (blk, LANE), 0)
    kl_terms = jnp.where(row < valid_rows, 1.0 + lv - mu * mu - jnp.exp(lv), 0.0)
    # Fold sublane groups: (blk,128) -> (blk//8, 8, 128) summed over groups.
    kl_ref[...] = jnp.sum(kl_terms.reshape(blk // 8, 8, LANE), axis=0)

    # ---- Reparametrization trick: z = mu + exp(log_var / 2) * eps -----------
    z = mu + jnp.exp(0.5 * lv) * eps_ref[...]

    # ---- Decoder: sigmoid(relu(z @ Wd1 + bd1) @ Wd2 + bd2) -------------------
    # (Wd1 only has 2 real rows; kept on the MXU for simplicity — it is ~2% of
    #  the FLOPs and its zero-padded rows make padded z lanes inert.)
    hd = jnp.dot(z.astype(jnp.bfloat16), wd1_ref[...],
                 preferred_element_type=jnp.float32)
    hd = jnp.maximum(hd + bd1_ref[...], 0.0)
    y = jnp.dot(hd.astype(jnp.bfloat16), wd2_ref[...],
                preferred_element_type=jnp.float32)
    out_ref[...] = jax.nn.sigmoid(y + bd2_ref[...]).astype(out_ref.dtype)


# -----------------------------------------------------------------------------
# Parameter init (mimics nn.Linear default U(+-1/sqrt(fan_in))) + device prep
# -----------------------------------------------------------------------------
def init_linear(key, din, dout):
    """Weights stored [in, out] (transpose of torch) so the kernel is x @ W + b."""
    kw, kb = jax.random.split(key)
    bound = 1.0 / float(din) ** 0.5
    w = jax.random.uniform(kw, (din, dout), jnp.float32, -bound, bound)
    b = jax.random.uniform(kb, (dout,), jnp.float32, -bound, bound)
    return w, b


def init_vae(key, latent_dims, hidden_dim, input_dim, output_dim):
    k = jax.random.split(key, 4)
    return {
        "enc_linear1": init_linear(k[0], input_dim, hidden_dim),
        "to_mean_logvar": init_linear(k[1], hidden_dim, 2 * latent_dims),
        "dec_linear1": init_linear(k[2], latent_dims, hidden_dim),
        "dec_linear2": init_linear(k[3], hidden_dim, output_dim),
        "latent_dims": latent_dims,
        "hidden_dim": hidden_dim,
        "input_dim": input_dim,
        "output_dim": output_dim,
    }


def prepare_params(params):
    """Pad to lane/MXU-friendly shapes, cast matmul weights to bf16 (done once).

    - input/output feature dims zero-padded to multiples of 128
    - to_mean_logvar is split into mu / log_var halves (torch.split(.., 2, -1)
      semantics: cols [:lat]=mu, [lat:]=log_var), each lane-padded to 128,
      then re-fused into ONE (hid, 256) weight + (1, 256) bias
    - decoder's tiny (latent_dims -> hidden) weight row-padded to 128
    - biases kept f32 (added after the f32 MXU accumulation)
    """
    lat = params["latent_dims"]
    hid = params["hidden_dim"]
    din, dout = params["input_dim"], params["output_dim"]
    din_p, dout_p = _round_up(din, LANE), _round_up(dout, LANE)

    w1, b1 = params["enc_linear1"]
    wml, bml = params["to_mean_logvar"]
    wd1, bd1 = params["dec_linear1"]
    wd2, bd2 = params["dec_linear2"]
    bf16 = lambda a: a.astype(jnp.bfloat16)

    wml_fused = jnp.concatenate(
        [jnp.pad(wml[:, :lat], ((0, 0), (0, LANE - lat))),
         jnp.pad(wml[:, lat:], ((0, 0), (0, LANE - lat)))], axis=1)     # (hid, 256)
    bml_fused = jnp.concatenate(
        [jnp.pad(bml[:lat], (0, LANE - lat)),
         jnp.pad(bml[lat:], (0, LANE - lat))]).reshape(1, 2 * LANE)     # (1, 256)

    return {
        "w1": bf16(jnp.pad(w1, ((0, din_p - din), (0, 0)))),
        "b1": b1.reshape(1, hid).astype(jnp.float32),
        "wml": bf16(wml_fused),
        "bml": bml_fused.astype(jnp.float32),
        "wd1": bf16(jnp.pad(wd1, ((0, LANE - lat), (0, 0)))),
        "bd1": bd1.reshape(1, hid).astype(jnp.float32),
        "wd2": bf16(jnp.pad(wd2, ((0, 0), (0, dout_p - dout)))),
        "bd2": jnp.pad(bd2, (0, dout_p - dout)).reshape(1, dout_p).astype(jnp.float32),
        "latent_dims": lat, "hidden_dim": hid,
        "input_dim": din, "output_dim": dout,
        "din_pad": din_p, "dout_pad": dout_p,
    }


# -----------------------------------------------------------------------------
# Forward wrapper
# -----------------------------------------------------------------------------
def vae_forward(prepared, x, eps, *, block_b=512):
    """Fused VAE forward. Returns (recon (-1,3,28,28) in bf16, kl scalar f32).

    `kl` mirrors the Encoder.kl attribute side-effect of the torch module.
    Wrap in jax.jit so the pad/cast/eps-scatter preamble fuses with callers.
    """
    B = x.shape[0]
    xf = x.reshape(B, -1).astype(jnp.float32)
    din, dout = prepared["input_dim"], prepared["output_dim"]
    din_p, dout_p = prepared["din_pad"], prepared["dout_pad"]
    hid, lat = prepared["hidden_dim"], prepared["latent_dims"]
    assert xf.shape[1] == din

    # Batch padding / block-size selection.
    bp = _round_up(B, SUBLANE)
    blk = min(block_b, bp)
    if bp // blk < 2 and bp >= 2 * SUBLANE:
        # Ensure >=2 grid steps when the batch allows it (v7x has 2 TCs and
        # "parallel" only shards grid axes with >1 step).
        blk = _round_up(bp // 2, SUBLANE)
    bp = _round_up(bp, blk)
    nblk = bp // blk
    grid = (nblk,)

    x_p = jnp.pad(xf, ((0, bp - B), (0, din_p - din))).astype(jnp.bfloat16)
    # TODO(synk): generate eps in-kernel (pltpu.prng_seed + pltpu.prng_random_bits
    # + Box-Muller) to drop this HBM input; kept as an explicit input here for
    # deterministic verification against the reference.
    eps_p = jnp.zeros((bp, LANE), jnp.float32).at[:B, :lat].set(
        eps.astype(jnp.float32))

    const = lambda i: (0, 0)   # weights: same block every step -> VMEM-resident
    batch = lambda i: (i, 0)   # activations: tiled along the batch grid axis
    # (pl.Buffered(1) on the constant weight specs would reclaim ~5 MB of VMEM
    #  on v7x; left at the default double-buffering for portability.)

    out, kl_part = pl.pallas_call(
        functools.partial(_vae_fused_kernel, valid_rows=B),
        out_shape=(
            jax.ShapeDtypeStruct((bp, dout_p), jnp.bfloat16),   # recon (bf16 writeback)
            jax.ShapeDtypeStruct((nblk * 8, LANE), jnp.float32),  # KL partial sums
        ),
        grid=grid,
        in_specs=[
            pl.BlockSpec((blk, din_p), batch),       # x
            pl.BlockSpec((blk, LANE), batch),        # eps
            pl.BlockSpec((din_p, hid), const),       # W1
            pl.BlockSpec((1, hid), const),           # b1
            pl.BlockSpec((hid, 2 * LANE), const),    # W_[mu|logvar] fused
            pl.BlockSpec((1, 2 * LANE), const),      # b_[mu|logvar] fused
            pl.BlockSpec((LANE, hid), const),        # W_dec1
            pl.BlockSpec((1, hid), const),           # b_dec1
            pl.BlockSpec((hid, dout_p), const),      # W_dec2
            pl.BlockSpec((1, dout_p), const),        # b_dec2
        ],
        out_specs=(
            pl.BlockSpec((blk, dout_p), batch),
            pl.BlockSpec((8, LANE), batch),
        ),
        compiler_params=pltpu.CompilerParams(
            # Batch blocks are fully independent -> shard across TCs (v7x).
            dimension_semantics=("parallel",),
            # ~5.4 MB bf16 weights (double-buffered) + activation blocks at
            # blk=512 stay well under this; also < v7x's 64 MiB physical VMEM.
            vmem_limit_bytes=48 * 1024 * 1024,
        ),
    )(x_p, eps_p,
      prepared["w1"], prepared["b1"],
      prepared["wml"], prepared["bml"],
      prepared["wd1"], prepared["bd1"],
      prepared["wd2"], prepared["bd2"])

    recon = out[:B, :dout].reshape(-1, 3, 28, 28)     # Decoder.reshape (bf16)
    kl = -0.5 * jnp.sum(kl_part)                      # Encoder.kl
    return recon, kl


# -----------------------------------------------------------------------------
# Pure-JAX f32 reference (mirrors the torch module) for a sanity check
# -----------------------------------------------------------------------------
def vae_forward_ref(params, x, eps):
    B = x.shape[0]
    xf = x.reshape(B, -1)
    w1, b1 = params["enc_linear1"]
    wml, bml = params["to_mean_logvar"]
    wd1, bd1 = params["dec_linear1"]
    wd2, bd2 = params["dec_linear2"]
    lat = params["latent_dims"]
    h = jnp.maximum(xf @ w1 + b1, 0.0)
    mlv = h @ wml + bml
    mu, lv = mlv[:, :lat], mlv[:, lat:]
    kl = -0.5 * jnp.sum(1.0 + lv - mu * mu - jnp.exp(lv))
    z = mu + jnp.exp(0.5 * lv) * eps
    hd = jnp.maximum(z @ wd1 + bd1, 0.0)
    y = jax.nn.sigmoid(hd @ wd2 + bd2)
    return y.reshape(-1, 3, 28, 28), kl


# -----------------------------------------------------------------------------
if __name__ == "__main__":
    key = jax.random.PRNGKey(0)
    k_param, k_x, k_eps = jax.random.split(key, 3)

    # Shapes implied by the module: input flattens to 3*28*28 = 2352 and the
    # decoder reshapes back to (-1, 3, 28, 28). latent_dims must be 2 for
    # `mu, log_var = torch.split(.., 2, dim=-1)` to unpack into two tensors.
    B, C, Hs, Ws = 2, 3, 28, 28
    input_dim = output_dim = C * Hs * Ws     # 2352
    latent_dims = 2
    hidden_dim = 512

    params = init_vae(k_param, latent_dims, hidden_dim, input_dim, output_dim)
    prepared = prepare_params(params)

    x = jax.random.normal(k_x, (B, C, Hs, Ws), jnp.float32)
    eps = jax.random.normal(k_eps, (B, latent_dims), jnp.float32)  # randn_like

    # jit so the pad/cast/eps-scatter prep fuses with the pallas_call.
    fwd = jax.jit(lambda x, eps: vae_forward(prepared, x, eps))
    recon, kl = fwd(x, eps)
    jax.block_until_ready((recon, kl))
    assert recon.shape == (B, 3, 28, 28)
    assert recon.dtype == jnp.bfloat16
    assert bool(jnp.isfinite(kl))

    # Sanity check against the f32 reference (bf16 MXU inputs + bf16 recon
    # writeback -> loose tolerance).
    recon_ref, kl_expect = vae_forward_ref(params, x, eps)
    err = float(jnp.max(jnp.abs(recon.astype(jnp.float32) - recon_ref)))
    assert err < 5e-2, f"recon deviates from reference: max abs err {err}"
    kl_err = float(jnp.abs(kl - kl_expect))
    assert kl_err < 1e-2 + 5e-2 * float(jnp.abs(kl_expect)), \
        f"kl deviates from reference: {float(kl)} vs {float(kl_expect)}"

    print("KERNEL_OK")
</pallas_src>

<mosaic_0001>
module attributes {stable_mosaic.version = 11 : i64} {
  func.func @_vae_fused_kernel(%arg0: i32, %arg1: memref<16x2432xbf16, #tpu.memory_space<vmem>>, %arg2: memref<16x128xf32, #tpu.memory_space<vmem>>, %arg3: memref<2432x512xbf16, #tpu.memory_space<vmem>>, %arg4: memref<1x512xf32, #tpu.memory_space<vmem>>, %arg5: memref<512x256xbf16, #tpu.memory_space<vmem>>, %arg6: memref<1x256xf32, #tpu.memory_space<vmem>>, %arg7: memref<128x512xbf16, #tpu.memory_space<vmem>>, %arg8: memref<1x512xf32, #tpu.memory_space<vmem>>, %arg9: memref<512x2432xbf16, #tpu.memory_space<vmem>>, %arg10: memref<1x2432xf32, #tpu.memory_space<vmem>>, %arg11: memref<16x2432xbf16, #tpu.memory_space<vmem>>, %arg12: memref<8x128xf32, #tpu.memory_space<vmem>>) attributes {dimension_semantics = [#tpu.dimension_semantics<parallel>], iteration_bounds = array<i64: 1>, scalar_prefetch = 0 : i64, scratch_operands = 0 : i64, tpu.core_type = #tpu.core_type<tc>, window_params = [{transform_indices = @transform_0, window_bounds = array<i64: 16, 2432>}, {transform_indices = @transform_1, window_bounds = array<i64: 16, 128>}, {pipeline_mode = #tpu.pipeline_mode<synchronous>, transform_indices = @transform_2, window_bounds = array<i64: 2432, 512>}, {pipeline_mode = #tpu.pipeline_mode<synchronous>, transform_indices = @transform_3, window_bounds = array<i64: 1, 512>}, {pipeline_mode = #tpu.pipeline_mode<synchronous>, transform_indices = @transform_4, window_bounds = array<i64: 512, 256>}, {pipeline_mode = #tpu.pipeline_mode<synchronous>, transform_indices = @transform_5, window_bounds = array<i64: 1, 256>}, {pipeline_mode = #tpu.pipeline_mode<synchronous>, transform_indices = @transform_6, window_bounds = array<i64: 128, 512>}, {pipeline_mode = #tpu.pipeline_mode<synchronous>, transform_indices = @transform_7, window_bounds = array<i64: 1, 512>}, {pipeline_mode = #tpu.pipeline_mode<synchronous>, transform_indices = @transform_8, window_bounds = array<i64: 512, 2432>}, {pipeline_mode = #tpu.pipeline_mode<synchronous>, transform_indices = @transform_9, window_bounds = array<i64: 1, 2432>}, {transform_indices = @transform_10, window_bounds = array<i64: 16, 2432>}, {transform_indices = @transform_11, window_bounds = array<i64: 8, 128>}]} {
    %c0 = arith.constant 0 : index
    %c0_0 = arith.constant 0 : index
    %0 = vector.load %arg1[%c0, %c0_0] : memref<16x2432xbf16, #tpu.memory_space<vmem>>, vector<16x2432xbf16>
    %c0_1 = arith.constant 0 : index
    %c0_2 = arith.constant 0 : index
    %1 = vector.load %arg3[%c0_1, %c0_2] : memref<2432x512xbf16, #tpu.memory_space<vmem>>, vector<2432x512xbf16>
    %cst = arith.constant dense<0.000000e+00> : vector<16x512xf32>
    %2 = tpu.matmul %0, %1, %cst {dimension_numbers = #tpu.dot_dimension_numbers<[1], [0], [0], [1], [0, 0, 1, 1], [], []>} : vector<16x2432xbf16>, vector<2432x512xbf16>, vector<16x512xf32> -> vector<16x512xf32>
    %c0_3 = arith.constant 0 : index
    %c0_4 = arith.constant 0 : index
    %3 = vector.load %arg4[%c0_3, %c0_4] : memref<1x512xf32, #tpu.memory_space<vmem>>, vector<1x512xf32>
    %4 = vector.broadcast %3 : vector<1x512xf32> to vector<16x512xf32>
    %5 = arith.addf %2, %4 : vector<16x512xf32>
    %cst_5 = arith.constant 0.000000e+00 : f32
    %6 = vector.broadcast %cst_5 : f32 to vector<16x512xf32>
    %7 = arith.maximumf %5, %6 : vector<16x512xf32>
    %8 = arith.truncf %7 : vector<16x512xf32> to vector<16x512xbf16>
    %c0_6 = arith.constant 0 : index
    %c0_7 = arith.constant 0 : index
    %9 = vector.load %arg5[%c0_6, %c0_7] : memref<512x256xbf16, #tpu.memory_space<vmem>>, vector<512x256xbf16>
    %cst_8 = arith.constant dense<0.000000e+00> : vector<16x256xf32>
    %10 = tpu.matmul %8, %9, %cst_8 {dimension_numbers = #tpu.dot_dimension_numbers<[1], [0], [0], [1], [0, 0, 1, 1], [], []>} : vector<16x512xbf16>, vector<512x256xbf16>, vector<16x256xf32> -> vector<16x256xf32>
    %c0_9 = arith.constant 0 : index
    %c0_10 = arith.constant 0 : index
    %11 = vector.load %arg6[%c0_9, %c0_10] : memref<1x256xf32, #tpu.memory_space<vmem>>, vector<1x256xf32>
    %12 = vector.broadcast %11 : vector<1x256xf32> to vector<16x256xf32>
    %13 = arith.addf %10, %12 : vector<16x256xf32>
    %14 = vector.extract_strided_slice %13 {offsets = [0, 0], sizes = [16, 128], strides = [1, 1]} : vector<16x256xf32> to vector<16x128xf32>
    %15 = vector.extract_strided_slice %13 {offsets = [0, 128], sizes = [16, 128], strides = [1, 1]} : vector<16x256xf32> to vector<16x128xf32>
    %c16_i32 = arith.constant 16 : i32
    %16 = arith.muli %arg0, %c16_i32 : i32
    %17 = tpu.iota {dimensions = array<i32: 0>} : vector<16x128xi32>
    %18 = vector.broadcast %16 : i32 to vector<16x128xi32>
    %19 = arith.addi %18, %17 : vector<16x128xi32>
    %c2_i32 = arith.constant 2 : i32
    %20 = vector.broadcast %c2_i32 : i32 to vector<16x128xi32>
    %21 = arith.cmpi slt, %19, %20 : vector<16x128xi32>
    %cst_11 = arith.constant 1.000000e+00 : f32
    %22 = vector.broadcast %cst_11 : f32 to vector<16x128xf32>
    %23 = arith.addf %22, %15 : vector<16x128xf32>
    %24 = arith.mulf %14, %14 : vector<16x128xf32>
    %25 = arith.subf %23, %24 : vector<16x128xf32>
    %26 = math.exp %15 : vector<16x128xf32>
    %27 = arith.subf %25, %26 : vector<16x128xf32>
    %cst_12 = arith.constant 0.000000e+00 : f32
    %28 = vector.broadcast %cst_12 : f32 to vector<16x128xf32>
    %29 = arith.select %21, %27, %28 : vector<16x128xi1>, vector<16x128xf32>
    %30 = vector.shape_cast %29 : vector<16x128xf32> to vector<2x8x128xf32>
    %cst_13 = arith.constant dense<0.000000e+00> : vector<8x128xf32>
    %31 = vector.multi_reduction <add>, %30, %cst_13 [0] : vector<2x8x128xf32> to vector<8x128xf32>
    %c0_14 = arith.constant 0 : index
    %c0_15 = arith.constant 0 : index
    %32 = vector.load %arg12[%c0_14, %c0_15] : memref<8x128xf32, #tpu.memory_space<vmem>>, vector<8x128xf32>
    tpu.vector_store %arg12[%c0_14, %c0_15], %31 {strides = array<i32>} : memref<8x128xf32, #tpu.memory_space<vmem>>, vector<8x128xf32>,
    %cst_16 = arith.constant 5.000000e-01 : f32
    %33 = vector.broadcast %cst_16 : f32 to vector<16x128xf32>
    %34 = arith.mulf %33, %15 : vector<16x128xf32>
    %35 = math.exp %34 : vector<16x128xf32>
    %c0_17 = arith.constant 0 : index
    %c0_18 = arith.constant 0 : index
    %36 = vector.load %arg2[%c0_17, %c0_18] : memref<16x128xf32, #tpu.memory_space<vmem>>, vector<16x128xf32>
    %37 = arith.mulf %35, %36 : vector<16x128xf32>
    %38 = arith.addf %14, %37 : vector<16x128xf32>
    %39 = arith.truncf %38 : vector<16x128xf32> to vector<16x128xbf16>
    %c0_19 = arith.constant 0 : index
    %c0_20 = arith.constant 0 : index
    %40 = vector.load %arg7[%c0_19, %c0_20] : memref<128x512xbf16, #tpu.memory_space<vmem>>, vector<128x512xbf16>
    %cst_21 = arith.constant dense<0.000000e+00> : vector<16x512xf32>
    %41 = tpu.matmul %39, %40, %cst_21 {dimension_numbers = #tpu.dot_dimension_numbers<[1], [0], [0], [1], [0, 0, 1, 1], [], []>} : vector<16x128xbf16>, vector<128x512xbf16>, vector<16x512xf32> -> vector<16x512xf32>
    %c0_22 = arith.constant 0 : index
    %c0_23 = arith.constant 0 : index
    %42 = vector.load %arg8[%c0_22, %c0_23] : memref<1x512xf32, #tpu.memory_space<vmem>>, vector<1x512xf32>
    %43 = vector.broadcast %42 : vector<1x512xf32> to vector<16x512xf32>
    %44 = arith.addf %41, %43 : vector<16x512xf32>
    %cst_24 = arith.constant 0.000000e+00 : f32
    %45 = vector.broadcast %cst_24 : f32 to vector<16x512xf32>
    %46 = arith.maximumf %44, %45 : vector<16x512xf32>
    %47 = arith.truncf %46 : vector<16x512xf32> to vector<16x512xbf16>
    %c0_25 = arith.constant 0 : index
    %c0_26 = arith.constant 0 : index
    %48 = vector.load %arg9[%c0_25, %c0_26] : memref<512x2432xbf16, #tpu.memory_space<vmem>>, vector<512x2432xbf16>
    %cst_27 = arith.constant dense<0.000000e+00> : vector<16x2432xf32>
    %49 = tpu.matmul %47, %48, %cst_27 {dimension_numbers = #tpu.dot_dimension_numbers<[1], [0], [0], [1], [0, 0, 1, 1], [], []>} : vector<16x512xbf16>, vector<512x2432xbf16>, vector<16x2432xf32> -> vector<16x2432xf32>
    %c0_28 = arith.constant 0 : index
    %c0_29 = arith.constant 0 : index
    %50 = vector.load %arg10[%c0_28, %c0_29] : memref<1x2432xf32, #tpu.memory_space<vmem>>, vector<1x2432xf32>
    %51 = vector.broadcast %50 : vector<1x2432xf32> to vector<16x2432xf32>
    %52 = arith.addf %49, %51 : vector<16x2432xf32>
    %53 = arith.negf %52 : vector<16x2432xf32>
    %54 = math.exp %53 : vector<16x2432xf32>
    %cst_30 = arith.constant 1.000000e+00 : f32
    %55 = vector.broadcast %cst_30 : f32 to vector<16x2432xf32>
    %56 = arith.addf %55, %54 : vector<16x2432xf32>
    %57 = arith.divf %55, %56 : vector<16x2432xf32>
    %58 = arith.truncf %57 : vector<16x2432xf32> to vector<16x2432xbf16>
    %c0_31 = arith.constant 0 : index
    %c0_32 = arith.constant 0 : index
    %59 = vector.load %arg11[%c0_31, %c0_32] : memref<16x2432xbf16, #tpu.memory_space<vmem>>, vector<16x2432xbf16>
    tpu.vector_store %arg11[%c0_31, %c0_32], %58 {strides = array<i32>} : memref<16x2432xbf16, #tpu.memory_space<vmem>>, vector<16x2432xbf16>,
    return
  }
  func.func @transform_0(%arg0: i32) -> (i32, i32) {
    %c0_i32 = arith.constant 0 : i32
    %c0_i32_0 = arith.constant 0 : i32
    return %arg0, %c0_i32 : i32, i32
  }
  func.func @transform_1(%arg0: i32) -> (i32, i32) {
    %c0_i32 = arith.constant 0 : i32
    %c0_i32_0 = arith.constant 0 : i32
    return %arg0, %c0_i32 : i32, i32
  }
  func.func @transform_2(%arg0: i32) -> (i32, i32) {
    %c0_i32 = arith.constant 0 : i32
    %c0_i32_0 = arith.constant 0 : i32
    %c0_i32_1 = arith.constant 0 : i32
    return %c0_i32, %c0_i32_0 : i32, i32
  }
  func.func @transform_3(%arg0: i32) -> (i32, i32) {
    %c0_i32 = arith.constant 0 : i32
    %c0_i32_0 = arith.constant 0 : i32
    %c0_i32_1 = arith.constant 0 : i32
    return %c0_i32, %c0_i32_0 : i32, i32
  }
  func.func @transform_4(%arg0: i32) -> (i32, i32) {
    %c0_i32 = arith.constant 0 : i32
    %c0_i32_0 = arith.constant 0 : i32
    %c0_i32_1 = arith.constant 0 : i32
    return %c0_i32, %c0_i32_0 : i32, i32
  }
  func.func @transform_5(%arg0: i32) -> (i32, i32) {
    %c0_i32 = arith.constant 0 : i32
    %c0_i32_0 = arith.constant 0 : i32
    %c0_i32_1 = arith.constant 0 : i32
    return %c0_i32, %c0_i32_0 : i32, i32
  }
  func.func @transform_6(%arg0: i32) -> (i32, i32) {
    %c0_i32 = arith.constant 0 : i32
    %c0_i32_0 = arith.constant 0 : i32
    %c0_i32_1 = arith.constant 0 : i32
    return %c0_i32, %c0_i32_0 : i32, i32
  }
  func.func @transform_7(%arg0: i32) -> (i32, i32) {
    %c0_i32 = arith.constant 0 : i32
    %c0_i32_0 = arith.constant 0 : i32
    %c0_i32_1 = arith.constant 0 : i32
    return %c0_i32, %c0_i32_0 : i32, i32
  }
  func.func @transform_8(%arg0: i32) -> (i32, i32) {
    %c0_i32 = arith.constant 0 : i32
    %c0_i32_0 = arith.constant 0 : i32
    %c0_i32_1 = arith.constant 0 : i32
    return %c0_i32, %c0_i32_0 : i32, i32
  }
  func.func @transform_9(%arg0: i32) -> (i32, i32) {
    %c0_i32 = arith.constant 0 : i32
    %c0_i32_0 = arith.constant 0 : i32
    %c0_i32_1 = arith.constant 0 : i32
    return %c0_i32, %c0_i32_0 : i32, i32
  }
  func.func @transform_10(%arg0: i32) -> (i32, i32) {
    %c0_i32 = arith.constant 0 : i32
    %c0_i32_0 = arith.constant 0 : i32
    return %arg0, %c0_i32 : i32, i32
  }
  func.func @transform_11(%arg0: i32) -> (i32, i32) {
    %c0_i32 = arith.constant 0 : i32
    %c0_i32_0 = arith.constant 0 : i32
    return %arg0, %c0_i32 : i32, i32
  }
}

</mosaic_0001>

<llo_original>
// kernel: _lambda_.1
$region0: #{_lambda_.1}
  #allocation0 [shape = 'u32[]', space=smem, size = 0x4, offset = 0x4, fixed_abs, tag = 'smem constant byte address 0x4 - core index']
  #allocation1 [shape = 'u32[72,128]{1,0:T(1,128)}', space=vmem, size = 0x9000, scoped, tag = 'internal scratch']
  %s0 = inlined_call_operand.vmem [shape: bf16[16,2432], index: 0, kind: input, shape index: {}]
  %s1 = inlined_call_operand.vmem [shape: f32[16,128], index: 1, kind: input, shape index: {}]
  %s2 = inlined_call_operand.hbm [shape: bf16[2432,512], index: 2, kind: input, shape index: {}]
  %s3 = inlined_call_operand.hbm [shape: f32[1,512], index: 3, kind: input, shape index: {}]
  %s4 = inlined_call_operand.hbm [shape: bf16[512,256], index: 4, kind: input, shape index: {}]
  %s5 = inlined_call_operand.hbm [shape: f32[1,256], index: 5, kind: input, shape index: {}]
  %s6 = inlined_call_operand.hbm [shape: bf16[128,512], index: 6, kind: input, shape index: {}]
  %s7 = inlined_call_operand.hbm [shape: f32[1,512], index: 7, kind: input, shape index: {}]
  %s8 = inlined_call_operand.hbm [shape: bf16[512,2432], index: 8, kind: input, shape index: {}]
  %s9 = inlined_call_operand.hbm [shape: f32[1,2432], index: 9, kind: input, shape index: {}]
  %s10 = inlined_call_operand.vmem [shape: bf16[16,2432], index: 10, kind: output, shape index: {0}]
  %s11 = inlined_call_operand.vmem [shape: f32[8,128], index: 11, kind: output, shape index: {1}]
  %12 = xla_tuple %s10, %s11
  %s13 = sld [smem:[#allocation0]]
  $region90: #{_lambda_.1} parent=0
    _
  %s15 = ssub.s32 1, %s13
  %s16 = scalar_select 0, %s15, %s13
  $region1: #{_lambda_.1} parent=0
    #allocation2 [shape = 'u8[2490368]{0}', space=vmem, size = 0x260000, scoped, tag = 'input window, operand 2, single buffered']
    #allocation3 [shape = 's32[1]{0}', space=sflag, size = 0x4, scoped, tag = 'scoped memory for _lambda_.1']
    #allocation4 [shape = 'u8[2048]{0}', space=vmem, size = 0x800, scoped, tag = 'input window, operand 3, single buffered']
    #allocation5 [shape = 's32[1]{0}', space=sflag, size = 0x4, scoped, tag = 'scoped memory for _lambda_.1']
    #allocation6 [shape = 'u8[262144]{0}', space=vmem, size = 0x40000, scoped, tag = 'input window, operand 4, single buffered']
    #allocation7 [shape = 'u8[1024]{0}', space=vmem, size = 0x400, scoped, tag = 'input window, operand 5, single buffered']
    #allocation8 [shape = 's32[1]{0}', space=sflag, size = 0x4, scoped, tag = 'scoped memory for _lambda_.1']
    #allocation9 [shape = 'u8[131072]{0}', space=vmem, size = 0x20000, scoped, tag = 'input window, operand 6, single buffered']
    #allocation10 [shape = 'u8[2048]{0}', space=vmem, size = 0x800, scoped, tag = 'input window, operand 7, single buffered']
    #allocation11 [shape = 's32[1]{0}', space=sflag, size = 0x4, scoped, tag = 'scoped memory for _lambda_.1']
    #allocation12 [shape = 'u8[2490368]{0}', space=vmem, size = 0x260000, scoped, tag = 'input window, operand 8, single buffered']
    #allocation13 [shape = 'u8[9728]{0}', space=vmem, size = 0x2800, scoped, tag = 'input window, operand 9, single buffered']
    #allocation14 [shape = 's32[1]{0}', space=sflag, size = 0x4, scoped, tag = 'scoped memory for _lambda_.1']
    %17 = vsyncpa [#allocation3], 0
    %18 = vsyncpa [#allocation5], 0
    %19 = vsyncpa [#allocation8], 0
    %20 = vsyncpa [#allocation11], 0
    %21 = vsyncpa [#allocation14], 0
    // Predicated region
    $region2: #{_lambda_.1} parent=1 // pred_check
      _
    $region3: #{_lambda_.1} parent=1 // pred_check_branch
      %23 = sbr.rel (0) target = $region5
    $region4: #{_lambda_.1} parent=1 // pred_region
      _
    $region5: #{_lambda_.1} parent=1 // pred_fallthru
      _
    // Predicated region
    $region6: #{_lambda_.1} parent=1 // pred_check
      _
    $region7: #{_lambda_.1} parent=1 // pred_check_branch
      %25 = sbr.rel (0) target = $region9
    $region8: #{_lambda_.1} parent=1 // pred_region
      _
    $region9: #{_lambda_.1} parent=1 // pred_fallthru
      _
    // Predicated region
    $region10: #{_lambda_.1} parent=1 // pred_check
      _
    $region11: #{_lambda_.1} parent=1 // pred_check_branch
      %27 = sbr.rel (0) target = $region13
    $region12: #{_lambda_.1} parent=1 // pred_region
      %29 = vsyncadd [#allocation3], 0
      %s30 = sshll.u32 %s2, 4
      %s31 = int_to_ptr.hbm [resolvable:$true] %s30
      %s32 = sshll.u32 [#allocation2], 4
      %s33 = int_to_ptr.vmem [resolvable:$true] %s32
      %38 = dma.hbm_to_vmem [thread:$0]  %s31, 77824, %s33, [#allocation3], 256, 256, 16
    $region13: #{_lambda_.1} parent=1 // pred_fallthru
      _
    // Predicated region
    $region14: #{_lambda_.1} parent=1 // pred_check
      _
    $region15: #{_lambda_.1} parent=1 // pred_check_branch
      %40 = sbr.rel (0) target = $region17
    $region16: #{_lambda_.1} parent=1 // pred_region
      %42 = vsyncadd [#allocation5], 0
      %s44 = sshll.u32 %s3, 4
      %s45 = int_to_ptr.hbm [resolvable:$true] %s44
      %s46 = sshll.u32 [#allocation4], 4
      %s47 = int_to_ptr.vmem [resolvable:$true] %s46
      %49 = dma.hbm_to_vmem [thread:$0]  %s45, 64, %s47, [#allocation5]
    $region17: #{_lambda_.1} parent=1 // pred_fallthru
      _
    // Predicated region
    $region18: #{_lambda_.1} parent=1 // pred_check
      _
    $region19: #{_lambda_.1} parent=1 // pred_check_branch
      %51 = sbr.rel (0) target = $region21
    $region20: #{_lambda_.1} parent=1 // pred_region
      %53 = vsyncadd [#allocation5], 0
      %s54 = sshll.u32 %s4, 4
      %s55 = int_to_ptr.hbm [resolvable:$true] %s54
      %s56 = sshll.u32 [#allocation6], 4
      %s57 = int_to_ptr.vmem [resolvable:$true] %s56
      %62 = dma.hbm_to_vmem [thread:$0]  %s55, 8192, %s57, [#allocation5], 128, 128, 8
    $region21: #{_lambda_.1} parent=1 // pred_fallthru
      _
    // Predicated region
    $region22: #{_lambda_.1} parent=1 // pred_check
      _
    $region23: #{_lambda_.1} parent=1 // pred_check_branch
      %64 = sbr.rel (0) target = $region25
    $region24: #{_lambda_.1} parent=1 // pred_region
      %66 = vsyncadd [#allocation8], 0
      %s68 = sshll.u32 %s5, 4
      %s69 = int_to_ptr.hbm [resolvable:$true] %s68
      %s70 = sshll.u32 [#allocation7], 4
      %s71 = int_to_ptr.vmem [resolvable:$true] %s70
      %73 = dma.hbm_to_vmem [thread:$0]  %s69, 32, %s71, [#allocation8]
    $region25: #{_lambda_.1} parent=1 // pred_fallthru
      _
    // Predicated region
    $region26: #{_lambda_.1} parent=1 // pred_check
      _
    $region27: #{_lambda_.1} parent=1 // pred_check_branch
      %75 = sbr.rel (0) target = $region29
    $region28: #{_lambda_.1} parent=1 // pred_region
      %77 = vsyncadd [#allocation8], 0
      %s78 = sshll.u32 %s6, 4
      %s79 = int_to_ptr.hbm [resolvable:$true] %s78
      %s80 = sshll.u32 [#allocation9], 4
      %s81 = int_to_ptr.vmem [resolvable:$true] %s80
      %86 = dma.hbm_to_vmem [thread:$0]  %s79, 4096, %s81, [#allocation8], 256, 256, 16
    $region29: #{_lambda_.1} parent=1 // pred_fallthru
      _
    // Predicated region
    $region30: #{_lambda_.1} parent=1 // pred_check
      _
    $region31: #{_lambda_.1} parent=1 // pred_check_branch
      %88 = sbr.rel (0) target = $region33
    $region32: #{_lambda_.1} parent=1 // pred_region
      %90 = vsyncadd [#allocation11], 0
      %s92 = sshll.u32 %s7, 4
      %s93 = int_to_ptr.hbm [resolvable:$true] %s92
      %s94 = sshll.u32 [#allocation10], 4
      %s95 = int_to_ptr.vmem [resolvable:$true] %s94
      %97 = dma.hbm_to_vmem [thread:$0]  %s93, 64, %s95, [#allocation11]
    $region33: #{_lambda_.1} parent=1 // pred_fallthru
      _
    // Predicated region
    $region34: #{_lambda_.1} parent=1 // pred_check
      _
    $region35: #{_lambda_.1} parent=1 // pred_check_branch
      %99 = sbr.rel (0) target = $region37
    $region36: #{_lambda_.1} parent=1 // pred_region
      %101 = vsyncadd [#allocation11], 0
      %s102 = sshll.u32 %s8, 4
      %s103 = int_to_ptr.hbm [resolvable:$true] %s102
      %s104 = sshll.u32 [#allocation12], 4
      %s105 = int_to_ptr.vmem [resolvable:$true] %s104
      %110 = dma.hbm_to_vmem [thread:$0]  %s103, 77824, %s105, [#allocation11], 1216, 1216, 76
    $region37: #{_lambda_.1} parent=1 // pred_fallthru
      _
    // Predicated region
    $region38: #{_lambda_.1} parent=1 // pred_check
      _
    $region39: #{_lambda_.1} parent=1 // pred_check_branch
      %112 = sbr.rel (0) target = $region41
    $region40: #{_lambda_.1} parent=1 // pred_region
      %114 = vsyncadd [#allocation14], 0
      %s116 = sshll.u32 %s9, 4
      %s117 = int_to_ptr.hbm [resolvable:$true] %s116
      %s118 = sshll.u32 [#allocation13], 4
      %s119 = int_to_ptr.vmem [resolvable:$true] %s118
      %121 = dma.hbm_to_vmem [thread:$0]  %s117, 304, %s119, [#allocation14]
    $region41: #{_lambda_.1} parent=1 // pred_fallthru
      _
    // Predicated region
    $region42: #{_lambda_.1} parent=1 // pred_check
      _
    $region43: #{_lambda_.1} parent=1 // pred_check_branch
      %123 = sbr.rel (0) target = $region45
    $region44: #{_lambda_.1} parent=1 // pred_region
      %125 = dma.done [#allocation3], 77824
    $region45: #{_lambda_.1} parent=1 // pred_fallthru
      _
    // Predicated region
    $region46: #{_lambda_.1} parent=1 // pred_check
      _
    $region47: #{_lambda_.1} parent=1 // pred_check_branch
      %127 = sbr.rel (0) target = $region49
    $region48: #{_lambda_.1} parent=1 // pred_region
      %129 = dma.done [#allocation5], 64
    $region49: #{_lambda_.1} parent=1 // pred_fallthru
      _
    // Predicated region
    $region50: #{_lambda_.1} parent=1 // pred_check
      _
    $region51: #{_lambda_.1} parent=1 // pred_check_branch
      %131 = sbr.rel (0) target = $region53
    $region52: #{_lambda_.1} parent=1 // pred_region
      %133 = dma.done [#allocation5], 8192
    $region53: #{_lambda_.1} parent=1 // pred_fallthru
      _
    // Predicated region
    $region54: #{_lambda_.1} parent=1 // pred_check
      _
    $region55: #{_lambda_.1} parent=1 // pred_check_branch
      %135 = sbr.rel (0) target = $region57
    $region56: #{_lambda_.1} parent=1 // pred_region
      %137 = dma.done [#allocation8], 32
    $region57: #{_lambda_.1} parent=1 // pred_fallthru
      _
    // Predicated region
    $region58: #{_lambda_.1} parent=1 // pred_check
      _
    $region59: #{_lambda_.1} parent=1 // pred_check_branch
      %139 = sbr.rel (0) target = $region61
    $region60: #{_lambda_.1} parent=1 // pred_region
      %141 = dma.done [#allocation8], 4096
    $region61: #{_lambda_.1} parent=1 // pred_fallthru
      _
    // Predicated region
    $region62: #{_lambda_.1} parent=1 // pred_check
      _
    $region63: #{_lambda_.1} parent=1 // pred_check_branch
      %143 = sbr.rel (0) target = $region65
    $region64: #{_lambda_.1} parent=1 // pred_region
      %145 = dma.done [#allocation11], 64
    $region65: #{_lambda_.1} parent=1 // pred_fallthru
      _
    // Predicated region
    $region66: #{_lambda_.1} parent=1 // pred_check
      _
    $region67: #{_lambda_.1} parent=1 // pred_check_branch
      %147 = sbr.rel (0) target = $region69
    $region68: #{_lambda_.1} parent=1 // pred_region
      %149 = dma.done [#allocation11], 77824
    $region69: #{_lambda_.1} parent=1 // pred_fallthru
      _
    // Predicated region
    $region70: #{_lambda_.1} parent=1 // pred_check
      _
    $region71: #{_lambda_.1} parent=1 // pred_check_branch
      %151 = sbr.rel (0) target = $region73
    $region72: #{_lambda_.1} parent=1 // pred_region
      %153 = dma.done [#allocation14], 304
    $region73: #{_lambda_.1} parent=1 // pred_fallthru
      _
    %v154 = vld [vmem:[%s0] sm:$0xff]
    %v155 = vld [vmem:[%s0 + $0x8] sm:$0xff]
    %v156 = vld [vmem:[%s0 + $0x10] sm:$0xff]
    %v157 = vld [vmem:[%s0 + $0x18] sm:$0xff]
    %v158 = vld [vmem:[%s0 + $0x20] sm:$0xff]
    %v159 = vld [vmem:[%s0 + $0x28] sm:$0xff]
    %v160 = vld [vmem:[%s0 + $0x30] sm:$0xff]
    %v161 = vld [vmem:[%s0 + $0x38] sm:$0xff]
    %v162 = vld [vmem:[%s0 + $0x40] sm:$0xff]
    %v163 = vld [vmem:[%s0 + $0x48] sm:$0xf]
    %v164 = vld [vmem:[%s0 + $0x4c] sm:$0xff]
    %v165 = vld [vmem:[%s0 + $0x54] sm:$0xff]
    %v166 = vld [vmem:[%s0 + $0x5c] sm:$0xff]
    %v167 = vld [vmem:[%s0 + $0x64] sm:$0xff]
    %v168 = vld [vmem:[%s0 + $0x6c] sm:$0xff]
    %v169 = vld [vmem:[%s0 + $0x74] sm:$0xff]
    %v170 = vld [vmem:[%s0 + $0x7c] sm:$0xff]
    %v171 = vld [vmem:[%s0 + $0x84] sm:$0xff]
    %v172 = vld [vmem:[%s0 + $0x8c] sm:$0xff]
    %v173 = vld [vmem:[%s0 + $0x94] sm:$0xf]
    %v174 = vld [vmem:[#allocation2] sm:$0xff]
    %v175 = vld [vmem:[#allocation2 + $0x8] sm:$0xff]
    %v176 = vld [vmem:[#allocation2 + $0x10] sm:$0xff]
    %v177 = vld [vmem:[#allocation2 + $0x18] sm:$0xff]
    %v178 = vld [vmem:[#allocation2 + $0x20] sm:$0xff]
    %v179 = vld [vmem:[#allocation2 + $0x28] sm:$0xff]
    %v180 = vld [vmem:[#allocation2 + $0x30] sm:$0xff]
    %v181 = vld [vmem:[#allocation2 + $0x38] sm:$0xff]
    %v182 = vld [vmem:[#allocation2 + $0x40] sm:$0xff]
    %v183 = vld [vmem:[#allocation2 + $0x48] sm:$0xff]
    %v184 = vld [vmem:[#allocation2 + $0x50] sm:$0xff]
    %v185 = vld [vmem:[#allocation2 + $0x58] sm:$0xff]
    %v186 = vld [vmem:[#allocation2 + $0x60] sm:$0xff]
    %v187 = vld [vmem:[#allocation2 + $0x68] sm:$0xff]
    %v188 = vld [vmem:[#allocation2 + $0x70] sm:$0xff]
    %v189 = vld [vmem:[#allocation2 + $0x78] sm:$0xff]
    %v190 = vld [vmem:[#allocation2 + $0x80] sm:$0xff]
    %v191 = vld [vmem:[#allocation2 + $0x88] sm:$0xff]
    %v192 = vld [vmem:[#allocation2 + $0x90] sm:$0xff]
    %v193 = vld [vmem:[#allocation2 + $0x98] sm:$0xff]
    %v194 = vld [vmem:[#allocation2 + $0xa0] sm:$0xff]
    %v195 = vld [vmem:[#allocation2 + $0xa8] sm:$0xff]
    %v196 = vld [vmem:[#allocation2 + $0xb0] sm:$0xff]
    %v197 = vld [vmem:[#allocation2 + $0xb8] sm:$0xff]
    %v198 = vld [vmem:[#allocation2 + $0xc0] sm:$0xff]
    %v199 = vld [vmem:[#allocation2 + $0xc8] sm:$0xff]
    %v200 = vld [vmem:[#allocation2 + $0xd0] sm:$0xff]
    %v201 = vld [vmem:[#allocation2 + $0xd8] sm:$0xff]
    %v202 = vld [vmem:[#allocation2 + $0xe0] sm:$0xff]
    %v203 = vld [vmem:[#allocation2 + $0xe8] sm:$0xff]
    %v204 = vld [vmem:[#allocation2 + $0xf0] sm:$0xff]
    %v205 = vld [vmem:[#allocation2 + $0xf8] sm:$0xff]
    %v206 = vld [vmem:[#allocation2 + $0x100] sm:$0xff]
    %v207 = vld [vmem:[#allocation2 + $0x108] sm:$0xff]
    %v208 = vld [vmem:[#allocation2 + $0x110] sm:$0xff]
    %v209 = vld [vmem:[#allocation2 + $0x118] sm:$0xff]
    %v210 = vld [vmem:[#allocation2 + $0x120] sm:$0xff]
    %v211 = vld [vmem:[#allocation2 + $0x128] sm:$0xff]
    %v212 = vld [vmem:[#allocation2 + $0x130] sm:$0xff]
    %v213 = vld [vmem:[#allocation2 + $0x138] sm:$0xff]
    %v214 = vld [vmem:[#allocation2 + $0x140] sm:$0xff]
    %v215 = vld [vmem:[#allocation2 + $0x148] sm:$0xff]
    %v216 = vld [vmem:[#allocation2 + $0x150] sm:$0xff]
    %v217 = vld [vmem:[#allocation2 + $0x158] sm:$0xff]
    %v218 = vld [vmem:[#allocation2 + $0x160] sm:$0xff]
    %v219 = vld [vmem:[#allocation2 + $0x168] sm:$0xff]
    %v220 = vld [vmem:[#allocation2 + $0x170] sm:$0xff]
    %v221 = vld [vmem:[#allocation2 + $0x178] sm:$0xff]
    %v222 = vld [vmem:[#allocation2 + $0x180] sm:$0xff]
    %v223 = vld [vmem:[#allocation2 + $0x188] sm:$0xff]
    %v224 = vld [vmem:[#allocation2 + $0x190] sm:$0xff]
    %v225 = vld [vmem:[#allocation2 + $0x198] sm:$0xff]
    %v226 = vld [vmem:[#allocation2 + $0x1a0] sm:$0xff]
    %v227 = vld [vmem:[#allocation2 + $0x1a8] sm:$0xff]
    %v228 = vld [vmem:[#allocation2 + $0x1b0] sm:$0xff]
    %v229 = vld [vmem:[#allocation2 + $0x1b8] sm:$0xff]
    %v230 = vld [vmem:[#allocation2 + $0x1c0] sm:$0xff]
    %v231 = vld [vmem:[#allocation2 + $0x1c8] sm:$0xff]
    %v232 = vld [vmem:[#allocation2 + $0x1d0] sm:$0xff]
    %v233 = vld [vmem:[#allocation2 + $0x1d8] sm:$0xff]
    %v234 = vld [vmem:[#allocation2 + $0x1e0] sm:$0xff]
    %v235 = vld [vmem:[#allocation2 + $0x1e8] sm:$0xff]
    %v236 = vld [vmem:[#allocation2 + $0x1f0] sm:$0xff]
    %v237 = vld [vmem:[#allocation2 + $0x1f8] sm:$0xff]
    %v238 = vld [vmem:[#allocation2 + $0x200] sm:$0xff]
    %v239 = vld [vmem:[#allocation2 + $0x208] sm:$0xff]
    %v240 = vld [vmem:[#allocation2 + $0x210] sm:$0xff]
    %v241 = vld [vmem:[#allocation2 + $0x218] sm:$0xff]
    %v242 = vld [vmem:[#allocation2 + $0x220] sm:$0xff]
    %v243 = vld [vmem:[#allocation2 + $0x228] sm:$0xff]
    %v244 = vld [vmem:[#allocation2 + $0x230] sm:$0xff]
    %v245 = vld [vmem:[#allocation2 + $0x238] sm:$0xff]
    %v246 = vld [vmem:[#allocation2 + $0x240] sm:$0xff]
    %v247 = vld [vmem:[#allocation2 + $0x248] sm:$0xff]
    %v248 = vld [vmem:[#allocation2 + $0x250] sm:$0xff]
    %v249 = vld [vmem:[#allocation2 + $0x258] sm:$0xff]
    %v250 = vld [vmem:[#allocation2 + $0x260] sm:$0xff]
    %v251 = vld [vmem:[#allocation2 + $0x268] sm:$0xff]
    %v252 = vld [vmem:[#allocation2 + $0x270] sm:$0xff]
    %v253 = vld [vmem:[#allocation2 + $0x278] sm:$0xff]
    %v254 = vld [vmem:[#allocation2 + $0x280] sm:$0xff]
    %v255 = vld [vmem:[#allocation2 + $0x288] sm:$0xff]
    %v256 = vld [vmem:[#allocation2 + $0x290] sm:$0xff]
    %v257 = vld [vmem:[#allocation2 + $0x298] sm:$0xff]
    %v258 = vld [vmem:[#allocation2 + $0x2a0] sm:$0xff]
    %v259 = vld [vmem:[#allocation2 + $0x2a8] sm:$0xff]
    %v260 = vld [vmem:[#allocation2 + $0x2b0] sm:$0xff]
    %v261 = vld [vmem:[#allocation2 + $0x2b8] sm:$0xff]
    %v262 = vld [vmem:[#allocation2 + $0x2c0] sm:$0xff]
    %v263 = vld [vmem:[#allocation2 + $0x2c8] sm:$0xff]
    %v264 = vld [vmem:[#allocation2 + $0x2d0] sm:$0xff]
    %v265 = vld [vmem:[#allocation2 + $0x2d8] sm:$0xff]
    %v266 = vld [vmem:[#allocation2 + $0x2e0] sm:$0xff]
    %v267 = vld [vmem:[#allocation2 + $0x2e8] sm:$0xff]
    %v268 = vld [vmem:[#allocation2 + $0x2f0] sm:$0xff]
    %v269 = vld [vmem:[#allocation2 + $0x2f8] sm:$0xff]
    %v270 = vld [vmem:[#allocation2 + $0x300] sm:$0xff]
    %v271 = vld [vmem:[#allocation2 + $0x308] sm:$0xff]
    %v272 = vld [vmem:[#allocation2 + $0x310] sm:$0xff]
    %v273 = vld [vmem:[#allocation2 + $0x318] sm:$0xff]
    %v274 = vld [vmem:[#allocation2 + $0x320] sm:$0xff]
    %v275 = vld [vmem:[#allocation2 + $0x328] sm:$0xff]
    %v276 = vld [vmem:[#allocation2 + $0x330] sm:$0xff]
    %v277 = vld [vmem:[#allocation2 + $0x338] sm:$0xff]
    %v278 = vld [vmem:[#allocation2 + $0x340] sm:$0xff]
    %v279 = vld [vmem:[#allocation2 + $0x348] sm:$0xff]
    %v280 = vld [vmem:[#allocation2 + $0x350] sm:$0xff]
    %v281 = vld [vmem:[#allocation2 + $0x358] sm:$0xff]
    %v282 = vld [vmem:[#allocation2 + $0x360] sm:$0xff]
    %v283 = vld [vmem:[#allocation2 + $0x368] sm:$0xff]
    %v284 = vld [vmem:[#allocation2 + $0x370] sm:$0xff]
    %v285 = vld [vmem:[#allocation2 + $0x378] sm:$0xff]
    %v286 = vld [vmem:[#allocation2 + $0x380] sm:$0xff]
    %v287 = vld [vmem:[#allocation2 + $0x388] sm:$0xff]
    %v288 = vld [vmem:[#allocation2 + $0x390] sm:$0xff]
    %v289 = vld [vmem:[#allocation2 + $0x398] sm:$0xff]
    %v290 = vld [vmem:[#allocation2 + $0x3a0] sm:$0xff]
    %v291 = vld [vmem:[#allocation2 + $0x3a8] sm:$0xff]
    %v292 = vld [vmem:[#allocation2 + $0x3b0] sm:$0xff]
    %v293 = vld [vmem:[#allocation2 + $0x3b8] sm:$0xff]
    %v294 = vld [vmem:[#allocation2 + $0x3c0] sm:$0xff]
    %v295 = vld [vmem:[#allocation2 + $0x3c8] sm:$0xff]
    %v296 = vld [vmem:[#allocation2 + $0x3d0] sm:$0xff]
    %v297 = vld [vmem:[#allocation2 + $0x3d8] sm:$0xff]
    %v298 = vld [vmem:[#allocation2 + $0x3e0] sm:$0xff]
    %v299 = vld [vmem:[#allocation2 + $0x3e8] sm:$0xff]
    %v300 = vld [vmem:[#allocation2 + $0x3f0] sm:$0xff]
    %v301 = vld [vmem:[#allocation2 + $0x3f8] sm:$0xff]
    %v302 = vld [vmem:[#allocation2 + $0x400] sm:$0xff]
    %v303 = vld [vmem:[#allocation2 + $0x408] sm:$0xff]
    %v304 = vld [vmem:[#allocation2 + $0x410] sm:$0xff]
    %v305 = vld [vmem:[#allocation2 + $0x418] sm:$0xff]
    %v306 = vld [vmem:[#allocation2 + $0x420] sm:$0xff]
    %v307 = vld [vmem:[#allocation2 + $0x428] sm:$0xff]
    %v308 = vld [vmem:[#allocation2 + $0x430] sm:$0xff]
    %v309 = vld [vmem:[#allocation2 + $0x438] sm:$0xff]
    %v310 = vld [vmem:[#allocation2 + $0x440] sm:$0xff]
    %v311 = vld [vmem:[#allocation2 + $0x448] sm:$0xff]
    %v312 = vld [vmem:[#allocation2 + $0x450] sm:$0xff]
    %v313 = vld [vmem:[#allocation2 + $0x458] sm:$0xff]
    %v314 = vld [vmem:[#allocation2 + $0x460] sm:$0xff]
    %v315 = vld [vmem:[#allocation2 + $0x468] sm:$0xff]
    %v316 = vld [vmem:[#allocation2 + $0x470] sm:$0xff]
    %v317 = vld [vmem:[#allocation2 + $0x478] sm:$0xff]
    %v318 = vld [vmem:[#allocation2 + $0x480] sm:$0xff]
    %v319 = vld [vmem:[#allocation2 + $0x488] sm:$0xff]
    %v320 = vld [vmem:[#allocation2 + $0x490] sm:$0xff]
    %v321 = vld [vmem:[#allocation2 + $0x498] sm:$0xff]
    %v322 = vld [vmem:[#allocation2 + $0x4a0] sm:$0xff]
    %v323 = vld [vmem:[#allocation2 + $0x4a8] sm:$0xff]
    %v324 = vld [vmem:[#allocation2 + $0x4b0] sm:$0xff]
    %v325 = vld [vmem:[#allocation2 + $0x4b8] sm:$0xff]
    %v326 = vld [vmem:[#allocation2 + $0x4c0] sm:$0xff]
    %v327 = vld [vmem:[#allocation2 + $0x4c8] sm:$0xff]
    %v328 = vld [vmem:[#allocation2 + $0x4d0] sm:$0xff]
    %v329 = vld [vmem:[#allocation2 + $0x4d8] sm:$0xff]
    %v330 = vld [vmem:[#allocation2 + $0x4e0] sm:$0xff]
    %v331 = vld [vmem:[#allocation2 + $0x4e8] sm:$0xff]
    %v332 = vld [vmem:[#allocation2 + $0x4f0] sm:$0xff]
    %v333 = vld [vmem:[#allocation2 + $0x4f8] sm:$0xff]
    %v334 = vld [vmem:[#allocation2 + $0x500] sm:$0xff]
    %v335 = vld [vmem:[#allocation2 + $0x508] sm:$0xff]
    %v336 = vld [vmem:[#allocation2 + $0x510] sm:$0xff]
    %v337 = vld [vmem:[#allocation2 + $0x518] sm:$0xff]
    %v338 = vld [vmem:[#allocation2 + $0x520] sm:$0xff]
    %v339 = vld [vmem:[#allocation2 + $0x528] sm:$0xff]
    %v340 = vld [vmem:[#allocation2 + $0x530] sm:$0xff]
    %v341 = vld [vmem:[#allocation2 + $0x538] sm:$0xff]
    %v342 = vld [vmem:[#allocation2 + $0x540] sm:$0xff]
    %v343 = vld [vmem:[#allocation2 + $0x548] sm:$0xff]
    %v344 = vld [vmem:[#allocation2 + $0x550] sm:$0xff]
    %v345 = vld [vmem:[#allocation2 + $0x558] sm:$0xff]
    %v346 = vld [vmem:[#allocation2 + $0x560] sm:$0xff]
    %v347 = vld [vmem:[#allocation2 + $0x568] sm:$0xff]
    %v348 = vld [vmem:[#allocation2 + $0x570] sm:$0xff]
    %v349 = vld [vmem:[#allocation2 + $0x578] sm:$0xff]
    %v350 = vld [vmem:[#allocation2 + $0x580] sm:$0xff]
    %v351 = vld [vmem:[#allocation2 + $0x588] sm:$0xff]
    %v352 = vld [vmem:[#allocation2 + $0x590] sm:$0xff]
    %v353 = vld [vmem:[#allocation2 + $0x598] sm:$0xff]
    %v354 = vld [vmem:[#allocation2 + $0x5a0] sm:$0xff]
    %v355 = vld [vmem:[#allocation2 + $0x5a8] sm:$0xff]
    %v356 = vld [vmem:[#allocation2 + $0x5b0] sm:$0xff]
    %v357 = vld [vmem:[#allocation2 + $0x5b8] sm:$0xff]
    %v358 = vld [vmem:[#allocation2 + $0x5c0] sm:$0xff]
    %v359 = vld [vmem:[#allocation2 + $0x5c8] sm:$0xff]
    %v360 = vld [vmem:[#allocation2 + $0x5d0] sm:$0xff]
    %v361 = vld [vmem:[#allocation2 + $0x5d8] sm:$0xff]
    %v362 = vld [vmem:[#allocation2 + $0x5e0] sm:$0xff]
    %v363 = vld [vmem:[#allocation2 + $0x5e8] sm:$0xff]
    %v364 = vld [vmem:[#allocation2 + $0x5f0] sm:$0xff]
    %v365 = vld [vmem:[#allocation2 + $0x5f8] sm:$0xff]
    %v366 = vld [vmem:[#allocation2 + $0x600] sm:$0xff]
    %v367 = vld [vmem:[#allocation2 + $0x608] sm:$0xff]
    %v368 = vld [vmem:[#allocation2 + $0x610] sm:$0xff]
    %v369 = vld [vmem:[#allocation2 + $0x618] sm:$0xff]
    %v370 = vld [vmem:[#allocation2 + $0x620] sm:$0xff]
    %v371 = vld [vmem:[#allocation2 + $0x628] sm:$0xff]
    %v372 = vld [vmem:[#allocation2 + $0x630] sm:$0xff]
    %v373 = vld [vmem:[#allocation2 + $0x638] sm:$0xff]
    %v374 = vld [vmem:[#allocation2 + $0x640] sm:$0xff]
    %v375 = vld [vmem:[#allocation2 + $0x648] sm:$0xff]
    %v376 = vld [vmem:[#allocation2 + $0x650] sm:$0xff]
    %v377 = vld [vmem:[#allocation2 + $0x658] sm:$0xff]
    %v378 = vld [vmem:[#allocation2 + $0x660] sm:$0xff]
    %v379 = vld [vmem:[#allocation2 + $0x668] sm:$0xff]
    %v380 = vld [vmem:[#allocation2 + $0x670] sm:$0xff]
    %v381 = vld [vmem:[#allocation2 + $0x678] sm:$0xff]
    %v382 = vld [vmem:[#allocation2 + $0x680] sm:$0xff]
    %v383 = vld [vmem:[#allocation2 + $0x688] sm:$0xff]
    %v384 = vld [vmem:[#allocation2 + $0x690] sm:$0xff]
    %v385 = vld [vmem:[#allocation2 + $0x698] sm:$0xff]
    %v386 = vld [vmem:[#allocation2 + $0x6a0] sm:$0xff]
    %v387 = vld [vmem:[#allocation2 + $0x6a8] sm:$0xff]
    %v388 = vld [vmem:[#allocation2 + $0x6b0] sm:$0xff]
    %v389 = vld [vmem:[#allocation2 + $0x6b8] sm:$0xff]
    %v390 = vld [vmem:[#allocation2 + $0x6c0] sm:$0xff]
    %v391 = vld [vmem:[#allocation2 + $0x6c8] sm:$0xff]
    %v392 = vld [vmem:[#allocation2 + $0x6d0] sm:$0xff]
    %v393 = vld [vmem:[#allocation2 + $0x6d8] sm:$0xff]
    %v394 = vld [vmem:[#allocation2 + $0x6e0] sm:$0xff]
    %v395 = vld [vmem:[#allocation2 + $0x6e8] sm:$0xff]
    %v396 = vld [vmem:[#allocation2 + $0x6f0] sm:$0xff]
    %v397 = vld [vmem:[#allocation2 + $0x6f8] sm:$0xff]
    %v398 = vld [vmem:[#allocation2 + $0x700] sm:$0xff]
    %v399 = vld [vmem:[#allocation2 + $0x708] sm:$0xff]
    %v400 = vld [vmem:[#allocation2 + $0x710] sm:$0xff]
    %v401 = vld [vmem:[#allocation2 + $0x718] sm:$0xff]
    %v402 = vld [vmem:[#allocation2 + $0x720] sm:$0xff]
    %v403 = vld [vmem:[#allocation2 + $0x728] sm:$0xff]
    %v404 = vld [vmem:[#allocation2 + $0x730] sm:$0xff]
    %v405 = vld [vmem:[#allocation2 + $0x738] sm:$0xff]
    %v406 = vld [vmem:[#allocation2 + $0x740] sm:$0xff]
    %v407 = vld [vmem:[#allocation2 + $0x748] sm:$0xff]
    %v408 = vld [vmem:[#allocation2 + $0x750] sm:$0xff]
    %v409 = vld [vmem:[#allocation2 + $0x758] sm:$0xff]
    %v410 = vld [vmem:[#allocation2 + $0x760] sm:$0xff]
    %v411 = vld [vmem:[#allocation2 + $0x768] sm:$0xff]
    %v412 = vld [vmem:[#allocation2 + $0x770] sm:$0xff]
    %v413 = vld [vmem:[#allocation2 + $0x778] sm:$0xff]
    %v414 = vld [vmem:[#allocation2 + $0x780] sm:$0xff]
    %v415 = vld [vmem:[#allocation2 + $0x788] sm:$0xff]
    %v416 = vld [vmem:[#allocation2 + $0x790] sm:$0xff]
    %v417 = vld [vmem:[#allocation2 + $0x798] sm:$0xff]
    %v418 = vld [vmem:[#allocation2 + $0x7a0] sm:$0xff]
    %v419 = vld [vmem:[#allocation2 + $0x7a8] sm:$0xff]
    %v420 = vld [vmem:[#allocation2 + $0x7b0] sm:$0xff]
    %v421 = vld [vmem:[#allocation2 + $0x7b8] sm:$0xff]
    %v422 = vld [vmem:[#allocation2 + $0x7c0] sm:$0xff]
    %v423 = vld [vmem:[#allocation2 + $0x7c8] sm:$0xff]
    %v424 = vld [vmem:[#allocation2 + $0x7d0] sm:$0xff]
    %v425 = vld [vmem:[#allocation2 + $0x7d8] sm:$0xff]
    %v426 = vld [vmem:[#allocation2 + $0x7e0] sm:$0xff]
    %v427 = vld [vmem:[#allocation2 + $0x7e8] sm:$0xff]
    %v428 = vld [vmem:[#allocation2 + $0x7f0] sm:$0xff]
    %v429 = vld [vmem:[#allocation2 + $0x7f8] sm:$0xff]
    %v430 = vld [vmem:[#allocation2 + $0x800] sm:$0xff]
    %v431 = vld [vmem:[#allocation2 + $0x808] sm:$0xff]
    %v432 = vld [vmem:[#allocation2 + $0x810] sm:$0xff]
    %v433 = vld [vmem:[#allocation2 + $0x818] sm:$0xff]
    %v434 = vld [vmem:[#allocation2 + $0x820] sm:$0xff]
    %v435 = vld [vmem:[#allocation2 + $0x828] sm:$0xff]
    %v436 = vld [vmem:[#allocation2 + $0x830] sm:$0xff]
    %v437 = vld [vmem:[#allocation2 + $0x838] sm:$0xff]
    %v438 = vld [vmem:[#allocation2 + $0x840] sm:$0xff]
    %v439 = vld [vmem:[#allocation2 + $0x848] sm:$0xff]
    %v440 = vld [vmem:[#allocation2 + $0x850] sm:$0xff]
    %v441 = vld [vmem:[#allocation2 + $0x858] sm:$0xff]
    %v442 = vld [vmem:[#allocation2 + $0x860] sm:$0xff]
    %v443 = vld [vmem:[#allocation2 + $0x868] sm:$0xff]
    %v444 = vld [vmem:[#allocation2 + $0x870] sm:$0xff]
    %v445 = vld [vmem:[#allocation2 + $0x878] sm:$0xff]
    %v446 = vld [vmem:[#allocation2 + $0x880] sm:$0xff]
    %v447 = vld [vmem:[#allocation2 + $0x888] sm:$0xff]
    %v448 = vld [vmem:[#allocation2 + $0x890] sm:$0xff]
    %v449 = vld [vmem:[#allocation2 + $0x898] sm:$0xff]
    %v450 = vld [vmem:[#allocation2 + $0x8a0] sm:$0xff]
    %v451 = vld [vmem:[#allocation2 + $0x8a8] sm:$0xff]
    %v452 = vld [vmem:[#allocation2 + $0x8b0] sm:$0xff]
    %v453 = vld [vmem:[#allocation2 + $0x8b8] sm:$0xff]
    %v454 = vld [vmem:[#allocation2 + $0x8c0] sm:$0xff]
    %v455 = vld [vmem:[#allocation2 + $0x8c8] sm:$0xff]
    %v456 = vld [vmem:[#allocation2 + $0x8d0] sm:$0xff]
    %v457 = vld [vmem:[#allocation2 + $0x8d8] sm:$0xff]
    %v458 = vld [vmem:[#allocation2 + $0x8e0] sm:$0xff]
    %v459 = vld [vmem:[#allocation2 + $0x8e8] sm:$0xff]
    %v460 = vld [vmem:[#allocation2 + $0x8f0] sm:$0xff]
    %v461 = vld [vmem:[#allocation2 + $0x8f8] sm:$0xff]
    %v462 = vld [vmem:[#allocation2 + $0x900] sm:$0xff]
    %v463 = vld [vmem:[#allocation2 + $0x908] sm:$0xff]
    %v464 = vld [vmem:[#allocation2 + $0x910] sm:$0xff]
    %v465 = vld [vmem:[#allocation2 + $0x918] sm:$0xff]
    %v466 = vld [vmem:[#allocation2 + $0x920] sm:$0xff]
    %v467 = vld [vmem:[#allocation2 + $0x928] sm:$0xff]
    %v468 = vld [vmem:[#allocation2 + $0x930] sm:$0xff]
    %v469 = vld [vmem:[#allocation2 + $0x938] sm:$0xff]
    %v470 = vld [vmem:[#allocation2 + $0x940] sm:$0xff]
    %v471 = vld [vmem:[#allocation2 + $0x948] sm:$0xff]
    %v472 = vld [vmem:[#allocation2 + $0x950] sm:$0xff]
    %v473 = vld [vmem:[#allocation2 + $0x958] sm:$0xff]
    %v474 = vld [vmem:[#allocation2 + $0x960] sm:$0xff]
    %v475 = vld [vmem:[#allocation2 + $0x968] sm:$0xff]
    %v476 = vld [vmem:[#allocation2 + $0x970] sm:$0xff]
    %v477 = vld [vmem:[#allocation2 + $0x978] sm:$0xff]
    %v478 = vld [vmem:[#allocation2 + $0x980] sm:$0xff]
    %v479 = vld [vmem:[#allocation2 + $0x988] sm:$0xff]
    %v480 = vld [vmem:[#allocation2 + $0x990] sm:$0xff]
    %v481 = vld [vmem:[#allocation2 + $0x998] sm:$0xff]
    %v482 = vld [vmem:[#allocation2 + $0x9a0] sm:$0xff]
    %v483 = vld [vmem:[#allocation2 + $0x9a8] sm:$0xff]
    %v484 = vld [vmem:[#allocation2 + $0x9b0] sm:$0xff]
    %v485 = vld [vmem:[#allocation2 + $0x9b8] sm:$0xff]
    %v486 = vld [vmem:[#allocation2 + $0x9c0] sm:$0xff]
    %v487 = vld [vmem:[#allocation2 + $0x9c8] sm:$0xff]
    %v488 = vld [vmem:[#allocation2 + $0x9d0] sm:$0xff]
    %v489 = vld [vmem:[#allocation2 + $0x9d8] sm:$0xff]
    %v490 = vld [vmem:[#allocation2 + $0x9e0] sm:$0xff]
    %v491 = vld [vmem:[#allocation2 + $0x9e8] sm:$0xff]
    %v492 = vld [vmem:[#allocation2 + $0x9f0] sm:$0xff]
    %v493 = vld [vmem:[#allocation2 + $0x9f8] sm:$0xff]
    %v494 = vld [vmem:[#allocation2 + $0xa00] sm:$0xff]
    %v495 = vld [vmem:[#allocation2 + $0xa08] sm:$0xff]
    %v496 = vld [vmem:[#allocation2 + $0xa10] sm:$0xff]
    %v497 = vld [vmem:[#allocation2 + $0xa18] sm:$0xff]
    %v498 = vld [vmem:[#allocation2 + $0xa20] sm:$0xff]
    %v499 = vld [vmem:[#allocation2 + $0xa28] sm:$0xff]
    %v500 = vld [vmem:[#allocation2 + $0xa30] sm:$0xff]
    %v501 = vld [vmem:[#allocation2 + $0xa38] sm:$0xff]
    %v502 = vld [vmem:[#allocation2 + $0xa40] sm:$0xff]
    %v503 = vld [vmem:[#allocation2 + $0xa48] sm:$0xff]
    %v504 = vld [vmem:[#allocation2 + $0xa50] sm:$0xff]
    %v505 = vld [vmem:[#allocation2 + $0xa58] sm:$0xff]
    %v506 = vld [vmem:[#allocation2 + $0xa60] sm:$0xff]
    %v507 = vld [vmem:[#allocation2 + $0xa68] sm:$0xff]
    %v508 = vld [vmem:[#allocation2 + $0xa70] sm:$0xff]
    %v509 = vld [vmem:[#allocation2 + $0xa78] sm:$0xff]
    %v510 = vld [vmem:[#allocation2 + $0xa80] sm:$0xff]
    %v511 = vld [vmem:[#allocation2 + $0xa88] sm:$0xff]
    %v512 = vld [vmem:[#allocation2 + $0xa90] sm:$0xff]
    %v513 = vld [vmem:[#allocation2 + $0xa98] sm:$0xff]
    %v514 = vld [vmem:[#allocation2 + $0xaa0] sm:$0xff]
    %v515 = vld [vmem:[#allocation2 + $0xaa8] sm:$0xff]
    %v516 = vld [vmem:[#allocation2 + $0xab0] sm:$0xff]
    %v517 = vld [vmem:[#allocation2 + $0xab8] sm:$0xff]
    %v518 = vld [vmem:[#allocation2 + $0xac0] sm:$0xff]
    %v519 = vld [vmem:[#allocation2 + $0xac8] sm:$0xff]
    %v520 = vld [vmem:[#allocation2 + $0xad0] sm:$0xff]
    %v521 = vld [vmem:[#allocation2 + $0xad8] sm:$0xff]
    %v522 = vld [vmem:[#allocation2 + $0xae0] sm:$0xff]
    %v523 = vld [vmem:[#allocation2 + $0xae8] sm:$0xff]
    %v524 = vld [vmem:[#allocation2 + $0xaf0] sm:$0xff]
    %v525 = vld [vmem:[#allocation2 + $0xaf8] sm:$0xff]
    %v526 = vld [vmem:[#allocation2 + $0xb00] sm:$0xff]
    %v527 = vld [vmem:[#allocation2 + $0xb08] sm:$0xff]
    %v528 = vld [vmem:[#allocation2 + $0xb10] sm:$0xff]
    %v529 = vld [vmem:[#allocation2 + $0xb18] sm:$0xff]
    %v530 = vld [vmem:[#allocation2 + $0xb20] sm:$0xff]
    %v531 = vld [vmem:[#allocation2 + $0xb28] sm:$0xff]
    %v532 = vld [vmem:[#allocation2 + $0xb30] sm:$0xff]
    %v533 = vld [vmem:[#allocation2 + $0xb38] sm:$0xff]
    %v534 = vld [vmem:[#allocation2 + $0xb40] sm:$0xff]
    %v535 = vld [vmem:[#allocation2 + $0xb48] sm:$0xff]
    %v536 = vld [vmem:[#allocation2 + $0xb50] sm:$0xff]
    %v537 = vld [vmem:[#allocation2 + $0xb58] sm:$0xff]
    %v538 = vld [vmem:[#allocation2 + $0xb60] sm:$0xff]
    %v539 = vld [vmem:[#allocation2 + $0xb68] sm:$0xff]
    %v540 = vld [vmem:[#allocation2 + $0xb70] sm:$0xff]
    %v541 = vld [vmem:[#allocation2 + $0xb78] sm:$0xff]
    %v542 = vld [vmem:[#allocation2 + $0xb80] sm:$0xff]
    %v543 = vld [vmem:[#allocation2 + $0xb88] sm:$0xff]
    %v544 = vld [vmem:[#allocation2 + $0xb90] sm:$0xff]
    %v545 = vld [vmem:[#allocation2 + $0xb98] sm:$0xff]
    %v546 = vld [vmem:[#allocation2 + $0xba0] sm:$0xff]
    %v547 = vld [vmem:[#allocation2 + $0xba8] sm:$0xff]
    %v548 = vld [vmem:[#allocation2 + $0xbb0] sm:$0xff]
    %v549 = vld [vmem:[#allocation2 + $0xbb8] sm:$0xff]
    %v550 = vld [vmem:[#allocation2 + $0xbc0] sm:$0xff]
    %v551 = vld [vmem:[#allocation2 + $0xbc8] sm:$0xff]
    %v552 = vld [vmem:[#allocation2 + $0xbd0] sm:$0xff]
    %v553 = vld [vmem:[#allocation2 + $0xbd8] sm:$0xff]
    %v554 = vld [vmem:[#allocation2 + $0xbe0] sm:$0xff]
    %v555 = vld [vmem:[#allocation2 + $0xbe8] sm:$0xff]
    %v556 = vld [vmem:[#allocation2 + $0xbf0] sm:$0xff]
    %v557 = vld [vmem:[#allocation2 + $0xbf8] sm:$0xff]
    %v558 = vld [vmem:[#allocation2 + $0xc00] sm:$0xff]
    %v559 = vld [vmem:[#allocation2 + $0xc08] sm:$0xff]
    %v560 = vld [vmem:[#allocation2 + $0xc10] sm:$0xff]
    %v561 = vld [vmem:[#allocation2 + $0xc18] sm:$0xff]
    %v562 = vld [vmem:[#allocation2 + $0xc20] sm:$0xff]
    %v563 = vld [vmem:[#allocation2 + $0xc28] sm:$0xff]
    %v564 = vld [vmem:[#allocation2 + $0xc30] sm:$0xff]
    %v565 = vld [vmem:[#allocation2 + $0xc38] sm:$0xff]
    %v566 = vld [vmem:[#allocation2 + $0xc40] sm:$0xff]
    %v567 = vld [vmem:[#allocation2 + $0xc48] sm:$0xff]
    %v568 = vld [vmem:[#allocation2 + $0xc50] sm:$0xff]
    %v569 = vld [vmem:[#allocation2 + $0xc58] sm:$0xff]
    %v570 = vld [vmem:[#allocation2 + $0xc60] sm:$0xff]
    %v571 = vld [vmem:[#allocation2 + $0xc68] sm:$0xff]
    %v572 = vld [vmem:[#allocation2 + $0xc70] sm:$0xff]
    %v573 = vld [vmem:[#allocation2 + $0xc78] sm:$0xff]
    %v574 = vld [vmem:[#allocation2 + $0xc80] sm:$0xff]
    %v575 = vld [vmem:[#allocation2 + $0xc88] sm:$0xff]
    %v576 = vld [vmem:[#allocation2 + $0xc90] sm:$0xff]
    %v577 = vld [vmem:[#allocation2 + $0xc98] sm:$0xff]
    %v578 = vld [vmem:[#allocation2 + $0xca0] sm:$0xff]
    %v579 = vld [vmem:[#allocation2 + $0xca8] sm:$0xff]
    %v580 = vld [vmem:[#allocation2 + $0xcb0] sm:$0xff]
    %v581 = vld [vmem:[#allocation2 + $0xcb8] sm:$0xff]
    %v582 = vld [vmem:[#allocation2 + $0xcc0] sm:$0xff]
    %v583 = vld [vmem:[#allocation2 + $0xcc8] sm:$0xff]
    %v584 = vld [vmem:[#allocation2 + $0xcd0] sm:$0xff]
    %v585 = vld [vmem:[#allocation2 + $0xcd8] sm:$0xff]
    %v586 = vld [vmem:[#allocation2 + $0xce0] sm:$0xff]
    %v587 = vld [vmem:[#allocation2 + $0xce8] sm:$0xff]
    %v588 = vld [vmem:[#allocation2 + $0xcf0] sm:$0xff]
    %v589 = vld [vmem:[#allocation2 + $0xcf8] sm:$0xff]
    %v590 = vld [vmem:[#allocation2 + $0xd00] sm:$0xff]
    %v591 = vld [vmem:[#allocation2 + $0xd08] sm:$0xff]
    %v592 = vld [vmem:[#allocation2 + $0xd10] sm:$0xff]
    %v593 = vld [vmem:[#allocation2 + $0xd18] sm:$0xff]
    %v594 = vld [vmem:[#allocation2 + $0xd20] sm:$0xff]
    %v595 = vld [vmem:[#allocation2 + $0xd28] sm:$0xff]
    %v596 = vld [vmem:[#allocation2 + $0xd30] sm:$0xff]
    %v597 = vld [vmem:[#allocation2 + $0xd38] sm:$0xff]
    %v598 = vld [vmem:[#allocation2 + $0xd40] sm:$0xff]
    %v599 = vld [vmem:[#allocation2 + $0xd48] sm:$0xff]
    %v600 = vld [vmem:[#allocation2 + $0xd50] sm:$0xff]
    %v601 = vld [vmem:[#allocation2 + $0xd58] sm:$0xff]
    %v602 = vld [vmem:[#allocation2 + $0xd60] sm:$0xff]
    %v603 = vld [vmem:[#allocation2 + $0xd68] sm:$0xff]
    %v604 = vld [vmem:[#allocation2 + $0xd70] sm:$0xff]
    %v605 = vld [vmem:[#allocation2 + $0xd78] sm:$0xff]
    %v606 = vld [vmem:[#allocation2 + $0xd80] sm:$0xff]
    %v607 = vld [vmem:[#allocation2 + $0xd88] sm:$0xff]
    %v608 = vld [vmem:[#allocation2 + $0xd90] sm:$0xff]
    %v609 = vld [vmem:[#allocation2 + $0xd98] sm:$0xff]
    %v610 = vld [vmem:[#allocation2 + $0xda0] sm:$0xff]
    %v611 = vld [vmem:[#allocation2 + $0xda8] sm:$0xff]
    %v612 = vld [vmem:[#allocation2 + $0xdb0] sm:$0xff]
    %v613 = vld [vmem:[#allocation2 + $0xdb8] sm:$0xff]
    %v614 = vld [vmem:[#allocation2 + $0xdc0] sm:$0xff]
    %v615 = vld [vmem:[#allocation2 + $0xdc8] sm:$0xff]
    %v616 = vld [vmem:[#allocation2 + $0xdd0] sm:$0xff]
    %v617 = vld [vmem:[#allocation2 + $0xdd8] sm:$0xff]
    %v618 = vld [vmem:[#allocation2 + $0xde0] sm:$0xff]
    %v619 = vld [vmem:[#allocation2 + $0xde8] sm:$0xff]
    %v620 = vld [vmem:[#allocation2 + $0xdf0] sm:$0xff]
    %v621 = vld [vmem:[#allocation2 + $0xdf8] sm:$0xff]
    %v622 = vld [vmem:[#allocation2 + $0xe00] sm:$0xff]
    %v623 = vld [vmem:[#allocation2 + $0xe08] sm:$0xff]
    %v624 = vld [vmem:[#allocation2 + $0xe10] sm:$0xff]
    %v625 = vld [vmem:[#allocation2 + $0xe18] sm:$0xff]
    %v626 = vld [vmem:[#allocation2 + $0xe20] sm:$0xff]
    %v627 = vld [vmem:[#allocation2 + $0xe28] sm:$0xff]
    %v628 = vld [vmem:[#allocation2 + $0xe30] sm:$0xff]
    %v629 = vld [vmem:[#allocation2 + $0xe38] sm:$0xff]
    %v630 = vld [vmem:[#allocation2 + $0xe40] sm:$0xff]
    %v631 = vld [vmem:[#allocation2 + $0xe48] sm:$0xff]
    %v632 = vld [vmem:[#allocation2 + $0xe50] sm:$0xff]
    %v633 = vld [vmem:[#allocation2 + $0xe58] sm:$0xff]
    %v634 = vld [vmem:[#allocation2 + $0xe60] sm:$0xff]
    %v635 = vld [vmem:[#allocation2 + $0xe68] sm:$0xff]
    %v636 = vld [vmem:[#allocation2 + $0xe70] sm:$0xff]
    %v637 = vld [vmem:[#allocation2 + $0xe78] sm:$0xff]
    %v638 = vld [vmem:[#allocation2 + $0xe80] sm:$0xff]
    %v639 = vld [vmem:[#allocation2 + $0xe88] sm:$0xff]
    %v640 = vld [vmem:[#allocation2 + $0xe90] sm:$0xff]
    %v641 = vld [vmem:[#allocation2 + $0xe98] sm:$0xff]
    %v642 = vld [vmem:[#allocation2 + $0xea0] sm:$0xff]
    %v643 = vld [vmem:[#allocation2 + $0xea8] sm:$0xff]
    %v644 = vld [vmem:[#allocation2 + $0xeb0] sm:$0xff]
    %v645 = vld [vmem:[#allocation2 + $0xeb8] sm:$0xff]
    %v646 = vld [vmem:[#allocation2 + $0xec0] sm:$0xff]
    %v647 = vld [vmem:[#allocation2 + $0xec8] sm:$0xff]
    %v648 = vld [vmem:[#allocation2 + $0xed0] sm:$0xff]
    %v649 = vld [vmem:[#allocation2 + $0xed8] sm:$0xff]
    %v650 = vld [vmem:[#allocation2 + $0xee0] sm:$0xff]
    %v651 = vld [vmem:[#allocation2 + $0xee8] sm:$0xff]
    %v652 = vld [vmem:[#allocation2 + $0xef0] sm:$0xff]
    %v653 = vld [vmem:[#allocation2 + $0xef8] sm:$0xff]
    %v654 = vld [vmem:[#allocation2 + $0xf00] sm:$0xff]
    %v655 = vld [vmem:[#allocation2 + $0xf08] sm:$0xff]
    %v656 = vld [vmem:[#allocation2 + $0xf10] sm:$0xff]
    %v657 = vld [vmem:[#allocation2 + $0xf18] sm:$0xff]
    %v658 = vld [vmem:[#allocation2 + $0xf20] sm:$0xff]
    %v659 = vld [vmem:[#allocation2 + $0xf28] sm:$0xff]
    %v660 = vld [vmem:[#allocation2 + $0xf30] sm:$0xff]
    %v661 = vld [vmem:[#allocation2 + $0xf38] sm:$0xff]
    %v662 = vld [vmem:[#allocation2 + $0xf40] sm:$0xff]
    %v663 = vld [vmem:[#allocation2 + $0xf48] sm:$0xff]
    %v664 = vld [vmem:[#allocation2 + $0xf50] sm:$0xff]
    %v665 = vld [vmem:[#allocation2 + $0xf58] sm:$0xff]
    %v666 = vld [vmem:[#allocation2 + $0xf60] sm:$0xff]
    %v667 = vld [vmem:[#allocation2 + $0xf68] sm:$0xff]
    %v668 = vld [vmem:[#allocation2 + $0xf70] sm:$0xff]
    %v669 = vld [vmem:[#allocation2 + $0xf78] sm:$0xff]
    %v670 = vld [vmem:[#allocation2 + $0xf80] sm:$0xff]
    %v671 = vld [vmem:[#allocation2 + $0xf88] sm:$0xff]
    %v672 = vld [vmem:[#allocation2 + $0xf90] sm:$0xff]
    %v673 = vld [vmem:[#allocation2 + $0xf98] sm:$0xff]
    %v674 = vld [vmem:[#allocation2 + $0xfa0] sm:$0xff]
    %v675 = vld [vmem:[#allocation2 + $0xfa8] sm:$0xff]
    %v676 = vld [vmem:[#allocation2 + $0xfb0] sm:$0xff]
    %v677 = vld [vmem:[#allocation2 + $0xfb8] sm:$0xff]
    %v678 = vld [vmem:[#allocation2 + $0xfc0] sm:$0xff]
    %v679 = vld [vmem:[#allocation2 + $0xfc8] sm:$0xff]
    %v680 = vld [vmem:[#allocation2 + $0xfd0] sm:$0xff]
    %v681 = vld [vmem:[#allocation2 + $0xfd8] sm:$0xff]
    %v682 = vld [vmem:[#allocation2 + $0xfe0] sm:$0xff]
    %v683 = vld [vmem:[#allocation2 + $0xfe8] sm:$0xff]
    %v684 = vld [vmem:[#allocation2 + $0xff0] sm:$0xff]
    %v685 = vld [vmem:[#allocation2 + $0xff8] sm:$0xff]
    %v686 = vld [vmem:[#allocation2 + $0x1000] sm:$0xff]
    %v687 = vld [vmem:[#allocation2 + $0x1008] sm:$0xff]
    %v688 = vld [vmem:[#allocation2 + $0x1010] sm:$0xff]
    %v689 = vld [vmem:[#allocation2 + $0x1018] sm:$0xff]
    %v690 = vld [vmem:[#allocation2 + $0x1020] sm:$0xff]
    %v691 = vld [vmem:[#allocation2 + $0x1028] sm:$0xff]
    %v692 = vld [vmem:[#allocation2 + $0x1030] sm:$0xff]
    %v693 = vld [vmem:[#allocation2 + $0x1038] sm:$0xff]
    %v694 = vld [vmem:[#allocation2 + $0x1040] sm:$0xff]
    %v695 = vld [vmem:[#allocation2 + $0x1048] sm:$0xff]
    %v696 = vld [vmem:[#allocation2 + $0x1050] sm:$0xff]
    %v697 = vld [vmem:[#allocation2 + $0x1058] sm:$0xff]
    %v698 = vld [vmem:[#allocation2 + $0x1060] sm:$0xff]
    %v699 = vld [vmem:[#allocation2 + $0x1068] sm:$0xff]
    %v700 = vld [vmem:[#allocation2 + $0x1070] sm:$0xff]
    %v701 = vld [vmem:[#allocation2 + $0x1078] sm:$0xff]
    %v702 = vld [vmem:[#allocation2 + $0x1080] sm:$0xff]
    %v703 = vld [vmem:[#allocation2 + $0x1088] sm:$0xff]
    %v704 = vld [vmem:[#allocation2 + $0x1090] sm:$0xff]
    %v705 = vld [vmem:[#allocation2 + $0x1098] sm:$0xff]
    %v706 = vld [vmem:[#allocation2 + $0x10a0] sm:$0xff]
    %v707 = vld [vmem:[#allocation2 + $0x10a8] sm:$0xff]
    %v708 = vld [vmem:[#allocation2 + $0x10b0] sm:$0xff]
    %v709 = vld [vmem:[#allocation2 + $0x10b8] sm:$0xff]
    %v710 = vld [vmem:[#allocation2 + $0x10c0] sm:$0xff]
    %v711 = vld [vmem:[#allocation2 + $0x10c8] sm:$0xff]
    %v712 = vld [vmem:[#allocation2 + $0x10d0] sm:$0xff]
    %v713 = vld [vmem:[#allocation2 + $0x10d8] sm:$0xff]
    %v714 = vld [vmem:[#allocation2 + $0x10e0] sm:$0xff]
    %v715 = vld [vmem:[#allocation2 + $0x10e8] sm:$0xff]
    %v716 = vld [vmem:[#allocation2 + $0x10f0] sm:$0xff]
    %v717 = vld [vmem:[#allocation2 + $0x10f8] sm:$0xff]
    %v718 = vld [vmem:[#allocation2 + $0x1100] sm:$0xff]
    %v719 = vld [vmem:[#allocation2 + $0x1108] sm:$0xff]
    %v720 = vld [vmem:[#allocation2 + $0x1110] sm:$0xff]
    %v721 = vld [vmem:[#allocation2 + $0x1118] sm:$0xff]
    %v722 = vld [vmem:[#allocation2 + $0x1120] sm:$0xff]
    %v723 = vld [vmem:[#allocation2 + $0x1128] sm:$0xff]
    %v724 = vld [vmem:[#allocation2 + $0x1130] sm:$0xff]
    %v725 = vld [vmem:[#allocation2 + $0x1138] sm:$0xff]
    %v726 = vld [vmem:[#allocation2 + $0x1140] sm:$0xff]
    %v727 = vld [vmem:[#allocation2 + $0x1148] sm:$0xff]
    %v728 = vld [vmem:[#allocation2 + $0x1150] sm:$0xff]
    %v729 = vld [vmem:[#allocation2 + $0x1158] sm:$0xff]
    %v730 = vld [vmem:[#allocation2 + $0x1160] sm:$0xff]
    %v731 = vld [vmem:[#allocation2 + $0x1168] sm:$0xff]
    %v732 = vld [vmem:[#allocation2 + $0x1170] sm:$0xff]
    %v733 = vld [vmem:[#allocation2 + $0x1178] sm:$0xff]
    %v734 = vld [vmem:[#allocation2 + $0x1180] sm:$0xff]
    %v735 = vld [vmem:[#allocation2 + $0x1188] sm:$0xff]
    %v736 = vld [vmem:[#allocation2 + $0x1190] sm:$0xff]
    %v737 = vld [vmem:[#allocation2 + $0x1198] sm:$0xff]
    %v738 = vld [vmem:[#allocation2 + $0x11a0] sm:$0xff]
    %v739 = vld [vmem:[#allocation2 + $0x11a8] sm:$0xff]
    %v740 = vld [vmem:[#allocation2 + $0x11b0] sm:$0xff]
    %v741 = vld [vmem:[#allocation2 + $0x11b8] sm:$0xff]
    %v742 = vld [vmem:[#allocation2 + $0x11c0] sm:$0xff]
    %v743 = vld [vmem:[#allocation2 + $0x11c8] sm:$0xff]
    %v744 = vld [vmem:[#allocation2 + $0x11d0] sm:$0xff]
    %v745 = vld [vmem:[#allocation2 + $0x11d8] sm:$0xff]
    %v746 = vld [vmem:[#allocation2 + $0x11e0] sm:$0xff]
    %v747 = vld [vmem:[#allocation2 + $0x11e8] sm:$0xff]
    %v748 = vld [vmem:[#allocation2 + $0x11f0] sm:$0xff]
    %v749 = vld [vmem:[#allocation2 + $0x11f8] sm:$0xff]
    %v750 = vld [vmem:[#allocation2 + $0x1200] sm:$0xff]
    %v751 = vld [vmem:[#allocation2 + $0x1208] sm:$0xff]
    %v752 = vld [vmem:[#allocation2 + $0x1210] sm:$0xff]
    %v753 = vld [vmem:[#allocation2 + $0x1218] sm:$0xff]
    %v754 = vld [vmem:[#allocation2 + $0x1220] sm:$0xff]
    %v755 = vld [vmem:[#allocation2 + $0x1228] sm:$0xff]
    %v756 = vld [vmem:[#allocation2 + $0x1230] sm:$0xff]
    %v757 = vld [vmem:[#allocation2 + $0x1238] sm:$0xff]
    %v758 = vld [vmem:[#allocation2 + $0x1240] sm:$0xff]
    %v759 = vld [vmem:[#allocation2 + $0x1248] sm:$0xff]
    %v760 = vld [vmem:[#allocation2 + $0x1250] sm:$0xff]
    %v761 = vld [vmem:[#allocation2 + $0x1258] sm:$0xff]
    %v762 = vld [vmem:[#allocation2 + $0x1260] sm:$0xff]
    %v763 = vld [vmem:[#allocation2 + $0x1268] sm:$0xff]
    %v764 = vld [vmem:[#allocation2 + $0x1270] sm:$0xff]
    %v765 = vld [vmem:[#allocation2 + $0x1278] sm:$0xff]
    %v766 = vld [vmem:[#allocation2 + $0x1280] sm:$0xff]
    %v767 = vld [vmem:[#allocation2 + $0x1288] sm:$0xff]
    %v768 = vld [vmem:[#allocation2 + $0x1290] sm:$0xff]
    %v769 = vld [vmem:[#allocation2 + $0x1298] sm:$0xff]
    %v770 = vld [vmem:[#allocation2 + $0x12a0] sm:$0xff]
    %v771 = vld [vmem:[#allocation2 + $0x12a8] sm:$0xff]
    %v772 = vld [vmem:[#allocation2 + $0x12b0] sm:$0xff]
    %v773 = vld [vmem:[#allocation2 + $0x12b8] sm:$0xff]
    %v774 = vld [vmem:[#allocation2 + $0x12c0] sm:$0xff]
    %v775 = vld [vmem:[#allocation2 + $0x12c8] sm:$0xff]
    %v776 = vld [vmem:[#allocation2 + $0x12d0] sm:$0xff]
    %v777 = vld [vmem:[#allocation2 + $0x12d8] sm:$0xff]
    %v778 = vld [vmem:[#allocation2 + $0x12e0] sm:$0xff]
    %v779 = vld [vmem:[#allocation2 + $0x12e8] sm:$0xff]
    %v780 = vld [vmem:[#allocation2 + $0x12f0] sm:$0xff]
    %v781 = vld [vmem:[#allocation2 + $0x12f8] sm:$0xff]
    %v782 = vld [vmem:[#allocation4] sm:$0xf]
    %v784 = vperm.slane %v782, 0
    %v785 = vperm.slane %v782, 1
    %v786 = vperm.slane %v782, 2
    %v787 = vperm.slane %v782, 3
    %v812 = vunpack.c.l.b16 %v154
    %v813 = vunpack.c.h.b16 %v154
    %v814 = vunpack.c.l.b16 %v155
    %v815 = vunpack.c.h.b16 %v155
    %v816 = vunpack.c.l.b16 %v156
    %v817 = vunpack.c.h.b16 %v156
    %v818 = vunpack.c.l.b16 %v157
    %v819 = vunpack.c.h.b16 %v157
    %v820 = vunpack.c.l.b16 %v158
    %v821 = vunpack.c.h.b16 %v158
    %v822 = vunpack.c.l.b16 %v159
    %v823 = vunpack.c.h.b16 %v159
    %v824 = vunpack.c.l.b16 %v160
    %v825 = vunpack.c.h.b16 %v160
    %v826 = vunpack.c.l.b16 %v161
    %v827 = vunpack.c.h.b16 %v161
    %v828 = vunpack.c.l.b16 %v162
    %v829 = vunpack.c.h.b16 %v162
    %v830 = vunpack.c.l.b16 %v163
    %v831 = vunpack.c.l.b16 %v164
    %v832 = vunpack.c.h.b16 %v164
    %v833 = vunpack.c.l.b16 %v165
    %v834 = vunpack.c.h.b16 %v165
    %v835 = vunpack.c.l.b16 %v166
    %v836 = vunpack.c.h.b16 %v166
    %v837 = vunpack.c.l.b16 %v167
    %v838 = vunpack.c.h.b16 %v167
    %v839 = vunpack.c.l.b16 %v168
    %v840 = vunpack.c.h.b16 %v168
    %v841 = vunpack.c.l.b16 %v169
    %v842 = vunpack.c.h.b16 %v169
    %v843 = vunpack.c.l.b16 %v170
    %v844 = vunpack.c.h.b16 %v170
    %v845 = vunpack.c.l.b16 %v171
    %v846 = vunpack.c.h.b16 %v171
    %v847 = vunpack.c.l.b16 %v172
    %v848 = vunpack.c.h.b16 %v172
    %v849 = vunpack.c.l.b16 %v173
    %v850 = vpack.c.b16 %v831, %v812
    %v851 = vpack.c.b16 %v832, %v813
    %v852 = vpack.c.b16 %v833, %v814
    %v853 = vpack.c.b16 %v834, %v815
    %v854 = vpack.c.b16 %v835, %v816
    %v855 = vpack.c.b16 %v836, %v817
    %v856 = vpack.c.b16 %v837, %v818
    %v857 = vpack.c.b16 %v838, %v819
    %v858 = vpack.c.b16 %v839, %v820
    %v859 = vpack.c.b16 %v840, %v821
    %v860 = vpack.c.b16 %v841, %v822
    %v861 = vpack.c.b16 %v842, %v823
    %v862 = vpack.c.b16 %v843, %v824
    %v863 = vpack.c.b16 %v844, %v825
    %v864 = vpack.c.b16 %v845, %v826
    %v865 = vpack.c.b16 %v846, %v827
    %v866 = vpack.c.b16 %v847, %v828
    %v867 = vpack.c.b16 %v848, %v829
    %v868 = vpack.c.b16 %v849, %v830
    %v1496 = vunpack.c.l.b16 %v174
    %v1497 = vunpack.c.h.b16 %v174
    %v1498 = vunpack.c.l.b16 %v175
    %v1499 = vunpack.c.h.b16 %v175
    %v1500 = vunpack.c.l.b16 %v176
    %v1501 = vunpack.c.h.b16 %v176
    %v1502 = vunpack.c.l.b16 %v177
    %v1503 = vunpack.c.h.b16 %v177
    %v1504 = vunpack.c.l.b16 %v178
    %v1505 = vunpack.c.h.b16 %v178
    %v1506 = vunpack.c.l.b16 %v179
    %v1507 = vunpack.c.h.b16 %v179
    %v1508 = vunpack.c.l.b16 %v180
    %v1509 = vunpack.c.h.b16 %v180
    %v1510 = vunpack.c.l.b16 %v181
    %v1511 = vunpack.c.h.b16 %v181
    %v1512 = vunpack.c.l.b16 %v182
    %v1513 = vunpack.c.h.b16 %v182
    %v1514 = vunpack.c.l.b16 %v183
    %v1515 = vunpack.c.h.b16 %v183
    %v1516 = vunpack.c.l.b16 %v184
    %v1517 = vunpack.c.h.b16 %v184
    %v1518 = vunpack.c.l.b16 %v185
    %v1519 = vunpack.c.h.b16 %v185
    %v1520 = vunpack.c.l.b16 %v186
    %v1521 = vunpack.c.h.b16 %v186
    %v1522 = vunpack.c.l.b16 %v187
    %v1523 = vunpack.c.h.b16 %v187
    %v1524 = vunpack.c.l.b16 %v188
    %v1525 = vunpack.c.h.b16 %v188
    %v1526 = vunpack.c.l.b16 %v189
    %v1527 = vunpack.c.h.b16 %v189
    %v1528 = vunpack.c.l.b16 %v190
    %v1529 = vunpack.c.h.b16 %v190
    %v1530 = vunpack.c.l.b16 %v191
    %v1531 = vunpack.c.h.b16 %v191
    %v1532 = vunpack.c.l.b16 %v192
    %v1533 = vunpack.c.h.b16 %v192
    %v1534 = vunpack.c.l.b16 %v193
    %v1535 = vunpack.c.h.b16 %v193
    %v1536 = vunpack.c.l.b16 %v194
    %v1537 = vunpack.c.h.b16 %v194
    %v1538 = vunpack.c.l.b16 %v195
    %v1539 = vunpack.c.h.b16 %v195
    %v1540 = vunpack.c.l.b16 %v196
    %v1541 = vunpack.c.h.b16 %v196
    %v1542 = vunpack.c.l.b16 %v197
    %v1543 = vunpack.c.h.b16 %v197
    %v1544 = vunpack.c.l.b16 %v198
    %v1545 = vunpack.c.h.b16 %v198
    %v1546 = vunpack.c.l.b16 %v199
    %v1547 = vunpack.c.h.b16 %v199
    %v1548 = vunpack.c.l.b16 %v200
    %v1549 = vunpack.c.h.b16 %v200
    %v1550 = vunpack.c.l.b16 %v201
    %v1551 = vunpack.c.h.b16 %v201
    %v1552 = vunpack.c.l.b16 %v202
    %v1553 = vunpack.c.h.b16 %v202
    %v1554 = vunpack.c.l.b16 %v203
    %v1555 = vunpack.c.h.b16 %v203
    %v1556 = vunpack.c.l.b16 %v204
    %v1557 = vunpack.c.h.b16 %v204
    %v1558 = vunpack.c.l.b16 %v205
    %v1559 = vunpack.c.h.b16 %v205
    %v1560 = vunpack.c.l.b16 %v206
    %v1561 = vunpack.c.h.b16 %v206
    %v1562 = vunpack.c.l.b16 %v207
    %v1563 = vunpack.c.h.b16 %v207
    %v1564 = vunpack.c.l.b16 %v208
    %v1565 = vunpack.c.h.b16 %v208
    %v1566 = vunpack.c.l.b16 %v209
    %v1567 = vunpack.c.h.b16 %v209
    %v1568 = vunpack.c.l.b16 %v210
    %v1569 = vunpack.c.h.b16 %v210
    %v1570 = vunpack.c.l.b16 %v211
    %v1571 = vunpack.c.h.b16 %v211
    %v1572 = vunpack.c.l.b16 %v212
    %v1573 = vunpack.c.h.b16 %v212
    %v1574 = vunpack.c.l.b16 %v213
    %v1575 = vunpack.c.h.b16 %v213
    %v1576 = vunpack.c.l.b16 %v214
    %v1577 = vunpack.c.h.b16 %v214
    %v1578 = vunpack.c.l.b16 %v215
    %v1579 = vunpack.c.h.b16 %v215
    %v1580 = vunpack.c.l.b16 %v216
    %v1581 = vunpack.c.h.b16 %v216
    %v1582 = vunpack.c.l.b16 %v217
    %v1583 = vunpack.c.h.b16 %v217
    %v1584 = vunpack.c.l.b16 %v218
    %v1585 = vunpack.c.h.b16 %v218
    %v1586 = vunpack.c.l.b16 %v219
    %v1587 = vunpack.c.h.b16 %v219
    %v1588 = vunpack.c.l.b16 %v220
    %v1589 = vunpack.c.h.b16 %v220
    %v1590 = vunpack.c.l.b16 %v221
    %v1591 = vunpack.c.h.b16 %v221
    %v1592 = vunpack.c.l.b16 %v222
    %v1593 = vunpack.c.h.b16 %v222
    %v1594 = vunpack.c.l.b16 %v223
    %v1595 = vunpack.c.h.b16 %v223
    %v1596 = vunpack.c.l.b16 %v224
    %v1597 = vunpack.c.h.b16 %v224
    %v1598 = vunpack.c.l.b16 %v225
    %v1599 = vunpack.c.h.b16 %v225
    %v1600 = vunpack.c.l.b16 %v226
    %v1601 = vunpack.c.h.b16 %v226
    %v1602 = vunpack.c.l.b16 %v227
    %v1603 = vunpack.c.h.b16 %v227
    %v1604 = vunpack.c.l.b16 %v228
    %v1605 = vunpack.c.h.b16 %v228
    %v1606 = vunpack.c.l.b16 %v229
    %v1607 = vunpack.c.h.b16 %v229
    %v1608 = vunpack.c.l.b16 %v230
    %v1609 = vunpack.c.h.b16 %v230
    %v1610 = vunpack.c.l.b16 %v231
    %v1611 = vunpack.c.h.b16 %v231
    %v1612 = vunpack.c.l.b16 %v232
    %v1613 = vunpack.c.h.b16 %v232
    %v1614 = vunpack.c.l.b16 %v233
    %v1615 = vunpack.c.h.b16 %v233
    %v1616 = vunpack.c.l.b16 %v234
    %v1617 = vunpack.c.h.b16 %v234
    %v1618 = vunpack.c.l.b16 %v235
    %v1619 = vunpack.c.h.b16 %v235
    %v1620 = vunpack.c.l.b16 %v236
    %v1621 = vunpack.c.h.b16 %v236
    %v1622 = vunpack.c.l.b16 %v237
    %v1623 = vunpack.c.h.b16 %v237
    %v1624 = vunpack.c.l.b16 %v238
    %v1625 = vunpack.c.h.b16 %v238
    %v1626 = vunpack.c.l.b16 %v239
    %v1627 = vunpack.c.h.b16 %v239
    %v1628 = vunpack.c.l.b16 %v240
    %v1629 = vunpack.c.h.b16 %v240
    %v1630 = vunpack.c.l.b16 %v241
    %v1631 = vunpack.c.h.b16 %v241
    %v1632 = vunpack.c.l.b16 %v242
    %v1633 = vunpack.c.h.b16 %v242
    %v1634 = vunpack.c.l.b16 %v243
    %v1635 = vunpack.c.h.b16 %v243
    %v1636 = vunpack.c.l.b16 %v244
    %v1637 = vunpack.c.h.b16 %v244
    %v1638 = vunpack.c.l.b16 %v245
    %v1639 = vunpack.c.h.b16 %v245
    %v1640 = vunpack.c.l.b16 %v246
    %v1641 = vunpack.c.h.b16 %v246
    %v1642 = vunpack.c.l.b16 %v247
    %v1643 = vunpack.c.h.b16 %v247
    %v1644 = vunpack.c.l.b16 %v248
    %v1645 = vunpack.c.h.b16 %v248
    %v1646 = vunpack.c.l.b16 %v249
    %v1647 = vunpack.c.h.b16 %v249
    %v1648 = vunpack.c.l.b16 %v250
    %v1649 = vunpack.c.h.b16 %v250
    %v1650 = vunpack.c.l.b16 %v251
    %v1651 = vunpack.c.h.b16 %v251
    %v1652 = vunpack.c.l.b16 %v252
    %v1653 = vunpack.c.h.b16 %v252
    %v1654 = vunpack.c.l.b16 %v253
    %v1655 = vunpack.c.h.b16 %v253
    %v1656 = vunpack.c.l.b16 %v254
    %v1657 = vunpack.c.h.b16 %v254
    %v1658 = vunpack.c.l.b16 %v255
    %v1659 = vunpack.c.h.b16 %v255
    %v1660 = vunpack.c.l.b16 %v256
    %v1661 = vunpack.c.h.b16 %v256
    %v1662 = vunpack.c.l.b16 %v257
    %v1663 = vunpack.c.h.b16 %v257
    %v1664 = vunpack.c.l.b16 %v258
    %v1665 = vunpack.c.h.b16 %v258
    %v1666 = vunpack.c.l.b16 %v259
    %v1667 = vunpack.c.h.b16 %v259
    %v1668 = vunpack.c.l.b16 %v260
    %v1669 = vunpack.c.h.b16 %v260
    %v1670 = vunpack.c.l.b16 %v261
    %v1671 = vunpack.c.h.b16 %v261
    %v1672 = vunpack.c.l.b16 %v262
    %v1673 = vunpack.c.h.b16 %v262
    %v1674 = vunpack.c.l.b16 %v263
    %v1675 = vunpack.c.h.b16 %v263
    %v1676 = vunpack.c.l.b16 %v264
    %v1677 = vunpack.c.h.b16 %v264
    %v1678 = vunpack.c.l.b16 %v265
    %v1679 = vunpack.c.h.b16 %v265
    %v1680 = vunpack.c.l.b16 %v266
    %v1681 = vunpack.c.h.b16 %v266
    %v1682 = vunpack.c.l.b16 %v267
    %v1683 = vunpack.c.h.b16 %v267
    %v1684 = vunpack.c.l.b16 %v268
    %v1685 = vunpack.c.h.b16 %v268
    %v1686 = vunpack.c.l.b16 %v269
    %v1687 = vunpack.c.h.b16 %v269
    %v1688 = vunpack.c.l.b16 %v270
    %v1689 = vunpack.c.h.b16 %v270
    %v1690 = vunpack.c.l.b16 %v271
    %v1691 = vunpack.c.h.b16 %v271
    %v1692 = vunpack.c.l.b16 %v272
    %v1693 = vunpack.c.h.b16 %v272
    %v1694 = vunpack.c.l.b16 %v273
    %v1695 = vunpack.c.h.b16 %v273
    %v1696 = vunpack.c.l.b16 %v274
    %v1697 = vunpack.c.h.b16 %v274
    %v1698 = vunpack.c.l.b16 %v275
    %v1699 = vunpack.c.h.b16 %v275
    %v1700 = vunpack.c.l.b16 %v276
    %v1701 = vunpack.c.h.b16 %v276
    %v1702 = vunpack.c.l.b16 %v277
    %v1703 = vunpack.c.h.b16 %v277
    %v1704 = vunpack.c.l.b16 %v278
    %v1705 = vunpack.c.h.b16 %v278
    %v1706 = vunpack.c.l.b16 %v279
    %v1707 = vunpack.c.h.b16 %v279
    %v1708 = vunpack.c.l.b16 %v280
    %v1709 = vunpack.c.h.b16 %v280
    %v1710 = vunpack.c.l.b16 %v281
    %v1711 = vunpack.c.h.b16 %v281
    %v1712 = vunpack.c.l.b16 %v282
    %v1713 = vunpack.c.h.b16 %v282
    %v1714 = vunpack.c.l.b16 %v283
    %v1715 = vunpack.c.h.b16 %v283
    %v1716 = vunpack.c.l.b16 %v284
    %v1717 = vunpack.c.h.b16 %v284
    %v1718 = vunpack.c.l.b16 %v285
    %v1719 = vunpack.c.h.b16 %v285
    %v1720 = vunpack.c.l.b16 %v286
    %v1721 = vunpack.c.h.b16 %v286
    %v1722 = vunpack.c.l.b16 %v287
    %v1723 = vunpack.c.h.b16 %v287
    %v1724 = vunpack.c.l.b16 %v288
    %v1725 = vunpack.c.h.b16 %v288
    %v1726 = vunpack.c.l.b16 %v289
    %v1727 = vunpack.c.h.b16 %v289
    %v1728 = vunpack.c.l.b16 %v290
    %v1729 = vunpack.c.h.b16 %v290
    %v1730 = vunpack.c.l.b16 %v291
    %v1731 = vunpack.c.h.b16 %v291
    %v1732 = vunpack.c.l.b16 %v292
    %v1733 = vunpack.c.h.b16 %v292
    %v1734 = vunpack.c.l.b16 %v293
    %v1735 = vunpack.c.h.b16 %v293
    %v1736 = vunpack.c.l.b16 %v294
    %v1737 = vunpack.c.h.b16 %v294
    %v1738 = vunpack.c.l.b16 %v295
    %v1739 = vunpack.c.h.b16 %v295
    %v1740 = vunpack.c.l.b16 %v296
    %v1741 = vunpack.c.h.b16 %v296
    %v1742 = vunpack.c.l.b16 %v297
    %v1743 = vunpack.c.h.b16 %v297
    %v1744 = vunpack.c.l.b16 %v298
    %v1745 = vunpack.c.h.b16 %v298
    %v1746 = vunpack.c.l.b16 %v299
    %v1747 = vunpack.c.h.b16 %v299
    %v1748 = vunpack.c.l.b16 %v300
    %v1749 = vunpack.c.h.b16 %v300
    %v1750 = vunpack.c.l.b16 %v301
    %v1751 = vunpack.c.h.b16 %v301
    %v1752 = vunpack.c.l.b16 %v302
    %v1753 = vunpack.c.h.b16 %v302
    %v1754 = vunpack.c.l.b16 %v303
    %v1755 = vunpack.c.h.b16 %v303
    %v1756 = vunpack.c.l.b16 %v304
    %v1757 = vunpack.c.h.b16 %v304
    %v1758 = vunpack.c.l.b16 %v305
    %v1759 = vunpack.c.h.b16 %v305
    %v1760 = vunpack.c.l.b16 %v306
    %v1761 = vunpack.c.h.b16 %v306
    %v1762 = vunpack.c.l.b16 %v307
    %v1763 = vunpack.c.h.b16 %v307
    %v1764 = vunpack.c.l.b16 %v308
    %v1765 = vunpack.c.h.b16 %v308
    %v1766 = vunpack.c.l.b16 %v309
    %v1767 = vunpack.c.h.b16 %v309
    %v1768 = vunpack.c.l.b16 %v310
    %v1769 = vunpack.c.h.b16 %v310
    %v1770 = vunpack.c.l.b16 %v311
    %v1771 = vunpack.c.h.b16 %v311
    %v1772 = vunpack.c.l.b16 %v312
    %v1773 = vunpack.c.h.b16 %v312
    %v1774 = vunpack.c.l.b16 %v313
    %v1775 = vunpack.c.h.b16 %v313
    %v1776 = vunpack.c.l.b16 %v314
    %v1777 = vunpack.c.h.b16 %v314
    %v1778 = vunpack.c.l.b16 %v315
    %v1779 = vunpack.c.h.b16 %v315
    %v1780 = vunpack.c.l.b16 %v316
    %v1781 = vunpack.c.h.b16 %v316
    %v1782 = vunpack.c.l.b16 %v317
    %v1783 = vunpack.c.h.b16 %v317
    %v1784 = vunpack.c.l.b16 %v318
    %v1785 = vunpack.c.h.b16 %v318
    %v1786 = vunpack.c.l.b16 %v319
    %v1787 = vunpack.c.h.b16 %v319
    %v1788 = vunpack.c.l.b16 %v320
    %v1789 = vunpack.c.h.b16 %v320
    %v1790 = vunpack.c.l.b16 %v321
    %v1791 = vunpack.c.h.b16 %v321
    %v1792 = vunpack.c.l.b16 %v322
    %v1793 = vunpack.c.h.b16 %v322
    %v1794 = vunpack.c.l.b16 %v323
    %v1795 = vunpack.c.h.b16 %v323
    %v1796 = vunpack.c.l.b16 %v324
    %v1797 = vunpack.c.h.b16 %v324
    %v1798 = vunpack.c.l.b16 %v325
    %v1799 = vunpack.c.h.b16 %v325
    %v1800 = vunpack.c.l.b16 %v326
    %v1801 = vunpack.c.h.b16 %v326
    %v1802 = vunpack.c.l.b16 %v327
    %v1803 = vunpack.c.h.b16 %v327
    %v1804 = vunpack.c.l.b16 %v328
    %v1805 = vunpack.c.h.b16 %v328
    %v1806 = vunpack.c.l.b16 %v329
    %v1807 = vunpack.c.h.b16 %v329
    %v1808 = vunpack.c.l.b16 %v330
    %v1809 = vunpack.c.h.b16 %v330
    %v1810 = vunpack.c.l.b16 %v331
    %v1811 = vunpack.c.h.b16 %v331
    %v1812 = vunpack.c.l.b16 %v332
    %v1813 = vunpack.c.h.b16 %v332
    %v1814 = vunpack.c.l.b16 %v333
    %v1815 = vunpack.c.h.b16 %v333
    %v1816 = vunpack.c.l.b16 %v334
    %v1817 = vunpack.c.h.b16 %v334
    %v1818 = vunpack.c.l.b16 %v335
    %v1819 = vunpack.c.h.b16 %v335
    %v1820 = vunpack.c.l.b16 %v336
    %v1821 = vunpack.c.h.b16 %v336
    %v1822 = vunpack.c.l.b16 %v337
    %v1823 = vunpack.c.h.b16 %v337
    %v1824 = vunpack.c.l.b16 %v338
    %v1825 = vunpack.c.h.b16 %v338
    %v1826 = vunpack.c.l.b16 %v339
    %v1827 = vunpack.c.h.b16 %v339
    %v1828 = vunpack.c.l.b16 %v340
    %v1829 = vunpack.c.h.b16 %v340
    %v1830 = vunpack.c.l.b16 %v341
    %v1831 = vunpack.c.h.b16 %v341
    %v1832 = vunpack.c.l.b16 %v342
    %v1833 = vunpack.c.h.b16 %v342
    %v1834 = vunpack.c.l.b16 %v343
    %v1835 = vunpack.c.h.b16 %v343
    %v1836 = vunpack.c.l.b16 %v344
    %v1837 = vunpack.c.h.b16 %v344
    %v1838 = vunpack.c.l.b16 %v345
    %v1839 = vunpack.c.h.b16 %v345
    %v1840 = vunpack.c.l.b16 %v346
    %v1841 = vunpack.c.h.b16 %v346
    %v1842 = vunpack.c.l.b16 %v347
    %v1843 = vunpack.c.h.b16 %v347
    %v1844 = vunpack.c.l.b16 %v348
    %v1845 = vunpack.c.h.b16 %v348
    %v1846 = vunpack.c.l.b16 %v349
    %v1847 = vunpack.c.h.b16 %v349
    %v1848 = vunpack.c.l.b16 %v350
    %v1849 = vunpack.c.h.b16 %v350
    %v1850 = vunpack.c.l.b16 %v351
    %v1851 = vunpack.c.h.b16 %v351
    %v1852 = vunpack.c.l.b16 %v352
    %v1853 = vunpack.c.h.b16 %v352
    %v1854 = vunpack.c.l.b16 %v353
    %v1855 = vunpack.c.h.b16 %v353
    %v1856 = vunpack.c.l.b16 %v354
    %v1857 = vunpack.c.h.b16 %v354
    %v1858 = vunpack.c.l.b16 %v355
    %v1859 = vunpack.c.h.b16 %v355
    %v1860 = vunpack.c.l.b16 %v356
    %v1861 = vunpack.c.h.b16 %v356
    %v1862 = vunpack.c.l.b16 %v357
    %v1863 = vunpack.c.h.b16 %v357
    %v1864 = vunpack.c.l.b16 %v358
    %v1865 = vunpack.c.h.b16 %v358
    %v1866 = vunpack.c.l.b16 %v359
    %v1867 = vunpack.c.h.b16 %v359
    %v1868 = vunpack.c.l.b16 %v360
    %v1869 = vunpack.c.h.b16 %v360
    %v1870 = vunpack.c.l.b16 %v361
    %v1871 = vunpack.c.h.b16 %v361
    %v1872 = vunpack.c.l.b16 %v362
    %v1873 = vunpack.c.h.b16 %v362
    %v1874 = vunpack.c.l.b16 %v363
    %v1875 = vunpack.c.h.b16 %v363
    %v1876 = vunpack.c.l.b16 %v364
    %v1877 = vunpack.c.h.b16 %v364
    %v1878 = vunpack.c.l.b16 %v365
    %v1879 = vunpack.c.h.b16 %v365
    %v1880 = vunpack.c.l.b16 %v366
    %v1881 = vunpack.c.h.b16 %v366
    %v1882 = vunpack.c.l.b16 %v367
    %v1883 = vunpack.c.h.b16 %v367
    %v1884 = vunpack.c.l.b16 %v368
    %v1885 = vunpack.c.h.b16 %v368
    %v1886 = vunpack.c.l.b16 %v369
    %v1887 = vunpack.c.h.b16 %v369
    %v1888 = vunpack.c.l.b16 %v370
    %v1889 = vunpack.c.h.b16 %v370
    %v1890 = vunpack.c.l.b16 %v371
    %v1891 = vunpack.c.h.b16 %v371
    %v1892 = vunpack.c.l.b16 %v372
    %v1893 = vunpack.c.h.b16 %v372
    %v1894 = vunpack.c.l.b16 %v373
    %v1895 = vunpack.c.h.b16 %v373
    %v1896 = vunpack.c.l.b16 %v374
    %v1897 = vunpack.c.h.b16 %v374
    %v1898 = vunpack.c.l.b16 %v375
    %v1899 = vunpack.c.h.b16 %v375
    %v1900 = vunpack.c.l.b16 %v376
    %v1901 = vunpack.c.h.b16 %v376
    %v1902 = vunpack.c.l.b16 %v377
    %v1903 = vunpack.c.h.b16 %v377
    %v1904 = vunpack.c.l.b16 %v378
    %v1905 = vunpack.c.h.b16 %v378
    %v1906 = vunpack.c.l.b16 %v379
    %v1907 = vunpack.c.h.b16 %v379
    %v1908 = vunpack.c.l.b16 %v380
    %v1909 = vunpack.c.h.b16 %v380
    %v1910 = vunpack.c.l.b16 %v381
    %v1911 = vunpack.c.h.b16 %v381
    %v1912 = vunpack.c.l.b16 %v382
    %v1913 = vunpack.c.h.b16 %v382
    %v1914 = vunpack.c.l.b16 %v383
    %v1915 = vunpack.c.h.b16 %v383
    %v1916 = vunpack.c.l.b16 %v384
    %v1917 = vunpack.c.h.b16 %v384
    %v1918 = vunpack.c.l.b16 %v385
    %v1919 = vunpack.c.h.b16 %v385
    %v1920 = vunpack.c.l.b16 %v386
    %v1921 = vunpack.c.h.b16 %v386
    %v1922 = vunpack.c.l.b16 %v387
    %v1923 = vunpack.c.h.b16 %v387
    %v1924 = vunpack.c.l.b16 %v388
    %v1925 = vunpack.c.h.b16 %v388
    %v1926 = vunpack.c.l.b16 %v389
    %v1927 = vunpack.c.h.b16 %v389
    %v1928 = vunpack.c.l.b16 %v390
    %v1929 = vunpack.c.h.b16 %v390
    %v1930 = vunpack.c.l.b16 %v391
    %v1931 = vunpack.c.h.b16 %v391
    %v1932 = vunpack.c.l.b16 %v392
    %v1933 = vunpack.c.h.b16 %v392
    %v1934 = vunpack.c.l.b16 %v393
    %v1935 = vunpack.c.h.b16 %v393
    %v1936 = vunpack.c.l.b16 %v394
    %v1937 = vunpack.c.h.b16 %v394
    %v1938 = vunpack.c.l.b16 %v395
    %v1939 = vunpack.c.h.b16 %v395
    %v1940 = vunpack.c.l.b16 %v396
    %v1941 = vunpack.c.h.b16 %v396
    %v1942 = vunpack.c.l.b16 %v397
    %v1943 = vunpack.c.h.b16 %v397
    %v1944 = vunpack.c.l.b16 %v398
    %v1945 = vunpack.c.h.b16 %v398
    %v1946 = vunpack.c.l.b16 %v399
    %v1947 = vunpack.c.h.b16 %v399
    %v1948 = vunpack.c.l.b16 %v400
    %v1949 = vunpack.c.h.b16 %v400
    %v1950 = vunpack.c.l.b16 %v401
    %v1951 = vunpack.c.h.b16 %v401
    %v1952 = vunpack.c.l.b16 %v402
    %v1953 = vunpack.c.h.b16 %v402
    %v1954 = vunpack.c.l.b16 %v403
    %v1955 = vunpack.c.h.b16 %v403
    %v1956 = vunpack.c.l.b16 %v404
    %v1957 = vunpack.c.h.b16 %v404
    %v1958 = vunpack.c.l.b16 %v405
    %v1959 = vunpack.c.h.b16 %v405
    %v1960 = vunpack.c.l.b16 %v406
    %v1961 = vunpack.c.h.b16 %v406
    %v1962 = vunpack.c.l.b16 %v407
    %v1963 = vunpack.c.h.b16 %v407
    %v1964 = vunpack.c.l.b16 %v408
    %v1965 = vunpack.c.h.b16 %v408
    %v1966 = vunpack.c.l.b16 %v409
    %v1967 = vunpack.c.h.b16 %v409
    %v1968 = vunpack.c.l.b16 %v410
    %v1969 = vunpack.c.h.b16 %v410
    %v1970 = vunpack.c.l.b16 %v411
    %v1971 = vunpack.c.h.b16 %v411
    %v1972 = vunpack.c.l.b16 %v412
    %v1973 = vunpack.c.h.b16 %v412
    %v1974 = vunpack.c.l.b16 %v413
    %v1975 = vunpack.c.h.b16 %v413
    %v1976 = vunpack.c.l.b16 %v414
    %v1977 = vunpack.c.h.b16 %v414
    %v1978 = vunpack.c.l.b16 %v415
    %v1979 = vunpack.c.h.b16 %v415
    %v1980 = vunpack.c.l.b16 %v416
    %v1981 = vunpack.c.h.b16 %v416
    %v1982 = vunpack.c.l.b16 %v417
    %v1983 = vunpack.c.h.b16 %v417
    %v1984 = vunpack.c.l.b16 %v418
    %v1985 = vunpack.c.h.b16 %v418
    %v1986 = vunpack.c.l.b16 %v419
    %v1987 = vunpack.c.h.b16 %v419
    %v1988 = vunpack.c.l.b16 %v420
    %v1989 = vunpack.c.h.b16 %v420
    %v1990 = vunpack.c.l.b16 %v421
    %v1991 = vunpack.c.h.b16 %v421
    %v1992 = vunpack.c.l.b16 %v422
    %v1993 = vunpack.c.h.b16 %v422
    %v1994 = vunpack.c.l.b16 %v423
    %v1995 = vunpack.c.h.b16 %v423
    %v1996 = vunpack.c.l.b16 %v424
    %v1997 = vunpack.c.h.b16 %v424
    %v1998 = vunpack.c.l.b16 %v425
    %v1999 = vunpack.c.h.b16 %v425
    %v2000 = vunpack.c.l.b16 %v426
    %v2001 = vunpack.c.h.b16 %v426
    %v2002 = vunpack.c.l.b16 %v427
    %v2003 = vunpack.c.h.b16 %v427
    %v2004 = vunpack.c.l.b16 %v428
    %v2005 = vunpack.c.h.b16 %v428
    %v2006 = vunpack.c.l.b16 %v429
    %v2007 = vunpack.c.h.b16 %v429
    %v2008 = vunpack.c.l.b16 %v430
    %v2009 = vunpack.c.h.b16 %v430
    %v2010 = vunpack.c.l.b16 %v431
    %v2011 = vunpack.c.h.b16 %v431
    %v2012 = vunpack.c.l.b16 %v432
    %v2013 = vunpack.c.h.b16 %v432
    %v2014 = vunpack.c.l.b16 %v433
    %v2015 = vunpack.c.h.b16 %v433
    %v2016 = vunpack.c.l.b16 %v434
    %v2017 = vunpack.c.h.b16 %v434
    %v2018 = vunpack.c.l.b16 %v435
    %v2019 = vunpack.c.h.b16 %v435
    %v2020 = vunpack.c.l.b16 %v436
    %v2021 = vunpack.c.h.b16 %v436
    %v2022 = vunpack.c.l.b16 %v437
    %v2023 = vunpack.c.h.b16 %v437
    %v2024 = vunpack.c.l.b16 %v438
    %v2025 = vunpack.c.h.b16 %v438
    %v2026 = vunpack.c.l.b16 %v439
    %v2027 = vunpack.c.h.b16 %v439
    %v2028 = vunpack.c.l.b16 %v440
    %v2029 = vunpack.c.h.b16 %v440
    %v2030 = vunpack.c.l.b16 %v441
    %v2031 = vunpack.c.h.b16 %v441
    %v2032 = vunpack.c.l.b16 %v442
    %v2033 = vunpack.c.h.b16 %v442
    %v2034 = vunpack.c.l.b16 %v443
    %v2035 = vunpack.c.h.b16 %v443
    %v2036 = vunpack.c.l.b16 %v444
    %v2037 = vunpack.c.h.b16 %v444
    %v2038 = vunpack.c.l.b16 %v445
    %v2039 = vunpack.c.h.b16 %v445
    %v2040 = vunpack.c.l.b16 %v446
    %v2041 = vunpack.c.h.b16 %v446
    %v2042 = vunpack.c.l.b16 %v447
    %v2043 = vunpack.c.h.b16 %v447
    %v2044 = vunpack.c.l.b16 %v448
    %v2045 = vunpack.c.h.b16 %v448
    %v2046 = vunpack.c.l.b16 %v449
    %v2047 = vunpack.c.h.b16 %v449
    %v2048 = vunpack.c.l.b16 %v450
    %v2049 = vunpack.c.h.b16 %v450
    %v2050 = vunpack.c.l.b16 %v451
    %v2051 = vunpack.c.h.b16 %v451
    %v2052 = vunpack.c.l.b16 %v452
    %v2053 = vunpack.c.h.b16 %v452
    %v2054 = vunpack.c.l.b16 %v453
    %v2055 = vunpack.c.h.b16 %v453
    %v2056 = vunpack.c.l.b16 %v454
    %v2057 = vunpack.c.h.b16 %v454
    %v2058 = vunpack.c.l.b16 %v455
    %v2059 = vunpack.c.h.b16 %v455
    %v2060 = vunpack.c.l.b16 %v456
    %v2061 = vunpack.c.h.b16 %v456
    %v2062 = vunpack.c.l.b16 %v457
    %v2063 = vunpack.c.h.b16 %v457
    %v2064 = vunpack.c.l.b16 %v458
    %v2065 = vunpack.c.h.b16 %v458
    %v2066 = vunpack.c.l.b16 %v459
    %v2067 = vunpack.c.h.b16 %v459
    %v2068 = vunpack.c.l.b16 %v460
    %v2069 = vunpack.c.h.b16 %v460
    %v2070 = vunpack.c.l.b16 %v461
    %v2071 = vunpack.c.h.b16 %v461
    %v2072 = vunpack.c.l.b16 %v462
    %v2073 = vunpack.c.h.b16 %v462
    %v2074 = vunpack.c.l.b16 %v463
    %v2075 = vunpack.c.h.b16 %v463
    %v2076 = vunpack.c.l.b16 %v464
    %v2077 = vunpack.c.h.b16 %v464
    %v2078 = vunpack.c.l.b16 %v465
    %v2079 = vunpack.c.h.b16 %v465
    %v2080 = vunpack.c.l.b16 %v466
    %v2081 = vunpack.c.h.b16 %v466
    %v2082 = vunpack.c.l.b16 %v467
    %v2083 = vunpack.c.h.b16 %v467
    %v2084 = vunpack.c.l.b16 %v468
    %v2085 = vunpack.c.h.b16 %v468
    %v2086 = vunpack.c.l.b16 %v469
    %v2087 = vunpack.c.h.b16 %v469
    %v2088 = vunpack.c.l.b16 %v470
    %v2089 = vunpack.c.h.b16 %v470
    %v2090 = vunpack.c.l.b16 %v471
    %v2091 = vunpack.c.h.b16 %v471
    %v2092 = vunpack.c.l.b16 %v472
    %v2093 = vunpack.c.h.b16 %v472
    %v2094 = vunpack.c.l.b16 %v473
    %v2095 = vunpack.c.h.b16 %v473
    %v2096 = vunpack.c.l.b16 %v474
    %v2097 = vunpack.c.h.b16 %v474
    %v2098 = vunpack.c.l.b16 %v475
    %v2099 = vunpack.c.h.b16 %v475
    %v2100 = vunpack.c.l.b16 %v476
    %v2101 = vunpack.c.h.b16 %v476
    %v2102 = vunpack.c.l.b16 %v477
    %v2103 = vunpack.c.h.b16 %v477
    %v2104 = vunpack.c.l.b16 %v478
    %v2105 = vunpack.c.h.b16 %v478
    %v2106 = vunpack.c.l.b16 %v479
    %v2107 = vunpack.c.h.b16 %v479
    %v2108 = vunpack.c.l.b16 %v480
    %v2109 = vunpack.c.h.b16 %v480
    %v2110 = vunpack.c.l.b16 %v481
    %v2111 = vunpack.c.h.b16 %v481
    %v2112 = vunpack.c.l.b16 %v482
    %v2113 = vunpack.c.h.b16 %v482
    %v2114 = vunpack.c.l.b16 %v483
    %v2115 = vunpack.c.h.b16 %v483
    %v2116 = vunpack.c.l.b16 %v484
    %v2117 = vunpack.c.h.b16 %v484
    %v2118 = vunpack.c.l.b16 %v485
    %v2119 = vunpack.c.h.b16 %v485
    %v2120 = vunpack.c.l.b16 %v486
    %v2121 = vunpack.c.h.b16 %v486
    %v2122 = vunpack.c.l.b16 %v487
    %v2123 = vunpack.c.h.b16 %v487
    %v2124 = vunpack.c.l.b16 %v488
    %v2125 = vunpack.c.h.b16 %v488
    %v2126 = vunpack.c.l.b16 %v489
    %v2127 = vunpack.c.h.b16 %v489
    %v2128 = vunpack.c.l.b16 %v490
    %v2129 = vunpack.c.h.b16 %v490
    %v2130 = vunpack.c.l.b16 %v491
    %v2131 = vunpack.c.h.b16 %v491
    %v2132 = vunpack.c.l.b16 %v492
    %v2133 = vunpack.c.h.b16 %v492
    %v2134 = vunpack.c.l.b16 %v493
    %v2135 = vunpack.c.h.b16 %v493
    %v2136 = vunpack.c.l.b16 %v494
    %v2137 = vunpack.c.h.b16 %v494
    %v2138 = vunpack.c.l.b16 %v495
    %v2139 = vunpack.c.h.b16 %v495
    %v2140 = vunpack.c.l.b16 %v496
    %v2141 = vunpack.c.h.b16 %v496
    %v2142 = vunpack.c.l.b16 %v497
    %v2143 = vunpack.c.h.b16 %v497
    %v2144 = vunpack.c.l.b16 %v498
    %v2145 = vunpack.c.h.b16 %v498
    %v2146 = vunpack.c.l.b16 %v499
    %v2147 = vunpack.c.h.b16 %v499
    %v2148 = vunpack.c.l.b16 %v500
    %v2149 = vunpack.c.h.b16 %v500
    %v2150 = vunpack.c.l.b16 %v501
    %v2151 = vunpack.c.h.b16 %v501
    %v2152 = vunpack.c.l.b16 %v502
    %v2153 = vunpack.c.h.b16 %v502
    %v2154 = vunpack.c.l.b16 %v503
    %v2155 = vunpack.c.h.b16 %v503
    %v2156 = vunpack.c.l.b16 %v504
    %v2157 = vunpack.c.h.b16 %v504
    %v2158 = vunpack.c.l.b16 %v505
    %v2159 = vunpack.c.h.b16 %v505
    %v2160 = vunpack.c.l.b16 %v506
    %v2161 = vunpack.c.h.b16 %v506
    %v2162 = vunpack.c.l.b16 %v507
    %v2163 = vunpack.c.h.b16 %v507
    %v2164 = vunpack.c.l.b16 %v508
    %v2165 = vunpack.c.h.b16 %v508
    %v2166 = vunpack.c.l.b16 %v509
    %v2167 = vunpack.c.h.b16 %v509
    %v2168 = vunpack.c.l.b16 %v510
    %v2169 = vunpack.c.h.b16 %v510
    %v2170 = vunpack.c.l.b16 %v511
    %v2171 = vunpack.c.h.b16 %v511
    %v2172 = vunpack.c.l.b16 %v512
    %v2173 = vunpack.c.h.b16 %v512
    %v2174 = vunpack.c.l.b16 %v513
    %v2175 = vunpack.c.h.b16 %v513
    %v2176 = vunpack.c.l.b16 %v514
    %v2177 = vunpack.c.h.b16 %v514
    %v2178 = vunpack.c.l.b16 %v515
    %v2179 = vunpack.c.h.b16 %v515
    %v2180 = vunpack.c.l.b16 %v516
    %v2181 = vunpack.c.h.b16 %v516
    %v2182 = vunpack.c.l.b16 %v517
    %v2183 = vunpack.c.h.b16 %v517
    %v2184 = vunpack.c.l.b16 %v518
    %v2185 = vunpack.c.h.b16 %v518
    %v2186 = vunpack.c.l.b16 %v519
    %v2187 = vunpack.c.h.b16 %v519
    %v2188 = vunpack.c.l.b16 %v520
    %v2189 = vunpack.c.h.b16 %v520
    %v2190 = vunpack.c.l.b16 %v521
    %v2191 = vunpack.c.h.b16 %v521
    %v2192 = vunpack.c.l.b16 %v522
    %v2193 = vunpack.c.h.b16 %v522
    %v2194 = vunpack.c.l.b16 %v523
    %v2195 = vunpack.c.h.b16 %v523
    %v2196 = vunpack.c.l.b16 %v524
    %v2197 = vunpack.c.h.b16 %v524
    %v2198 = vunpack.c.l.b16 %v525
    %v2199 = vunpack.c.h.b16 %v525
    %v2200 = vunpack.c.l.b16 %v526
    %v2201 = vunpack.c.h.b16 %v526
    %v2202 = vunpack.c.l.b16 %v527
    %v2203 = vunpack.c.h.b16 %v527
    %v2204 = vunpack.c.l.b16 %v528
    %v2205 = vunpack.c.h.b16 %v528
    %v2206 = vunpack.c.l.b16 %v529
    %v2207 = vunpack.c.h.b16 %v529
    %v2208 = vunpack.c.l.b16 %v530
    %v2209 = vunpack.c.h.b16 %v530
    %v2210 = vunpack.c.l.b16 %v531
    %v2211 = vunpack.c.h.b16 %v531
    %v2212 = vunpack.c.l.b16 %v532
    %v2213 = vunpack.c.h.b16 %v532
    %v2214 = vunpack.c.l.b16 %v533
    %v2215 = vunpack.c.h.b16 %v533
    %v2216 = vunpack.c.l.b16 %v534
    %v2217 = vunpack.c.h.b16 %v534
    %v2218 = vunpack.c.l.b16 %v535
    %v2219 = vunpack.c.h.b16 %v535
    %v2220 = vunpack.c.l.b16 %v536
    %v2221 = vunpack.c.h.b16 %v536
    %v2222 = vunpack.c.l.b16 %v537
    %v2223 = vunpack.c.h.b16 %v537
    %v2224 = vunpack.c.l.b16 %v538
    %v2225 = vunpack.c.h.b16 %v538
    %v2226 = vunpack.c.l.b16 %v539
    %v2227 = vunpack.c.h.b16 %v539
    %v2228 = vunpack.c.l.b16 %v540
    %v2229 = vunpack.c.h.b16 %v540
    %v2230 = vunpack.c.l.b16 %v541
    %v2231 = vunpack.c.h.b16 %v541
    %v2232 = vunpack.c.l.b16 %v542
    %v2233 = vunpack.c.h.b16 %v542
    %v2234 = vunpack.c.l.b16 %v543
    %v2235 = vunpack.c.h.b16 %v543
    %v2236 = vunpack.c.l.b16 %v544
    %v2237 = vunpack.c.h.b16 %v544
    %v2238 = vunpack.c.l.b16 %v545
    %v2239 = vunpack.c.h.b16 %v545
    %v2240 = vunpack.c.l.b16 %v546
    %v2241 = vunpack.c.h.b16 %v546
    %v2242 = vunpack.c.l.b16 %v547
    %v2243 = vunpack.c.h.b16 %v547
    %v2244 = vunpack.c.l.b16 %v548
    %v2245 = vunpack.c.h.b16 %v548
    %v2246 = vunpack.c.l.b16 %v549
    %v2247 = vunpack.c.h.b16 %v549
    %v2248 = vunpack.c.l.b16 %v550
    %v2249 = vunpack.c.h.b16 %v550
    %v2250 = vunpack.c.l.b16 %v551
    %v2251 = vunpack.c.h.b16 %v551
    %v2252 = vunpack.c.l.b16 %v552
    %v2253 = vunpack.c.h.b16 %v552
    %v2254 = vunpack.c.l.b16 %v553
    %v2255 = vunpack.c.h.b16 %v553
    %v2256 = vunpack.c.l.b16 %v554
    %v2257 = vunpack.c.h.b16 %v554
    %v2258 = vunpack.c.l.b16 %v555
    %v2259 = vunpack.c.h.b16 %v555
    %v2260 = vunpack.c.l.b16 %v556
    %v2261 = vunpack.c.h.b16 %v556
    %v2262 = vunpack.c.l.b16 %v557
    %v2263 = vunpack.c.h.b16 %v557
    %v2264 = vunpack.c.l.b16 %v558
    %v2265 = vunpack.c.h.b16 %v558
    %v2266 = vunpack.c.l.b16 %v559
    %v2267 = vunpack.c.h.b16 %v559
    %v2268 = vunpack.c.l.b16 %v560
    %v2269 = vunpack.c.h.b16 %v560
    %v2270 = vunpack.c.l.b16 %v561
    %v2271 = vunpack.c.h.b16 %v561
    %v2272 = vunpack.c.l.b16 %v562
    %v2273 = vunpack.c.h.b16 %v562
    %v2274 = vunpack.c.l.b16 %v563
    %v2275 = vunpack.c.h.b16 %v563
    %v2276 = vunpack.c.l.b16 %v564
    %v2277 = vunpack.c.h.b16 %v564
    %v2278 = vunpack.c.l.b16 %v565
    %v2279 = vunpack.c.h.b16 %v565
    %v2280 = vunpack.c.l.b16 %v566
    %v2281 = vunpack.c.h.b16 %v566
    %v2282 = vunpack.c.l.b16 %v567
    %v2283 = vunpack.c.h.b16 %v567
    %v2284 = vunpack.c.l.b16 %v568
    %v2285 = vunpack.c.h.b16 %v568
    %v2286 = vunpack.c.l.b16 %v569
    %v2287 = vunpack.c.h.b16 %v569
    %v2288 = vunpack.c.l.b16 %v570
    %v2289 = vunpack.c.h.b16 %v570
    %v2290 = vunpack.c.l.b16 %v571
    %v2291 = vunpack.c.h.b16 %v571
    %v2292 = vunpack.c.l.b16 %v572
    %v2293 = vunpack.c.h.b16 %v572
    %v2294 = vunpack.c.l.b16 %v573
    %v2295 = vunpack.c.h.b16 %v573
    %v2296 = vunpack.c.l.b16 %v574
    %v2297 = vunpack.c.h.b16 %v574
    %v2298 = vunpack.c.l.b16 %v575
    %v2299 = vunpack.c.h.b16 %v575
    %v2300 = vunpack.c.l.b16 %v576
    %v2301 = vunpack.c.h.b16 %v576
    %v2302 = vunpack.c.l.b16 %v577
    %v2303 = vunpack.c.h.b16 %v577
    %v2304 = vunpack.c.l.b16 %v578
    %v2305 = vunpack.c.h.b16 %v578
    %v2306 = vunpack.c.l.b16 %v579
    %v2307 = vunpack.c.h.b16 %v579
    %v2308 = vunpack.c.l.b16 %v580
    %v2309 = vunpack.c.h.b16 %v580
    %v2310 = vunpack.c.l.b16 %v581
    %v2311 = vunpack.c.h.b16 %v581
    %v2312 = vunpack.c.l.b16 %v582
    %v2313 = vunpack.c.h.b16 %v582
    %v2314 = vunpack.c.l.b16 %v583
    %v2315 = vunpack.c.h.b16 %v583
    %v2316 = vunpack.c.l.b16 %v584
    %v2317 = vunpack.c.h.b16 %v584
    %v2318 = vunpack.c.l.b16 %v585
    %v2319 = vunpack.c.h.b16 %v585
    %v2320 = vunpack.c.l.b16 %v586
    %v2321 = vunpack.c.h.b16 %v586
    %v2322 = vunpack.c.l.b16 %v587
    %v2323 = vunpack.c.h.b16 %v587
    %v2324 = vunpack.c.l.b16 %v588
    %v2325 = vunpack.c.h.b16 %v588
    %v2326 = vunpack.c.l.b16 %v589
    %v2327 = vunpack.c.h.b16 %v589
    %v2328 = vunpack.c.l.b16 %v590
    %v2329 = vunpack.c.h.b16 %v590
    %v2330 = vunpack.c.l.b16 %v591
    %v2331 = vunpack.c.h.b16 %v591
    %v2332 = vunpack.c.l.b16 %v592
    %v2333 = vunpack.c.h.b16 %v592
    %v2334 = vunpack.c.l.b16 %v593
    %v2335 = vunpack.c.h.b16 %v593
    %v2336 = vunpack.c.l.b16 %v594
    %v2337 = vunpack.c.h.b16 %v594
    %v2338 = vunpack.c.l.b16 %v595
    %v2339 = vunpack.c.h.b16 %v595
    %v2340 = vunpack.c.l.b16 %v596
    %v2341 = vunpack.c.h.b16 %v596
    %v2342 = vunpack.c.l.b16 %v597
    %v2343 = vunpack.c.h.b16 %v597
    %v2344 = vunpack.c.l.b16 %v598
    %v2345 = vunpack.c.h.b16 %v598
    %v2346 = vunpack.c.l.b16 %v599
    %v2347 = vunpack.c.h.b16 %v599
    %v2348 = vunpack.c.l.b16 %v600
    %v2349 = vunpack.c.h.b16 %v600
    %v2350 = vunpack.c.l.b16 %v601
    %v2351 = vunpack.c.h.b16 %v601
    %v2352 = vunpack.c.l.b16 %v602
    %v2353 = vunpack.c.h.b16 %v602
    %v2354 = vunpack.c.l.b16 %v603
    %v2355 = vunpack.c.h.b16 %v603
    %v2356 = vunpack.c.l.b16 %v604
    %v2357 = vunpack.c.h.b16 %v604
    %v2358 = vunpack.c.l.b16 %v605
    %v2359 = vunpack.c.h.b16 %v605
    %v2360 = vunpack.c.l.b16 %v606
    %v2361 = vunpack.c.h.b16 %v606
    %v2362 = vunpack.c.l.b16 %v607
    %v2363 = vunpack.c.h.b16 %v607
    %v2364 = vunpack.c.l.b16 %v608
    %v2365 = vunpack.c.h.b16 %v608
    %v2366 = vunpack.c.l.b16 %v609
    %v2367 = vunpack.c.h.b16 %v609
    %v2368 = vunpack.c.l.b16 %v610
    %v2369 = vunpack.c.h.b16 %v610
    %v2370 = vunpack.c.l.b16 %v611
    %v2371 = vunpack.c.h.b16 %v611
    %v2372 = vunpack.c.l.b16 %v612
    %v2373 = vunpack.c.h.b16 %v612
    %v2374 = vunpack.c.l.b16 %v613
    %v2375 = vunpack.c.h.b16 %v613
    %v2376 = vunpack.c.l.b16 %v614
    %v2377 = vunpack.c.h.b16 %v614
    %v2378 = vunpack.c.l.b16 %v615
    %v2379 = vunpack.c.h.b16 %v615
    %v2380 = vunpack.c.l.b16 %v616
    %v2381 = vunpack.c.h.b16 %v616
    %v2382 = vunpack.c.l.b16 %v617
    %v2383 = vunpack.c.h.b16 %v617
    %v2384 = vunpack.c.l.b16 %v618
    %v2385 = vunpack.c.h.b16 %v618
    %v2386 = vunpack.c.l.b16 %v619
    %v2387 = vunpack.c.h.b16 %v619
    %v2388 = vunpack.c.l.b16 %v620
    %v2389 = vunpack.c.h.b16 %v620
    %v2390 = vunpack.c.l.b16 %v621
    %v2391 = vunpack.c.h.b16 %v621
    %v2392 = vunpack.c.l.b16 %v622
    %v2393 = vunpack.c.h.b16 %v622
    %v2394 = vunpack.c.l.b16 %v623
    %v2395 = vunpack.c.h.b16 %v623
    %v2396 = vunpack.c.l.b16 %v624
    %v2397 = vunpack.c.h.b16 %v624
    %v2398 = vunpack.c.l.b16 %v625
    %v2399 = vunpack.c.h.b16 %v625
    %v2400 = vunpack.c.l.b16 %v626
    %v2401 = vunpack.c.h.b16 %v626
    %v2402 = vunpack.c.l.b16 %v627
    %v2403 = vunpack.c.h.b16 %v627
    %v2404 = vunpack.c.l.b16 %v628
    %v2405 = vunpack.c.h.b16 %v628
    %v2406 = vunpack.c.l.b16 %v629
    %v2407 = vunpack.c.h.b16 %v629
    %v2408 = vunpack.c.l.b16 %v630
    %v2409 = vunpack.c.h.b16 %v630
    %v2410 = vunpack.c.l.b16 %v631
    %v2411 = vunpack.c.h.b16 %v631
    %v2412 = vunpack.c.l.b16 %v632
    %v2413 = vunpack.c.h.b16 %v632
    %v2414 = vunpack.c.l.b16 %v633
    %v2415 = vunpack.c.h.b16 %v633
    %v2416 = vunpack.c.l.b16 %v634
    %v2417 = vunpack.c.h.b16 %v634
    %v2418 = vunpack.c.l.b16 %v635
    %v2419 = vunpack.c.h.b16 %v635
    %v2420 = vunpack.c.l.b16 %v636
    %v2421 = vunpack.c.h.b16 %v636
    %v2422 = vunpack.c.l.b16 %v637
    %v2423 = vunpack.c.h.b16 %v637
    %v2424 = vunpack.c.l.b16 %v638
    %v2425 = vunpack.c.h.b16 %v638
    %v2426 = vunpack.c.l.b16 %v639
    %v2427 = vunpack.c.h.b16 %v639
    %v2428 = vunpack.c.l.b16 %v640
    %v2429 = vunpack.c.h.b16 %v640
    %v2430 = vunpack.c.l.b16 %v641
    %v2431 = vunpack.c.h.b16 %v641
    %v2432 = vunpack.c.l.b16 %v642
    %v2433 = vunpack.c.h.b16 %v642
    %v2434 = vunpack.c.l.b16 %v643
    %v2435 = vunpack.c.h.b16 %v643
    %v2436 = vunpack.c.l.b16 %v644
    %v2437 = vunpack.c.h.b16 %v644
    %v2438 = vunpack.c.l.b16 %v645
    %v2439 = vunpack.c.h.b16 %v645
    %v2440 = vunpack.c.l.b16 %v646
    %v2441 = vunpack.c.h.b16 %v646
    %v2442 = vunpack.c.l.b16 %v647
    %v2443 = vunpack.c.h.b16 %v647
    %v2444 = vunpack.c.l.b16 %v648
    %v2445 = vunpack.c.h.b16 %v648
    %v2446 = vunpack.c.l.b16 %v649
    %v2447 = vunpack.c.h.b16 %v649
    %v2448 = vunpack.c.l.b16 %v650
    %v2449 = vunpack.c.h.b16 %v650
    %v2450 = vunpack.c.l.b16 %v651
    %v2451 = vunpack.c.h.b16 %v651
    %v2452 = vunpack.c.l.b16 %v652
    %v2453 = vunpack.c.h.b16 %v652
    %v2454 = vunpack.c.l.b16 %v653
    %v2455 = vunpack.c.h.b16 %v653
    %v2456 = vunpack.c.l.b16 %v654
    %v2457 = vunpack.c.h.b16 %v654
    %v2458 = vunpack.c.l.b16 %v655
    %v2459 = vunpack.c.h.b16 %v655
    %v2460 = vunpack.c.l.b16 %v656
    %v2461 = vunpack.c.h.b16 %v656
    %v2462 = vunpack.c.l.b16 %v657
    %v2463 = vunpack.c.h.b16 %v657
    %v2464 = vunpack.c.l.b16 %v658
    %v2465 = vunpack.c.h.b16 %v658
    %v2466 = vunpack.c.l.b16 %v659
    %v2467 = vunpack.c.h.b16 %v659
    %v2468 = vunpack.c.l.b16 %v660
    %v2469 = vunpack.c.h.b16 %v660
    %v2470 = vunpack.c.l.b16 %v661
    %v2471 = vunpack.c.h.b16 %v661
    %v2472 = vunpack.c.l.b16 %v662
    %v2473 = vunpack.c.h.b16 %v662
    %v2474 = vunpack.c.l.b16 %v663
    %v2475 = vunpack.c.h.b16 %v663
    %v2476 = vunpack.c.l.b16 %v664
    %v2477 = vunpack.c.h.b16 %v664
    %v2478 = vunpack.c.l.b16 %v665
    %v2479 = vunpack.c.h.b16 %v665
    %v2480 = vunpack.c.l.b16 %v666
    %v2481 = vunpack.c.h.b16 %v666
    %v2482 = vunpack.c.l.b16 %v667
    %v2483 = vunpack.c.h.b16 %v667
    %v2484 = vunpack.c.l.b16 %v668
    %v2485 = vunpack.c.h.b16 %v668
    %v2486 = vunpack.c.l.b16 %v669
    %v2487 = vunpack.c.h.b16 %v669
    %v2488 = vunpack.c.l.b16 %v670
    %v2489 = vunpack.c.h.b16 %v670
    %v2490 = vunpack.c.l.b16 %v671
    %v2491 = vunpack.c.h.b16 %v671
    %v2492 = vunpack.c.l.b16 %v672
    %v2493 = vunpack.c.h.b16 %v672
    %v2494 = vunpack.c.l.b16 %v673
    %v2495 = vunpack.c.h.b16 %v673
    %v2496 = vunpack.c.l.b16 %v674
    %v2497 = vunpack.c.h.b16 %v674
    %v2498 = vunpack.c.l.b16 %v675
    %v2499 = vunpack.c.h.b16 %v675
    %v2500 = vunpack.c.l.b16 %v676
    %v2501 = vunpack.c.h.b16 %v676
    %v2502 = vunpack.c.l.b16 %v677
    %v2503 = vunpack.c.h.b16 %v677
    %v2504 = vunpack.c.l.b16 %v678
    %v2505 = vunpack.c.h.b16 %v678
    %v2506 = vunpack.c.l.b16 %v679
    %v2507 = vunpack.c.h.b16 %v679
    %v2508 = vunpack.c.l.b16 %v680
    %v2509 = vunpack.c.h.b16 %v680
    %v2510 = vunpack.c.l.b16 %v681
    %v2511 = vunpack.c.h.b16 %v681
    %v2512 = vunpack.c.l.b16 %v682
    %v2513 = vunpack.c.h.b16 %v682
    %v2514 = vunpack.c.l.b16 %v683
    %v2515 = vunpack.c.h.b16 %v683
    %v2516 = vunpack.c.l.b16 %v684
    %v2517 = vunpack.c.h.b16 %v684
    %v2518 = vunpack.c.l.b16 %v685
    %v2519 = vunpack.c.h.b16 %v685
    %v2520 = vunpack.c.l.b16 %v686
    %v2521 = vunpack.c.h.b16 %v686
    %v2522 = vunpack.c.l.b16 %v687
    %v2523 = vunpack.c.h.b16 %v687
    %v2524 = vunpack.c.l.b16 %v688
    %v2525 = vunpack.c.h.b16 %v688
    %v2526 = vunpack.c.l.b16 %v689
    %v2527 = vunpack.c.h.b16 %v689
    %v2528 = vunpack.c.l.b16 %v690
    %v2529 = vunpack.c.h.b16 %v690
    %v2530 = vunpack.c.l.b16 %v691
    %v2531 = vunpack.c.h.b16 %v691
    %v2532 = vunpack.c.l.b16 %v692
    %v2533 = vunpack.c.h.b16 %v692
    %v2534 = vunpack.c.l.b16 %v693
    %v2535 = vunpack.c.h.b16 %v693
    %v2536 = vunpack.c.l.b16 %v694
    %v2537 = vunpack.c.h.b16 %v694
    %v2538 = vunpack.c.l.b16 %v695
    %v2539 = vunpack.c.h.b16 %v695
    %v2540 = vunpack.c.l.b16 %v696
    %v2541 = vunpack.c.h.b16 %v696
    %v2542 = vunpack.c.l.b16 %v697
    %v2543 = vunpack.c.h.b16 %v697
    %v2544 = vunpack.c.l.b16 %v698
    %v2545 = vunpack.c.h.b16 %v698
    %v2546 = vunpack.c.l.b16 %v699
    %v2547 = vunpack.c.h.b16 %v699
    %v2548 = vunpack.c.l.b16 %v700
    %v2549 = vunpack.c.h.b16 %v700
    %v2550 = vunpack.c.l.b16 %v701
    %v2551 = vunpack.c.h.b16 %v701
    %v2552 = vunpack.c.l.b16 %v702
    %v2553 = vunpack.c.h.b16 %v702
    %v2554 = vunpack.c.l.b16 %v703
    %v2555 = vunpack.c.h.b16 %v703
    %v2556 = vunpack.c.l.b16 %v704
    %v2557 = vunpack.c.h.b16 %v704
    %v2558 = vunpack.c.l.b16 %v705
    %v2559 = vunpack.c.h.b16 %v705
    %v2560 = vunpack.c.l.b16 %v706
    %v2561 = vunpack.c.h.b16 %v706
    %v2562 = vunpack.c.l.b16 %v707
    %v2563 = vunpack.c.h.b16 %v707
    %v2564 = vunpack.c.l.b16 %v708
    %v2565 = vunpack.c.h.b16 %v708
    %v2566 = vunpack.c.l.b16 %v709
    %v2567 = vunpack.c.h.b16 %v709
    %v2568 = vunpack.c.l.b16 %v710
    %v2569 = vunpack.c.h.b16 %v710
    %v2570 = vunpack.c.l.b16 %v711
    %v2571 = vunpack.c.h.b16 %v711
    %v2572 = vunpack.c.l.b16 %v712
    %v2573 = vunpack.c.h.b16 %v712
    %v2574 = vunpack.c.l.b16 %v713
    %v2575 = vunpack.c.h.b16 %v713
    %v2576 = vunpack.c.l.b16 %v714
    %v2577 = vunpack.c.h.b16 %v714
    %v2578 = vunpack.c.l.b16 %v715
    %v2579 = vunpack.c.h.b16 %v715
    %v2580 = vunpack.c.l.b16 %v716
    %v2581 = vunpack.c.h.b16 %v716
    %v2582 = vunpack.c.l.b16 %v717
    %v2583 = vunpack.c.h.b16 %v717
    %v2584 = vunpack.c.l.b16 %v718
    %v2585 = vunpack.c.h.b16 %v718
    %v2586 = vunpack.c.l.b16 %v719
    %v2587 = vunpack.c.h.b16 %v719
    %v2588 = vunpack.c.l.b16 %v720
    %v2589 = vunpack.c.h.b16 %v720
    %v2590 = vunpack.c.l.b16 %v721
    %v2591 = vunpack.c.h.b16 %v721
    %v2592 = vunpack.c.l.b16 %v722
    %v2593 = vunpack.c.h.b16 %v722
    %v2594 = vunpack.c.l.b16 %v723
    %v2595 = vunpack.c.h.b16 %v723
    %v2596 = vunpack.c.l.b16 %v724
    %v2597 = vunpack.c.h.b16 %v724
    %v2598 = vunpack.c.l.b16 %v725
    %v2599 = vunpack.c.h.b16 %v725
    %v2600 = vunpack.c.l.b16 %v726
    %v2601 = vunpack.c.h.b16 %v726
    %v2602 = vunpack.c.l.b16 %v727
    %v2603 = vunpack.c.h.b16 %v727
    %v2604 = vunpack.c.l.b16 %v728
    %v2605 = vunpack.c.h.b16 %v728
    %v2606 = vunpack.c.l.b16 %v729
    %v2607 = vunpack.c.h.b16 %v729
    %v2608 = vunpack.c.l.b16 %v730
    %v2609 = vunpack.c.h.b16 %v730
    %v2610 = vunpack.c.l.b16 %v731
    %v2611 = vunpack.c.h.b16 %v731
    %v2612 = vunpack.c.l.b16 %v732
    %v2613 = vunpack.c.h.b16 %v732
    %v2614 = vunpack.c.l.b16 %v733
    %v2615 = vunpack.c.h.b16 %v733
    %v2616 = vunpack.c.l.b16 %v734
    %v2617 = vunpack.c.h.b16 %v734
    %v2618 = vunpack.c.l.b16 %v735
    %v2619 = vunpack.c.h.b16 %v735
    %v2620 = vunpack.c.l.b16 %v736
    %v2621 = vunpack.c.h.b16 %v736
    %v2622 = vunpack.c.l.b16 %v737
    %v2623 = vunpack.c.h.b16 %v737
    %v2624 = vunpack.c.l.b16 %v738
    %v2625 = vunpack.c.h.b16 %v738
    %v2626 = vunpack.c.l.b16 %v739
    %v2627 = vunpack.c.h.b16 %v739
    %v2628 = vunpack.c.l.b16 %v740
    %v2629 = vunpack.c.h.b16 %v740
    %v2630 = vunpack.c.l.b16 %v741
    %v2631 = vunpack.c.h.b16 %v741
    %v2632 = vunpack.c.l.b16 %v742
    %v2633 = vunpack.c.h.b16 %v742
    %v2634 = vunpack.c.l.b16 %v743
    %v2635 = vunpack.c.h.b16 %v743
    %v2636 = vunpack.c.l.b16 %v744
    %v2637 = vunpack.c.h.b16 %v744
    %v2638 = vunpack.c.l.b16 %v745
    %v2639 = vunpack.c.h.b16 %v745
    %v2640 = vunpack.c.l.b16 %v746
    %v2641 = vunpack.c.h.b16 %v746
    %v2642 = vunpack.c.l.b16 %v747
    %v2643 = vunpack.c.h.b16 %v747
    %v2644 = vunpack.c.l.b16 %v748
    %v2645 = vunpack.c.h.b16 %v748
    %v2646 = vunpack.c.l.b16 %v749
    %v2647 = vunpack.c.h.b16 %v749
    %v2648 = vunpack.c.l.b16 %v750
    %v2649 = vunpack.c.h.b16 %v750
    %v2650 = vunpack.c.l.b16 %v751
    %v2651 = vunpack.c.h.b16 %v751
    %v2652 = vunpack.c.l.b16 %v752
    %v2653 = vunpack.c.h.b16 %v752
    %v2654 = vunpack.c.l.b16 %v753
    %v2655 = vunpack.c.h.b16 %v753
    %v2656 = vunpack.c.l.b16 %v754
    %v2657 = vunpack.c.h.b16 %v754
    %v2658 = vunpack.c.l.b16 %v755
    %v2659 = vunpack.c.h.b16 %v755
    %v2660 = vunpack.c.l.b16 %v756
    %v2661 = vunpack.c.h.b16 %v756
    %v2662 = vunpack.c.l.b16 %v757
    %v2663 = vunpack.c.h.b16 %v757
    %v2664 = vunpack.c.l.b16 %v758
    %v2665 = vunpack.c.h.b16 %v758
    %v2666 = vunpack.c.l.b16 %v759
    %v2667 = vunpack.c.h.b16 %v759
    %v2668 = vunpack.c.l.b16 %v760
    %v2669 = vunpack.c.h.b16 %v760
    %v2670 = vunpack.c.l.b16 %v761
    %v2671 = vunpack.c.h.b16 %v761
    %v2672 = vunpack.c.l.b16 %v762
    %v2673 = vunpack.c.h.b16 %v762
    %v2674 = vunpack.c.l.b16 %v763
    %v2675 = vunpack.c.h.b16 %v763
    %v2676 = vunpack.c.l.b16 %v764
    %v2677 = vunpack.c.h.b16 %v764
    %v2678 = vunpack.c.l.b16 %v765
    %v2679 = vunpack.c.h.b16 %v765
    %v2680 = vunpack.c.l.b16 %v766
    %v2681 = vunpack.c.h.b16 %v766
    %v2682 = vunpack.c.l.b16 %v767
    %v2683 = vunpack.c.h.b16 %v767
    %v2684 = vunpack.c.l.b16 %v768
    %v2685 = vunpack.c.h.b16 %v768
    %v2686 = vunpack.c.l.b16 %v769
    %v2687 = vunpack.c.h.b16 %v769
    %v2688 = vunpack.c.l.b16 %v770
    %v2689 = vunpack.c.h.b16 %v770
    %v2690 = vunpack.c.l.b16 %v771
    %v2691 = vunpack.c.h.b16 %v771
    %v2692 = vunpack.c.l.b16 %v772
    %v2693 = vunpack.c.h.b16 %v772
    %v2694 = vunpack.c.l.b16 %v773
    %v2695 = vunpack.c.h.b16 %v773
    %v2696 = vunpack.c.l.b16 %v774
    %v2697 = vunpack.c.h.b16 %v774
    %v2698 = vunpack.c.l.b16 %v775
    %v2699 = vunpack.c.h.b16 %v775
    %v2700 = vunpack.c.l.b16 %v776
    %v2701 = vunpack.c.h.b16 %v776
    %v2702 = vunpack.c.l.b16 %v777
    %v2703 = vunpack.c.h.b16 %v777
    %v2704 = vunpack.c.l.b16 %v778
    %v2705 = vunpack.c.h.b16 %v778
    %v2706 = vunpack.c.l.b16 %v779
    %v2707 = vunpack.c.h.b16 %v779
    %v2708 = vunpack.c.l.b16 %v780
    %v2709 = vunpack.c.h.b16 %v780
    %v2710 = vunpack.c.l.b16 %v781
    %v2711 = vunpack.c.h.b16 %v781
    %v2712 = vpack.c.b16 %v1500, %v1496
    %v2713 = vpack.c.b16 %v1501, %v1497
    %v2714 = vpack.c.b16 %v1502, %v1498
    %v2715 = vpack.c.b16 %v1503, %v1499
    %v2716 = vpack.c.b16 %v1508, %v1504
    %v2717 = vpack.c.b16 %v1509, %v1505
    %v2718 = vpack.c.b16 %v1510, %v1506
    %v2719 = vpack.c.b16 %v1511, %v1507
    %v2720 = vpack.c.b16 %v1516, %v1512
    %v2721 = vpack.c.b16 %v1517, %v1513
    %v2722 = vpack.c.b16 %v1518, %v1514
    %v2723 = vpack.c.b16 %v1519, %v1515
    %v2724 = vpack.c.b16 %v1524, %v1520
    %v2725 = vpack.c.b16 %v1525, %v1521
    %v2726 = vpack.c.b16 %v1526, %v1522
    %v2727 = vpack.c.b16 %v1527, %v1523
    %v2728 = vpack.c.b16 %v1532, %v1528
    %v2729 = vpack.c.b16 %v1533, %v1529
    %v2730 = vpack.c.b16 %v1534, %v1530
    %v2731 = vpack.c.b16 %v1535, %v1531
    %v2732 = vpack.c.b16 %v1540, %v1536
    %v2733 = vpack.c.b16 %v1541, %v1537
    %v2734 = vpack.c.b16 %v1542, %v1538
    %v2735 = vpack.c.b16 %v1543, %v1539
    %v2736 = vpack.c.b16 %v1548, %v1544
    %v2737 = vpack.c.b16 %v1549, %v1545
    %v2738 = vpack.c.b16 %v1550, %v1546
    %v2739 = vpack.c.b16 %v1551, %v1547
    %v2740 = vpack.c.b16 %v1556, %v1552
    %v2741 = vpack.c.b16 %v1557, %v1553
    %v2742 = vpack.c.b16 %v1558, %v1554
    %v2743 = vpack.c.b16 %v1559, %v1555
    %v2744 = vpack.c.b16 %v1564, %v1560
    %v2745 = vpack.c.b16 %v1565, %v1561
    %v2746 = vpack.c.b16 %v1566, %v1562
    %v2747 = vpack.c.b16 %v1567, %v1563
    %v2748 = vpack.c.b16 %v1572, %v1568
    %v2749 = vpack.c.b16 %v1573, %v1569
    %v2750 = vpack.c.b16 %v1574, %v1570
    %v2751 = vpack.c.b16 %v1575, %v1571
    %v2752 = vpack.c.b16 %v1580, %v1576
    %v2753 = vpack.c.b16 %v1581, %v1577
    %v2754 = vpack.c.b16 %v1582, %v1578
    %v2755 = vpack.c.b16 %v1583, %v1579
    %v2756 = vpack.c.b16 %v1588, %v1584
    %v2757 = vpack.c.b16 %v1589, %v1585
    %v2758 = vpack.c.b16 %v1590, %v1586
    %v2759 = vpack.c.b16 %v1591, %v1587
    %v2760 = vpack.c.b16 %v1596, %v1592
    %v2761 = vpack.c.b16 %v1597, %v1593
    %v2762 = vpack.c.b16 %v1598, %v1594
    %v2763 = vpack.c.b16 %v1599, %v1595
    %v2764 = vpack.c.b16 %v1604, %v1600
    %v2765 = vpack.c.b16 %v1605, %v1601
    %v2766 = vpack.c.b16 %v1606, %v1602
    %v2767 = vpack.c.b16 %v1607, %v1603
    %v2768 = vpack.c.b16 %v1612, %v1608
    %v2769 = vpack.c.b16 %v1613, %v1609
    %v2770 = vpack.c.b16 %v1614, %v1610
    %v2771 = vpack.c.b16 %v1615, %v1611
    %v2772 = vpack.c.b16 %v1620, %v1616
    %v2773 = vpack.c.b16 %v1621, %v1617
    %v2774 = vpack.c.b16 %v1622, %v1618
    %v2775 = vpack.c.b16 %v1623, %v1619
    %v2776 = vpack.c.b16 %v1628, %v1624
    %v2777 = vpack.c.b16 %v1629, %v1625
    %v2778 = vpack.c.b16 %v1630, %v1626
    %v2779 = vpack.c.b16 %v1631, %v1627
    %v2780 = vpack.c.b16 %v1636, %v1632
    %v2781 = vpack.c.b16 %v1637, %v1633
    %v2782 = vpack.c.b16 %v1638, %v1634
    %v2783 = vpack.c.b16 %v1639, %v1635
    %v2784 = vpack.c.b16 %v1644, %v1640
    %v2785 = vpack.c.b16 %v1645, %v1641
    %v2786 = vpack.c.b16 %v1646, %v1642
    %v2787 = vpack.c.b16 %v1647, %v1643
    %v2788 = vpack.c.b16 %v1652, %v1648
    %v2789 = vpack.c.b16 %v1653, %v1649
    %v2790 = vpack.c.b16 %v1654, %v1650
    %v2791 = vpack.c.b16 %v1655, %v1651
    %v2792 = vpack.c.b16 %v1660, %v1656
    %v2793 = vpack.c.b16 %v1661, %v1657
    %v2794 = vpack.c.b16 %v1662, %v1658
    %v2795 = vpack.c.b16 %v1663, %v1659
    %v2796 = vpack.c.b16 %v1668, %v1664
    %v2797 = vpack.c.b16 %v1669, %v1665
    %v2798 = vpack.c.b16 %v1670, %v1666
    %v2799 = vpack.c.b16 %v1671, %v1667
    %v2800 = vpack.c.b16 %v1676, %v1672
    %v2801 = vpack.c.b16 %v1677, %v1673
    %v2802 = vpack.c.b16 %v1678, %v1674
    %v2803 = vpack.c.b16 %v1679, %v1675
    %v2804 = vpack.c.b16 %v1684, %v1680
    %v2805 = vpack.c.b16 %v1685, %v1681
    %v2806 = vpack.c.b16 %v1686, %v1682
    %v2807 = vpack.c.b16 %v1687, %v1683
    %v2808 = vpack.c.b16 %v1692, %v1688
    %v2809 = vpack.c.b16 %v1693, %v1689
    %v2810 = vpack.c.b16 %v1694, %v1690
    %v2811 = vpack.c.b16 %v1695, %v1691
    %v2812 = vpack.c.b16 %v1700, %v1696
    %v2813 = vpack.c.b16 %v1701, %v1697
    %v2814 = vpack.c.b16 %v1702, %v1698
    %v2815 = vpack.c.b16 %v1703, %v1699
    %v2816 = vpack.c.b16 %v1708, %v1704
    %v2817 = vpack.c.b16 %v1709, %v1705
    %v2818 = vpack.c.b16 %v1710, %v1706
    %v2819 = vpack.c.b16 %v1711, %v1707
    %v2820 = vpack.c.b16 %v1716, %v1712
    %v2821 = vpack.c.b16 %v1717, %v1713
    %v2822 = vpack.c.b16 %v1718, %v1714
    %v2823 = vpack.c.b16 %v1719, %v1715
    %v2824 = vpack.c.b16 %v1724, %v1720
    %v2825 = vpack.c.b16 %v1725, %v1721
    %v2826 = vpack.c.b16 %v1726, %v1722
    %v2827 = vpack.c.b16 %v1727, %v1723
    %v2828 = vpack.c.b16 %v1732, %v1728
    %v2829 = vpack.c.b16 %v1733, %v1729
    %v2830 = vpack.c.b16 %v1734, %v1730
    %v2831 = vpack.c.b16 %v1735, %v1731
    %v2832 = vpack.c.b16 %v1740, %v1736
    %v2833 = vpack.c.b16 %v1741, %v1737
    %v2834 = vpack.c.b16 %v1742, %v1738
    %v2835 = vpack.c.b16 %v1743, %v1739
    %v2836 = vpack.c.b16 %v1748, %v1744
    %v2837 = vpack.c.b16 %v1749, %v1745
    %v2838 = vpack.c.b16 %v1750, %v1746
    %v2839 = vpack.c.b16 %v1751, %v1747
    %v2840 = vpack.c.b16 %v1756, %v1752
    %v2841 = vpack.c.b16 %v1757, %v1753
    %v2842 = vpack.c.b16 %v1758, %v1754
    %v2843 = vpack.c.b16 %v1759, %v1755
    %v2844 = vpack.c.b16 %v1764, %v1760
    %v2845 = vpack.c.b16 %v1765, %v1761
    %v2846 = vpack.c.b16 %v1766, %v1762
    %v2847 = vpack.c.b16 %v1767, %v1763
    %v2848 = vpack.c.b16 %v1772, %v1768
    %v2849 = vpack.c.b16 %v1773, %v1769
    %v2850 = vpack.c.b16 %v1774, %v1770
    %v2851 = vpack.c.b16 %v1775, %v1771
    %v2852 = vpack.c.b16 %v1780, %v1776
    %v2853 = vpack.c.b16 %v1781, %v1777
    %v2854 = vpack.c.b16 %v1782, %v1778
    %v2855 = vpack.c.b16 %v1783, %v1779
    %v2856 = vpack.c.b16 %v1788, %v1784
    %v2857 = vpack.c.b16 %v1789, %v1785
    %v2858 = vpack.c.b16 %v1790, %v1786
    %v2859 = vpack.c.b16 %v1791, %v1787
    %v2860 = vpack.c.b16 %v1796, %v1792
    %v2861 = vpack.c.b16 %v1797, %v1793
    %v2862 = vpack.c.b16 %v1798, %v1794
    %v2863 = vpack.c.b16 %v1799, %v1795
    %v2864 = vpack.c.b16 %v1804, %v1800
    %v2865 = vpack.c.b16 %v1805, %v1801
    %v2866 = vpack.c.b16 %v1806, %v1802
    %v2867 = vpack.c.b16 %v1807, %v1803
    %v2868 = vpack.c.b16 %v1812, %v1808
    %v2869 = vpack.c.b16 %v1813, %v1809
    %v2870 = vpack.c.b16 %v1814, %v1810
    %v2871 = vpack.c.b16 %v1815, %v1811
    %v2872 = vpack.c.b16 %v1820, %v1816
    %v2873 = vpack.c.b16 %v1821, %v1817
    %v2874 = vpack.c.b16 %v1822, %v1818
    %v2875 = vpack.c.b16 %v1823, %v1819
    %v2876 = vpack.c.b16 %v1828, %v1824
    %v2877 = vpack.c.b16 %v1829, %v1825
    %v2878 = vpack.c.b16 %v1830, %v1826
    %v2879 = vpack.c.b16 %v1831, %v1827
    %v2880 = vpack.c.b16 %v1836, %v1832
    %v2881 = vpack.c.b16 %v1837, %v1833
    %v2882 = vpack.c.b16 %v1838, %v1834
    %v2883 = vpack.c.b16 %v1839, %v1835
    %v2884 = vpack.c.b16 %v1844, %v1840
    %v2885 = vpack.c.b16 %v1845, %v1841
    %v2886 = vpack.c.b16 %v1846, %v1842
    %v2887 = vpack.c.b16 %v1847, %v1843
    %v2888 = vpack.c.b16 %v1852, %v1848
    %v2889 = vpack.c.b16 %v1853, %v1849
    %v2890 = vpack.c.b16 %v1854, %v1850
    %v2891 = vpack.c.b16 %v1855, %v1851
    %v2892 = vpack.c.b16 %v1860, %v1856
    %v2893 = vpack.c.b16 %v1861, %v1857
    %v2894 = vpack.c.b16 %v1862, %v1858
    %v2895 = vpack.c.b16 %v1863, %v1859
    %v2896 = vpack.c.b16 %v1868, %v1864
    %v2897 = vpack.c.b16 %v1869, %v1865
    %v2898 = vpack.c.b16 %v1870, %v1866
    %v2899 = vpack.c.b16 %v1871, %v1867
    %v2900 = vpack.c.b16 %v1876, %v1872
    %v2901 = vpack.c.b16 %v1877, %v1873
    %v2902 = vpack.c.b16 %v1878, %v1874
    %v2903 = vpack.c.b16 %v1879, %v1875
    %v2904 = vpack.c.b16 %v1884, %v1880
    %v2905 = vpack.c.b16 %v1885, %v1881
    %v2906 = vpack.c.b16 %v1886, %v1882
    %v2907 = vpack.c.b16 %v1887, %v1883
    %v2908 = vpack.c.b16 %v1892, %v1888
    %v2909 = vpack.c.b16 %v1893, %v1889
    %v2910 = vpack.c.b16 %v1894, %v1890
    %v2911 = vpack.c.b16 %v1895, %v1891
    %v2912 = vpack.c.b16 %v1900, %v1896
    %v2913 = vpack.c.b16 %v1901, %v1897
    %v2914 = vpack.c.b16 %v1902, %v1898
    %v2915 = vpack.c.b16 %v1903, %v1899
    %v2916 = vpack.c.b16 %v1908, %v1904
    %v2917 = vpack.c.b16 %v1909, %v1905
    %v2918 = vpack.c.b16 %v1910, %v1906
    %v2919 = vpack.c.b16 %v1911, %v1907
    %v2920 = vpack.c.b16 %v1916, %v1912
    %v2921 = vpack.c.b16 %v1917, %v1913
    %v2922 = vpack.c.b16 %v1918, %v1914
    %v2923 = vpack.c.b16 %v1919, %v1915
    %v2924 = vpack.c.b16 %v1924, %v1920
    %v2925 = vpack.c.b16 %v1925, %v1921
    %v2926 = vpack.c.b16 %v1926, %v1922
    %v2927 = vpack.c.b16 %v1927, %v1923
    %v2928 = vpack.c.b16 %v1932, %v1928
    %v2929 = vpack.c.b16 %v1933, %v1929
    %v2930 = vpack.c.b16 %v1934, %v1930
    %v2931 = vpack.c.b16 %v1935, %v1931
    %v2932 = vpack.c.b16 %v1940, %v1936
    %v2933 = vpack.c.b16 %v1941, %v1937
    %v2934 = vpack.c.b16 %v1942, %v1938
    %v2935 = vpack.c.b16 %v1943, %v1939
    %v2936 = vpack.c.b16 %v1948, %v1944
    %v2937 = vpack.c.b16 %v1949, %v1945
    %v2938 = vpack.c.b16 %v1950, %v1946
    %v2939 = vpack.c.b16 %v1951, %v1947
    %v2940 = vpack.c.b16 %v1956, %v1952
    %v2941 = vpack.c.b16 %v1957, %v1953
    %v2942 = vpack.c.b16 %v1958, %v1954
    %v2943 = vpack.c.b16 %v1959, %v1955
    %v2944 = vpack.c.b16 %v1964, %v1960
    %v2945 = vpack.c.b16 %v1965, %v1961
    %v2946 = vpack.c.b16 %v1966, %v1962
    %v2947 = vpack.c.b16 %v1967, %v1963
    %v2948 = vpack.c.b16 %v1972, %v1968
    %v2949 = vpack.c.b16 %v1973, %v1969
    %v2950 = vpack.c.b16 %v1974, %v1970
    %v2951 = vpack.c.b16 %v1975, %v1971
    %v2952 = vpack.c.b16 %v1980, %v1976
    %v2953 = vpack.c.b16 %v1981, %v1977
    %v2954 = vpack.c.b16 %v1982, %v1978
    %v2955 = vpack.c.b16 %v1983, %v1979
    %v2956 = vpack.c.b16 %v1988, %v1984
    %v2957 = vpack.c.b16 %v1989, %v1985
    %v2958 = vpack.c.b16 %v1990, %v1986
    %v2959 = vpack.c.b16 %v1991, %v1987
    %v2960 = vpack.c.b16 %v1996, %v1992
    %v2961 = vpack.c.b16 %v1997, %v1993
    %v2962 = vpack.c.b16 %v1998, %v1994
    %v2963 = vpack.c.b16 %v1999, %v1995
    %v2964 = vpack.c.b16 %v2004, %v2000
    %v2965 = vpack.c.b16 %v2005, %v2001
    %v2966 = vpack.c.b16 %v2006, %v2002
    %v2967 = vpack.c.b16 %v2007, %v2003
    %v2968 = vpack.c.b16 %v2012, %v2008
    %v2969 = vpack.c.b16 %v2013, %v2009
    %v2970 = vpack.c.b16 %v2014, %v2010
    %v2971 = vpack.c.b16 %v2015, %v2011
    %v2972 = vpack.c.b16 %v2020, %v2016
    %v2973 = vpack.c.b16 %v2021, %v2017
    %v2974 = vpack.c.b16 %v2022, %v2018
    %v2975 = vpack.c.b16 %v2023, %v2019
    %v2976 = vpack.c.b16 %v2028, %v2024
    %v2977 = vpack.c.b16 %v2029, %v2025
    %v2978 = vpack.c.b16 %v2030, %v2026
    %v2979 = vpack.c.b16 %v2031, %v2027
    %v2980 = vpack.c.b16 %v2036, %v2032
    %v2981 = vpack.c.b16 %v2037, %v2033
    %v2982 = vpack.c.b16 %v2038, %v2034
    %v2983 = vpack.c.b16 %v2039, %v2035
    %v2984 = vpack.c.b16 %v2044, %v2040
    %v2985 = vpack.c.b16 %v2045, %v2041
    %v2986 = vpack.c.b16 %v2046, %v2042
    %v2987 = vpack.c.b16 %v2047, %v2043
    %v2988 = vpack.c.b16 %v2052, %v2048
    %v2989 = vpack.c.b16 %v2053, %v2049
    %v2990 = vpack.c.b16 %v2054, %v2050
    %v2991 = vpack.c.b16 %v2055, %v2051
    %v2992 = vpack.c.b16 %v2060, %v2056
    %v2993 = vpack.c.b16 %v2061, %v2057
    %v2994 = vpack.c.b16 %v2062, %v2058
    %v2995 = vpack.c.b16 %v2063, %v2059
    %v2996 = vpack.c.b16 %v2068, %v2064
    %v2997 = vpack.c.b16 %v2069, %v2065
    %v2998 = vpack.c.b16 %v2070, %v2066
    %v2999 = vpack.c.b16 %v2071, %v2067
    %v3000 = vpack.c.b16 %v2076, %v2072
    %v3001 = vpack.c.b16 %v2077, %v2073
    %v3002 = vpack.c.b16 %v2078, %v2074
    %v3003 = vpack.c.b16 %v2079, %v2075
    %v3004 = vpack.c.b16 %v2084, %v2080
    %v3005 = vpack.c.b16 %v2085, %v2081
    %v3006 = vpack.c.b16 %v2086, %v2082
    %v3007 = vpack.c.b16 %v2087, %v2083
    %v3008 = vpack.c.b16 %v2092, %v2088
    %v3009 = vpack.c.b16 %v2093, %v2089
    %v3010 = vpack.c.b16 %v2094, %v2090
    %v3011 = vpack.c.b16 %v2095, %v2091
    %v3012 = vpack.c.b16 %v2100, %v2096
    %v3013 = vpack.c.b16 %v2101, %v2097
    %v3014 = vpack.c.b16 %v2102, %v2098
    %v3015 = vpack.c.b16 %v2103, %v2099
    %v3016 = vpack.c.b16 %v2108, %v2104
    %v3017 = vpack.c.b16 %v2109, %v2105
    %v3018 = vpack.c.b16 %v2110, %v2106
    %v3019 = vpack.c.b16 %v2111, %v2107
    %v3020 = vpack.c.b16 %v2116, %v2112
    %v3021 = vpack.c.b16 %v2117, %v2113
    %v3022 = vpack.c.b16 %v2118, %v2114
    %v3023 = vpack.c.b16 %v2119, %v2115
    %v3024 = vpack.c.b16 %v2124, %v2120
    %v3025 = vpack.c.b16 %v2125, %v2121
    %v3026 = vpack.c.b16 %v2126, %v2122
    %v3027 = vpack.c.b16 %v2127, %v2123
    %v3028 = vpack.c.b16 %v2132, %v2128
    %v3029 = vpack.c.b16 %v2133, %v2129
    %v3030 = vpack.c.b16 %v2134, %v2130
    %v3031 = vpack.c.b16 %v2135, %v2131
    %v3032 = vpack.c.b16 %v2140, %v2136
    %v3033 = vpack.c.b16 %v2141, %v2137
    %v3034 = vpack.c.b16 %v2142, %v2138
    %v3035 = vpack.c.b16 %v2143, %v2139
    %v3036 = vpack.c.b16 %v2148, %v2144
    %v3037 = vpack.c.b16 %v2149, %v2145
    %v3038 = vpack.c.b16 %v2150, %v2146
    %v3039 = vpack.c.b16 %v2151, %v2147
    %v3040 = vpack.c.b16 %v2156, %v2152
    %v3041 = vpack.c.b16 %v2157, %v2153
    %v3042 = vpack.c.b16 %v2158, %v2154
    %v3043 = vpack.c.b16 %v2159, %v2155
    %v3044 = vpack.c.b16 %v2164, %v2160
    %v3045 = vpack.c.b16 %v2165, %v2161
    %v3046 = vpack.c.b16 %v2166, %v2162
    %v3047 = vpack.c.b16 %v2167, %v2163
    %v3048 = vpack.c.b16 %v2172, %v2168
    %v3049 = vpack.c.b16 %v2173, %v2169
    %v3050 = vpack.c.b16 %v2174, %v2170
    %v3051 = vpack.c.b16 %v2175, %v2171
    %v3052 = vpack.c.b16 %v2180, %v2176
    %v3053 = vpack.c.b16 %v2181, %v2177
    %v3054 = vpack.c.b16 %v2182, %v2178
    %v3055 = vpack.c.b16 %v2183, %v2179
    %v3056 = vpack.c.b16 %v2188, %v2184
    %v3057 = vpack.c.b16 %v2189, %v2185
    %v3058 = vpack.c.b16 %v2190, %v2186
    %v3059 = vpack.c.b16 %v2191, %v2187
    %v3060 = vpack.c.b16 %v2196, %v2192
    %v3061 = vpack.c.b16 %v2197, %v2193
    %v3062 = vpack.c.b16 %v2198, %v2194
    %v3063 = vpack.c.b16 %v2199, %v2195
    %v3064 = vpack.c.b16 %v2204, %v2200
    %v3065 = vpack.c.b16 %v2205, %v2201
    %v3066 = vpack.c.b16 %v2206, %v2202
    %v3067 = vpack.c.b16 %v2207, %v2203
    %v3068 = vpack.c.b16 %v2212, %v2208
    %v3069 = vpack.c.b16 %v2213, %v2209
    %v3070 = vpack.c.b16 %v2214, %v2210
    %v3071 = vpack.c.b16 %v2215, %v2211
    %v3072 = vpack.c.b16 %v2220, %v2216
    %v3073 = vpack.c.b16 %v2221, %v2217
    %v3074 = vpack.c.b16 %v2222, %v2218
    %v3075 = vpack.c.b16 %v2223, %v2219
    %v3076 = vpack.c.b16 %v2228, %v2224
    %v3077 = vpack.c.b16 %v2229, %v2225
    %v3078 = vpack.c.b16 %v2230, %v2226
    %v3079 = vpack.c.b16 %v2231, %v2227
    %v3080 = vpack.c.b16 %v2236, %v2232
    %v3081 = vpack.c.b16 %v2237, %v2233
    %v3082 = vpack.c.b16 %v2238, %v2234
    %v3083 = vpack.c.b16 %v2239, %v2235
    %v3084 = vpack.c.b16 %v2244, %v2240
    %v3085 = vpack.c.b16 %v2245, %v2241
    %v3086 = vpack.c.b16 %v2246, %v2242
    %v3087 = vpack.c.b16 %v2247, %v2243
    %v3088 = vpack.c.b16 %v2252, %v2248
    %v3089 = vpack.c.b16 %v2253, %v2249
    %v3090 = vpack.c.b16 %v2254, %v2250
    %v3091 = vpack.c.b16 %v2255, %v2251
    %v3092 = vpack.c.b16 %v2260, %v2256
    %v3093 = vpack.c.b16 %v2261, %v2257
    %v3094 = vpack.c.b16 %v2262, %v2258
    %v3095 = vpack.c.b16 %v2263, %v2259
    %v3096 = vpack.c.b16 %v2268, %v2264
    %v3097 = vpack.c.b16 %v2269, %v2265
    %v3098 = vpack.c.b16 %v2270, %v2266
    %v3099 = vpack.c.b16 %v2271, %v2267
    %v3100 = vpack.c.b16 %v2276, %v2272
    %v3101 = vpack.c.b16 %v2277, %v2273
    %v3102 = vpack.c.b16 %v2278, %v2274
    %v3103 = vpack.c.b16 %v2279, %v2275
    %v3104 = vpack.c.b16 %v2284, %v2280
    %v3105 = vpack.c.b16 %v2285, %v2281
    %v3106 = vpack.c.b16 %v2286, %v2282
    %v3107 = vpack.c.b16 %v2287, %v2283
    %v3108 = vpack.c.b16 %v2292, %v2288
    %v3109 = vpack.c.b16 %v2293, %v2289
    %v3110 = vpack.c.b16 %v2294, %v2290
    %v3111 = vpack.c.b16 %v2295, %v2291
    %v3112 = vpack.c.b16 %v2300, %v2296
    %v3113 = vpack.c.b16 %v2301, %v2297
    %v3114 = vpack.c.b16 %v2302, %v2298
    %v3115 = vpack.c.b16 %v2303, %v2299
    %v3116 = vpack.c.b16 %v2308, %v2304
    %v3117 = vpack.c.b16 %v2309, %v2305
    %v3118 = vpack.c.b16 %v2310, %v2306
    %v3119 = vpack.c.b16 %v2311, %v2307
    %v3120 = vpack.c.b16 %v2316, %v2312
    %v3121 = vpack.c.b16 %v2317, %v2313
    %v3122 = vpack.c.b16 %v2318, %v2314
    %v3123 = vpack.c.b16 %v2319, %v2315
    %v3124 = vpack.c.b16 %v2324, %v2320
    %v3125 = vpack.c.b16 %v2325, %v2321
    %v3126 = vpack.c.b16 %v2326, %v2322
    %v3127 = vpack.c.b16 %v2327, %v2323
    %v3128 = vpack.c.b16 %v2332, %v2328
    %v3129 = vpack.c.b16 %v2333, %v2329
    %v3130 = vpack.c.b16 %v2334, %v2330
    %v3131 = vpack.c.b16 %v2335, %v2331
    %v3132 = vpack.c.b16 %v2340, %v2336
    %v3133 = vpack.c.b16 %v2341, %v2337
    %v3134 = vpack.c.b16 %v2342, %v2338
    %v3135 = vpack.c.b16 %v2343, %v2339
    %v3136 = vpack.c.b16 %v2348, %v2344
    %v3137 = vpack.c.b16 %v2349, %v2345
    %v3138 = vpack.c.b16 %v2350, %v2346
    %v3139 = vpack.c.b16 %v2351, %v2347
    %v3140 = vpack.c.b16 %v2356, %v2352
    %v3141 = vpack.c.b16 %v2357, %v2353
    %v3142 = vpack.c.b16 %v2358, %v2354
    %v3143 = vpack.c.b16 %v2359, %v2355
    %v3144 = vpack.c.b16 %v2364, %v2360
    %v3145 = vpack.c.b16 %v2365, %v2361
    %v3146 = vpack.c.b16 %v2366, %v2362
    %v3147 = vpack.c.b16 %v2367, %v2363
    %v3148 = vpack.c.b16 %v2372, %v2368
    %v3149 = vpack.c.b16 %v2373, %v2369
    %v3150 = vpack.c.b16 %v2374, %v2370
    %v3151 = vpack.c.b16 %v2375, %v2371
    %v3152 = vpack.c.b16 %v2380, %v2376
    %v3153 = vpack.c.b16 %v2381, %v2377
    %v3154 = vpack.c.b16 %v2382, %v2378
    %v3155 = vpack.c.b16 %v2383, %v2379
    %v3156 = vpack.c.b16 %v2388, %v2384
    %v3157 = vpack.c.b16 %v2389, %v2385
    %v3158 = vpack.c.b16 %v2390, %v2386
    %v3159 = vpack.c.b16 %v2391, %v2387
    %v3160 = vpack.c.b16 %v2396, %v2392
    %v3161 = vpack.c.b16 %v2397, %v2393
    %v3162 = vpack.c.b16 %v2398, %v2394
    %v3163 = vpack.c.b16 %v2399, %v2395
    %v3164 = vpack.c.b16 %v2404, %v2400
    %v3165 = vpack.c.b16 %v2405, %v2401
    %v3166 = vpack.c.b16 %v2406, %v2402
    %v3167 = vpack.c.b16 %v2407, %v2403
    %v3168 = vpack.c.b16 %v2412, %v2408
    %v3169 = vpack.c.b16 %v2413, %v2409
    %v3170 = vpack.c.b16 %v2414, %v2410
    %v3171 = vpack.c.b16 %v2415, %v2411
    %v3172 = vpack.c.b16 %v2420, %v2416
    %v3173 = vpack.c.b16 %v2421, %v2417
    %v3174 = vpack.c.b16 %v2422, %v2418
    %v3175 = vpack.c.b16 %v2423, %v2419
    %v3176 = vpack.c.b16 %v2428, %v2424
    %v3177 = vpack.c.b16 %v2429, %v2425
    %v3178 = vpack.c.b16 %v2430, %v2426
    %v3179 = vpack.c.b16 %v2431, %v2427
    %v3180 = vpack.c.b16 %v2436, %v2432
    %v3181 = vpack.c.b16 %v2437, %v2433
    %v3182 = vpack.c.b16 %v2438, %v2434
    %v3183 = vpack.c.b16 %v2439, %v2435
    %v3184 = vpack.c.b16 %v2444, %v2440
    %v3185 = vpack.c.b16 %v2445, %v2441
    %v3186 = vpack.c.b16 %v2446, %v2442
    %v3187 = vpack.c.b16 %v2447, %v2443
    %v3188 = vpack.c.b16 %v2452, %v2448
    %v3189 = vpack.c.b16 %v2453, %v2449
    %v3190 = vpack.c.b16 %v2454, %v2450
    %v3191 = vpack.c.b16 %v2455, %v2451
    %v3192 = vpack.c.b16 %v2460, %v2456
    %v3193 = vpack.c.b16 %v2461, %v2457
    %v3194 = vpack.c.b16 %v2462, %v2458
    %v3195 = vpack.c.b16 %v2463, %v2459
    %v3196 = vpack.c.b16 %v2468, %v2464
    %v3197 = vpack.c.b16 %v2469, %v2465
    %v3198 = vpack.c.b16 %v2470, %v2466
    %v3199 = vpack.c.b16 %v2471, %v2467
    %v3200 = vpack.c.b16 %v2476, %v2472
    %v3201 = vpack.c.b16 %v2477, %v2473
    %v3202 = vpack.c.b16 %v2478, %v2474
    %v3203 = vpack.c.b16 %v2479, %v2475
    %v3204 = vpack.c.b16 %v2484, %v2480
    %v3205 = vpack.c.b16 %v2485, %v2481
    %v3206 = vpack.c.b16 %v2486, %v2482
    %v3207 = vpack.c.b16 %v2487, %v2483
    %v3208 = vpack.c.b16 %v2492, %v2488
    %v3209 = vpack.c.b16 %v2493, %v2489
    %v3210 = vpack.c.b16 %v2494, %v2490
    %v3211 = vpack.c.b16 %v2495, %v2491
    %v3212 = vpack.c.b16 %v2500, %v2496
    %v3213 = vpack.c.b16 %v2501, %v2497
    %v3214 = vpack.c.b16 %v2502, %v2498
    %v3215 = vpack.c.b16 %v2503, %v2499
    %v3216 = vpack.c.b16 %v2508, %v2504
    %v3217 = vpack.c.b16 %v2509, %v2505
    %v3218 = vpack.c.b16 %v2510, %v2506
    %v3219 = vpack.c.b16 %v2511, %v2507
    %v3220 = vpack.c.b16 %v2516, %v2512
    %v3221 = vpack.c.b16 %v2517, %v2513
    %v3222 = vpack.c.b16 %v2518, %v2514
    %v3223 = vpack.c.b16 %v2519, %v2515
    %v3224 = vpack.c.b16 %v2524, %v2520
    %v3225 = vpack.c.b16 %v2525, %v2521
    %v3226 = vpack.c.b16 %v2526, %v2522
    %v3227 = vpack.c.b16 %v2527, %v2523
    %v3228 = vpack.c.b16 %v2532, %v2528
    %v3229 = vpack.c.b16 %v2533, %v2529
    %v3230 = vpack.c.b16 %v2534, %v2530
    %v3231 = vpack.c.b16 %v2535, %v2531
    %v3232 = vpack.c.b16 %v2540, %v2536
    %v3233 = vpack.c.b16 %v2541, %v2537
    %v3234 = vpack.c.b16 %v2542, %v2538
    %v3235 = vpack.c.b16 %v2543, %v2539
    %v3236 = vpack.c.b16 %v2548, %v2544
    %v3237 = vpack.c.b16 %v2549, %v2545
    %v3238 = vpack.c.b16 %v2550, %v2546
    %v3239 = vpack.c.b16 %v2551, %v2547
    %v3240 = vpack.c.b16 %v2556, %v2552
    %v3241 = vpack.c.b16 %v2557, %v2553
    %v3242 = vpack.c.b16 %v2558, %v2554
    %v3243 = vpack.c.b16 %v2559, %v2555
    %v3244 = vpack.c.b16 %v2564, %v2560
    %v3245 = vpack.c.b16 %v2565, %v2561
    %v3246 = vpack.c.b16 %v2566, %v2562
    %v3247 = vpack.c.b16 %v2567, %v2563
    %v3248 = vpack.c.b16 %v2572, %v2568
    %v3249 = vpack.c.b16 %v2573, %v2569
    %v3250 = vpack.c.b16 %v2574, %v2570
    %v3251 = vpack.c.b16 %v2575, %v2571
    %v3252 = vpack.c.b16 %v2580, %v2576
    %v3253 = vpack.c.b16 %v2581, %v2577
    %v3254 = vpack.c.b16 %v2582, %v2578
    %v3255 = vpack.c.b16 %v2583, %v2579
    %v3256 = vpack.c.b16 %v2588, %v2584
    %v3257 = vpack.c.b16 %v2589, %v2585
    %v3258 = vpack.c.b16 %v2590, %v2586
    %v3259 = vpack.c.b16 %v2591, %v2587
    %v3260 = vpack.c.b16 %v2596, %v2592
    %v3261 = vpack.c.b16 %v2597, %v2593
    %v3262 = vpack.c.b16 %v2598, %v2594
    %v3263 = vpack.c.b16 %v2599, %v2595
    %v3264 = vpack.c.b16 %v2604, %v2600
    %v3265 = vpack.c.b16 %v2605, %v2601
    %v3266 = vpack.c.b16 %v2606, %v2602
    %v3267 = vpack.c.b16 %v2607, %v2603
    %v3268 = vpack.c.b16 %v2612, %v2608
    %v3269 = vpack.c.b16 %v2613, %v2609
    %v3270 = vpack.c.b16 %v2614, %v2610
    %v3271 = vpack.c.b16 %v2615, %v2611
    %v3272 = vpack.c.b16 %v2620, %v2616
    %v3273 = vpack.c.b16 %v2621, %v2617
    %v3274 = vpack.c.b16 %v2622, %v2618
    %v3275 = vpack.c.b16 %v2623, %v2619
    %v3276 = vpack.c.b16 %v2628, %v2624
    %v3277 = vpack.c.b16 %v2629, %v2625
    %v3278 = vpack.c.b16 %v2630, %v2626
    %v3279 = vpack.c.b16 %v2631, %v2627
    %v3280 = vpack.c.b16 %v2636, %v2632
    %v3281 = vpack.c.b16 %v2637, %v2633
    %v3282 = vpack.c.b16 %v2638, %v2634
    %v3283 = vpack.c.b16 %v2639, %v2635
    %v3284 = vpack.c.b16 %v2644, %v2640
    %v3285 = vpack.c.b16 %v2645, %v2641
    %v3286 = vpack.c.b16 %v2646, %v2642
    %v3287 = vpack.c.b16 %v2647, %v2643
    %v3288 = vpack.c.b16 %v2652, %v2648
    %v3289 = vpack.c.b16 %v2653, %v2649
    %v3290 = vpack.c.b16 %v2654, %v2650
    %v3291 = vpack.c.b16 %v2655, %v2651
    %v3292 = vpack.c.b16 %v2660, %v2656
    %v3293 = vpack.c.b16 %v2661, %v2657
    %v3294 = vpack.c.b16 %v2662, %v2658
    %v3295 = vpack.c.b16 %v2663, %v2659
    %v3296 = vpack.c.b16 %v2668, %v2664
    %v3297 = vpack.c.b16 %v2669, %v2665
    %v3298 = vpack.c.b16 %v2670, %v2666
    %v3299 = vpack.c.b16 %v2671, %v2667
    %v3300 = vpack.c.b16 %v2676, %v2672
    %v3301 = vpack.c.b16 %v2677, %v2673
    %v3302 = vpack.c.b16 %v2678, %v2674
    %v3303 = vpack.c.b16 %v2679, %v2675
    %v3304 = vpack.c.b16 %v2684, %v2680
    %v3305 = vpack.c.b16 %v2685, %v2681
    %v3306 = vpack.c.b16 %v2686, %v2682
    %v3307 = vpack.c.b16 %v2687, %v2683
    %v3308 = vpack.c.b16 %v2692, %v2688
    %v3309 = vpack.c.b16 %v2693, %v2689
    %v3310 = vpack.c.b16 %v2694, %v2690
    %v3311 = vpack.c.b16 %v2695, %v2691
    %v3312 = vpack.c.b16 %v2700, %v2696
    %v3313 = vpack.c.b16 %v2701, %v2697
    %v3314 = vpack.c.b16 %v2702, %v2698
    %v3315 = vpack.c.b16 %v2703, %v2699
    %v3316 = vpack.c.b16 %v2708, %v2704
    %v3317 = vpack.c.b16 %v2709, %v2705
    %v3318 = vpack.c.b16 %v2710, %v2706
    %v3319 = vpack.c.b16 %v2711, %v2707
    %3928 = vmatpush.bf16.msra.mxu0 %v2740
    %3929 = vmatpush.bf16.msra.mxu0 %v2736
    %3930 = vmatpush.bf16.msra.mxu0 %v2732
    %3931 = vmatpush.bf16.msra.mxu0 %v2728
    %3932 = vmatpush.bf16.msra.mxu0 %v2724
    %3933 = vmatpush.bf16.msra.mxu0 %v2720
    %3934 = vmatpush.bf16.msra.mxu0 %v2716
    %3935 = vmatpush.bf16.msra.mxu0 %v2712
    %3936 = vmatmul.bf16.gmra.mxu0 %v850
    %v3937 = vpop.f32.mrf.mxu0
    %v3938 = vadd.f32 %v784, %v3937
    %v3939 = vpop.f32.mrf.mxu0
    %v3940 = vadd.f32 %v784, %v3939
    %3941 = vdwg.mxu0
    %3942 = vmatpush.bf16.msra.mxu0 %v2772
    %3943 = vmatpush.bf16.msra.mxu0 %v2768
    %3944 = vmatpush.bf16.msra.mxu0 %v2764
    %3945 = vmatpush.bf16.msra.mxu0 %v2760
    %3946 = vmatpush.bf16.msra.mxu0 %v2756
    %3947 = vmatpush.bf16.msra.mxu0 %v2752
    %3948 = vmatpush.bf16.msra.mxu0 %v2748
    %3949 = vmatpush.bf16.msra.mxu0 %v2744
    %3950 = vmatmul.bf16.gmra.mxu0 %v851
    %v3951 = vpop.f32.mrf.mxu0
    %v3952 = vadd.f32 %v3938, %v3951
    %v3953 = vpop.f32.mrf.mxu0
    %v3954 = vadd.f32 %v3940, %v3953
    %3955 = vdwg.mxu0
    %3956 = vmatpush.bf16.msra.mxu0 %v2804
    %3957 = vmatpush.bf16.msra.mxu0 %v2800
    %3958 = vmatpush.bf16.msra.mxu0 %v2796
    %3959 = vmatpush.bf16.msra.mxu0 %v2792
    %3960 = vmatpush.bf16.msra.mxu0 %v2788
    %3961 = vmatpush.bf16.msra.mxu0 %v2784
    %3962 = vmatpush.bf16.msra.mxu0 %v2780
    %3963 = vmatpush.bf16.msra.mxu0 %v2776
    %3964 = vmatmul.bf16.gmra.mxu0 %v852
    %v3965 = vpop.f32.mrf.mxu0
    %v3966 = vadd.f32 %v3952, %v3965
    %v3967 = vpop.f32.mrf.mxu0
    %v3968 = vadd.f32 %v3954, %v3967
    %3969 = vdwg.mxu0
    %3970 = vmatpush.bf16.msra.mxu0 %v2836
    %3971 = vmatpush.bf16.msra.mxu0 %v2832
    %3972 = vmatpush.bf16.msra.mxu0 %v2828
    %3973 = vmatpush.bf16.msra.mxu0 %v2824
    %3974 = vmatpush.bf16.msra.mxu0 %v2820
    %3975 = vmatpush.bf16.msra.mxu0 %v2816
    %3976 = vmatpush.bf16.msra.mxu0 %v2812
    %3977 = vmatpush.bf16.msra.mxu0 %v2808
    %3978 = vmatmul.bf16.gmra.mxu0 %v853
    %v3979 = vpop.f32.mrf.mxu0
    %v3980 = vadd.f32 %v3966, %v3979
    %v3981 = vpop.f32.mrf.mxu0
    %v3982 = vadd.f32 %v3968, %v3981
    %3983 = vdwg.mxu0
    %3984 = vmatpush.bf16.msra.mxu0 %v2868
    %3985 = vmatpush.bf16.msra.mxu0 %v2864
    %3986 = vmatpush.bf16.msra.mxu0 %v2860
    %3987 = vmatpush.bf16.msra.mxu0 %v2856
    %3988 = vmatpush.bf16.msra.mxu0 %v2852
    %3989 = vmatpush.bf16.msra.mxu0 %v2848
    %3990 = vmatpush.bf16.msra.mxu0 %v2844
    %3991 = vmatpush.bf16.msra.mxu0 %v2840
    %3992 = vmatmul.bf16.gmra.mxu0 %v854
    %v3993 = vpop.f32.mrf.mxu0
    %v3994 = vadd.f32 %v3980, %v3993
    %v3995 = vpop.f32.mrf.mxu0
    %v3996 = vadd.f32 %v3982, %v3995
    %3997 = vdwg.mxu0
    %3998 = vmatpush.bf16.msra.mxu0 %v2900
    %3999 = vmatpush.bf16.msra.mxu0 %v2896
    %4000 = vmatpush.bf16.msra.mxu0 %v2892
    %4001 = vmatpush.bf16.msra.mxu0 %v2888
    %4002 = vmatpush.bf16.msra.mxu0 %v2884
    %4003 = vmatpush.bf16.msra.mxu0 %v2880
    %4004 = vmatpush.bf16.msra.mxu0 %v2876
    %4005 = vmatpush.bf16.msra.mxu0 %v2872
    %4006 = vmatmul.bf16.gmra.mxu0 %v855
    %v4007 = vpop.f32.mrf.mxu0
    %v4008 = vadd.f32 %v3994, %v4007
    %v4009 = vpop.f32.mrf.mxu0
    %v4010 = vadd.f32 %v3996, %v4009
    %4011 = vdwg.mxu0
    %4012 = vmatpush.bf16.msra.mxu0 %v2932
    %4013 = vmatpush.bf16.msra.mxu0 %v2928
    %4014 = vmatpush.bf16.msra.mxu0 %v2924
    %4015 = vmatpush.bf16.msra.mxu0 %v2920
    %4016 = vmatpush.bf16.msra.mxu0 %v2916
    %4017 = vmatpush.bf16.msra.mxu0 %v2912
    %4018 = vmatpush.bf16.msra.mxu0 %v2908
    %4019 = vmatpush.bf16.msra.mxu0 %v2904
    %4020 = vmatmul.bf16.gmra.mxu0 %v856
    %v4021 = vpop.f32.mrf.mxu0
    %v4022 = vadd.f32 %v4008, %v4021
    %v4023 = vpop.f32.mrf.mxu0
    %v4024 = vadd.f32 %v4010, %v4023
    %4025 = vdwg.mxu0
    %4026 = vmatpush.bf16.msra.mxu0 %v2964
    %4027 = vmatpush.bf16.msra.mxu0 %v2960
    %4028 = vmatpush.bf16.msra.mxu0 %v2956
    %4029 = vmatpush.bf16.msra.mxu0 %v2952
    %4030 = vmatpush.bf16.msra.mxu0 %v2948
    %4031 = vmatpush.bf16.msra.mxu0 %v2944
    %4032 = vmatpush.bf16.msra.mxu0 %v2940
    %4033 = vmatpush.bf16.msra.mxu0 %v2936
    %4034 = vmatmul.bf16.gmra.mxu0 %v857
    %v4035 = vpop.f32.mrf.mxu0
    %v4036 = vadd.f32 %v4022, %v4035
    %v4037 = vpop.f32.mrf.mxu0
    %v4038 = vadd.f32 %v4024, %v4037
    %4039 = vdwg.mxu0
    %4040 = vmatpush.bf16.msra.mxu0 %v2996
    %4041 = vmatpush.bf16.msra.mxu0 %v2992
    %4042 = vmatpush.bf16.msra.mxu0 %v2988
    %4043 = vmatpush.bf16.msra.mxu0 %v2984
    %4044 = vmatpush.bf16.msra.mxu0 %v2980
    %4045 = vmatpush.bf16.msra.mxu0 %v2976
    %4046 = vmatpush.bf16.msra.mxu0 %v2972
    %4047 = vmatpush.bf16.msra.mxu0 %v2968
    %4048 = vmatmul.bf16.gmra.mxu0 %v858
    %v4049 = vpop.f32.mrf.mxu0
    %v4050 = vadd.f32 %v4036, %v4049
    %v4051 = vpop.f32.mrf.mxu0
    %v4052 = vadd.f32 %v4038, %v4051
    %4053 = vdwg.mxu0
    %4054 = vmatpush.bf16.msra.mxu0 %v3028
    %4055 = vmatpush.bf16.msra.mxu0 %v3024
    %4056 = vmatpush.bf16.msra.mxu0 %v3020
    %4057 = vmatpush.bf16.msra.mxu0 %v3016
    %4058 = vmatpush.bf16.msra.mxu0 %v3012
    %4059 = vmatpush.bf16.msra.mxu0 %v3008
    %4060 = vmatpush.bf16.msra.mxu0 %v3004
    %4061 = vmatpush.bf16.msra.mxu0 %v3000
    %4062 = vmatmul.bf16.gmra.mxu0 %v859
    %v4063 = vpop.f32.mrf.mxu0
    %v4064 = vadd.f32 %v4050, %v4063
    %v4065 = vpop.f32.mrf.mxu0
    %v4066 = vadd.f32 %v4052, %v4065
    %4067 = vdwg.mxu0
    %4068 = vmatpush.bf16.msra.mxu0 %v3060
    %4069 = vmatpush.bf16.msra.mxu0 %v3056
    %4070 = vmatpush.bf16.msra.mxu0 %v3052
    %4071 = vmatpush.bf16.msra.mxu0 %v3048
    %4072 = vmatpush.bf16.msra.mxu0 %v3044
    %4073 = vmatpush.bf16.msra.mxu0 %v3040
    %4074 = vmatpush.bf16.msra.mxu0 %v3036
    %4075 = vmatpush.bf16.msra.mxu0 %v3032
    %4076 = vmatmul.bf16.gmra.mxu0 %v860
    %v4077 = vpop.f32.mrf.mxu0
    %v4078 = vadd.f32 %v4064, %v4077
    %v4079 = vpop.f32.mrf.mxu0
    %v4080 = vadd.f32 %v4066, %v4079
    %4081 = vdwg.mxu0
    %4082 = vmatpush.bf16.msra.mxu0 %v3092
    %4083 = vmatpush.bf16.msra.mxu0 %v3088
    %4084 = vmatpush.bf16.msra.mxu0 %v3084
    %4085 = vmatpush.bf16.msra.mxu0 %v3080
    %4086 = vmatpush.bf16.msra.mxu0 %v3076
    %4087 = vmatpush.bf16.msra.mxu0 %v3072
    %4088 = vmatpush.bf16.msra.mxu0 %v3068
    %4089 = vmatpush.bf16.msra.mxu0 %v3064
    %4090 = vmatmul.bf16.gmra.mxu0 %v861
    %v4091 = vpop.f32.mrf.mxu0
    %v4092 = vadd.f32 %v4078, %v4091
    %v4093 = vpop.f32.mrf.mxu0
    %v4094 = vadd.f32 %v4080, %v4093
    %4095 = vdwg.mxu0
    %4096 = vmatpush.bf16.msra.mxu0 %v3124
    %4097 = vmatpush.bf16.msra.mxu0 %v3120
    %4098 = vmatpush.bf16.msra.mxu0 %v3116
    %4099 = vmatpush.bf16.msra.mxu0 %v3112
    %4100 = vmatpush.bf16.msra.mxu0 %v3108
    %4101 = vmatpush.bf16.msra.mxu0 %v3104
    %4102 = vmatpush.bf16.msra.mxu0 %v3100
    %4103 = vmatpush.bf16.msra.mxu0 %v3096
    %4104 = vmatmul.bf16.gmra.mxu0 %v862
    %v4105 = vpop.f32.mrf.mxu0
    %v4106 = vadd.f32 %v4092, %v4105
    %v4107 = vpop.f32.mrf.mxu0
    %v4108 = vadd.f32 %v4094, %v4107
    %4109 = vdwg.mxu0
    %4110 = vmatpush.bf16.msra.mxu0 %v3156
    %4111 = vmatpush.bf16.msra.mxu0 %v3152
    %4112 = vmatpush.bf16.msra.mxu0 %v3148
    %4113 = vmatpush.bf16.msra.mxu0 %v3144
    %4114 = vmatpush.bf16.msra.mxu0 %v3140
    %4115 = vmatpush.bf16.msra.mxu0 %v3136
    %4116 = vmatpush.bf16.msra.mxu0 %v3132
    %4117 = vmatpush.bf16.msra.mxu0 %v3128
    %4118 = vmatmul.bf16.gmra.mxu0 %v863
    %v4119 = vpop.f32.mrf.mxu0
    %v4120 = vadd.f32 %v4106, %v4119
    %v4121 = vpop.f32.mrf.mxu0
    %v4122 = vadd.f32 %v4108, %v4121
    %4123 = vdwg.mxu0
    %4124 = vmatpush.bf16.msra.mxu0 %v3188
    %4125 = vmatpush.bf16.msra.mxu0 %v3184
    %4126 = vmatpush.bf16.msra.mxu0 %v3180
    %4127 = vmatpush.bf16.msra.mxu0 %v3176
    %4128 = vmatpush.bf16.msra.mxu0 %v3172
    %4129 = vmatpush.bf16.msra.mxu0 %v3168
    %4130 = vmatpush.bf16.msra.mxu0 %v3164
    %4131 = vmatpush.bf16.msra.mxu0 %v3160
    %4132 = vmatmul.bf16.gmra.mxu0 %v864
    %v4133 = vpop.f32.mrf.mxu0
    %v4134 = vadd.f32 %v4120, %v4133
    %v4135 = vpop.f32.mrf.mxu0
    %v4136 = vadd.f32 %v4122, %v4135
    %4137 = vdwg.mxu0
    %4138 = vmatpush.bf16.msra.mxu0 %v3220
    %4139 = vmatpush.bf16.msra.mxu0 %v3216
    %4140 = vmatpush.bf16.msra.mxu0 %v3212
    %4141 = vmatpush.bf16.msra.mxu0 %v3208
    %4142 = vmatpush.bf16.msra.mxu0 %v3204
    %4143 = vmatpush.bf16.msra.mxu0 %v3200
    %4144 = vmatpush.bf16.msra.mxu0 %v3196
    %4145 = vmatpush.bf16.msra.mxu0 %v3192
    %4146 = vmatmul.bf16.gmra.mxu0 %v865
    %v4147 = vpop.f32.mrf.mxu0
    %v4148 = vadd.f32 %v4134, %v4147
    %v4149 = vpop.f32.mrf.mxu0
    %v4150 = vadd.f32 %v4136, %v4149
    %4151 = vdwg.mxu0
    %4152 = vmatpush.bf16.msra.mxu0 %v3252
    %4153 = vmatpush.bf16.msra.mxu0 %v3248
    %4154 = vmatpush.bf16.msra.mxu0 %v3244
    %4155 = vmatpush.bf16.msra.mxu0 %v3240
    %4156 = vmatpush.bf16.msra.mxu0 %v3236
    %4157 = vmatpush.bf16.msra.mxu0 %v3232
    %4158 = vmatpush.bf16.msra.mxu0 %v3228
    %4159 = vmatpush.bf16.msra.mxu0 %v3224
    %4160 = vmatmul.bf16.gmra.mxu0 %v866
    %v4161 = vpop.f32.mrf.mxu0
    %v4162 = vadd.f32 %v4148, %v4161
    %v4163 = vpop.f32.mrf.mxu0
    %v4164 = vadd.f32 %v4150, %v4163
    %4165 = vdwg.mxu0
    %4166 = vmatpush.bf16.msra.mxu0 %v3284
    %4167 = vmatpush.bf16.msra.mxu0 %v3280
    %4168 = vmatpush.bf16.msra.mxu0 %v3276
    %4169 = vmatpush.bf16.msra.mxu0 %v3272
    %4170 = vmatpush.bf16.msra.mxu0 %v3268
    %4171 = vmatpush.bf16.msra.mxu0 %v3264
    %4172 = vmatpush.bf16.msra.mxu0 %v3260
    %4173 = vmatpush.bf16.msra.mxu0 %v3256
    %4174 = vmatmul.bf16.gmra.mxu0 %v867
    %v4175 = vpop.f32.mrf.mxu0
    %v4176 = vadd.f32 %v4162, %v4175
    %v4177 = vpop.f32.mrf.mxu0
    %v4178 = vadd.f32 %v4164, %v4177
    %4179 = vdwg.mxu0
    %4180 = vmatpush.bf16.msra.mxu0 %v3316
    %4181 = vmatpush.bf16.msra.mxu0 %v3312
    %4182 = vmatpush.bf16.msra.mxu0 %v3308
    %4183 = vmatpush.bf16.msra.mxu0 %v3304
    %4184 = vmatpush.bf16.msra.mxu0 %v3300
    %4185 = vmatpush.bf16.msra.mxu0 %v3296
    %4186 = vmatpush.bf16.msra.mxu0 %v3292
    %4187 = vmatpush.bf16.msra.mxu0 %v3288
    %4188 = vmatmul.bf16.gmra.mxu0 %v868
    %v4189 = vpop.f32.mrf.mxu0
    %v4190 = vadd.f32 %v4176, %v4189
    %v4191 = vpop.f32.mrf.mxu0
    %v4192 = vadd.f32 %v4178, %v4191
    %4193 = vdwg.mxu0
    %4194 = vmatpush.bf16.msra.mxu0 %v2741
    %4195 = vmatpush.bf16.msra.mxu0 %v2737
    %4196 = vmatpush.bf16.msra.mxu0 %v2733
    %4197 = vmatpush.bf16.msra.mxu0 %v2729
    %4198 = vmatpush.bf16.msra.mxu0 %v2725
    %4199 = vmatpush.bf16.msra.mxu0 %v2721
    %4200 = vmatpush.bf16.msra.mxu0 %v2717
    %4201 = vmatpush.bf16.msra.mxu0 %v2713
    %4202 = vmatmul.bf16.gmra.mxu0 %v850
    %v4203 = vpop.f32.mrf.mxu0
    %v4204 = vadd.f32 %v785, %v4203
    %v4205 = vpop.f32.mrf.mxu0
    %v4206 = vadd.f32 %v785, %v4205
    %4207 = vdwg.mxu0
    %4208 = vmatpush.bf16.msra.mxu0 %v2773
    %4209 = vmatpush.bf16.msra.mxu0 %v2769
    %4210 = vmatpush.bf16.msra.mxu0 %v2765
    %4211 = vmatpush.bf16.msra.mxu0 %v2761
    %4212 = vmatpush.bf16.msra.mxu0 %v2757
    %4213 = vmatpush.bf16.msra.mxu0 %v2753
    %4214 = vmatpush.bf16.msra.mxu0 %v2749
    %4215 = vmatpush.bf16.msra.mxu0 %v2745
    %4216 = vmatmul.bf16.gmra.mxu0 %v851
    %v4217 = vpop.f32.mrf.mxu0
    %v4218 = vadd.f32 %v4204, %v4217
    %v4219 = vpop.f32.mrf.mxu0
    %v4220 = vadd.f32 %v4206, %v4219
    %4221 = vdwg.mxu0
    %4222 = vmatpush.bf16.msra.mxu0 %v2805
    %4223 = vmatpush.bf16.msra.mxu0 %v2801
    %4224 = vmatpush.bf16.msra.mxu0 %v2797
    %4225 = vmatpush.bf16.msra.mxu0 %v2793
    %4226 = vmatpush.bf16.msra.mxu0 %v2789
    %4227 = vmatpush.bf16.msra.mxu0 %v2785
    %4228 = vmatpush.bf16.msra.mxu0 %v2781
    %4229 = vmatpush.bf16.msra.mxu0 %v2777
    %4230 = vmatmul.bf16.gmra.mxu0 %v852
    %v4231 = vpop.f32.mrf.mxu0
    %v4232 = vadd.f32 %v4218, %v4231
    %v4233 = vpop.f32.mrf.mxu0
    %v4234 = vadd.f32 %v4220, %v4233
    %4235 = vdwg.mxu0
    %4236 = vmatpush.bf16.msra.mxu0 %v2837
    %4237 = vmatpush.bf16.msra.mxu0 %v2833
    %4238 = vmatpush.bf16.msra.mxu0 %v2829
    %4239 = vmatpush.bf16.msra.mxu0 %v2825
    %4240 = vmatpush.bf16.msra.mxu0 %v2821
    %4241 = vmatpush.bf16.msra.mxu0 %v2817
    %4242 = vmatpush.bf16.msra.mxu0 %v2813
    %4243 = vmatpush.bf16.msra.mxu0 %v2809
    %4244 = vmatmul.bf16.gmra.mxu0 %v853
    %v4245 = vpop.f32.mrf.mxu0
    %v4246 = vadd.f32 %v4232, %v4245
    %v4247 = vpop.f32.mrf.mxu0
    %v4248 = vadd.f32 %v4234, %v4247
    %4249 = vdwg.mxu0
    %4250 = vmatpush.bf16.msra.mxu0 %v2869
    %4251 = vmatpush.bf16.msra.mxu0 %v2865
    %4252 = vmatpush.bf16.msra.mxu0 %v2861
    %4253 = vmatpush.bf16.msra.mxu0 %v2857
    %4254 = vmatpush.bf16.msra.mxu0 %v2853
    %4255 = vmatpush.bf16.msra.mxu0 %v2849
    %4256 = vmatpush.bf16.msra.mxu0 %v2845
    %4257 = vmatpush.bf16.msra.mxu0 %v2841
    %4258 = vmatmul.bf16.gmra.mxu0 %v854
    %v4259 = vpop.f32.mrf.mxu0
    %v4260 = vadd.f32 %v4246, %v4259
    %v4261 = vpop.f32.mrf.mxu0
    %v4262 = vadd.f32 %v4248, %v4261
    %4263 = vdwg.mxu0
    %4264 = vmatpush.bf16.msra.mxu0 %v2901
    %4265 = vmatpush.bf16.msra.mxu0 %v2897
    %4266 = vmatpush.bf16.msra.mxu0 %v2893
    %4267 = vmatpush.bf16.msra.mxu0 %v2889
    %4268 = vmatpush.bf16.msra.mxu0 %v2885
    %4269 = vmatpush.bf16.msra.mxu0 %v2881
    %4270 = vmatpush.bf16.msra.mxu0 %v2877
    %4271 = vmatpush.bf16.msra.mxu0 %v2873
    %4272 = vmatmul.bf16.gmra.mxu0 %v855
    %v4273 = vpop.f32.mrf.mxu0
    %v4274 = vadd.f32 %v4260, %v4273
    %v4275 = vpop.f32.mrf.mxu0
    %v4276 = vadd.f32 %v4262, %v4275
    %4277 = vdwg.mxu0
    %4278 = vmatpush.bf16.msra.mxu0 %v2933
    %4279 = vmatpush.bf16.msra.mxu0 %v2929
    %4280 = vmatpush.bf16.msra.mxu0 %v2925
    %4281 = vmatpush.bf16.msra.mxu0 %v2921
    %4282 = vmatpush.bf16.msra.mxu0 %v2917
    %4283 = vmatpush.bf16.msra.mxu0 %v2913
    %4284 = vmatpush.bf16.msra.mxu0 %v2909
    %4285 = vmatpush.bf16.msra.mxu0 %v2905
    %4286 = vmatmul.bf16.gmra.mxu0 %v856
    %v4287 = vpop.f32.mrf.mxu0
    %v4288 = vadd.f32 %v4274, %v4287
    %v4289 = vpop.f32.mrf.mxu0
    %v4290 = vadd.f32 %v4276, %v4289
    %4291 = vdwg.mxu0
    %4292 = vmatpush.bf16.msra.mxu0 %v2965
    %4293 = vmatpush.bf16.msra.mxu0 %v2961
    %4294 = vmatpush.bf16.msra.mxu0 %v2957
    %4295 = vmatpush.bf16.msra.mxu0 %v2953
    %4296 = vmatpush.bf16.msra.mxu0 %v2949
    %4297 = vmatpush.bf16.msra.mxu0 %v2945
    %4298 = vmatpush.bf16.msra.mxu0 %v2941
    %4299 = vmatpush.bf16.msra.mxu0 %v2937
    %4300 = vmatmul.bf16.gmra.mxu0 %v857
    %v4301 = vpop.f32.mrf.mxu0
    %v4302 = vadd.f32 %v4288, %v4301
    %v4303 = vpop.f32.mrf.mxu0
    %v4304 = vadd.f32 %v4290, %v4303
    %4305 = vdwg.mxu0
    %4306 = vmatpush.bf16.msra.mxu0 %v2997
    %4307 = vmatpush.bf16.msra.mxu0 %v2993
    %4308 = vmatpush.bf16.msra.mxu0 %v2989
    %4309 = vmatpush.bf16.msra.mxu0 %v2985
    %4310 = vmatpush.bf16.msra.mxu0 %v2981
    %4311 = vmatpush.bf16.msra.mxu0 %v2977
    %4312 = vmatpush.bf16.msra.mxu0 %v2973
    %4313 = vmatpush.bf16.msra.mxu0 %v2969
    %4314 = vmatmul.bf16.gmra.mxu0 %v858
    %v4315 = vpop.f32.mrf.mxu0
    %v4316 = vadd.f32 %v4302, %v4315
    %v4317 = vpop.f32.mrf.mxu0
    %v4318 = vadd.f32 %v4304, %v4317
    %4319 = vdwg.mxu0
    %4320 = vmatpush.bf16.msra.mxu0 %v3029
    %4321 = vmatpush.bf16.msra.mxu0 %v3025
    %4322 = vmatpush.bf16.msra.mxu0 %v3021
    %4323 = vmatpush.bf16.msra.mxu0 %v3017
    %4324 = vmatpush.bf16.msra.mxu0 %v3013
    %4325 = vmatpush.bf16.msra.mxu0 %v3009
    %4326 = vmatpush.bf16.msra.mxu0 %v3005
    %4327 = vmatpush.bf16.msra.mxu0 %v3001
    %4328 = vmatmul.bf16.gmra.mxu0 %v859
    %v4329 = vpop.f32.mrf.mxu0
    %v4330 = vadd.f32 %v4316, %v4329
    %v4331 = vpop.f32.mrf.mxu0
    %v4332 = vadd.f32 %v4318, %v4331
    %4333 = vdwg.mxu0
    %4334 = vmatpush.bf16.msra.mxu0 %v3061
    %4335 = vmatpush.bf16.msra.mxu0 %v3057
    %4336 = vmatpush.bf16.msra.mxu0 %v3053
    %4337 = vmatpush.bf16.msra.mxu0 %v3049
    %4338 = vmatpush.bf16.msra.mxu0 %v3045
    %4339 = vmatpush.bf16.msra.mxu0 %v3041
    %4340 = vmatpush.bf16.msra.mxu0 %v3037
    %4341 = vmatpush.bf16.msra.mxu0 %v3033
    %4342 = vmatmul.bf16.gmra.mxu0 %v860
    %v4343 = vpop.f32.mrf.mxu0
    %v4344 = vadd.f32 %v4330, %v4343
    %v4345 = vpop.f32.mrf.mxu0
    %v4346 = vadd.f32 %v4332, %v4345
    %4347 = vdwg.mxu0
    %4348 = vmatpush.bf16.msra.mxu0 %v3093
    %4349 = vmatpush.bf16.msra.mxu0 %v3089
    %4350 = vmatpush.bf16.msra.mxu0 %v3085
    %4351 = vmatpush.bf16.msra.mxu0 %v3081
    %4352 = vmatpush.bf16.msra.mxu0 %v3077
    %4353 = vmatpush.bf16.msra.mxu0 %v3073
    %4354 = vmatpush.bf16.msra.mxu0 %v3069
    %4355 = vmatpush.bf16.msra.mxu0 %v3065
    %4356 = vmatmul.bf16.gmra.mxu0 %v861
    %v4357 = vpop.f32.mrf.mxu0
    %v4358 = vadd.f32 %v4344, %v4357
    %v4359 = vpop.f32.mrf.mxu0
    %v4360 = vadd.f32 %v4346, %v4359
    %4361 = vdwg.mxu0
    %4362 = vmatpush.bf16.msra.mxu0 %v3125
    %4363 = vmatpush.bf16.msra.mxu0 %v3121
    %4364 = vmatpush.bf16.msra.mxu0 %v3117
    %4365 = vmatpush.bf16.msra.mxu0 %v3113
    %4366 = vmatpush.bf16.msra.mxu0 %v3109
    %4367 = vmatpush.bf16.msra.mxu0 %v3105
    %4368 = vmatpush.bf16.msra.mxu0 %v3101
    %4369 = vmatpush.bf16.msra.mxu0 %v3097
    %4370 = vmatmul.bf16.gmra.mxu0 %v862
    %v4371 = vpop.f32.mrf.mxu0
    %v4372 = vadd.f32 %v4358, %v4371
    %v4373 = vpop.f32.mrf.mxu0
    %v4374 = vadd.f32 %v4360, %v4373
    %4375 = vdwg.mxu0
    %4376 = vmatpush.bf16.msra.mxu0 %v3157
    %4377 = vmatpush.bf16.msra.mxu0 %v3153
    %4378 = vmatpush.bf16.msra.mxu0 %v3149
    %4379 = vmatpush.bf16.msra.mxu0 %v3145
    %4380 = vmatpush.bf16.msra.mxu0 %v3141
    %4381 = vmatpush.bf16.msra.mxu0 %v3137
    %4382 = vmatpush.bf16.msra.mxu0 %v3133
    %4383 = vmatpush.bf16.msra.mxu0 %v3129
    %4384 = vmatmul.bf16.gmra.mxu0 %v863
    %v4385 = vpop.f32.mrf.mxu0
    %v4386 = vadd.f32 %v4372, %v4385
    %v4387 = vpop.f32.mrf.mxu0
    %v4388 = vadd.f32 %v4374, %v4387
    %4389 = vdwg.mxu0
    %4390 = vmatpush.bf16.msra.mxu0 %v3189
    %4391 = vmatpush.bf16.msra.mxu0 %v3185
    %4392 = vmatpush.bf16.msra.mxu0 %v3181
    %4393 = vmatpush.bf16.msra.mxu0 %v3177
    %4394 = vmatpush.bf16.msra.mxu0 %v3173
    %4395 = vmatpush.bf16.msra.mxu0 %v3169
    %4396 = vmatpush.bf16.msra.mxu0 %v3165
    %4397 = vmatpush.bf16.msra.mxu0 %v3161
    %4398 = vmatmul.bf16.gmra.mxu0 %v864
    %v4399 = vpop.f32.mrf.mxu0
    %v4400 = vadd.f32 %v4386, %v4399
    %v4401 = vpop.f32.mrf.mxu0
    %v4402 = vadd.f32 %v4388, %v4401
    %4403 = vdwg.mxu0
    %4404 = vmatpush.bf16.msra.mxu0 %v3221
    %4405 = vmatpush.bf16.msra.mxu0 %v3217
    %4406 = vmatpush.bf16.msra.mxu0 %v3213
    %4407 = vmatpush.bf16.msra.mxu0 %v3209
    %4408 = vmatpush.bf16.msra.mxu0 %v3205
    %4409 = vmatpush.bf16.msra.mxu0 %v3201
    %4410 = vmatpush.bf16.msra.mxu0 %v3197
    %4411 = vmatpush.bf16.msra.mxu0 %v3193
    %4412 = vmatmul.bf16.gmra.mxu0 %v865
    %v4413 = vpop.f32.mrf.mxu0
    %v4414 = vadd.f32 %v4400, %v4413
    %v4415 = vpop.f32.mrf.mxu0
    %v4416 = vadd.f32 %v4402, %v4415
    %4417 = vdwg.mxu0
    %4418 = vmatpush.bf16.msra.mxu0 %v3253
    %4419 = vmatpush.bf16.msra.mxu0 %v3249
    %4420 = vmatpush.bf16.msra.mxu0 %v3245
    %4421 = vmatpush.bf16.msra.mxu0 %v3241
    %4422 = vmatpush.bf16.msra.mxu0 %v3237
    %4423 = vmatpush.bf16.msra.mxu0 %v3233
    %4424 = vmatpush.bf16.msra.mxu0 %v3229
    %4425 = vmatpush.bf16.msra.mxu0 %v3225
    %4426 = vmatmul.bf16.gmra.mxu0 %v866
    %v4427 = vpop.f32.mrf.mxu0
    %v4428 = vadd.f32 %v4414, %v4427
    %v4429 = vpop.f32.mrf.mxu0
    %v4430 = vadd.f32 %v4416, %v4429
    %4431 = vdwg.mxu0
    %4432 = vmatpush.bf16.msra.mxu0 %v3285
    %4433 = vmatpush.bf16.msra.mxu0 %v3281
    %4434 = vmatpush.bf16.msra.mxu0 %v3277
    %4435 = vmatpush.bf16.msra.mxu0 %v3273
    %4436 = vmatpush.bf16.msra.mxu0 %v3269
    %4437 = vmatpush.bf16.msra.mxu0 %v3265
    %4438 = vmatpush.bf16.msra.mxu0 %v3261
    %4439 = vmatpush.bf16.msra.mxu0 %v3257
    %4440 = vmatmul.bf16.gmra.mxu0 %v867
    %v4441 = vpop.f32.mrf.mxu0
    %v4442 = vadd.f32 %v4428, %v4441
    %v4443 = vpop.f32.mrf.mxu0
    %v4444 = vadd.f32 %v4430, %v4443
    %4445 = vdwg.mxu0
    %4446 = vmatpush.bf16.msra.mxu0 %v3317
    %4447 = vmatpush.bf16.msra.mxu0 %v3313
    %4448 = vmatpush.bf16.msra.mxu0 %v3309
    %4449 = vmatpush.bf16.msra.mxu0 %v3305
    %4450 = vmatpush.bf16.msra.mxu0 %v3301
    %4451 = vmatpush.bf16.msra.mxu0 %v3297
    %4452 = vmatpush.bf16.msra.mxu0 %v3293
    %4453 = vmatpush.bf16.msra.mxu0 %v3289
    %4454 = vmatmul.bf16.gmra.mxu0 %v868
    %v4455 = vpop.f32.mrf.mxu0
    %v4456 = vadd.f32 %v4442, %v4455
    %v4457 = vpop.f32.mrf.mxu0
    %v4458 = vadd.f32 %v4444, %v4457
    %4459 = vdwg.mxu0
    %4460 = vmatpush.bf16.msra.mxu0 %v2742
    %4461 = vmatpush.bf16.msra.mxu0 %v2738
    %4462 = vmatpush.bf16.msra.mxu0 %v2734
    %4463 = vmatpush.bf16.msra.mxu0 %v2730
    %4464 = vmatpush.bf16.msra.mxu0 %v2726
    %4465 = vmatpush.bf16.msra.mxu0 %v2722
    %4466 = vmatpush.bf16.msra.mxu0 %v2718
    %4467 = vmatpush.bf16.msra.mxu0 %v2714
    %4468 = vmatmul.bf16.gmra.mxu0 %v850
    %v4469 = vpop.f32.mrf.mxu0
    %v4470 = vadd.f32 %v786, %v4469
    %v4471 = vpop.f32.mrf.mxu0
    %v4472 = vadd.f32 %v786, %v4471
    %4473 = vdwg.mxu0
    %4474 = vmatpush.bf16.msra.mxu0 %v2774
    %4475 = vmatpush.bf16.msra.mxu0 %v2770
    %4476 = vmatpush.bf16.msra.mxu0 %v2766
    %4477 = vmatpush.bf16.msra.mxu0 %v2762
    %4478 = vmatpush.bf16.msra.mxu0 %v2758
    %4479 = vmatpush.bf16.msra.mxu0 %v2754
    %4480 = vmatpush.bf16.msra.mxu0 %v2750
    %4481 = vmatpush.bf16.msra.mxu0 %v2746
    %4482 = vmatmul.bf16.gmra.mxu0 %v851
    %v4483 = vpop.f32.mrf.mxu0
    %v4484 = vadd.f32 %v4470, %v4483
    %v4485 = vpop.f32.mrf.mxu0
    %v4486 = vadd.f32 %v4472, %v4485
    %4487 = vdwg.mxu0
    %4488 = vmatpush.bf16.msra.mxu0 %v2806
    %4489 = vmatpush.bf16.msra.mxu0 %v2802
    %4490 = vmatpush.bf16.msra.mxu0 %v2798
    %4491 = vmatpush.bf16.msra.mxu0 %v2794
    %4492 = vmatpush.bf16.msra.mxu0 %v2790
    %4493 = vmatpush.bf16.msra.mxu0 %v2786
    %4494 = vmatpush.bf16.msra.mxu0 %v2782
    %4495 = vmatpush.bf16.msra.mxu0 %v2778
    %4496 = vmatmul.bf16.gmra.mxu0 %v852
    %v4497 = vpop.f32.mrf.mxu0
    %v4498 = vadd.f32 %v4484, %v4497
    %v4499 = vpop.f32.mrf.mxu0
    %v4500 = vadd.f32 %v4486, %v4499
    %4501 = vdwg.mxu0
    %4502 = vmatpush.bf16.msra.mxu0 %v2838
    %4503 = vmatpush.bf16.msra.mxu0 %v2834
    %4504 = vmatpush.bf16.msra.mxu0 %v2830
    %4505 = vmatpush.bf16.msra.mxu0 %v2826
    %4506 = vmatpush.bf16.msra.mxu0 %v2822
    %4507 = vmatpush.bf16.msra.mxu0 %v2818
    %4508 = vmatpush.bf16.msra.mxu0 %v2814
    %4509 = vmatpush.bf16.msra.mxu0 %v2810
    %4510 = vmatmul.bf16.gmra.mxu0 %v853
    %v4511 = vpop.f32.mrf.mxu0
    %v4512 = vadd.f32 %v4498, %v4511
    %v4513 = vpop.f32.mrf.mxu0
    %v4514 = vadd.f32 %v4500, %v4513
    %4515 = vdwg.mxu0
    %4516 = vmatpush.bf16.msra.mxu0 %v2870
    %4517 = vmatpush.bf16.msra.mxu0 %v2866
    %4518 = vmatpush.bf16.msra.mxu0 %v2862
    %4519 = vmatpush.bf16.msra.mxu0 %v2858
    %4520 = vmatpush.bf16.msra.mxu0 %v2854
    %4521 = vmatpush.bf16.msra.mxu0 %v2850
    %4522 = vmatpush.bf16.msra.mxu0 %v2846
    %4523 = vmatpush.bf16.msra.mxu0 %v2842
    %4524 = vmatmul.bf16.gmra.mxu0 %v854
    %v4525 = vpop.f32.mrf.mxu0
    %v4526 = vadd.f32 %v4512, %v4525
    %v4527 = vpop.f32.mrf.mxu0
    %v4528 = vadd.f32 %v4514, %v4527
    %4529 = vdwg.mxu0
    %4530 = vmatpush.bf16.msra.mxu0 %v2902
    %4531 = vmatpush.bf16.msra.mxu0 %v2898
    %4532 = vmatpush.bf16.msra.mxu0 %v2894
    %4533 = vmatpush.bf16.msra.mxu0 %v2890
    %4534 = vmatpush.bf16.msra.mxu0 %v2886
    %4535 = vmatpush.bf16.msra.mxu0 %v2882
    %4536 = vmatpush.bf16.msra.mxu0 %v2878
    %4537 = vmatpush.bf16.msra.mxu0 %v2874
    %4538 = vmatmul.bf16.gmra.mxu0 %v855
    %v4539 = vpop.f32.mrf.mxu0
    %v4540 = vadd.f32 %v4526, %v4539
    %v4541 = vpop.f32.mrf.mxu0
    %v4542 = vadd.f32 %v4528, %v4541
    %4543 = vdwg.mxu0
    %4544 = vmatpush.bf16.msra.mxu0 %v2934
    %4545 = vmatpush.bf16.msra.mxu0 %v2930
    %4546 = vmatpush.bf16.msra.mxu0 %v2926
    %4547 = vmatpush.bf16.msra.mxu0 %v2922
    %4548 = vmatpush.bf16.msra.mxu0 %v2918
    %4549 = vmatpush.bf16.msra.mxu0 %v2914
    %4550 = vmatpush.bf16.msra.mxu0 %v2910
    %4551 = vmatpush.bf16.msra.mxu0 %v2906
    %4552 = vmatmul.bf16.gmra.mxu0 %v856
    %v4553 = vpop.f32.mrf.mxu0
    %v4554 = vadd.f32 %v4540, %v4553
    %v4555 = vpop.f32.mrf.mxu0
    %v4556 = vadd.f32 %v4542, %v4555
    %4557 = vdwg.mxu0
    %4558 = vmatpush.bf16.msra.mxu0 %v2966
    %4559 = vmatpush.bf16.msra.mxu0 %v2962
    %4560 = vmatpush.bf16.msra.mxu0 %v2958
    %4561 = vmatpush.bf16.msra.mxu0 %v2954
    %4562 = vmatpush.bf16.msra.mxu0 %v2950
    %4563 = vmatpush.bf16.msra.mxu0 %v2946
    %4564 = vmatpush.bf16.msra.mxu0 %v2942
    %4565 = vmatpush.bf16.msra.mxu0 %v2938
    %4566 = vmatmul.bf16.gmra.mxu0 %v857
    %v4567 = vpop.f32.mrf.mxu0
    %v4568 = vadd.f32 %v4554, %v4567
    %v4569 = vpop.f32.mrf.mxu0
    %v4570 = vadd.f32 %v4556, %v4569
    %4571 = vdwg.mxu0
    %4572 = vmatpush.bf16.msra.mxu0 %v2998
    %4573 = vmatpush.bf16.msra.mxu0 %v2994
    %4574 = vmatpush.bf16.msra.mxu0 %v2990
    %4575 = vmatpush.bf16.msra.mxu0 %v2986
    %4576 = vmatpush.bf16.msra.mxu0 %v2982
    %4577 = vmatpush.bf16.msra.mxu0 %v2978
    %4578 = vmatpush.bf16.msra.mxu0 %v2974
    %4579 = vmatpush.bf16.msra.mxu0 %v2970
    %4580 = vmatmul.bf16.gmra.mxu0 %v858
    %v4581 = vpop.f32.mrf.mxu0
    %v4582 = vadd.f32 %v4568, %v4581
    %v4583 = vpop.f32.mrf.mxu0
    %v4584 = vadd.f32 %v4570, %v4583
    %4585 = vdwg.mxu0
    %4586 = vmatpush.bf16.msra.mxu0 %v3030
    %4587 = vmatpush.bf16.msra.mxu0 %v3026
    %4588 = vmatpush.bf16.msra.mxu0 %v3022
    %4589 = vmatpush.bf16.msra.mxu0 %v3018
    %4590 = vmatpush.bf16.msra.mxu0 %v3014
    %4591 = vmatpush.bf16.msra.mxu0 %v3010
    %4592 = vmatpush.bf16.msra.mxu0 %v3006
    %4593 = vmatpush.bf16.msra.mxu0 %v3002
    %4594 = vmatmul.bf16.gmra.mxu0 %v859
    %v4595 = vpop.f32.mrf.mxu0
    %v4596 = vadd.f32 %v4582, %v4595
    %v4597 = vpop.f32.mrf.mxu0
    %v4598 = vadd.f32 %v4584, %v4597
    %4599 = vdwg.mxu0
    %4600 = vmatpush.bf16.msra.mxu0 %v3062
    %4601 = vmatpush.bf16.msra.mxu0 %v3058
    %4602 = vmatpush.bf16.msra.mxu0 %v3054
    %4603 = vmatpush.bf16.msra.mxu0 %v3050
    %4604 = vmatpush.bf16.msra.mxu0 %v3046
    %4605 = vmatpush.bf16.msra.mxu0 %v3042
    %4606 = vmatpush.bf16.msra.mxu0 %v3038
    %4607 = vmatpush.bf16.msra.mxu0 %v3034
    %4608 = vmatmul.bf16.gmra.mxu0 %v860
    %v4609 = vpop.f32.mrf.mxu0
    %v4610 = vadd.f32 %v4596, %v4609
    %v4611 = vpop.f32.mrf.mxu0
    %v4612 = vadd.f32 %v4598, %v4611
    %4613 = vdwg.mxu0
    %4614 = vmatpush.bf16.msra.mxu0 %v3094
    %4615 = vmatpush.bf16.msra.mxu0 %v3090
    %4616 = vmatpush.bf16.msra.mxu0 %v3086
    %4617 = vmatpush.bf16.msra.mxu0 %v3082
    %4618 = vmatpush.bf16.msra.mxu0 %v3078
    %4619 = vmatpush.bf16.msra.mxu0 %v3074
    %4620 = vmatpush.bf16.msra.mxu0 %v3070
    %4621 = vmatpush.bf16.msra.mxu0 %v3066
    %4622 = vmatmul.bf16.gmra.mxu0 %v861
    %v4623 = vpop.f32.mrf.mxu0
    %v4624 = vadd.f32 %v4610, %v4623
    %v4625 = vpop.f32.mrf.mxu0
    %v4626 = vadd.f32 %v4612, %v4625
    %4627 = vdwg.mxu0
    %4628 = vmatpush.bf16.msra.mxu0 %v3126
    %4629 = vmatpush.bf16.msra.mxu0 %v3122
    %4630 = vmatpush.bf16.msra.mxu0 %v3118
    %4631 = vmatpush.bf16.msra.mxu0 %v3114
    %4632 = vmatpush.bf16.msra.mxu0 %v3110
    %4633 = vmatpush.bf16.msra.mxu0 %v3106
    %4634 = vmatpush.bf16.msra.mxu0 %v3102
    %4635 = vmatpush.bf16.msra.mxu0 %v3098
    %4636 = vmatmul.bf16.gmra.mxu0 %v862
    %v4637 = vpop.f32.mrf.mxu0
    %v4638 = vadd.f32 %v4624, %v4637
    %v4639 = vpop.f32.mrf.mxu0
    %v4640 = vadd.f32 %v4626, %v4639
    %4641 = vdwg.mxu0
    %4642 = vmatpush.bf16.msra.mxu0 %v3158
    %4643 = vmatpush.bf16.msra.mxu0 %v3154
    %4644 = vmatpush.bf16.msra.mxu0 %v3150
    %4645 = vmatpush.bf16.msra.mxu0 %v3146
    %4646 = vmatpush.bf16.msra.mxu0 %v3142
    %4647 = vmatpush.bf16.msra.mxu0 %v3138
    %4648 = vmatpush.bf16.msra.mxu0 %v3134
    %4649 = vmatpush.bf16.msra.mxu0 %v3130
    %4650 = vmatmul.bf16.gmra.mxu0 %v863
    %v4651 = vpop.f32.mrf.mxu0
    %v4652 = vadd.f32 %v4638, %v4651
    %v4653 = vpop.f32.mrf.mxu0
    %v4654 = vadd.f32 %v4640, %v4653
    %4655 = vdwg.mxu0
    %4656 = vmatpush.bf16.msra.mxu0 %v3190
    %4657 = vmatpush.bf16.msra.mxu0 %v3186
    %4658 = vmatpush.bf16.msra.mxu0 %v3182
    %4659 = vmatpush.bf16.msra.mxu0 %v3178
    %4660 = vmatpush.bf16.msra.mxu0 %v3174
    %4661 = vmatpush.bf16.msra.mxu0 %v3170
    %4662 = vmatpush.bf16.msra.mxu0 %v3166
    %4663 = vmatpush.bf16.msra.mxu0 %v3162
    %4664 = vmatmul.bf16.gmra.mxu0 %v864
    %v4665 = vpop.f32.mrf.mxu0
    %v4666 = vadd.f32 %v4652, %v4665
    %v4667 = vpop.f32.mrf.mxu0
    %v4668 = vadd.f32 %v4654, %v4667
    %4669 = vdwg.mxu0
    %4670 = vmatpush.bf16.msra.mxu0 %v3222
    %4671 = vmatpush.bf16.msra.mxu0 %v3218
    %4672 = vmatpush.bf16.msra.mxu0 %v3214
    %4673 = vmatpush.bf16.msra.mxu0 %v3210
    %4674 = vmatpush.bf16.msra.mxu0 %v3206
    %4675 = vmatpush.bf16.msra.mxu0 %v3202
    %4676 = vmatpush.bf16.msra.mxu0 %v3198
    %4677 = vmatpush.bf16.msra.mxu0 %v3194
    %4678 = vmatmul.bf16.gmra.mxu0 %v865
    %v4679 = vpop.f32.mrf.mxu0
    %v4680 = vadd.f32 %v4666, %v4679
    %v4681 = vpop.f32.mrf.mxu0
    %v4682 = vadd.f32 %v4668, %v4681
    %4683 = vdwg.mxu0
    %4684 = vmatpush.bf16.msra.mxu0 %v3254
    %4685 = vmatpush.bf16.msra.mxu0 %v3250
    %4686 = vmatpush.bf16.msra.mxu0 %v3246
    %4687 = vmatpush.bf16.msra.mxu0 %v3242
    %4688 = vmatpush.bf16.msra.mxu0 %v3238
    %4689 = vmatpush.bf16.msra.mxu0 %v3234
    %4690 = vmatpush.bf16.msra.mxu0 %v3230
    %4691 = vmatpush.bf16.msra.mxu0 %v3226
    %4692 = vmatmul.bf16.gmra.mxu0 %v866
    %v4693 = vpop.f32.mrf.mxu0
    %v4694 = vadd.f32 %v4680, %v4693
    %v4695 = vpop.f32.mrf.mxu0
    %v4696 = vadd.f32 %v4682, %v4695
    %4697 = vdwg.mxu0
    %4698 = vmatpush.bf16.msra.mxu0 %v3286
    %4699 = vmatpush.bf16.msra.mxu0 %v3282
    %4700 = vmatpush.bf16.msra.mxu0 %v3278
    %4701 = vmatpush.bf16.msra.mxu0 %v3274
    %4702 = vmatpush.bf16.msra.mxu0 %v3270
    %4703 = vmatpush.bf16.msra.mxu0 %v3266
    %4704 = vmatpush.bf16.msra.mxu0 %v3262
    %4705 = vmatpush.bf16.msra.mxu0 %v3258
    %4706 = vmatmul.bf16.gmra.mxu0 %v867
    %v4707 = vpop.f32.mrf.mxu0
    %v4708 = vadd.f32 %v4694, %v4707
    %v4709 = vpop.f32.mrf.mxu0
    %v4710 = vadd.f32 %v4696, %v4709
    %4711 = vdwg.mxu0
    %4712 = vmatpush.bf16.msra.mxu0 %v3318
    %4713 = vmatpush.bf16.msra.mxu0 %v3314
    %4714 = vmatpush.bf16.msra.mxu0 %v3310
    %4715 = vmatpush.bf16.msra.mxu0 %v3306
    %4716 = vmatpush.bf16.msra.mxu0 %v3302
    %4717 = vmatpush.bf16.msra.mxu0 %v3298
    %4718 = vmatpush.bf16.msra.mxu0 %v3294
    %4719 = vmatpush.bf16.msra.mxu0 %v3290
    %4720 = vmatmul.bf16.gmra.mxu0 %v868
    %v4721 = vpop.f32.mrf.mxu0
    %v4722 = vadd.f32 %v4708, %v4721
    %v4723 = vpop.f32.mrf.mxu0
    %v4724 = vadd.f32 %v4710, %v4723
    %4725 = vdwg.mxu0
    %4726 = vmatpush.bf16.msra.mxu0 %v2743
    %4727 = vmatpush.bf16.msra.mxu0 %v2739
    %4728 = vmatpush.bf16.msra.mxu0 %v2735
    %4729 = vmatpush.bf16.msra.mxu0 %v2731
    %4730 = vmatpush.bf16.msra.mxu0 %v2727
    %4731 = vmatpush.bf16.msra.mxu0 %v2723
    %4732 = vmatpush.bf16.msra.mxu0 %v2719
    %4733 = vmatpush.bf16.msra.mxu0 %v2715
    %4734 = vmatmul.bf16.gmra.mxu0 %v850
    %v4735 = vpop.f32.mrf.mxu0
    %v4736 = vadd.f32 %v787, %v4735
    %v4737 = vpop.f32.mrf.mxu0
    %v4738 = vadd.f32 %v787, %v4737
    %4739 = vdwg.mxu0
    %4740 = vmatpush.bf16.msra.mxu0 %v2775
    %4741 = vmatpush.bf16.msra.mxu0 %v2771
    %4742 = vmatpush.bf16.msra.mxu0 %v2767
    %4743 = vmatpush.bf16.msra.mxu0 %v2763
    %4744 = vmatpush.bf16.msra.mxu0 %v2759
    %4745 = vmatpush.bf16.msra.mxu0 %v2755
    %4746 = vmatpush.bf16.msra.mxu0 %v2751
    %4747 = vmatpush.bf16.msra.mxu0 %v2747
    %4748 = vmatmul.bf16.gmra.mxu0 %v851
    %v4749 = vpop.f32.mrf.mxu0
    %v4750 = vadd.f32 %v4736, %v4749
    %v4751 = vpop.f32.mrf.mxu0
    %v4752 = vadd.f32 %v4738, %v4751
    %4753 = vdwg.mxu0
    %4754 = vmatpush.bf16.msra.mxu0 %v2807
    %4755 = vmatpush.bf16.msra.mxu0 %v2803
    %4756 = vmatpush.bf16.msra.mxu0 %v2799
    %4757 = vmatpush.bf16.msra.mxu0 %v2795
    %4758 = vmatpush.bf16.msra.mxu0 %v2791
    %4759 = vmatpush.bf16.msra.mxu0 %v2787
    %4760 = vmatpush.bf16.msra.mxu0 %v2783
    %4761 = vmatpush.bf16.msra.mxu0 %v2779
    %4762 = vmatmul.bf16.gmra.mxu0 %v852
    %v4763 = vpop.f32.mrf.mxu0
    %v4764 = vadd.f32 %v4750, %v4763
    %v4765 = vpop.f32.mrf.mxu0
    %v4766 = vadd.f32 %v4752, %v4765
    %4767 = vdwg.mxu0
    %4768 = vmatpush.bf16.msra.mxu0 %v2839
    %4769 = vmatpush.bf16.msra.mxu0 %v2835
    %4770 = vmatpush.bf16.msra.mxu0 %v2831
    %4771 = vmatpush.bf16.msra.mxu0 %v2827
    %4772 = vmatpush.bf16.msra.mxu0 %v2823
    %4773 = vmatpush.bf16.msra.mxu0 %v2819
    %4774 = vmatpush.bf16.msra.mxu0 %v2815
    %4775 = vmatpush.bf16.msra.mxu0 %v2811
    %4776 = vmatmul.bf16.gmra.mxu0 %v853
    %v4777 = vpop.f32.mrf.mxu0
    %v4778 = vadd.f32 %v4764, %v4777
    %v4779 = vpop.f32.mrf.mxu0
    %v4780 = vadd.f32 %v4766, %v4779
    %4781 = vdwg.mxu0
    %4782 = vmatpush.bf16.msra.mxu0 %v2871
    %4783 = vmatpush.bf16.msra.mxu0 %v2867
    %4784 = vmatpush.bf16.msra.mxu0 %v2863
    %4785 = vmatpush.bf16.msra.mxu0 %v2859
    %4786 = vmatpush.bf16.msra.mxu0 %v2855
    %4787 = vmatpush.bf16.msra.mxu0 %v2851
    %4788 = vmatpush.bf16.msra.mxu0 %v2847
    %4789 = vmatpush.bf16.msra.mxu0 %v2843
    %4790 = vmatmul.bf16.gmra.mxu0 %v854
    %v4791 = vpop.f32.mrf.mxu0
    %v4792 = vadd.f32 %v4778, %v4791
    %v4793 = vpop.f32.mrf.mxu0
    %v4794 = vadd.f32 %v4780, %v4793
    %4795 = vdwg.mxu0
    %4796 = vmatpush.bf16.msra.mxu0 %v2903
    %4797 = vmatpush.bf16.msra.mxu0 %v2899
    %4798 = vmatpush.bf16.msra.mxu0 %v2895
    %4799 = vmatpush.bf16.msra.mxu0 %v2891
    %4800 = vmatpush.bf16.msra.mxu0 %v2887
    %4801 = vmatpush.bf16.msra.mxu0 %v2883
    %4802 = vmatpush.bf16.msra.mxu0 %v2879
    %4803 = vmatpush.bf16.msra.mxu0 %v2875
    %4804 = vmatmul.bf16.gmra.mxu0 %v855
    %v4805 = vpop.f32.mrf.mxu0
    %v4806 = vadd.f32 %v4792, %v4805
    %v4807 = vpop.f32.mrf.mxu0
    %v4808 = vadd.f32 %v4794, %v4807
    %4809 = vdwg.mxu0
    %4810 = vmatpush.bf16.msra.mxu0 %v2935
    %4811 = vmatpush.bf16.msra.mxu0 %v2931
    %4812 = vmatpush.bf16.msra.mxu0 %v2927
    %4813 = vmatpush.bf16.msra.mxu0 %v2923
    %4814 = vmatpush.bf16.msra.mxu0 %v2919
    %4815 = vmatpush.bf16.msra.mxu0 %v2915
    %4816 = vmatpush.bf16.msra.mxu0 %v2911
    %4817 = vmatpush.bf16.msra.mxu0 %v2907
    %4818 = vmatmul.bf16.gmra.mxu0 %v856
    %v4819 = vpop.f32.mrf.mxu0
    %v4820 = vadd.f32 %v4806, %v4819
    %v4821 = vpop.f32.mrf.mxu0
    %v4822 = vadd.f32 %v4808, %v4821
    %4823 = vdwg.mxu0
    %4824 = vmatpush.bf16.msra.mxu0 %v2967
    %4825 = vmatpush.bf16.msra.mxu0 %v2963
    %4826 = vmatpush.bf16.msra.mxu0 %v2959
    %4827 = vmatpush.bf16.msra.mxu0 %v2955
    %4828 = vmatpush.bf16.msra.mxu0 %v2951
    %4829 = vmatpush.bf16.msra.mxu0 %v2947
    %4830 = vmatpush.bf16.msra.mxu0 %v2943
    %4831 = vmatpush.bf16.msra.mxu0 %v2939
    %4832 = vmatmul.bf16.gmra.mxu0 %v857
    %v4833 = vpop.f32.mrf.mxu0
    %v4834 = vadd.f32 %v4820, %v4833
    %v4835 = vpop.f32.mrf.mxu0
    %v4836 = vadd.f32 %v4822, %v4835
    %4837 = vdwg.mxu0
    %4838 = vmatpush.bf16.msra.mxu0 %v2999
    %4839 = vmatpush.bf16.msra.mxu0 %v2995
    %4840 = vmatpush.bf16.msra.mxu0 %v2991
    %4841 = vmatpush.bf16.msra.mxu0 %v2987
    %4842 = vmatpush.bf16.msra.mxu0 %v2983
    %4843 = vmatpush.bf16.msra.mxu0 %v2979
    %4844 = vmatpush.bf16.msra.mxu0 %v2975
    %4845 = vmatpush.bf16.msra.mxu0 %v2971
    %4846 = vmatmul.bf16.gmra.mxu0 %v858
    %v4847 = vpop.f32.mrf.mxu0
    %v4848 = vadd.f32 %v4834, %v4847
    %v4849 = vpop.f32.mrf.mxu0
    %v4850 = vadd.f32 %v4836, %v4849
    %4851 = vdwg.mxu0
    %4852 = vmatpush.bf16.msra.mxu0 %v3031
    %4853 = vmatpush.bf16.msra.mxu0 %v3027
    %4854 = vmatpush.bf16.msra.mxu0 %v3023
    %4855 = vmatpush.bf16.msra.mxu0 %v3019
    %4856 = vmatpush.bf16.msra.mxu0 %v3015
    %4857 = vmatpush.bf16.msra.mxu0 %v3011
    %4858 = vmatpush.bf16.msra.mxu0 %v3007
    %4859 = vmatpush.bf16.msra.mxu0 %v3003
    %4860 = vmatmul.bf16.gmra.mxu0 %v859
    %v4861 = vpop.f32.mrf.mxu0
    %v4862 = vadd.f32 %v4848, %v4861
    %v4863 = vpop.f32.mrf.mxu0
    %v4864 = vadd.f32 %v4850, %v4863
    %4865 = vdwg.mxu0
    %4866 = vmatpush.bf16.msra.mxu0 %v3063
    %4867 = vmatpush.bf16.msra.mxu0 %v3059
    %4868 = vmatpush.bf16.msra.mxu0 %v3055
    %4869 = vmatpush.bf16.msra.mxu0 %v3051
    %4870 = vmatpush.bf16.msra.mxu0 %v3047
    %4871 = vmatpush.bf16.msra.mxu0 %v3043
    %4872 = vmatpush.bf16.msra.mxu0 %v3039
    %4873 = vmatpush.bf16.msra.mxu0 %v3035
    %4874 = vmatmul.bf16.gmra.mxu0 %v860
    %v4875 = vpop.f32.mrf.mxu0
    %v4876 = vadd.f32 %v4862, %v4875
    %v4877 = vpop.f32.mrf.mxu0
    %v4878 = vadd.f32 %v4864, %v4877
    %4879 = vdwg.mxu0
    %4880 = vmatpush.bf16.msra.mxu0 %v3095
    %4881 = vmatpush.bf16.msra.mxu0 %v3091
    %4882 = vmatpush.bf16.msra.mxu0 %v3087
    %4883 = vmatpush.bf16.msra.mxu0 %v3083
    %4884 = vmatpush.bf16.msra.mxu0 %v3079
    %4885 = vmatpush.bf16.msra.mxu0 %v3075
    %4886 = vmatpush.bf16.msra.mxu0 %v3071
    %4887 = vmatpush.bf16.msra.mxu0 %v3067
    %4888 = vmatmul.bf16.gmra.mxu0 %v861
    %v4889 = vpop.f32.mrf.mxu0
    %v4890 = vadd.f32 %v4876, %v4889
    %v4891 = vpop.f32.mrf.mxu0
    %v4892 = vadd.f32 %v4878, %v4891
    %4893 = vdwg.mxu0
    %4894 = vmatpush.bf16.msra.mxu0 %v3127
    %4895 = vmatpush.bf16.msra.mxu0 %v3123
    %4896 = vmatpush.bf16.msra.mxu0 %v3119
    %4897 = vmatpush.bf16.msra.mxu0 %v3115
    %4898 = vmatpush.bf16.msra.mxu0 %v3111
    %4899 = vmatpush.bf16.msra.mxu0 %v3107
    %4900 = vmatpush.bf16.msra.mxu0 %v3103
    %4901 = vmatpush.bf16.msra.mxu0 %v3099
    %4902 = vmatmul.bf16.gmra.mxu0 %v862
    %v4903 = vpop.f32.mrf.mxu0
    %v4904 = vadd.f32 %v4890, %v4903
    %v4905 = vpop.f32.mrf.mxu0
    %v4906 = vadd.f32 %v4892, %v4905
    %4907 = vdwg.mxu0
    %4908 = vmatpush.bf16.msra.mxu0 %v3159
    %4909 = vmatpush.bf16.msra.mxu0 %v3155
    %4910 = vmatpush.bf16.msra.mxu0 %v3151
    %4911 = vmatpush.bf16.msra.mxu0 %v3147
    %4912 = vmatpush.bf16.msra.mxu0 %v3143
    %4913 = vmatpush.bf16.msra.mxu0 %v3139
    %4914 = vmatpush.bf16.msra.mxu0 %v3135
    %4915 = vmatpush.bf16.msra.mxu0 %v3131
    %4916 = vmatmul.bf16.gmra.mxu0 %v863
    %v4917 = vpop.f32.mrf.mxu0
    %v4918 = vadd.f32 %v4904, %v4917
    %v4919 = vpop.f32.mrf.mxu0
    %v4920 = vadd.f32 %v4906, %v4919
    %4921 = vdwg.mxu0
    %4922 = vmatpush.bf16.msra.mxu0 %v3191
    %4923 = vmatpush.bf16.msra.mxu0 %v3187
    %4924 = vmatpush.bf16.msra.mxu0 %v3183
    %4925 = vmatpush.bf16.msra.mxu0 %v3179
    %4926 = vmatpush.bf16.msra.mxu0 %v3175
    %4927 = vmatpush.bf16.msra.mxu0 %v3171
    %4928 = vmatpush.bf16.msra.mxu0 %v3167
    %4929 = vmatpush.bf16.msra.mxu0 %v3163
    %4930 = vmatmul.bf16.gmra.mxu0 %v864
    %v4931 = vpop.f32.mrf.mxu0
    %v4932 = vadd.f32 %v4918, %v4931
    %v4933 = vpop.f32.mrf.mxu0
    %v4934 = vadd.f32 %v4920, %v4933
    %4935 = vdwg.mxu0
    %4936 = vmatpush.bf16.msra.mxu0 %v3223
    %4937 = vmatpush.bf16.msra.mxu0 %v3219
    %4938 = vmatpush.bf16.msra.mxu0 %v3215
    %4939 = vmatpush.bf16.msra.mxu0 %v3211
    %4940 = vmatpush.bf16.msra.mxu0 %v3207
    %4941 = vmatpush.bf16.msra.mxu0 %v3203
    %4942 = vmatpush.bf16.msra.mxu0 %v3199
    %4943 = vmatpush.bf16.msra.mxu0 %v3195
    %4944 = vmatmul.bf16.gmra.mxu0 %v865
    %v4945 = vpop.f32.mrf.mxu0
    %v4946 = vadd.f32 %v4932, %v4945
    %v4947 = vpop.f32.mrf.mxu0
    %v4948 = vadd.f32 %v4934, %v4947
    %4949 = vdwg.mxu0
    %4950 = vmatpush.bf16.msra.mxu0 %v3255
    %4951 = vmatpush.bf16.msra.mxu0 %v3251
    %4952 = vmatpush.bf16.msra.mxu0 %v3247
    %4953 = vmatpush.bf16.msra.mxu0 %v3243
    %4954 = vmatpush.bf16.msra.mxu0 %v3239
    %4955 = vmatpush.bf16.msra.mxu0 %v3235
    %4956 = vmatpush.bf16.msra.mxu0 %v3231
    %4957 = vmatpush.bf16.msra.mxu0 %v3227
    %4958 = vmatmul.bf16.gmra.mxu0 %v866
    %v4959 = vpop.f32.mrf.mxu0
    %v4960 = vadd.f32 %v4946, %v4959
    %v4961 = vpop.f32.mrf.mxu0
    %v4962 = vadd.f32 %v4948, %v4961
    %4963 = vdwg.mxu0
    %4964 = vmatpush.bf16.msra.mxu0 %v3287
    %4965 = vmatpush.bf16.msra.mxu0 %v3283
    %4966 = vmatpush.bf16.msra.mxu0 %v3279
    %4967 = vmatpush.bf16.msra.mxu0 %v3275
    %4968 = vmatpush.bf16.msra.mxu0 %v3271
    %4969 = vmatpush.bf16.msra.mxu0 %v3267
    %4970 = vmatpush.bf16.msra.mxu0 %v3263
    %4971 = vmatpush.bf16.msra.mxu0 %v3259
    %4972 = vmatmul.bf16.gmra.mxu0 %v867
    %v4973 = vpop.f32.mrf.mxu0
    %v4974 = vadd.f32 %v4960, %v4973
    %v4975 = vpop.f32.mrf.mxu0
    %v4976 = vadd.f32 %v4962, %v4975
    %4977 = vdwg.mxu0
    %4978 = vmatpush.bf16.msra.mxu0 %v3319
    %4979 = vmatpush.bf16.msra.mxu0 %v3315
    %4980 = vmatpush.bf16.msra.mxu0 %v3311
    %4981 = vmatpush.bf16.msra.mxu0 %v3307
    %4982 = vmatpush.bf16.msra.mxu0 %v3303
    %4983 = vmatpush.bf16.msra.mxu0 %v3299
    %4984 = vmatpush.bf16.msra.mxu0 %v3295
    %4985 = vmatpush.bf16.msra.mxu0 %v3291
    %4986 = vmatmul.bf16.gmra.mxu0 %v868
    %v4987 = vpop.f32.mrf.mxu0
    %v4988 = vadd.f32 %v4974, %v4987
    %v4989 = vpop.f32.mrf.mxu0
    %v4990 = vadd.f32 %v4976, %v4989
    %4991 = vdwg.mxu0
    %v4992 = vmax.f32 %v4190, 0.0
    %v4993 = vmax.f32 %v4456, 0.0
    %v4994 = vmax.f32 %v4722, 0.0
    %v4995 = vmax.f32 %v4988, 0.0
    %v4996 = vmax.f32 %v4192, 0.0
    %v4997 = vmax.f32 %v4458, 0.0
    %v4998 = vmax.f32 %v4724, 0.0
    %v4999 = vmax.f32 %v4990, 0.0
    %v5000 = vpack.c.bf16 %v4996, %v4992
    %v5001 = vpack.c.bf16 %v4997, %v4993
    %v5002 = vpack.c.bf16 %v4998, %v4994
    %v5003 = vpack.c.bf16 %v4999, %v4995
    %v5004 = vld [vmem:[#allocation6] sm:$0xff]
    %v5005 = vld [vmem:[#allocation6 + $0x8] sm:$0xff]
    %v5006 = vld [vmem:[#allocation6 + $0x10] sm:$0xff]
    %v5007 = vld [vmem:[#allocation6 + $0x18] sm:$0xff]
    %v5008 = vld [vmem:[#allocation6 + $0x20] sm:$0xff]
    %v5009 = vld [vmem:[#allocation6 + $0x28] sm:$0xff]
    %v5010 = vld [vmem:[#allocation6 + $0x30] sm:$0xff]
    %v5011 = vld [vmem:[#allocation6 + $0x38] sm:$0xff]
    %v5012 = vld [vmem:[#allocation6 + $0x40] sm:$0xff]
    %v5013 = vld [vmem:[#allocation6 + $0x48] sm:$0xff]
    %v5014 = vld [vmem:[#allocation6 + $0x50] sm:$0xff]
    %v5015 = vld [vmem:[#allocation6 + $0x58] sm:$0xff]
    %v5016 = vld [vmem:[#allocation6 + $0x60] sm:$0xff]
    %v5017 = vld [vmem:[#allocation6 + $0x68] sm:$0xff]
    %v5018 = vld [vmem:[#allocation6 + $0x70] sm:$0xff]
    %v5019 = vld [vmem:[#allocation6 + $0x78] sm:$0xff]
    %v5020 = vld [vmem:[#allocation6 + $0x80] sm:$0xff]
    %v5021 = vld [vmem:[#allocation6 + $0x88] sm:$0xff]
    %v5022 = vld [vmem:[#allocation6 + $0x90] sm:$0xff]
    %v5023 = vld [vmem:[#allocation6 + $0x98] sm:$0xff]
    %v5024 = vld [vmem:[#allocation6 + $0xa0] sm:$0xff]
    %v5025 = vld [vmem:[#allocation6 + $0xa8] sm:$0xff]
    %v5026 = vld [vmem:[#allocation6 + $0xb0] sm:$0xff]
    %v5027 = vld [vmem:[#allocation6 + $0xb8] sm:$0xff]
    %v5028 = vld [vmem:[#allocation6 + $0xc0] sm:$0xff]
    %v5029 = vld [vmem:[#allocation6 + $0xc8] sm:$0xff]
    %v5030 = vld [vmem:[#allocation6 + $0xd0] sm:$0xff]
    %v5031 = vld [vmem:[#allocation6 + $0xd8] sm:$0xff]
    %v5032 = vld [vmem:[#allocation6 + $0xe0] sm:$0xff]
    %v5033 = vld [vmem:[#allocation6 + $0xe8] sm:$0xff]
    %v5034 = vld [vmem:[#allocation6 + $0xf0] sm:$0xff]
    %v5035 = vld [vmem:[#allocation6 + $0xf8] sm:$0xff]
    %v5036 = vld [vmem:[#allocation6 + $0x100] sm:$0xff]
    %v5037 = vld [vmem:[#allocation6 + $0x108] sm:$0xff]
    %v5038 = vld [vmem:[#allocation6 + $0x110] sm:$0xff]
    %v5039 = vld [vmem:[#allocation6 + $0x118] sm:$0xff]
    %v5040 = vld [vmem:[#allocation6 + $0x120] sm:$0xff]
    %v5041 = vld [vmem:[#allocation6 + $0x128] sm:$0xff]
    %v5042 = vld [vmem:[#allocation6 + $0x130] sm:$0xff]
    %v5043 = vld [vmem:[#allocation6 + $0x138] sm:$0xff]
    %v5044 = vld [vmem:[#allocation6 + $0x140] sm:$0xff]
    %v5045 = vld [vmem:[#allocation6 + $0x148] sm:$0xff]
    %v5046 = vld [vmem:[#allocation6 + $0x150] sm:$0xff]
    %v5047 = vld [vmem:[#allocation6 + $0x158] sm:$0xff]
    %v5048 = vld [vmem:[#allocation6 + $0x160] sm:$0xff]
    %v5049 = vld [vmem:[#allocation6 + $0x168] sm:$0xff]
    %v5050 = vld [vmem:[#allocation6 + $0x170] sm:$0xff]
    %v5051 = vld [vmem:[#allocation6 + $0x178] sm:$0xff]
    %v5052 = vld [vmem:[#allocation6 + $0x180] sm:$0xff]
    %v5053 = vld [vmem:[#allocation6 + $0x188] sm:$0xff]
    %v5054 = vld [vmem:[#allocation6 + $0x190] sm:$0xff]
    %v5055 = vld [vmem:[#allocation6 + $0x198] sm:$0xff]
    %v5056 = vld [vmem:[#allocation6 + $0x1a0] sm:$0xff]
    %v5057 = vld [vmem:[#allocation6 + $0x1a8] sm:$0xff]
    %v5058 = vld [vmem:[#allocation6 + $0x1b0] sm:$0xff]
    %v5059 = vld [vmem:[#allocation6 + $0x1b8] sm:$0xff]
    %v5060 = vld [vmem:[#allocation6 + $0x1c0] sm:$0xff]
    %v5061 = vld [vmem:[#allocation6 + $0x1c8] sm:$0xff]
    %v5062 = vld [vmem:[#allocation6 + $0x1d0] sm:$0xff]
    %v5063 = vld [vmem:[#allocation6 + $0x1d8] sm:$0xff]
    %v5064 = vld [vmem:[#allocation6 + $0x1e0] sm:$0xff]
    %v5065 = vld [vmem:[#allocation6 + $0x1e8] sm:$0xff]
    %v5066 = vld [vmem:[#allocation6 + $0x1f0] sm:$0xff]
    %v5067 = vld [vmem:[#allocation6 + $0x1f8] sm:$0xff]
    %v5068 = vld [vmem:[#allocation7] sm:$0x3]
    %v5070 = vperm.slane %v5068, 0
    %v5071 = vperm.slane %v5068, 1
    %v5138 = vunpack.c.l.b16 %v5004
    %v5139 = vunpack.c.h.b16 %v5004
    %v5140 = vunpack.c.l.b16 %v5005
    %v5141 = vunpack.c.h.b16 %v5005
    %v5142 = vunpack.c.l.b16 %v5006
    %v5143 = vunpack.c.h.b16 %v5006
    %v5144 = vunpack.c.l.b16 %v5007
    %v5145 = vunpack.c.h.b16 %v5007
    %v5146 = vunpack.c.l.b16 %v5008
    %v5147 = vunpack.c.h.b16 %v5008
    %v5148 = vunpack.c.l.b16 %v5009
    %v5149 = vunpack.c.h.b16 %v5009
    %v5150 = vunpack.c.l.b16 %v5010
    %v5151 = vunpack.c.h.b16 %v5010
    %v5152 = vunpack.c.l.b16 %v5011
    %v5153 = vunpack.c.h.b16 %v5011
    %v5154 = vunpack.c.l.b16 %v5012
    %v5155 = vunpack.c.h.b16 %v5012
    %v5156 = vunpack.c.l.b16 %v5013
    %v5157 = vunpack.c.h.b16 %v5013
    %v5158 = vunpack.c.l.b16 %v5014
    %v5159 = vunpack.c.h.b16 %v5014
    %v5160 = vunpack.c.l.b16 %v5015
    %v5161 = vunpack.c.h.b16 %v5015
    %v5162 = vunpack.c.l.b16 %v5016
    %v5163 = vunpack.c.h.b16 %v5016
    %v5164 = vunpack.c.l.b16 %v5017
    %v5165 = vunpack.c.h.b16 %v5017
    %v5166 = vunpack.c.l.b16 %v5018
    %v5167 = vunpack.c.h.b16 %v5018
    %v5168 = vunpack.c.l.b16 %v5019
    %v5169 = vunpack.c.h.b16 %v5019
    %v5170 = vunpack.c.l.b16 %v5020
    %v5171 = vunpack.c.h.b16 %v5020
    %v5172 = vunpack.c.l.b16 %v5021
    %v5173 = vunpack.c.h.b16 %v5021
    %v5174 = vunpack.c.l.b16 %v5022
    %v5175 = vunpack.c.h.b16 %v5022
    %v5176 = vunpack.c.l.b16 %v5023
    %v5177 = vunpack.c.h.b16 %v5023
    %v5178 = vunpack.c.l.b16 %v5024
    %v5179 = vunpack.c.h.b16 %v5024
    %v5180 = vunpack.c.l.b16 %v5025
    %v5181 = vunpack.c.h.b16 %v5025
    %v5182 = vunpack.c.l.b16 %v5026
    %v5183 = vunpack.c.h.b16 %v5026
    %v5184 = vunpack.c.l.b16 %v5027
    %v5185 = vunpack.c.h.b16 %v5027
    %v5186 = vunpack.c.l.b16 %v5028
    %v5187 = vunpack.c.h.b16 %v5028
    %v5188 = vunpack.c.l.b16 %v5029
    %v5189 = vunpack.c.h.b16 %v5029
    %v5190 = vunpack.c.l.b16 %v5030
    %v5191 = vunpack.c.h.b16 %v5030
    %v5192 = vunpack.c.l.b16 %v5031
    %v5193 = vunpack.c.h.b16 %v5031
    %v5194 = vunpack.c.l.b16 %v5032
    %v5195 = vunpack.c.h.b16 %v5032
    %v5196 = vunpack.c.l.b16 %v5033
    %v5197 = vunpack.c.h.b16 %v5033
    %v5198 = vunpack.c.l.b16 %v5034
    %v5199 = vunpack.c.h.b16 %v5034
    %v5200 = vunpack.c.l.b16 %v5035
    %v5201 = vunpack.c.h.b16 %v5035
    %v5202 = vunpack.c.l.b16 %v5036
    %v5203 = vunpack.c.h.b16 %v5036
    %v5204 = vunpack.c.l.b16 %v5037
    %v5205 = vunpack.c.h.b16 %v5037
    %v5206 = vunpack.c.l.b16 %v5038
    %v5207 = vunpack.c.h.b16 %v5038
    %v5208 = vunpack.c.l.b16 %v5039
    %v5209 = vunpack.c.h.b16 %v5039
    %v5210 = vunpack.c.l.b16 %v5040
    %v5211 = vunpack.c.h.b16 %v5040
    %v5212 = vunpack.c.l.b16 %v5041
    %v5213 = vunpack.c.h.b16 %v5041
    %v5214 = vunpack.c.l.b16 %v5042
    %v5215 = vunpack.c.h.b16 %v5042
    %v5216 = vunpack.c.l.b16 %v5043
    %v5217 = vunpack.c.h.b16 %v5043
    %v5218 = vunpack.c.l.b16 %v5044
    %v5219 = vunpack.c.h.b16 %v5044
    %v5220 = vunpack.c.l.b16 %v5045
    %v5221 = vunpack.c.h.b16 %v5045
    %v5222 = vunpack.c.l.b16 %v5046
    %v5223 = vunpack.c.h.b16 %v5046
    %v5224 = vunpack.c.l.b16 %v5047
    %v5225 = vunpack.c.h.b16 %v5047
    %v5226 = vunpack.c.l.b16 %v5048
    %v5227 = vunpack.c.h.b16 %v5048
    %v5228 = vunpack.c.l.b16 %v5049
    %v5229 = vunpack.c.h.b16 %v5049
    %v5230 = vunpack.c.l.b16 %v5050
    %v5231 = vunpack.c.h.b16 %v5050
    %v5232 = vunpack.c.l.b16 %v5051
    %v5233 = vunpack.c.h.b16 %v5051
    %v5234 = vunpack.c.l.b16 %v5052
    %v5235 = vunpack.c.h.b16 %v5052
    %v5236 = vunpack.c.l.b16 %v5053
    %v5237 = vunpack.c.h.b16 %v5053
    %v5238 = vunpack.c.l.b16 %v5054
    %v5239 = vunpack.c.h.b16 %v5054
    %v5240 = vunpack.c.l.b16 %v5055
    %v5241 = vunpack.c.h.b16 %v5055
    %v5242 = vunpack.c.l.b16 %v5056
    %v5243 = vunpack.c.h.b16 %v5056
    %v5244 = vunpack.c.l.b16 %v5057
    %v5245 = vunpack.c.h.b16 %v5057
    %v5246 = vunpack.c.l.b16 %v5058
    %v5247 = vunpack.c.h.b16 %v5058
    %v5248 = vunpack.c.l.b16 %v5059
    %v5249 = vunpack.c.h.b16 %v5059
    %v5250 = vunpack.c.l.b16 %v5060
    %v5251 = vunpack.c.h.b16 %v5060
    %v5252 = vunpack.c.l.b16 %v5061
    %v5253 = vunpack.c.h.b16 %v5061
    %v5254 = vunpack.c.l.b16 %v5062
    %v5255 = vunpack.c.h.b16 %v5062
    %v5256 = vunpack.c.l.b16 %v5063
    %v5257 = vunpack.c.h.b16 %v5063
    %v5258 = vunpack.c.l.b16 %v5064
    %v5259 = vunpack.c.h.b16 %v5064
    %v5260 = vunpack.c.l.b16 %v5065
    %v5261 = vunpack.c.h.b16 %v5065
    %v5262 = vunpack.c.l.b16 %v5066
    %v5263 = vunpack.c.h.b16 %v5066
    %v5264 = vunpack.c.l.b16 %v5067
    %v5265 = vunpack.c.h.b16 %v5067
    %v5266 = vpack.c.b16 %v5140, %v5138
    %v5267 = vpack.c.b16 %v5141, %v5139
    %v5268 = vpack.c.b16 %v5144, %v5142
    %v5269 = vpack.c.b16 %v5145, %v5143
    %v5270 = vpack.c.b16 %v5148, %v5146
    %v5271 = vpack.c.b16 %v5149, %v5147
    %v5272 = vpack.c.b16 %v5152, %v5150
    %v5273 = vpack.c.b16 %v5153, %v5151
    %v5274 = vpack.c.b16 %v5156, %v5154
    %v5275 = vpack.c.b16 %v5157, %v5155
    %v5276 = vpack.c.b16 %v5160, %v5158
    %v5277 = vpack.c.b16 %v5161, %v5159
    %v5278 = vpack.c.b16 %v5164, %v5162
    %v5279 = vpack.c.b16 %v5165, %v5163
    %v5280 = vpack.c.b16 %v5168, %v5166
    %v5281 = vpack.c.b16 %v5169, %v5167
    %v5282 = vpack.c.b16 %v5172, %v5170
    %v5283 = vpack.c.b16 %v5173, %v5171
    %v5284 = vpack.c.b16 %v5176, %v5174
    %v5285 = vpack.c.b16 %v5177, %v5175
    %v5286 = vpack.c.b16 %v5180, %v5178
    %v5287 = vpack.c.b16 %v5181, %v5179
    %v5288 = vpack.c.b16 %v5184, %v5182
    %v5289 = vpack.c.b16 %v5185, %v5183
    %v5290 = vpack.c.b16 %v5188, %v5186
    %v5291 = vpack.c.b16 %v5189, %v5187
    %v5292 = vpack.c.b16 %v5192, %v5190
    %v5293 = vpack.c.b16 %v5193, %v5191
    %v5294 = vpack.c.b16 %v5196, %v5194
    %v5295 = vpack.c.b16 %v5197, %v5195
    %v5296 = vpack.c.b16 %v5200, %v5198
    %v5297 = vpack.c.b16 %v5201, %v5199
    %v5298 = vpack.c.b16 %v5204, %v5202
    %v5299 = vpack.c.b16 %v5205, %v5203
    %v5300 = vpack.c.b16 %v5208, %v5206
    %v5301 = vpack.c.b16 %v5209, %v5207
    %v5302 = vpack.c.b16 %v5212, %v5210
    %v5303 = vpack.c.b16 %v5213, %v5211
    %v5304 = vpack.c.b16 %v5216, %v5214
    %v5305 = vpack.c.b16 %v5217, %v5215
    %v5306 = vpack.c.b16 %v5220, %v5218
    %v5307 = vpack.c.b16 %v5221, %v5219
    %v5308 = vpack.c.b16 %v5224, %v5222
    %v5309 = vpack.c.b16 %v5225, %v5223
    %v5310 = vpack.c.b16 %v5228, %v5226
    %v5311 = vpack.c.b16 %v5229, %v5227
    %v5312 = vpack.c.b16 %v5232, %v5230
    %v5313 = vpack.c.b16 %v5233, %v5231
    %v5314 = vpack.c.b16 %v5236, %v5234
    %v5315 = vpack.c.b16 %v5237, %v5235
    %v5316 = vpack.c.b16 %v5240, %v5238
    %v5317 = vpack.c.b16 %v5241, %v5239
    %v5318 = vpack.c.b16 %v5244, %v5242
    %v5319 = vpack.c.b16 %v5245, %v5243
    %v5320 = vpack.c.b16 %v5248, %v5246
    %v5321 = vpack.c.b16 %v5249, %v5247
    %v5322 = vpack.c.b16 %v5252, %v5250
    %v5323 = vpack.c.b16 %v5253, %v5251
    %v5324 = vpack.c.b16 %v5256, %v5254
    %v5325 = vpack.c.b16 %v5257, %v5255
    %v5326 = vpack.c.b16 %v5260, %v5258
    %v5327 = vpack.c.b16 %v5261, %v5259
    %v5328 = vpack.c.b16 %v5264, %v5262
    %v5329 = vpack.c.b16 %v5265, %v5263
    %5394 = vmatpush.bf16.msra.mxu0 %v5280
    %5395 = vmatpush.bf16.msra.mxu0 %v5278
    %5396 = vmatpush.bf16.msra.mxu0 %v5276
    %5397 = vmatpush.bf16.msra.mxu0 %v5274
    %5398 = vmatpush.bf16.msra.mxu0 %v5272
    %5399 = vmatpush.bf16.msra.mxu0 %v5270
    %5400 = vmatpush.bf16.msra.mxu0 %v5268
    %5401 = vmatpush.bf16.msra.mxu0 %v5266
    %5402 = vmatmul.bf16.gmra.mxu0 %v5000
    %v5403 = vpop.f32.mrf.mxu0
    %v5404 = vadd.f32 %v5070, %v5403
    %v5405 = vpop.f32.mrf.mxu0
    %v5406 = vadd.f32 %v5070, %v5405
    %5407 = vdwg.mxu0
    %5408 = vmatpush.bf16.msra.mxu0 %v5296
    %5409 = vmatpush.bf16.msra.mxu0 %v5294
    %5410 = vmatpush.bf16.msra.mxu0 %v5292
    %5411 = vmatpush.bf16.msra.mxu0 %v5290
    %5412 = vmatpush.bf16.msra.mxu0 %v5288
    %5413 = vmatpush.bf16.msra.mxu0 %v5286
    %5414 = vmatpush.bf16.msra.mxu0 %v5284
    %5415 = vmatpush.bf16.msra.mxu0 %v5282
    %5416 = vmatmul.bf16.gmra.mxu0 %v5001
    %v5417 = vpop.f32.mrf.mxu0
    %v5418 = vadd.f32 %v5404, %v5417
    %v5419 = vpop.f32.mrf.mxu0
    %v5420 = vadd.f32 %v5406, %v5419
    %5421 = vdwg.mxu0
    %5422 = vmatpush.bf16.msra.mxu0 %v5312
    %5423 = vmatpush.bf16.msra.mxu0 %v5310
    %5424 = vmatpush.bf16.msra.mxu0 %v5308
    %5425 = vmatpush.bf16.msra.mxu0 %v5306
    %5426 = vmatpush.bf16.msra.mxu0 %v5304
    %5427 = vmatpush.bf16.msra.mxu0 %v5302
    %5428 = vmatpush.bf16.msra.mxu0 %v5300
    %5429 = vmatpush.bf16.msra.mxu0 %v5298
    %5430 = vmatmul.bf16.gmra.mxu0 %v5002
    %v5431 = vpop.f32.mrf.mxu0
    %v5432 = vadd.f32 %v5418, %v5431
    %v5433 = vpop.f32.mrf.mxu0
    %v5434 = vadd.f32 %v5420, %v5433
    %5435 = vdwg.mxu0
    %5436 = vmatpush.bf16.msra.mxu0 %v5328
    %5437 = vmatpush.bf16.msra.mxu0 %v5326
    %5438 = vmatpush.bf16.msra.mxu0 %v5324
    %5439 = vmatpush.bf16.msra.mxu0 %v5322
    %5440 = vmatpush.bf16.msra.mxu0 %v5320
    %5441 = vmatpush.bf16.msra.mxu0 %v5318
    %5442 = vmatpush.bf16.msra.mxu0 %v5316
    %5443 = vmatpush.bf16.msra.mxu0 %v5314
    %5444 = vmatmul.bf16.gmra.mxu0 %v5003
    %v5445 = vpop.f32.mrf.mxu0
    %v5446 = vadd.f32 %v5432, %v5445
    %v5447 = vpop.f32.mrf.mxu0
    %v5448 = vadd.f32 %v5434, %v5447
    %5449 = vdwg.mxu0
    %5450 = vmatpush.bf16.msra.mxu0 %v5281
    %5451 = vmatpush.bf16.msra.mxu0 %v5279
    %5452 = vmatpush.bf16.msra.mxu0 %v5277
    %5453 = vmatpush.bf16.msra.mxu0 %v5275
    %5454 = vmatpush.bf16.msra.mxu0 %v5273
    %5455 = vmatpush.bf16.msra.mxu0 %v5271
    %5456 = vmatpush.bf16.msra.mxu0 %v5269
    %5457 = vmatpush.bf16.msra.mxu0 %v5267
    %5458 = vmatmul.bf16.gmra.mxu0 %v5000
    %v5459 = vpop.f32.mrf.mxu0
    %v5460 = vadd.f32 %v5071, %v5459
    %v5461 = vpop.f32.mrf.mxu0
    %v5462 = vadd.f32 %v5071, %v5461
    %5463 = vdwg.mxu0
    %5464 = vmatpush.bf16.msra.mxu0 %v5297
    %5465 = vmatpush.bf16.msra.mxu0 %v5295
    %5466 = vmatpush.bf16.msra.mxu0 %v5293
    %5467 = vmatpush.bf16.msra.mxu0 %v5291
    %5468 = vmatpush.bf16.msra.mxu0 %v5289
    %5469 = vmatpush.bf16.msra.mxu0 %v5287
    %5470 = vmatpush.bf16.msra.mxu0 %v5285
    %5471 = vmatpush.bf16.msra.mxu0 %v5283
    %5472 = vmatmul.bf16.gmra.mxu0 %v5001
    %v5473 = vpop.f32.mrf.mxu0
    %v5474 = vadd.f32 %v5460, %v5473
    %v5475 = vpop.f32.mrf.mxu0
    %v5476 = vadd.f32 %v5462, %v5475
    %5477 = vdwg.mxu0
    %5478 = vmatpush.bf16.msra.mxu0 %v5313
    %5479 = vmatpush.bf16.msra.mxu0 %v5311
    %5480 = vmatpush.bf16.msra.mxu0 %v5309
    %5481 = vmatpush.bf16.msra.mxu0 %v5307
    %5482 = vmatpush.bf16.msra.mxu0 %v5305
    %5483 = vmatpush.bf16.msra.mxu0 %v5303
    %5484 = vmatpush.bf16.msra.mxu0 %v5301
    %5485 = vmatpush.bf16.msra.mxu0 %v5299
    %5486 = vmatmul.bf16.gmra.mxu0 %v5002
    %v5487 = vpop.f32.mrf.mxu0
    %v5488 = vadd.f32 %v5474, %v5487
    %v5489 = vpop.f32.mrf.mxu0
    %v5490 = vadd.f32 %v5476, %v5489
    %5491 = vdwg.mxu0
    %5492 = vmatpush.bf16.msra.mxu0 %v5329
    %5493 = vmatpush.bf16.msra.mxu0 %v5327
    %5494 = vmatpush.bf16.msra.mxu0 %v5325
    %5495 = vmatpush.bf16.msra.mxu0 %v5323
    %5496 = vmatpush.bf16.msra.mxu0 %v5321
    %5497 = vmatpush.bf16.msra.mxu0 %v5319
    %5498 = vmatpush.bf16.msra.mxu0 %v5317
    %5499 = vmatpush.bf16.msra.mxu0 %v5315
    %5500 = vmatmul.bf16.gmra.mxu0 %v5003
    %v5501 = vpop.f32.mrf.mxu0
    %v5502 = vadd.f32 %v5488, %v5501
    %v5503 = vpop.f32.mrf.mxu0
    %v5504 = vadd.f32 %v5490, %v5503
    %5505 = vdwg.mxu0
    %s5506 = smul.u32 0, 16
    %v5507 = vlaneseq
    %v5508 = vshrl.u32 %v5507, 7
    %v5509 = vadd.s32 %v5508, 8
    %v5510 = vstv %s5506
    %v5511 = vadd.s32 %v5510, %v5508
    %v5512 = vadd.s32 %v5510, %v5509
    %vm5513 = vcmp.lt.s32.totalorder %v5511, 2
    %vm5514 = vcmp.lt.s32.totalorder %v5512, 2
    %v5515 = vadd.f32 %v5502, 1.0
    %v5516 = vadd.f32 %v5504, 1.0
    %v5517 = vmul.f32 %v5446, %v5446
    %v5518 = vmul.f32 %v5448, %v5448
    %v5519 = vsub.f32 %v5515, %v5517
    %v5520 = vsub.f32 %v5516, %v5518
    %v5521 = vmul.f32 %v5502, 1.442695
    %v5522 = vpow.pop %v5521
    %v5523 = vmul.f32 %v5504, 1.442695
    %v5524 = vpow.pop %v5523
    %v5525 = vsub.f32 %v5519, %v5522
    %v5526 = vsub.f32 %v5520, %v5524
    %v5527 = vsel %vm5513, %v5525, 0.0
    %v5528 = vsel %vm5514, %v5526, 0.0
    %v5529 = vadd.f32 %v5527, %v5528
    %5530 = vst [vmem:[%s11] sm:$0xff] %v5529
    %v5531 = vmul.f32 %v5502, 0.5
    %v5532 = vmul.f32 %v5504, 0.5
    %v5533 = vmul.f32 %v5531, 1.442695
    %v5534 = vpow.pop %v5533
    %v5535 = vmul.f32 %v5532, 1.442695
    %v5536 = vpow.pop %v5535
    %v5537 = vld [vmem:[%s1] sm:$0xff]
    %v5538 = vld [vmem:[%s1 + $0x8] sm:$0xff]
    %v5539 = vmul.f32 %v5534, %v5537
    %v5540 = vmul.f32 %v5536, %v5538
    %v5541 = vadd.f32 %v5446, %v5539
    %v5542 = vadd.f32 %v5448, %v5540
    %v5543 = vpack.c.bf16 %v5542, %v5541
    %v5544 = vld [vmem:[#allocation9] sm:$0xff]
    %v5545 = vld [vmem:[#allocation9 + $0x8] sm:$0xff]
    %v5546 = vld [vmem:[#allocation9 + $0x10] sm:$0xff]
    %v5547 = vld [vmem:[#allocation9 + $0x18] sm:$0xff]
    %v5548 = vld [vmem:[#allocation9 + $0x20] sm:$0xff]
    %v5549 = vld [vmem:[#allocation9 + $0x28] sm:$0xff]
    %v5550 = vld [vmem:[#allocation9 + $0x30] sm:$0xff]
    %v5551 = vld [vmem:[#allocation9 + $0x38] sm:$0xff]
    %v5552 = vld [vmem:[#allocation9 + $0x40] sm:$0xff]
    %v5553 = vld [vmem:[#allocation9 + $0x48] sm:$0xff]
    %v5554 = vld [vmem:[#allocation9 + $0x50] sm:$0xff]
    %v5555 = vld [vmem:[#allocation9 + $0x58] sm:$0xff]
    %v5556 = vld [vmem:[#allocation9 + $0x60] sm:$0xff]
    %v5557 = vld [vmem:[#allocation9 + $0x68] sm:$0xff]
    %v5558 = vld [vmem:[#allocation9 + $0x70] sm:$0xff]
    %v5559 = vld [vmem:[#allocation9 + $0x78] sm:$0xff]
    %v5560 = vld [vmem:[#allocation9 + $0x80] sm:$0xff]
    %v5561 = vld [vmem:[#allocation9 + $0x88] sm:$0xff]
    %v5562 = vld [vmem:[#allocation9 + $0x90] sm:$0xff]
    %v5563 = vld [vmem:[#allocation9 + $0x98] sm:$0xff]
    %v5564 = vld [vmem:[#allocation9 + $0xa0] sm:$0xff]
    %v5565 = vld [vmem:[#allocation9 + $0xa8] sm:$0xff]
    %v5566 = vld [vmem:[#allocation9 + $0xb0] sm:$0xff]
    %v5567 = vld [vmem:[#allocation9 + $0xb8] sm:$0xff]
    %v5568 = vld [vmem:[#allocation9 + $0xc0] sm:$0xff]
    %v5569 = vld [vmem:[#allocation9 + $0xc8] sm:$0xff]
    %v5570 = vld [vmem:[#allocation9 + $0xd0] sm:$0xff]
    %v5571 = vld [vmem:[#allocation9 + $0xd8] sm:$0xff]
    %v5572 = vld [vmem:[#allocation9 + $0xe0] sm:$0xff]
    %v5573 = vld [vmem:[#allocation9 + $0xe8] sm:$0xff]
    %v5574 = vld [vmem:[#allocation9 + $0xf0] sm:$0xff]
    %v5575 = vld [vmem:[#allocation9 + $0xf8] sm:$0xff]
    %v5576 = vld [vmem:[#allocation10] sm:$0xf]
    %v5578 = vperm.slane %v5576, 0
    %v5579 = vperm.slane %v5576, 1
    %v5580 = vperm.slane %v5576, 2
    %v5581 = vperm.slane %v5576, 3
    %v5618 = vunpack.c.l.b16 %v5544
    %v5619 = vunpack.c.h.b16 %v5544
    %v5620 = vunpack.c.l.b16 %v5545
    %v5621 = vunpack.c.h.b16 %v5545
    %v5622 = vunpack.c.l.b16 %v5546
    %v5623 = vunpack.c.h.b16 %v5546
    %v5624 = vunpack.c.l.b16 %v5547
    %v5625 = vunpack.c.h.b16 %v5547
    %v5626 = vunpack.c.l.b16 %v5548
    %v5627 = vunpack.c.h.b16 %v5548
    %v5628 = vunpack.c.l.b16 %v5549
    %v5629 = vunpack.c.h.b16 %v5549
    %v5630 = vunpack.c.l.b16 %v5550
    %v5631 = vunpack.c.h.b16 %v5550
    %v5632 = vunpack.c.l.b16 %v5551
    %v5633 = vunpack.c.h.b16 %v5551
    %v5634 = vunpack.c.l.b16 %v5552
    %v5635 = vunpack.c.h.b16 %v5552
    %v5636 = vunpack.c.l.b16 %v5553
    %v5637 = vunpack.c.h.b16 %v5553
    %v5638 = vunpack.c.l.b16 %v5554
    %v5639 = vunpack.c.h.b16 %v5554
    %v5640 = vunpack.c.l.b16 %v5555
    %v5641 = vunpack.c.h.b16 %v5555
    %v5642 = vunpack.c.l.b16 %v5556
    %v5643 = vunpack.c.h.b16 %v5556
    %v5644 = vunpack.c.l.b16 %v5557
    %v5645 = vunpack.c.h.b16 %v5557
    %v5646 = vunpack.c.l.b16 %v5558
    %v5647 = vunpack.c.h.b16 %v5558
    %v5648 = vunpack.c.l.b16 %v5559
    %v5649 = vunpack.c.h.b16 %v5559
    %v5650 = vunpack.c.l.b16 %v5560
    %v5651 = vunpack.c.h.b16 %v5560
    %v5652 = vunpack.c.l.b16 %v5561
    %v5653 = vunpack.c.h.b16 %v5561
    %v5654 = vunpack.c.l.b16 %v5562
    %v5655 = vunpack.c.h.b16 %v5562
    %v5656 = vunpack.c.l.b16 %v5563
    %v5657 = vunpack.c.h.b16 %v5563
    %v5658 = vunpack.c.l.b16 %v5564
    %v5659 = vunpack.c.h.b16 %v5564
    %v5660 = vunpack.c.l.b16 %v5565
    %v5661 = vunpack.c.h.b16 %v5565
    %v5662 = vunpack.c.l.b16 %v5566
    %v5663 = vunpack.c.h.b16 %v5566
    %v5664 = vunpack.c.l.b16 %v5567
    %v5665 = vunpack.c.h.b16 %v5567
    %v5666 = vunpack.c.l.b16 %v5568
    %v5667 = vunpack.c.h.b16 %v5568
    %v5668 = vunpack.c.l.b16 %v5569
    %v5669 = vunpack.c.h.b16 %v5569
    %v5670 = vunpack.c.l.b16 %v5570
    %v5671 = vunpack.c.h.b16 %v5570
    %v5672 = vunpack.c.l.b16 %v5571
    %v5673 = vunpack.c.h.b16 %v5571
    %v5674 = vunpack.c.l.b16 %v5572
    %v5675 = vunpack.c.h.b16 %v5572
    %v5676 = vunpack.c.l.b16 %v5573
    %v5677 = vunpack.c.h.b16 %v5573
    %v5678 = vunpack.c.l.b16 %v5574
    %v5679 = vunpack.c.h.b16 %v5574
    %v5680 = vunpack.c.l.b16 %v5575
    %v5681 = vunpack.c.h.b16 %v5575
    %v5682 = vpack.c.b16 %v5622, %v5618
    %v5683 = vpack.c.b16 %v5623, %v5619
    %v5684 = vpack.c.b16 %v5624, %v5620
    %v5685 = vpack.c.b16 %v5625, %v5621
    %v5686 = vpack.c.b16 %v5630, %v5626
    %v5687 = vpack.c.b16 %v5631, %v5627
    %v5688 = vpack.c.b16 %v5632, %v5628
    %v5689 = vpack.c.b16 %v5633, %v5629
    %v5690 = vpack.c.b16 %v5638, %v5634
    %v5691 = vpack.c.b16 %v5639, %v5635
    %v5692 = vpack.c.b16 %v5640, %v5636
    %v5693 = vpack.c.b16 %v5641, %v5637
    %v5694 = vpack.c.b16 %v5646, %v5642
    %v5695 = vpack.c.b16 %v5647, %v5643
    %v5696 = vpack.c.b16 %v5648, %v5644
    %v5697 = vpack.c.b16 %v5649, %v5645
    %v5698 = vpack.c.b16 %v5654, %v5650
    %v5699 = vpack.c.b16 %v5655, %v5651
    %v5700 = vpack.c.b16 %v5656, %v5652
    %v5701 = vpack.c.b16 %v5657, %v5653
    %v5702 = vpack.c.b16 %v5662, %v5658
    %v5703 = vpack.c.b16 %v5663, %v5659
    %v5704 = vpack.c.b16 %v5664, %v5660
    %v5705 = vpack.c.b16 %v5665, %v5661
    %v5706 = vpack.c.b16 %v5670, %v5666
    %v5707 = vpack.c.b16 %v5671, %v5667
    %v5708 = vpack.c.b16 %v5672, %v5668
    %v5709 = vpack.c.b16 %v5673, %v5669
    %v5710 = vpack.c.b16 %v5678, %v5674
    %v5711 = vpack.c.b16 %v5679, %v5675
    %v5712 = vpack.c.b16 %v5680, %v5676
    %v5713 = vpack.c.b16 %v5681, %v5677
    %5746 = vmatpush.bf16.msra.mxu0 %v5710
    %5747 = vmatpush.bf16.msra.mxu0 %v5706
    %5748 = vmatpush.bf16.msra.mxu0 %v5702
    %5749 = vmatpush.bf16.msra.mxu0 %v5698
    %5750 = vmatpush.bf16.msra.mxu0 %v5694
    %5751 = vmatpush.bf16.msra.mxu0 %v5690
    %5752 = vmatpush.bf16.msra.mxu0 %v5686
    %5753 = vmatpush.bf16.msra.mxu0 %v5682
    %5754 = vmatmul.bf16.gmra.mxu0 %v5543
    %v5755 = vpop.f32.mrf.mxu0
    %v5756 = vadd.f32 %v5578, %v5755
    %v5757 = vpop.f32.mrf.mxu0
    %v5758 = vadd.f32 %v5578, %v5757
    %5759 = vdwg.mxu0
    %5760 = vmatpush.bf16.msra.mxu0 %v5711
    %5761 = vmatpush.bf16.msra.mxu0 %v5707
    %5762 = vmatpush.bf16.msra.mxu0 %v5703
    %5763 = vmatpush.bf16.msra.mxu0 %v5699
    %5764 = vmatpush.bf16.msra.mxu0 %v5695
    %5765 = vmatpush.bf16.msra.mxu0 %v5691
    %5766 = vmatpush.bf16.msra.mxu0 %v5687
    %5767 = vmatpush.bf16.msra.mxu0 %v5683
    %5768 = vmatmul.bf16.gmra.mxu0 %v5543
    %v5769 = vpop.f32.mrf.mxu0
    %v5770 = vadd.f32 %v5579, %v5769
    %v5771 = vpop.f32.mrf.mxu0
    %v5772 = vadd.f32 %v5579, %v5771
    %5773 = vdwg.mxu0
    %5774 = vmatpush.bf16.msra.mxu0 %v5712
    %5775 = vmatpush.bf16.msra.mxu0 %v5708
    %5776 = vmatpush.bf16.msra.mxu0 %v5704
    %5777 = vmatpush.bf16.msra.mxu0 %v5700
    %5778 = vmatpush.bf16.msra.mxu0 %v5696
    %5779 = vmatpush.bf16.msra.mxu0 %v5692
    %5780 = vmatpush.bf16.msra.mxu0 %v5688
    %5781 = vmatpush.bf16.msra.mxu0 %v5684
    %5782 = vmatmul.bf16.gmra.mxu0 %v5543
    %v5783 = vpop.f32.mrf.mxu0
    %v5784 = vadd.f32 %v5580, %v5783
    %v5785 = vpop.f32.mrf.mxu0
    %v5786 = vadd.f32 %v5580, %v5785
    %5787 = vdwg.mxu0
    %5788 = vmatpush.bf16.msra.mxu0 %v5713
    %5789 = vmatpush.bf16.msra.mxu0 %v5709
    %5790 = vmatpush.bf16.msra.mxu0 %v5705
    %5791 = vmatpush.bf16.msra.mxu0 %v5701
    %5792 = vmatpush.bf16.msra.mxu0 %v5697
    %5793 = vmatpush.bf16.msra.mxu0 %v5693
    %5794 = vmatpush.bf16.msra.mxu0 %v5689
    %5795 = vmatpush.bf16.msra.mxu0 %v5685
    %5796 = vmatmul.bf16.gmra.mxu0 %v5543
    %v5797 = vpop.f32.mrf.mxu0
    %v5798 = vadd.f32 %v5581, %v5797
    %v5799 = vpop.f32.mrf.mxu0
    %v5800 = vadd.f32 %v5581, %v5799
    %5801 = vdwg.mxu0
    %v5802 = vmax.f32 %v5756, 0.0
    %v5803 = vmax.f32 %v5770, 0.0
    %v5804 = vmax.f32 %v5784, 0.0
    %v5805 = vmax.f32 %v5798, 0.0
    %v5806 = vmax.f32 %v5758, 0.0
    %v5807 = vmax.f32 %v5772, 0.0
    %v5808 = vmax.f32 %v5786, 0.0
    %v5809 = vmax.f32 %v5800, 0.0
    %v5810 = vpack.c.bf16 %v5806, %v5802
    %v5811 = vpack.c.bf16 %v5807, %v5803
    %v5812 = vpack.c.bf16 %v5808, %v5804
    %v5813 = vpack.c.bf16 %v5809, %v5805
    %v5814 = vld [vmem:[#allocation12] sm:$0xff]
    %v5815 = vld [vmem:[#allocation12 + $0x8] sm:$0xff]
    %v5816 = vld [vmem:[#allocation12 + $0x10] sm:$0xff]
    %v5817 = vld [vmem:[#allocation12 + $0x18] sm:$0xff]
    %v5818 = vld [vmem:[#allocation12 + $0x20] sm:$0xff]
    %v5819 = vld [vmem:[#allocation12 + $0x28] sm:$0xff]
    %v5820 = vld [vmem:[#allocation12 + $0x30] sm:$0xff]
    %v5821 = vld [vmem:[#allocation12 + $0x38] sm:$0xff]
    %v5822 = vld [vmem:[#allocation12 + $0x40] sm:$0xff]
    %v5823 = vld [vmem:[#allocation12 + $0x48] sm:$0xf]
    %v5824 = vld [vmem:[#allocation12 + $0x4c] sm:$0xff]
    %v5825 = vld [vmem:[#allocation12 + $0x54] sm:$0xff]
    %v5826 = vld [vmem:[#allocation12 + $0x5c] sm:$0xff]
    %v5827 = vld [vmem:[#allocation12 + $0x64] sm:$0xff]
    %v5828 = vld [vmem:[#allocation12 + $0x6c] sm:$0xff]
    %v5829 = vld [vmem:[#allocation12 + $0x74] sm:$0xff]
    %v5830 = vld [vmem:[#allocation12 + $0x7c] sm:$0xff]
    %v5831 = vld [vmem:[#allocation12 + $0x84] sm:$0xff]
    %v5832 = vld [vmem:[#allocation12 + $0x8c] sm:$0xff]
    %v5833 = vld [vmem:[#allocation12 + $0x94] sm:$0xf]
    %v5834 = vld [vmem:[#allocation12 + $0x98] sm:$0xff]
    %v5835 = vld [vmem:[#allocation12 + $0xa0] sm:$0xff]
    %v5836 = vld [vmem:[#allocation12 + $0xa8] sm:$0xff]
    %v5837 = vld [vmem:[#allocation12 + $0xb0] sm:$0xff]
    %v5838 = vld [vmem:[#allocation12 + $0xb8] sm:$0xff]
    %v5839 = vld [vmem:[#allocation12 + $0xc0] sm:$0xff]
    %v5840 = vld [vmem:[#allocation12 + $0xc8] sm:$0xff]
    %v5841 = vld [vmem:[#allocation12 + $0xd0] sm:$0xff]
    %v5842 = vld [vmem:[#allocation12 + $0xd8] sm:$0xff]
    %v5843 = vld [vmem:[#allocation12 + $0xe0] sm:$0xf]
    %v5844 = vld [vmem:[#allocation12 + $0xe4] sm:$0xff]
    %v5845 = vld [vmem:[#allocation12 + $0xec] sm:$0xff]
    %v5846 = vld [vmem:[#allocation12 + $0xf4] sm:$0xff]
    %v5847 = vld [vmem:[#allocation12 + $0xfc] sm:$0xff]
    %v5848 = vld [vmem:[#allocation12 + $0x104] sm:$0xff]
    %v5849 = vld [vmem:[#allocation12 + $0x10c] sm:$0xff]
    %v5850 = vld [vmem:[#allocation12 + $0x114] sm:$0xff]
    %v5851 = vld [vmem:[#allocation12 + $0x11c] sm:$0xff]
    %v5852 = vld [vmem:[#allocation12 + $0x124] sm:$0xff]
    %v5853 = vld [vmem:[#allocation12 + $0x12c] sm:$0xf]
    %v5854 = vld [vmem:[#allocation12 + $0x130] sm:$0xff]
    %v5855 = vld [vmem:[#allocation12 + $0x138] sm:$0xff]
    %v5856 = vld [vmem:[#allocation12 + $0x140] sm:$0xff]
    %v5857 = vld [vmem:[#allocation12 + $0x148] sm:$0xff]
    %v5858 = vld [vmem:[#allocation12 + $0x150] sm:$0xff]
    %v5859 = vld [vmem:[#allocation12 + $0x158] sm:$0xff]
    %v5860 = vld [vmem:[#allocation12 + $0x160] sm:$0xff]
    %v5861 = vld [vmem:[#allocation12 + $0x168] sm:$0xff]
    %v5862 = vld [vmem:[#allocation12 + $0x170] sm:$0xff]
    %v5863 = vld [vmem:[#allocation12 + $0x178] sm:$0xf]
    %v5864 = vld [vmem:[#allocation12 + $0x17c] sm:$0xff]
    %v5865 = vld [vmem:[#allocation12 + $0x184] sm:$0xff]
    %v5866 = vld [vmem:[#allocation12 + $0x18c] sm:$0xff]
    %v5867 = vld [vmem:[#allocation12 + $0x194] sm:$0xff]
    %v5868 = vld [vmem:[#allocation12 + $0x19c] sm:$0xff]
    %v5869 = vld [vmem:[#allocation12 + $0x1a4] sm:$0xff]
    %v5870 = vld [vmem:[#allocation12 + $0x1ac] sm:$0xff]
    %v5871 = vld [vmem:[#allocation12 + $0x1b4] sm:$0xff]
    %v5872 = vld [vmem:[#allocation12 + $0x1bc] sm:$0xff]
    %v5873 = vld [vmem:[#allocation12 + $0x1c4] sm:$0xf]
    %v5874 = vld [vmem:[#allocation12 + $0x1c8] sm:$0xff]
    %v5875 = vld [vmem:[#allocation12 + $0x1d0] sm:$0xff]
    %v5876 = vld [vmem:[#allocation12 + $0x1d8] sm:$0xff]
    %v5877 = vld [vmem:[#allocation12 + $0x1e0] sm:$0xff]
    %v5878 = vld [vmem:[#allocation12 + $0x1e8] sm:$0xff]
    %v5879 = vld [vmem:[#allocation12 + $0x1f0] sm:$0xff]
    %v5880 = vld [vmem:[#allocation12 + $0x1f8] sm:$0xff]
    %v5881 = vld [vmem:[#allocation12 + $0x200] sm:$0xff]
    %v5882 = vld [vmem:[#allocation12 + $0x208] sm:$0xff]
    %v5883 = vld [vmem:[#allocation12 + $0x210] sm:$0xf]
    %v5884 = vld [vmem:[#allocation12 + $0x214] sm:$0xff]
    %v5885 = vld [vmem:[#allocation12 + $0x21c] sm:$0xff]
    %v5886 = vld [vmem:[#allocation12 + $0x224] sm:$0xff]
    %v5887 = vld [vmem:[#allocation12 + $0x22c] sm:$0xff]
    %v5888 = vld [vmem:[#allocation12 + $0x234] sm:$0xff]
    %v5889 = vld [vmem:[#allocation12 + $0x23c] sm:$0xff]
    %v5890 = vld [vmem:[#allocation12 + $0x244] sm:$0xff]
    %v5891 = vld [vmem:[#allocation12 + $0x24c] sm:$0xff]
    %v5892 = vld [vmem:[#allocation12 + $0x254] sm:$0xff]
    %v5893 = vld [vmem:[#allocation12 + $0x25c] sm:$0xf]
    %v5894 = vld [vmem:[#allocation12 + $0x260] sm:$0xff]
    %v5895 = vld [vmem:[#allocation12 + $0x268] sm:$0xff]
    %v5896 = vld [vmem:[#allocation12 + $0x270] sm:$0xff]
    %v5897 = vld [vmem:[#allocation12 + $0x278] sm:$0xff]
    %v5898 = vld [vmem:[#allocation12 + $0x280] sm:$0xff]
    %v5899 = vld [vmem:[#allocation12 + $0x288] sm:$0xff]
    %v5900 = vld [vmem:[#allocation12 + $0x290] sm:$0xff]
    %v5901 = vld [vmem:[#allocation12 + $0x298] sm:$0xff]
    %v5902 = vld [vmem:[#allocation12 + $0x2a0] sm:$0xff]
    %v5903 = vld [vmem:[#allocation12 + $0x2a8] sm:$0xf]
    %v5904 = vld [vmem:[#allocation12 + $0x2ac] sm:$0xff]
    %v5905 = vld [vmem:[#allocation12 + $0x2b4] sm:$0xff]
    %v5906 = vld [vmem:[#allocation12 + $0x2bc] sm:$0xff]
    %v5907 = vld [vmem:[#allocation12 + $0x2c4] sm:$0xff]
    %v5908 = vld [vmem:[#allocation12 + $0x2cc] sm:$0xff]
    %v5909 = vld [vmem:[#allocation12 + $0x2d4] sm:$0xff]
    %v5910 = vld [vmem:[#allocation12 + $0x2dc] sm:$0xff]
    %v5911 = vld [vmem:[#allocation12 + $0x2e4] sm:$0xff]
    %v5912 = vld [vmem:[#allocation12 + $0x2ec] sm:$0xff]
    %v5913 = vld [vmem:[#allocation12 + $0x2f4] sm:$0xf]
    %v5914 = vld [vmem:[#allocation12 + $0x2f8] sm:$0xff]
    %v5915 = vld [vmem:[#allocation12 + $0x300] sm:$0xff]
    %v5916 = vld [vmem:[#allocation12 + $0x308] sm:$0xff]
    %v5917 = vld [vmem:[#allocation12 + $0x310] sm:$0xff]
    %v5918 = vld [vmem:[#allocation12 + $0x318] sm:$0xff]
    %v5919 = vld [vmem:[#allocation12 + $0x320] sm:$0xff]
    %v5920 = vld [vmem:[#allocation12 + $0x328] sm:$0xff]
    %v5921 = vld [vmem:[#allocation12 + $0x330] sm:$0xff]
    %v5922 = vld [vmem:[#allocation12 + $0x338] sm:$0xff]
    %v5923 = vld [vmem:[#allocation12 + $0x340] sm:$0xf]
    %v5924 = vld [vmem:[#allocation12 + $0x344] sm:$0xff]
    %v5925 = vld [vmem:[#allocation12 + $0x34c] sm:$0xff]
    %v5926 = vld [vmem:[#allocation12 + $0x354] sm:$0xff]
    %v5927 = vld [vmem:[#allocation12 + $0x35c] sm:$0xff]
    %v5928 = vld [vmem:[#allocation12 + $0x364] sm:$0xff]
    %v5929 = vld [vmem:[#allocation12 + $0x36c] sm:$0xff]
    %v5930 = vld [vmem:[#allocation12 + $0x374] sm:$0xff]
    %v5931 = vld [vmem:[#allocation12 + $0x37c] sm:$0xff]
    %v5932 = vld [vmem:[#allocation12 + $0x384] sm:$0xff]
    %v5933 = vld [vmem:[#allocation12 + $0x38c] sm:$0xf]
    %v5934 = vld [vmem:[#allocation12 + $0x390] sm:$0xff]
    %v5935 = vld [vmem:[#allocation12 + $0x398] sm:$0xff]
    %v5936 = vld [vmem:[#allocation12 + $0x3a0] sm:$0xff]
    %v5937 = vld [vmem:[#allocation12 + $0x3a8] sm:$0xff]
    %v5938 = vld [vmem:[#allocation12 + $0x3b0] sm:$0xff]
    %v5939 = vld [vmem:[#allocation12 + $0x3b8] sm:$0xff]
    %v5940 = vld [vmem:[#allocation12 + $0x3c0] sm:$0xff]
    %v5941 = vld [vmem:[#allocation12 + $0x3c8] sm:$0xff]
    %v5942 = vld [vmem:[#allocation12 + $0x3d0] sm:$0xff]
    %v5943 = vld [vmem:[#allocation12 + $0x3d8] sm:$0xf]
    %v5944 = vld [vmem:[#allocation12 + $0x3dc] sm:$0xff]
    %v5945 = vld [vmem:[#allocation12 + $0x3e4] sm:$0xff]
    %v5946 = vld [vmem:[#allocation12 + $0x3ec] sm:$0xff]
    %v5947 = vld [vmem:[#allocation12 + $0x3f4] sm:$0xff]
    %v5948 = vld [vmem:[#allocation12 + $0x3fc] sm:$0xff]
    %v5949 = vld [vmem:[#allocation12 + $0x404] sm:$0xff]
    %v5950 = vld [vmem:[#allocation12 + $0x40c] sm:$0xff]
    %v5951 = vld [vmem:[#allocation12 + $0x414] sm:$0xff]
    %v5952 = vld [vmem:[#allocation12 + $0x41c] sm:$0xff]
    %v5953 = vld [vmem:[#allocation12 + $0x424] sm:$0xf]
    %v5954 = vld [vmem:[#allocation12 + $0x428] sm:$0xff]
    %v5955 = vld [vmem:[#allocation12 + $0x430] sm:$0xff]
    %v5956 = vld [vmem:[#allocation12 + $0x438] sm:$0xff]
    %v5957 = vld [vmem:[#allocation12 + $0x440] sm:$0xff]
    %v5958 = vld [vmem:[#allocation12 + $0x448] sm:$0xff]
    %v5959 = vld [vmem:[#allocation12 + $0x450] sm:$0xff]
    %v5960 = vld [vmem:[#allocation12 + $0x458] sm:$0xff]
    %v5961 = vld [vmem:[#allocation12 + $0x460] sm:$0xff]
    %v5962 = vld [vmem:[#allocation12 + $0x468] sm:$0xff]
    %v5963 = vld [vmem:[#allocation12 + $0x470] sm:$0xf]
    %v5964 = vld [vmem:[#allocation12 + $0x474] sm:$0xff]
    %v5965 = vld [vmem:[#allocation12 + $0x47c] sm:$0xff]
    %v5966 = vld [vmem:[#allocation12 + $0x484] sm:$0xff]
    %v5967 = vld [vmem:[#allocation12 + $0x48c] sm:$0xff]
    %v5968 = vld [vmem:[#allocation12 + $0x494] sm:$0xff]
    %v5969 = vld [vmem:[#allocation12 + $0x49c] sm:$0xff]
    %v5970 = vld [vmem:[#allocation12 + $0x4a4] sm:$0xff]
    %v5971 = vld [vmem:[#allocation12 + $0x4ac] sm:$0xff]
    %v5972 = vld [vmem:[#allocation12 + $0x4b4] sm:$0xff]
    %v5973 = vld [vmem:[#allocation12 + $0x4bc] sm:$0xf]
    %v5974 = vld [vmem:[#allocation12 + $0x4c0] sm:$0xff]
    %v5975 = vld [vmem:[#allocation12 + $0x4c8] sm:$0xff]
    %v5976 = vld [vmem:[#allocation12 + $0x4d0] sm:$0xff]
    %v5977 = vld [vmem:[#allocation12 + $0x4d8] sm:$0xff]
    %v5978 = vld [vmem:[#allocation12 + $0x4e0] sm:$0xff]
    %v5979 = vld [vmem:[#allocation12 + $0x4e8] sm:$0xff]
    %v5980 = vld [vmem:[#allocation12 + $0x4f0] sm:$0xff]
    %v5981 = vld [vmem:[#allocation12 + $0x4f8] sm:$0xff]
    %v5982 = vld [vmem:[#allocation12 + $0x500] sm:$0xff]
    %v5983 = vld [vmem:[#allocation12 + $0x508] sm:$0xf]
    %v5984 = vld [vmem:[#allocation12 + $0x50c] sm:$0xff]
    %v5985 = vld [vmem:[#allocation12 + $0x514] sm:$0xff]
    %v5986 = vld [vmem:[#allocation12 + $0x51c] sm:$0xff]
    %v5987 = vld [vmem:[#allocation12 + $0x524] sm:$0xff]
    %v5988 = vld [vmem:[#allocation12 + $0x52c] sm:$0xff]
    %v5989 = vld [vmem:[#allocation12 + $0x534] sm:$0xff]
    %v5990 = vld [vmem:[#allocation12 + $0x53c] sm:$0xff]
    %v5991 = vld [vmem:[#allocation12 + $0x544] sm:$0xff]
    %v5992 = vld [vmem:[#allocation12 + $0x54c] sm:$0xff]
    %v5993 = vld [vmem:[#allocation12 + $0x554] sm:$0xf]
    %v5994 = vld [vmem:[#allocation12 + $0x558] sm:$0xff]
    %v5995 = vld [vmem:[#allocation12 + $0x560] sm:$0xff]
    %v5996 = vld [vmem:[#allocation12 + $0x568] sm:$0xff]
    %v5997 = vld [vmem:[#allocation12 + $0x570] sm:$0xff]
    %v5998 = vld [vmem:[#allocation12 + $0x578] sm:$0xff]
    %v5999 = vld [vmem:[#allocation12 + $0x580] sm:$0xff]
    %v6000 = vld [vmem:[#allocation12 + $0x588] sm:$0xff]
    %v6001 = vld [vmem:[#allocation12 + $0x590] sm:$0xff]
    %v6002 = vld [vmem:[#allocation12 + $0x598] sm:$0xff]
    %v6003 = vld [vmem:[#allocation12 + $0x5a0] sm:$0xf]
    %v6004 = vld [vmem:[#allocation12 + $0x5a4] sm:$0xff]
    %v6005 = vld [vmem:[#allocation12 + $0x5ac] sm:$0xff]
    %v6006 = vld [vmem:[#allocation12 + $0x5b4] sm:$0xff]
    %v6007 = vld [vmem:[#allocation12 + $0x5bc] sm:$0xff]
    %v6008 = vld [vmem:[#allocation12 + $0x5c4] sm:$0xff]
    %v6009 = vld [vmem:[#allocation12 + $0x5cc] sm:$0xff]
    %v6010 = vld [vmem:[#allocation12 + $0x5d4] sm:$0xff]
    %v6011 = vld [vmem:[#allocation12 + $0x5dc] sm:$0xff]
    %v6012 = vld [vmem:[#allocation12 + $0x5e4] sm:$0xff]
    %v6013 = vld [vmem:[#allocation12 + $0x5ec] sm:$0xf]
    %v6014 = vld [vmem:[#allocation12 + $0x5f0] sm:$0xff]
    %v6015 = vld [vmem:[#allocation12 + $0x5f8] sm:$0xff]
    %v6016 = vld [vmem:[#allocation12 + $0x600] sm:$0xff]
    %v6017 = vld [vmem:[#allocation12 + $0x608] sm:$0xff]
    %v6018 = vld [vmem:[#allocation12 + $0x610] sm:$0xff]
    %v6019 = vld [vmem:[#allocation12 + $0x618] sm:$0xff]
    %v6020 = vld [vmem:[#allocation12 + $0x620] sm:$0xff]
    %v6021 = vld [vmem:[#allocation12 + $0x628] sm:$0xff]
    %v6022 = vld [vmem:[#allocation12 + $0x630] sm:$0xff]
    %v6023 = vld [vmem:[#allocation12 + $0x638] sm:$0xf]
    %v6024 = vld [vmem:[#allocation12 + $0x63c] sm:$0xff]
    %v6025 = vld [vmem:[#allocation12 + $0x644] sm:$0xff]
    %v6026 = vld [vmem:[#allocation12 + $0x64c] sm:$0xff]
    %v6027 = vld [vmem:[#allocation12 + $0x654] sm:$0xff]
    %v6028 = vld [vmem:[#allocation12 + $0x65c] sm:$0xff]
    %v6029 = vld [vmem:[#allocation12 + $0x664] sm:$0xff]
    %v6030 = vld [vmem:[#allocation12 + $0x66c] sm:$0xff]
    %v6031 = vld [vmem:[#allocation12 + $0x674] sm:$0xff]
    %v6032 = vld [vmem:[#allocation12 + $0x67c] sm:$0xff]
    %v6033 = vld [vmem:[#allocation12 + $0x684] sm:$0xf]
    %v6034 = vld [vmem:[#allocation12 + $0x688] sm:$0xff]
    %v6035 = vld [vmem:[#allocation12 + $0x690] sm:$0xff]
    %v6036 = vld [vmem:[#allocation12 + $0x698] sm:$0xff]
    %v6037 = vld [vmem:[#allocation12 + $0x6a0] sm:$0xff]
    %v6038 = vld [vmem:[#allocation12 + $0x6a8] sm:$0xff]
    %v6039 = vld [vmem:[#allocation12 + $0x6b0] sm:$0xff]
    %v6040 = vld [vmem:[#allocation12 + $0x6b8] sm:$0xff]
    %v6041 = vld [vmem:[#allocation12 + $0x6c0] sm:$0xff]
    %v6042 = vld [vmem:[#allocation12 + $0x6c8] sm:$0xff]
    %v6043 = vld [vmem:[#allocation12 + $0x6d0] sm:$0xf]
    %v6044 = vld [vmem:[#allocation12 + $0x6d4] sm:$0xff]
    %v6045 = vld [vmem:[#allocation12 + $0x6dc] sm:$0xff]
    %v6046 = vld [vmem:[#allocation12 + $0x6e4] sm:$0xff]
    %v6047 = vld [vmem:[#allocation12 + $0x6ec] sm:$0xff]
    %v6048 = vld [vmem:[#allocation12 + $0x6f4] sm:$0xff]
    %v6049 = vld [vmem:[#allocation12 + $0x6fc] sm:$0xff]
    %v6050 = vld [vmem:[#allocation12 + $0x704] sm:$0xff]
    %v6051 = vld [vmem:[#allocation12 + $0x70c] sm:$0xff]
    %v6052 = vld [vmem:[#allocation12 + $0x714] sm:$0xff]
    %v6053 = vld [vmem:[#allocation12 + $0x71c] sm:$0xf]
    %v6054 = vld [vmem:[#allocation12 + $0x720] sm:$0xff]
    %v6055 = vld [vmem:[#allocation12 + $0x728] sm:$0xff]
    %v6056 = vld [vmem:[#allocation12 + $0x730] sm:$0xff]
    %v6057 = vld [vmem:[#allocation12 + $0x738] sm:$0xff]
    %v6058 = vld [vmem:[#allocation12 + $0x740] sm:$0xff]
    %v6059 = vld [vmem:[#allocation12 + $0x748] sm:$0xff]
    %v6060 = vld [vmem:[#allocation12 + $0x750] sm:$0xff]
    %v6061 = vld [vmem:[#allocation12 + $0x758] sm:$0xff]
    %v6062 = vld [vmem:[#allocation12 + $0x760] sm:$0xff]
    %v6063 = vld [vmem:[#allocation12 + $0x768] sm:$0xf]
    %v6064 = vld [vmem:[#allocation12 + $0x76c] sm:$0xff]
    %v6065 = vld [vmem:[#allocation12 + $0x774] sm:$0xff]
    %v6066 = vld [vmem:[#allocation12 + $0x77c] sm:$0xff]
    %v6067 = vld [vmem:[#allocation12 + $0x784] sm:$0xff]
    %v6068 = vld [vmem:[#allocation12 + $0x78c] sm:$0xff]
    %v6069 = vld [vmem:[#allocation12 + $0x794] sm:$0xff]
    %v6070 = vld [vmem:[#allocation12 + $0x79c] sm:$0xff]
    %v6071 = vld [vmem:[#allocation12 + $0x7a4] sm:$0xff]
    %v6072 = vld [vmem:[#allocation12 + $0x7ac] sm:$0xff]
    %v6073 = vld [vmem:[#allocation12 + $0x7b4] sm:$0xf]
    %v6074 = vld [vmem:[#allocation12 + $0x7b8] sm:$0xff]
    %v6075 = vld [vmem:[#allocation12 + $0x7c0] sm:$0xff]
    %v6076 = vld [vmem:[#allocation12 + $0x7c8] sm:$0xff]
    %v6077 = vld [vmem:[#allocation12 + $0x7d0] sm:$0xff]
    %v6078 = vld [vmem:[#allocation12 + $0x7d8] sm:$0xff]
    %v6079 = vld [vmem:[#allocation12 + $0x7e0] sm:$0xff]
    %v6080 = vld [vmem:[#allocation12 + $0x7e8] sm:$0xff]
    %v6081 = vld [vmem:[#allocation12 + $0x7f0] sm:$0xff]
    %v6082 = vld [vmem:[#allocation12 + $0x7f8] sm:$0xff]
    %v6083 = vld [vmem:[#allocation12 + $0x800] sm:$0xf]
    %v6084 = vld [vmem:[#allocation12 + $0x804] sm:$0xff]
    %v6085 = vld [vmem:[#allocation12 + $0x80c] sm:$0xff]
    %v6086 = vld [vmem:[#allocation12 + $0x814] sm:$0xff]
    %v6087 = vld [vmem:[#allocation12 + $0x81c] sm:$0xff]
    %v6088 = vld [vmem:[#allocation12 + $0x824] sm:$0xff]
    %v6089 = vld [vmem:[#allocation12 + $0x82c] sm:$0xff]
    %v6090 = vld [vmem:[#allocation12 + $0x834] sm:$0xff]
    %v6091 = vld [vmem:[#allocation12 + $0x83c] sm:$0xff]
    %v6092 = vld [vmem:[#allocation12 + $0x844] sm:$0xff]
    %v6093 = vld [vmem:[#allocation12 + $0x84c] sm:$0xf]
    %v6094 = vld [vmem:[#allocation12 + $0x850] sm:$0xff]
    %v6095 = vld [vmem:[#allocation12 + $0x858] sm:$0xff]
    %v6096 = vld [vmem:[#allocation12 + $0x860] sm:$0xff]
    %v6097 = vld [vmem:[#allocation12 + $0x868] sm:$0xff]
    %v6098 = vld [vmem:[#allocation12 + $0x870] sm:$0xff]
    %v6099 = vld [vmem:[#allocation12 + $0x878] sm:$0xff]
    %v6100 = vld [vmem:[#allocation12 + $0x880] sm:$0xff]
    %v6101 = vld [vmem:[#allocation12 + $0x888] sm:$0xff]
    %v6102 = vld [vmem:[#allocation12 + $0x890] sm:$0xff]
    %v6103 = vld [vmem:[#allocation12 + $0x898] sm:$0xf]
    %v6104 = vld [vmem:[#allocation12 + $0x89c] sm:$0xff]
    %v6105 = vld [vmem:[#allocation12 + $0x8a4] sm:$0xff]
    %v6106 = vld [vmem:[#allocation12 + $0x8ac] sm:$0xff]
    %v6107 = vld [vmem:[#allocation12 + $0x8b4] sm:$0xff]
    %v6108 = vld [vmem:[#allocation12 + $0x8bc] sm:$0xff]
    %v6109 = vld [vmem:[#allocation12 + $0x8c4] sm:$0xff]
    %v6110 = vld [vmem:[#allocation12 + $0x8cc] sm:$0xff]
    %v6111 = vld [vmem:[#allocation12 + $0x8d4] sm:$0xff]
    %v6112 = vld [vmem:[#allocation12 + $0x8dc] sm:$0xff]
    %v6113 = vld [vmem:[#allocation12 + $0x8e4] sm:$0xf]
    %v6114 = vld [vmem:[#allocation12 + $0x8e8] sm:$0xff]
    %v6115 = vld [vmem:[#allocation12 + $0x8f0] sm:$0xff]
    %v6116 = vld [vmem:[#allocation12 + $0x8f8] sm:$0xff]
    %v6117 = vld [vmem:[#allocation12 + $0x900] sm:$0xff]
    %v6118 = vld [vmem:[#allocation12 + $0x908] sm:$0xff]
    %v6119 = vld [vmem:[#allocation12 + $0x910] sm:$0xff]
    %v6120 = vld [vmem:[#allocation12 + $0x918] sm:$0xff]
    %v6121 = vld [vmem:[#allocation12 + $0x920] sm:$0xff]
    %v6122 = vld [vmem:[#allocation12 + $0x928] sm:$0xff]
    %v6123 = vld [vmem:[#allocation12 + $0x930] sm:$0xf]
    %v6124 = vld [vmem:[#allocation12 + $0x934] sm:$0xff]
    %v6125 = vld [vmem:[#allocation12 + $0x93c] sm:$0xff]
    %v6126 = vld [vmem:[#allocation12 + $0x944] sm:$0xff]
    %v6127 = vld [vmem:[#allocation12 + $0x94c] sm:$0xff]
    %v6128 = vld [vmem:[#allocation12 + $0x954] sm:$0xff]
    %v6129 = vld [vmem:[#allocation12 + $0x95c] sm:$0xff]
    %v6130 = vld [vmem:[#allocation12 + $0x964] sm:$0xff]
    %v6131 = vld [vmem:[#allocation12 + $0x96c] sm:$0xff]
    %v6132 = vld [vmem:[#allocation12 + $0x974] sm:$0xff]
    %v6133 = vld [vmem:[#allocation12 + $0x97c] sm:$0xf]
    %v6134 = vld [vmem:[#allocation12 + $0x980] sm:$0xff]
    %v6135 = vld [vmem:[#allocation12 + $0x988] sm:$0xff]
    %v6136 = vld [vmem:[#allocation12 + $0x990] sm:$0xff]
    %v6137 = vld [vmem:[#allocation12 + $0x998] sm:$0xff]
    %v6138 = vld [vmem:[#allocation12 + $0x9a0] sm:$0xff]
    %v6139 = vld [vmem:[#allocation12 + $0x9a8] sm:$0xff]
    %v6140 = vld [vmem:[#allocation12 + $0x9b0] sm:$0xff]
    %v6141 = vld [vmem:[#allocation12 + $0x9b8] sm:$0xff]
    %v6142 = vld [vmem:[#allocation12 + $0x9c0] sm:$0xff]
    %v6143 = vld [vmem:[#allocation12 + $0x9c8] sm:$0xf]
    %v6144 = vld [vmem:[#allocation12 + $0x9cc] sm:$0xff]
    %v6145 = vld [vmem:[#allocation12 + $0x9d4] sm:$0xff]
    %v6146 = vld [vmem:[#allocation12 + $0x9dc] sm:$0xff]
    %v6147 = vld [vmem:[#allocation12 + $0x9e4] sm:$0xff]
    %v6148 = vld [vmem:[#allocation12 + $0x9ec] sm:$0xff]
    %v6149 = vld [vmem:[#allocation12 + $0x9f4] sm:$0xff]
    %v6150 = vld [vmem:[#allocation12 + $0x9fc] sm:$0xff]
    %v6151 = vld [vmem:[#allocation12 + $0xa04] sm:$0xff]
    %v6152 = vld [vmem:[#allocation12 + $0xa0c] sm:$0xff]
    %v6153 = vld [vmem:[#allocation12 + $0xa14] sm:$0xf]
    %v6154 = vld [vmem:[#allocation12 + $0xa18] sm:$0xff]
    %v6155 = vld [vmem:[#allocation12 + $0xa20] sm:$0xff]
    %v6156 = vld [vmem:[#allocation12 + $0xa28] sm:$0xff]
    %v6157 = vld [vmem:[#allocation12 + $0xa30] sm:$0xff]
    %v6158 = vld [vmem:[#allocation12 + $0xa38] sm:$0xff]
    %v6159 = vld [vmem:[#allocation12 + $0xa40] sm:$0xff]
    %v6160 = vld [vmem:[#allocation12 + $0xa48] sm:$0xff]
    %v6161 = vld [vmem:[#allocation12 + $0xa50] sm:$0xff]
    %v6162 = vld [vmem:[#allocation12 + $0xa58] sm:$0xff]
    %v6163 = vld [vmem:[#allocation12 + $0xa60] sm:$0xf]
    %v6164 = vld [vmem:[#allocation12 + $0xa64] sm:$0xff]
    %v6165 = vld [vmem:[#allocation12 + $0xa6c] sm:$0xff]
    %v6166 = vld [vmem:[#allocation12 + $0xa74] sm:$0xff]
    %v6167 = vld [vmem:[#allocation12 + $0xa7c] sm:$0xff]
    %v6168 = vld [vmem:[#allocation12 + $0xa84] sm:$0xff]
    %v6169 = vld [vmem:[#allocation12 + $0xa8c] sm:$0xff]
    %v6170 = vld [vmem:[#allocation12 + $0xa94] sm:$0xff]
    %v6171 = vld [vmem:[#allocation12 + $0xa9c] sm:$0xff]
    %v6172 = vld [vmem:[#allocation12 + $0xaa4] sm:$0xff]
    %v6173 = vld [vmem:[#allocation12 + $0xaac] sm:$0xf]
    %v6174 = vld [vmem:[#allocation12 + $0xab0] sm:$0xff]
    %v6175 = vld [vmem:[#allocation12 + $0xab8] sm:$0xff]
    %v6176 = vld [vmem:[#allocation12 + $0xac0] sm:$0xff]
    %v6177 = vld [vmem:[#allocation12 + $0xac8] sm:$0xff]
    %v6178 = vld [vmem:[#allocation12 + $0xad0] sm:$0xff]
    %v6179 = vld [vmem:[#allocation12 + $0xad8] sm:$0xff]
    %v6180 = vld [vmem:[#allocation12 + $0xae0] sm:$0xff]
    %v6181 = vld [vmem:[#allocation12 + $0xae8] sm:$0xff]
    %v6182 = vld [vmem:[#allocation12 + $0xaf0] sm:$0xff]
    %v6183 = vld [vmem:[#allocation12 + $0xaf8] sm:$0xf]
    %v6184 = vld [vmem:[#allocation12 + $0xafc] sm:$0xff]
    %v6185 = vld [vmem:[#allocation12 + $0xb04] sm:$0xff]
    %v6186 = vld [vmem:[#allocation12 + $0xb0c] sm:$0xff]
    %v6187 = vld [vmem:[#allocation12 + $0xb14] sm:$0xff]
    %v6188 = vld [vmem:[#allocation12 + $0xb1c] sm:$0xff]
    %v6189 = vld [vmem:[#allocation12 + $0xb24] sm:$0xff]
    %v6190 = vld [vmem:[#allocation12 + $0xb2c] sm:$0xff]
    %v6191 = vld [vmem:[#allocation12 + $0xb34] sm:$0xff]
    %v6192 = vld [vmem:[#allocation12 + $0xb3c] sm:$0xff]
    %v6193 = vld [vmem:[#allocation12 + $0xb44] sm:$0xf]
    %v6194 = vld [vmem:[#allocation12 + $0xb48] sm:$0xff]
    %v6195 = vld [vmem:[#allocation12 + $0xb50] sm:$0xff]
    %v6196 = vld [vmem:[#allocation12 + $0xb58] sm:$0xff]
    %v6197 = vld [vmem:[#allocation12 + $0xb60] sm:$0xff]
    %v6198 = vld [vmem:[#allocation12 + $0xb68] sm:$0xff]
    %v6199 = vld [vmem:[#allocation12 + $0xb70] sm:$0xff]
    %v6200 = vld [vmem:[#allocation12 + $0xb78] sm:$0xff]
    %v6201 = vld [vmem:[#allocation12 + $0xb80] sm:$0xff]
    %v6202 = vld [vmem:[#allocation12 + $0xb88] sm:$0xff]
    %v6203 = vld [vmem:[#allocation12 + $0xb90] sm:$0xf]
    %v6204 = vld [vmem:[#allocation12 + $0xb94] sm:$0xff]
    %v6205 = vld [vmem:[#allocation12 + $0xb9c] sm:$0xff]
    %v6206 = vld [vmem:[#allocation12 + $0xba4] sm:$0xff]
    %v6207 = vld [vmem:[#allocation12 + $0xbac] sm:$0xff]
    %v6208 = vld [vmem:[#allocation12 + $0xbb4] sm:$0xff]
    %v6209 = vld [vmem:[#allocation12 + $0xbbc] sm:$0xff]
    %v6210 = vld [vmem:[#allocation12 + $0xbc4] sm:$0xff]
    %v6211 = vld [vmem:[#allocation12 + $0xbcc] sm:$0xff]
    %v6212 = vld [vmem:[#allocation12 + $0xbd4] sm:$0xff]
    %v6213 = vld [vmem:[#allocation12 + $0xbdc] sm:$0xf]
    %v6214 = vld [vmem:[#allocation12 + $0xbe0] sm:$0xff]
    %v6215 = vld [vmem:[#allocation12 + $0xbe8] sm:$0xff]
    %v6216 = vld [vmem:[#allocation12 + $0xbf0] sm:$0xff]
    %v6217 = vld [vmem:[#allocation12 + $0xbf8] sm:$0xff]
    %v6218 = vld [vmem:[#allocation12 + $0xc00] sm:$0xff]
    %v6219 = vld [vmem:[#allocation12 + $0xc08] sm:$0xff]
    %v6220 = vld [vmem:[#allocation12 + $0xc10] sm:$0xff]
    %v6221 = vld [vmem:[#allocation12 + $0xc18] sm:$0xff]
    %v6222 = vld [vmem:[#allocation12 + $0xc20] sm:$0xff]
    %v6223 = vld [vmem:[#allocation12 + $0xc28] sm:$0xf]
    %v6224 = vld [vmem:[#allocation12 + $0xc2c] sm:$0xff]
    %v6225 = vld [vmem:[#allocation12 + $0xc34] sm:$0xff]
    %v6226 = vld [vmem:[#allocation12 + $0xc3c] sm:$0xff]
    %v6227 = vld [vmem:[#allocation12 + $0xc44] sm:$0xff]
    %v6228 = vld [vmem:[#allocation12 + $0xc4c] sm:$0xff]
    %v6229 = vld [vmem:[#allocation12 + $0xc54] sm:$0xff]
    %v6230 = vld [vmem:[#allocation12 + $0xc5c] sm:$0xff]
    %v6231 = vld [vmem:[#allocation12 + $0xc64] sm:$0xff]
    %v6232 = vld [vmem:[#allocation12 + $0xc6c] sm:$0xff]
    %v6233 = vld [vmem:[#allocation12 + $0xc74] sm:$0xf]
    %v6234 = vld [vmem:[#allocation12 + $0xc78] sm:$0xff]
    %v6235 = vld [vmem:[#allocation12 + $0xc80] sm:$0xff]
    %v6236 = vld [vmem:[#allocation12 + $0xc88] sm:$0xff]
    %v6237 = vld [vmem:[#allocation12 + $0xc90] sm:$0xff]
    %v6238 = vld [vmem:[#allocation12 + $0xc98] sm:$0xff]
    %v6239 = vld [vmem:[#allocation12 + $0xca0] sm:$0xff]
    %v6240 = vld [vmem:[#allocation12 + $0xca8] sm:$0xff]
    %v6241 = vld [vmem:[#allocation12 + $0xcb0] sm:$0xff]
    %v6242 = vld [vmem:[#allocation12 + $0xcb8] sm:$0xff]
    %v6243 = vld [vmem:[#allocation12 + $0xcc0] sm:$0xf]
    %v6244 = vld [vmem:[#allocation12 + $0xcc4] sm:$0xff]
    %v6245 = vld [vmem:[#allocation12 + $0xccc] sm:$0xff]
    %v6246 = vld [vmem:[#allocation12 + $0xcd4] sm:$0xff]
    %v6247 = vld [vmem:[#allocation12 + $0xcdc] sm:$0xff]
    %v6248 = vld [vmem:[#allocation12 + $0xce4] sm:$0xff]
    %v6249 = vld [vmem:[#allocation12 + $0xcec] sm:$0xff]
    %v6250 = vld [vmem:[#allocation12 + $0xcf4] sm:$0xff]
    %v6251 = vld [vmem:[#allocation12 + $0xcfc] sm:$0xff]
    %v6252 = vld [vmem:[#allocation12 + $0xd04] sm:$0xff]
    %v6253 = vld [vmem:[#allocation12 + $0xd0c] sm:$0xf]
    %v6254 = vld [vmem:[#allocation12 + $0xd10] sm:$0xff]
    %v6255 = vld [vmem:[#allocation12 + $0xd18] sm:$0xff]
    %v6256 = vld [vmem:[#allocation12 + $0xd20] sm:$0xff]
    %v6257 = vld [vmem:[#allocation12 + $0xd28] sm:$0xff]
    %v6258 = vld [vmem:[#allocation12 + $0xd30] sm:$0xff]
    %v6259 = vld [vmem:[#allocation12 + $0xd38] sm:$0xff]
    %v6260 = vld [vmem:[#allocation12 + $0xd40] sm:$0xff]
    %v6261 = vld [vmem:[#allocation12 + $0xd48] sm:$0xff]
    %v6262 = vld [vmem:[#allocation12 + $0xd50] sm:$0xff]
    %v6263 = vld [vmem:[#allocation12 + $0xd58] sm:$0xf]
    %v6264 = vld [vmem:[#allocation12 + $0xd5c] sm:$0xff]
    %v6265 = vld [vmem:[#allocation12 + $0xd64] sm:$0xff]
    %v6266 = vld [vmem:[#allocation12 + $0xd6c] sm:$0xff]
    %v6267 = vld [vmem:[#allocation12 + $0xd74] sm:$0xff]
    %v6268 = vld [vmem:[#allocation12 + $0xd7c] sm:$0xff]
    %v6269 = vld [vmem:[#allocation12 + $0xd84] sm:$0xff]
    %v6270 = vld [vmem:[#allocation12 + $0xd8c] sm:$0xff]
    %v6271 = vld [vmem:[#allocation12 + $0xd94] sm:$0xff]
    %v6272 = vld [vmem:[#allocation12 + $0xd9c] sm:$0xff]
    %v6273 = vld [vmem:[#allocation12 + $0xda4] sm:$0xf]
    %v6274 = vld [vmem:[#allocation12 + $0xda8] sm:$0xff]
    %v6275 = vld [vmem:[#allocation12 + $0xdb0] sm:$0xff]
    %v6276 = vld [vmem:[#allocation12 + $0xdb8] sm:$0xff]
    %v6277 = vld [vmem:[#allocation12 + $0xdc0] sm:$0xff]
    %v6278 = vld [vmem:[#allocation12 + $0xdc8] sm:$0xff]
    %v6279 = vld [vmem:[#allocation12 + $0xdd0] sm:$0xff]
    %v6280 = vld [vmem:[#allocation12 + $0xdd8] sm:$0xff]
    %v6281 = vld [vmem:[#allocation12 + $0xde0] sm:$0xff]
    %v6282 = vld [vmem:[#allocation12 + $0xde8] sm:$0xff]
    %v6283 = vld [vmem:[#allocation12 + $0xdf0] sm:$0xf]
    %v6284 = vld [vmem:[#allocation12 + $0xdf4] sm:$0xff]
    %v6285 = vld [vmem:[#allocation12 + $0xdfc] sm:$0xff]
    %v6286 = vld [vmem:[#allocation12 + $0xe04] sm:$0xff]
    %v6287 = vld [vmem:[#allocation12 + $0xe0c] sm:$0xff]
    %v6288 = vld [vmem:[#allocation12 + $0xe14] sm:$0xff]
    %v6289 = vld [vmem:[#allocation12 + $0xe1c] sm:$0xff]
    %v6290 = vld [vmem:[#allocation12 + $0xe24] sm:$0xff]
    %v6291 = vld [vmem:[#allocation12 + $0xe2c] sm:$0xff]
    %v6292 = vld [vmem:[#allocation12 + $0xe34] sm:$0xff]
    %v6293 = vld [vmem:[#allocation12 + $0xe3c] sm:$0xf]
    %v6294 = vld [vmem:[#allocation12 + $0xe40] sm:$0xff]
    %v6295 = vld [vmem:[#allocation12 + $0xe48] sm:$0xff]
    %v6296 = vld [vmem:[#allocation12 + $0xe50] sm:$0xff]
    %v6297 = vld [vmem:[#allocation12 + $0xe58] sm:$0xff]
    %v6298 = vld [vmem:[#allocation12 + $0xe60] sm:$0xff]
    %v6299 = vld [vmem:[#allocation12 + $0xe68] sm:$0xff]
    %v6300 = vld [vmem:[#allocation12 + $0xe70] sm:$0xff]
    %v6301 = vld [vmem:[#allocation12 + $0xe78] sm:$0xff]
    %v6302 = vld [vmem:[#allocation12 + $0xe80] sm:$0xff]
    %v6303 = vld [vmem:[#allocation12 + $0xe88] sm:$0xf]
    %v6304 = vld [vmem:[#allocation12 + $0xe8c] sm:$0xff]
    %v6305 = vld [vmem:[#allocation12 + $0xe94] sm:$0xff]
    %v6306 = vld [vmem:[#allocation12 + $0xe9c] sm:$0xff]
    %v6307 = vld [vmem:[#allocation12 + $0xea4] sm:$0xff]
    %v6308 = vld [vmem:[#allocation12 + $0xeac] sm:$0xff]
    %v6309 = vld [vmem:[#allocation12 + $0xeb4] sm:$0xff]
    %v6310 = vld [vmem:[#allocation12 + $0xebc] sm:$0xff]
    %v6311 = vld [vmem:[#allocation12 + $0xec4] sm:$0xff]
    %v6312 = vld [vmem:[#allocation12 + $0xecc] sm:$0xff]
    %v6313 = vld [vmem:[#allocation12 + $0xed4] sm:$0xf]
    %v6314 = vld [vmem:[#allocation12 + $0xed8] sm:$0xff]
    %v6315 = vld [vmem:[#allocation12 + $0xee0] sm:$0xff]
    %v6316 = vld [vmem:[#allocation12 + $0xee8] sm:$0xff]
    %v6317 = vld [vmem:[#allocation12 + $0xef0] sm:$0xff]
    %v6318 = vld [vmem:[#allocation12 + $0xef8] sm:$0xff]
    %v6319 = vld [vmem:[#allocation12 + $0xf00] sm:$0xff]
    %v6320 = vld [vmem:[#allocation12 + $0xf08] sm:$0xff]
    %v6321 = vld [vmem:[#allocation12 + $0xf10] sm:$0xff]
    %v6322 = vld [vmem:[#allocation12 + $0xf18] sm:$0xff]
    %v6323 = vld [vmem:[#allocation12 + $0xf20] sm:$0xf]
    %v6324 = vld [vmem:[#allocation12 + $0xf24] sm:$0xff]
    %v6325 = vld [vmem:[#allocation12 + $0xf2c] sm:$0xff]
    %v6326 = vld [vmem:[#allocation12 + $0xf34] sm:$0xff]
    %v6327 = vld [vmem:[#allocation12 + $0xf3c] sm:$0xff]
    %v6328 = vld [vmem:[#allocation12 + $0xf44] sm:$0xff]
    %v6329 = vld [vmem:[#allocation12 + $0xf4c] sm:$0xff]
    %v6330 = vld [vmem:[#allocation12 + $0xf54] sm:$0xff]
    %v6331 = vld [vmem:[#allocation12 + $0xf5c] sm:$0xff]
    %v6332 = vld [vmem:[#allocation12 + $0xf64] sm:$0xff]
    %v6333 = vld [vmem:[#allocation12 + $0xf6c] sm:$0xf]
    %v6334 = vld [vmem:[#allocation12 + $0xf70] sm:$0xff]
    %v6335 = vld [vmem:[#allocation12 + $0xf78] sm:$0xff]
    %v6336 = vld [vmem:[#allocation12 + $0xf80] sm:$0xff]
    %v6337 = vld [vmem:[#allocation12 + $0xf88] sm:$0xff]
    %v6338 = vld [vmem:[#allocation12 + $0xf90] sm:$0xff]
    %v6339 = vld [vmem:[#allocation12 + $0xf98] sm:$0xff]
    %v6340 = vld [vmem:[#allocation12 + $0xfa0] sm:$0xff]
    %v6341 = vld [vmem:[#allocation12 + $0xfa8] sm:$0xff]
    %v6342 = vld [vmem:[#allocation12 + $0xfb0] sm:$0xff]
    %v6343 = vld [vmem:[#allocation12 + $0xfb8] sm:$0xf]
    %v6344 = vld [vmem:[#allocation12 + $0xfbc] sm:$0xff]
    %v6345 = vld [vmem:[#allocation12 + $0xfc4] sm:$0xff]
    %v6346 = vld [vmem:[#allocation12 + $0xfcc] sm:$0xff]
    %v6347 = vld [vmem:[#allocation12 + $0xfd4] sm:$0xff]
    %v6348 = vld [vmem:[#allocation12 + $0xfdc] sm:$0xff]
    %v6349 = vld [vmem:[#allocation12 + $0xfe4] sm:$0xff]
    %v6350 = vld [vmem:[#allocation12 + $0xfec] sm:$0xff]
    %v6351 = vld [vmem:[#allocation12 + $0xff4] sm:$0xff]
    %v6352 = vld [vmem:[#allocation12 + $0xffc] sm:$0xff]
    %v6353 = vld [vmem:[#allocation12 + $0x1004] sm:$0xf]
    %v6354 = vld [vmem:[#allocation12 + $0x1008] sm:$0xff]
    %v6355 = vld [vmem:[#allocation12 + $0x1010] sm:$0xff]
    %v6356 = vld [vmem:[#allocation12 + $0x1018] sm:$0xff]
    %v6357 = vld [vmem:[#allocation12 + $0x1020] sm:$0xff]
    %v6358 = vld [vmem:[#allocation12 + $0x1028] sm:$0xff]
    %v6359 = vld [vmem:[#allocation12 + $0x1030] sm:$0xff]
    %v6360 = vld [vmem:[#allocation12 + $0x1038] sm:$0xff]
    %v6361 = vld [vmem:[#allocation12 + $0x1040] sm:$0xff]
    %v6362 = vld [vmem:[#allocation12 + $0x1048] sm:$0xff]
    %v6363 = vld [vmem:[#allocation12 + $0x1050] sm:$0xf]
    %v6364 = vld [vmem:[#allocation12 + $0x1054] sm:$0xff]
    %v6365 = vld [vmem:[#allocation12 + $0x105c] sm:$0xff]
    %v6366 = vld [vmem:[#allocation12 + $0x1064] sm:$0xff]
    %v6367 = vld [vmem:[#allocation12 + $0x106c] sm:$0xff]
    %v6368 = vld [vmem:[#allocation12 + $0x1074] sm:$0xff]
    %v6369 = vld [vmem:[#allocation12 + $0x107c] sm:$0xff]
    %v6370 = vld [vmem:[#allocation12 + $0x1084] sm:$0xff]
    %v6371 = vld [vmem:[#allocation12 + $0x108c] sm:$0xff]
    %v6372 = vld [vmem:[#allocation12 + $0x1094] sm:$0xff]
    %v6373 = vld [vmem:[#allocation12 + $0x109c] sm:$0xf]
    %v6374 = vld [vmem:[#allocation12 + $0x10a0] sm:$0xff]
    %v6375 = vld [vmem:[#allocation12 + $0x10a8] sm:$0xff]
    %v6376 = vld [vmem:[#allocation12 + $0x10b0] sm:$0xff]
    %v6377 = vld [vmem:[#allocation12 + $0x10b8] sm:$0xff]
    %v6378 = vld [vmem:[#allocation12 + $0x10c0] sm:$0xff]
    %v6379 = vld [vmem:[#allocation12 + $0x10c8] sm:$0xff]
    %v6380 = vld [vmem:[#allocation12 + $0x10d0] sm:$0xff]
    %v6381 = vld [vmem:[#allocation12 + $0x10d8] sm:$0xff]
    %v6382 = vld [vmem:[#allocation12 + $0x10e0] sm:$0xff]
    %v6383 = vld [vmem:[#allocation12 + $0x10e8] sm:$0xf]
    %v6384 = vld [vmem:[#allocation12 + $0x10ec] sm:$0xff]
    %v6385 = vld [vmem:[#allocation12 + $0x10f4] sm:$0xff]
    %v6386 = vld [vmem:[#allocation12 + $0x10fc] sm:$0xff]
    %v6387 = vld [vmem:[#allocation12 + $0x1104] sm:$0xff]
    %v6388 = vld [vmem:[#allocation12 + $0x110c] sm:$0xff]
    %v6389 = vld [vmem:[#allocation12 + $0x1114] sm:$0xff]
    %v6390 = vld [vmem:[#allocation12 + $0x111c] sm:$0xff]
    %v6391 = vld [vmem:[#allocation12 + $0x1124] sm:$0xff]
    %v6392 = vld [vmem:[#allocation12 + $0x112c] sm:$0xff]
    %v6393 = vld [vmem:[#allocation12 + $0x1134] sm:$0xf]
    %v6394 = vld [vmem:[#allocation12 + $0x1138] sm:$0xff]
    %v6395 = vld [vmem:[#allocation12 + $0x1140] sm:$0xff]
    %v6396 = vld [vmem:[#allocation12 + $0x1148] sm:$0xff]
    %v6397 = vld [vmem:[#allocation12 + $0x1150] sm:$0xff]
    %v6398 = vld [vmem:[#allocation12 + $0x1158] sm:$0xff]
    %v6399 = vld [vmem:[#allocation12 + $0x1160] sm:$0xff]
    %v6400 = vld [vmem:[#allocation12 + $0x1168] sm:$0xff]
    %v6401 = vld [vmem:[#allocation12 + $0x1170] sm:$0xff]
    %v6402 = vld [vmem:[#allocation12 + $0x1178] sm:$0xff]
    %v6403 = vld [vmem:[#allocation12 + $0x1180] sm:$0xf]
    %v6404 = vld [vmem:[#allocation12 + $0x1184] sm:$0xff]
    %v6405 = vld [vmem:[#allocation12 + $0x118c] sm:$0xff]
    %v6406 = vld [vmem:[#allocation12 + $0x1194] sm:$0xff]
    %v6407 = vld [vmem:[#allocation12 + $0x119c] sm:$0xff]
    %v6408 = vld [vmem:[#allocation12 + $0x11a4] sm:$0xff]
    %v6409 = vld [vmem:[#allocation12 + $0x11ac] sm:$0xff]
    %v6410 = vld [vmem:[#allocation12 + $0x11b4] sm:$0xff]
    %v6411 = vld [vmem:[#allocation12 + $0x11bc] sm:$0xff]
    %v6412 = vld [vmem:[#allocation12 + $0x11c4] sm:$0xff]
    %v6413 = vld [vmem:[#allocation12 + $0x11cc] sm:$0xf]
    %v6414 = vld [vmem:[#allocation12 + $0x11d0] sm:$0xff]
    %v6415 = vld [vmem:[#allocation12 + $0x11d8] sm:$0xff]
    %v6416 = vld [vmem:[#allocation12 + $0x11e0] sm:$0xff]
    %v6417 = vld [vmem:[#allocation12 + $0x11e8] sm:$0xff]
    %v6418 = vld [vmem:[#allocation12 + $0x11f0] sm:$0xff]
    %v6419 = vld [vmem:[#allocation12 + $0x11f8] sm:$0xff]
    %v6420 = vld [vmem:[#allocation12 + $0x1200] sm:$0xff]
    %v6421 = vld [vmem:[#allocation12 + $0x1208] sm:$0xff]
    %v6422 = vld [vmem:[#allocation12 + $0x1210] sm:$0xff]
    %v6423 = vld [vmem:[#allocation12 + $0x1218] sm:$0xf]
    %v6424 = vld [vmem:[#allocation12 + $0x121c] sm:$0xff]
    %v6425 = vld [vmem:[#allocation12 + $0x1224] sm:$0xff]
    %v6426 = vld [vmem:[#allocation12 + $0x122c] sm:$0xff]
    %v6427 = vld [vmem:[#allocation12 + $0x1234] sm:$0xff]
    %v6428 = vld [vmem:[#allocation12 + $0x123c] sm:$0xff]
    %v6429 = vld [vmem:[#allocation12 + $0x1244] sm:$0xff]
    %v6430 = vld [vmem:[#allocation12 + $0x124c] sm:$0xff]
    %v6431 = vld [vmem:[#allocation12 + $0x1254] sm:$0xff]
    %v6432 = vld [vmem:[#allocation12 + $0x125c] sm:$0xff]
    %v6433 = vld [vmem:[#allocation12 + $0x1264] sm:$0xf]
    %v6434 = vld [vmem:[#allocation12 + $0x1268] sm:$0xff]
    %v6435 = vld [vmem:[#allocation12 + $0x1270] sm:$0xff]
    %v6436 = vld [vmem:[#allocation12 + $0x1278] sm:$0xff]
    %v6437 = vld [vmem:[#allocation12 + $0x1280] sm:$0xff]
    %v6438 = vld [vmem:[#allocation12 + $0x1288] sm:$0xff]
    %v6439 = vld [vmem:[#allocation12 + $0x1290] sm:$0xff]
    %v6440 = vld [vmem:[#allocation12 + $0x1298] sm:$0xff]
    %v6441 = vld [vmem:[#allocation12 + $0x12a0] sm:$0xff]
    %v6442 = vld [vmem:[#allocation12 + $0x12a8] sm:$0xff]
    %v6443 = vld [vmem:[#allocation12 + $0x12b0] sm:$0xf]
    %v6444 = vld [vmem:[#allocation12 + $0x12b4] sm:$0xff]
    %v6445 = vld [vmem:[#allocation12 + $0x12bc] sm:$0xff]
    %v6446 = vld [vmem:[#allocation12 + $0x12c4] sm:$0xff]
    %v6447 = vld [vmem:[#allocation12 + $0x12cc] sm:$0xff]
    %v6448 = vld [vmem:[#allocation12 + $0x12d4] sm:$0xff]
    %v6449 = vld [vmem:[#allocation12 + $0x12dc] sm:$0xff]
    %v6450 = vld [vmem:[#allocation12 + $0x12e4] sm:$0xff]
    %v6451 = vld [vmem:[#allocation12 + $0x12ec] sm:$0xff]
    %v6452 = vld [vmem:[#allocation12 + $0x12f4] sm:$0xff]
    %v6453 = vld [vmem:[#allocation12 + $0x12fc] sm:$0xf]
    %v6454 = vld [vmem:[#allocation13] sm:$0xff]
    %v6455 = vld [vmem:[#allocation13 + $0x8] sm:$0xff]
    %v6456 = vld [vmem:[#allocation13 + $0x10] sm:$0x7]
    %v6460 = vperm.slane %v6454, 0
    %v6461 = vperm.slane %v6454, 1
    %v6462 = vperm.slane %v6454, 2
    %v6463 = vperm.slane %v6454, 3
    %v6464 = vperm.slane %v6454, 4
    %v6465 = vperm.slane %v6454, 5
    %v6466 = vperm.slane %v6454, 6
    %v6467 = vperm.slane %v6454, 7
    %v6468 = vperm.slane %v6455, 0
    %v6469 = vperm.slane %v6455, 1
    %v6470 = vperm.slane %v6455, 2
    %v6471 = vperm.slane %v6455, 3
    %v6472 = vperm.slane %v6455, 4
    %v6473 = vperm.slane %v6455, 5
    %v6474 = vperm.slane %v6455, 6
    %v6475 = vperm.slane %v6455, 7
    %v6476 = vperm.slane %v6456, 0
    %v6477 = vperm.slane %v6456, 1
    %v6478 = vperm.slane %v6456, 2
    %v7138 = vunpack.c.l.b16 %v5814
    %v7139 = vunpack.c.h.b16 %v5814
    %v7140 = vunpack.c.l.b16 %v5815
    %v7141 = vunpack.c.h.b16 %v5815
    %v7142 = vunpack.c.l.b16 %v5816
    %v7143 = vunpack.c.h.b16 %v5816
    %v7144 = vunpack.c.l.b16 %v5817
    %v7145 = vunpack.c.h.b16 %v5817
    %v7146 = vunpack.c.l.b16 %v5818
    %v7147 = vunpack.c.h.b16 %v5818
    %v7148 = vunpack.c.l.b16 %v5819
    %v7149 = vunpack.c.h.b16 %v5819
    %v7150 = vunpack.c.l.b16 %v5820
    %v7151 = vunpack.c.h.b16 %v5820
    %v7152 = vunpack.c.l.b16 %v5821
    %v7153 = vunpack.c.h.b16 %v5821
    %v7154 = vunpack.c.l.b16 %v5822
    %v7155 = vunpack.c.h.b16 %v5822
    %v7156 = vunpack.c.l.b16 %v5823
    %v7157 = vunpack.c.l.b16 %v5824
    %v7158 = vunpack.c.h.b16 %v5824
    %v7159 = vunpack.c.l.b16 %v5825
    %v7160 = vunpack.c.h.b16 %v5825
    %v7161 = vunpack.c.l.b16 %v5826
    %v7162 = vunpack.c.h.b16 %v5826
    %v7163 = vunpack.c.l.b16 %v5827
    %v7164 = vunpack.c.h.b16 %v5827
    %v7165 = vunpack.c.l.b16 %v5828
    %v7166 = vunpack.c.h.b16 %v5828
    %v7167 = vunpack.c.l.b16 %v5829
    %v7168 = vunpack.c.h.b16 %v5829
    %v7169 = vunpack.c.l.b16 %v5830
    %v7170 = vunpack.c.h.b16 %v5830
    %v7171 = vunpack.c.l.b16 %v5831
    %v7172 = vunpack.c.h.b16 %v5831
    %v7173 = vunpack.c.l.b16 %v5832
    %v7174 = vunpack.c.h.b16 %v5832
    %v7175 = vunpack.c.l.b16 %v5833
    %v7176 = vunpack.c.l.b16 %v5834
    %v7177 = vunpack.c.h.b16 %v5834
    %v7178 = vunpack.c.l.b16 %v5835
    %v7179 = vunpack.c.h.b16 %v5835
    %v7180 = vunpack.c.l.b16 %v5836
    %v7181 = vunpack.c.h.b16 %v5836
    %v7182 = vunpack.c.l.b16 %v5837
    %v7183 = vunpack.c.h.b16 %v5837
    %v7184 = vunpack.c.l.b16 %v5838
    %v7185 = vunpack.c.h.b16 %v5838
    %v7186 = vunpack.c.l.b16 %v5839
    %v7187 = vunpack.c.h.b16 %v5839
    %v7188 = vunpack.c.l.b16 %v5840
    %v7189 = vunpack.c.h.b16 %v5840
    %v7190 = vunpack.c.l.b16 %v5841
    %v7191 = vunpack.c.h.b16 %v5841
    %v7192 = vunpack.c.l.b16 %v5842
    %v7193 = vunpack.c.h.b16 %v5842
    %v7194 = vunpack.c.l.b16 %v5843
    %v7195 = vunpack.c.l.b16 %v5844
    %v7196 = vunpack.c.h.b16 %v5844
    %v7197 = vunpack.c.l.b16 %v5845
    %v7198 = vunpack.c.h.b16 %v5845
    %v7199 = vunpack.c.l.b16 %v5846
    %v7200 = vunpack.c.h.b16 %v5846
    %v7201 = vunpack.c.l.b16 %v5847
    %v7202 = vunpack.c.h.b16 %v5847
    %v7203 = vunpack.c.l.b16 %v5848
    %v7204 = vunpack.c.h.b16 %v5848
    %v7205 = vunpack.c.l.b16 %v5849
    %v7206 = vunpack.c.h.b16 %v5849
    %v7207 = vunpack.c.l.b16 %v5850
    %v7208 = vunpack.c.h.b16 %v5850
    %v7209 = vunpack.c.l.b16 %v5851
    %v7210 = vunpack.c.h.b16 %v5851
    %v7211 = vunpack.c.l.b16 %v5852
    %v7212 = vunpack.c.h.b16 %v5852
    %v7213 = vunpack.c.l.b16 %v5853
    %v7214 = vunpack.c.l.b16 %v5854
    %v7215 = vunpack.c.h.b16 %v5854
    %v7216 = vunpack.c.l.b16 %v5855
    %v7217 = vunpack.c.h.b16 %v5855
    %v7218 = vunpack.c.l.b16 %v5856
    %v7219 = vunpack.c.h.b16 %v5856
    %v7220 = vunpack.c.l.b16 %v5857
    %v7221 = vunpack.c.h.b16 %v5857
    %v7222 = vunpack.c.l.b16 %v5858
    %v7223 = vunpack.c.h.b16 %v5858
    %v7224 = vunpack.c.l.b16 %v5859
    %v7225 = vunpack.c.h.b16 %v5859
    %v7226 = vunpack.c.l.b16 %v5860
    %v7227 = vunpack.c.h.b16 %v5860
    %v7228 = vunpack.c.l.b16 %v5861
    %v7229 = vunpack.c.h.b16 %v5861
    %v7230 = vunpack.c.l.b16 %v5862
    %v7231 = vunpack.c.h.b16 %v5862
    %v7232 = vunpack.c.l.b16 %v5863
    %v7233 = vunpack.c.l.b16 %v5864
    %v7234 = vunpack.c.h.b16 %v5864
    %v7235 = vunpack.c.l.b16 %v5865
    %v7236 = vunpack.c.h.b16 %v5865
    %v7237 = vunpack.c.l.b16 %v5866
    %v7238 = vunpack.c.h.b16 %v5866
    %v7239 = vunpack.c.l.b16 %v5867
    %v7240 = vunpack.c.h.b16 %v5867
    %v7241 = vunpack.c.l.b16 %v5868
    %v7242 = vunpack.c.h.b16 %v5868
    %v7243 = vunpack.c.l.b16 %v5869
    %v7244 = vunpack.c.h.b16 %v5869
    %v7245 = vunpack.c.l.b16 %v5870
    %v7246 = vunpack.c.h.b16 %v5870
    %v7247 = vunpack.c.l.b16 %v5871
    %v7248 = vunpack.c.h.b16 %v5871
    %v7249 = vunpack.c.l.b16 %v5872
    %v7250 = vunpack.c.h.b16 %v5872
    %v7251 = vunpack.c.l.b16 %v5873
    %v7252 = vunpack.c.l.b16 %v5874
    %v7253 = vunpack.c.h.b16 %v5874
    %v7254 = vunpack.c.l.b16 %v5875
    %v7255 = vunpack.c.h.b16 %v5875
    %v7256 = vunpack.c.l.b16 %v5876
    %v7257 = vunpack.c.h.b16 %v5876
    %v7258 = vunpack.c.l.b16 %v5877
    %v7259 = vunpack.c.h.b16 %v5877
    %v7260 = vunpack.c.l.b16 %v5878
    %v7261 = vunpack.c.h.b16 %v5878
    %v7262 = vunpack.c.l.b16 %v5879
    %v7263 = vunpack.c.h.b16 %v5879
    %v7264 = vunpack.c.l.b16 %v5880
    %v7265 = vunpack.c.h.b16 %v5880
    %v7266 = vunpack.c.l.b16 %v5881
    %v7267 = vunpack.c.h.b16 %v5881
    %v7268 = vunpack.c.l.b16 %v5882
    %v7269 = vunpack.c.h.b16 %v5882
    %v7270 = vunpack.c.l.b16 %v5883
    %v7271 = vunpack.c.l.b16 %v5884
    %v7272 = vunpack.c.h.b16 %v5884
    %v7273 = vunpack.c.l.b16 %v5885
    %v7274 = vunpack.c.h.b16 %v5885
    %v7275 = vunpack.c.l.b16 %v5886
    %v7276 = vunpack.c.h.b16 %v5886
    %v7277 = vunpack.c.l.b16 %v5887
    %v7278 = vunpack.c.h.b16 %v5887
    %v7279 = vunpack.c.l.b16 %v5888
    %v7280 = vunpack.c.h.b16 %v5888
    %v7281 = vunpack.c.l.b16 %v5889
    %v7282 = vunpack.c.h.b16 %v5889
    %v7283 = vunpack.c.l.b16 %v5890
    %v7284 = vunpack.c.h.b16 %v5890
    %v7285 = vunpack.c.l.b16 %v5891
    %v7286 = vunpack.c.h.b16 %v5891
    %v7287 = vunpack.c.l.b16 %v5892
    %v7288 = vunpack.c.h.b16 %v5892
    %v7289 = vunpack.c.l.b16 %v5893
    %v7290 = vunpack.c.l.b16 %v5894
    %v7291 = vunpack.c.h.b16 %v5894
    %v7292 = vunpack.c.l.b16 %v5895
    %v7293 = vunpack.c.h.b16 %v5895
    %v7294 = vunpack.c.l.b16 %v5896
    %v7295 = vunpack.c.h.b16 %v5896
    %v7296 = vunpack.c.l.b16 %v5897
    %v7297 = vunpack.c.h.b16 %v5897
    %v7298 = vunpack.c.l.b16 %v5898
    %v7299 = vunpack.c.h.b16 %v5898
    %v7300 = vunpack.c.l.b16 %v5899
    %v7301 = vunpack.c.h.b16 %v5899
    %v7302 = vunpack.c.l.b16 %v5900
    %v7303 = vunpack.c.h.b16 %v5900
    %v7304 = vunpack.c.l.b16 %v5901
    %v7305 = vunpack.c.h.b16 %v5901
    %v7306 = vunpack.c.l.b16 %v5902
    %v7307 = vunpack.c.h.b16 %v5902
    %v7308 = vunpack.c.l.b16 %v5903
    %v7309 = vunpack.c.l.b16 %v5904
    %v7310 = vunpack.c.h.b16 %v5904
    %v7311 = vunpack.c.l.b16 %v5905
    %v7312 = vunpack.c.h.b16 %v5905
    %v7313 = vunpack.c.l.b16 %v5906
    %v7314 = vunpack.c.h.b16 %v5906
    %v7315 = vunpack.c.l.b16 %v5907
    %v7316 = vunpack.c.h.b16 %v5907
    %v7317 = vunpack.c.l.b16 %v5908
    %v7318 = vunpack.c.h.b16 %v5908
    %v7319 = vunpack.c.l.b16 %v5909
    %v7320 = vunpack.c.h.b16 %v5909
    %v7321 = vunpack.c.l.b16 %v5910
    %v7322 = vunpack.c.h.b16 %v5910
    %v7323 = vunpack.c.l.b16 %v5911
    %v7324 = vunpack.c.h.b16 %v5911
    %v7325 = vunpack.c.l.b16 %v5912
    %v7326 = vunpack.c.h.b16 %v5912
    %v7327 = vunpack.c.l.b16 %v5913
    %v7328 = vunpack.c.l.b16 %v5914
    %v7329 = vunpack.c.h.b16 %v5914
    %v7330 = vunpack.c.l.b16 %v5915
    %v7331 = vunpack.c.h.b16 %v5915
    %v7332 = vunpack.c.l.b16 %v5916
    %v7333 = vunpack.c.h.b16 %v5916
    %v7334 = vunpack.c.l.b16 %v5917
    %v7335 = vunpack.c.h.b16 %v5917
    %v7336 = vunpack.c.l.b16 %v5918
    %v7337 = vunpack.c.h.b16 %v5918
    %v7338 = vunpack.c.l.b16 %v5919
    %v7339 = vunpack.c.h.b16 %v5919
    %v7340 = vunpack.c.l.b16 %v5920
    %v7341 = vunpack.c.h.b16 %v5920
    %v7342 = vunpack.c.l.b16 %v5921
    %v7343 = vunpack.c.h.b16 %v5921
    %v7344 = vunpack.c.l.b16 %v5922
    %v7345 = vunpack.c.h.b16 %v5922
    %v7346 = vunpack.c.l.b16 %v5923
    %v7347 = vunpack.c.l.b16 %v5924
    %v7348 = vunpack.c.h.b16 %v5924
    %v7349 = vunpack.c.l.b16 %v5925
    %v7350 = vunpack.c.h.b16 %v5925
    %v7351 = vunpack.c.l.b16 %v5926
    %v7352 = vunpack.c.h.b16 %v5926
    %v7353 = vunpack.c.l.b16 %v5927
    %v7354 = vunpack.c.h.b16 %v5927
    %v7355 = vunpack.c.l.b16 %v5928
    %v7356 = vunpack.c.h.b16 %v5928
    %v7357 = vunpack.c.l.b16 %v5929
    %v7358 = vunpack.c.h.b16 %v5929
    %v7359 = vunpack.c.l.b16 %v5930
    %v7360 = vunpack.c.h.b16 %v5930
    %v7361 = vunpack.c.l.b16 %v5931
    %v7362 = vunpack.c.h.b16 %v5931
    %v7363 = vunpack.c.l.b16 %v5932
    %v7364 = vunpack.c.h.b16 %v5932
    %v7365 = vunpack.c.l.b16 %v5933
    %v7366 = vunpack.c.l.b16 %v5934
    %v7367 = vunpack.c.h.b16 %v5934
    %v7368 = vunpack.c.l.b16 %v5935
    %v7369 = vunpack.c.h.b16 %v5935
    %v7370 = vunpack.c.l.b16 %v5936
    %v7371 = vunpack.c.h.b16 %v5936
    %v7372 = vunpack.c.l.b16 %v5937
    %v7373 = vunpack.c.h.b16 %v5937
    %v7374 = vunpack.c.l.b16 %v5938
    %v7375 = vunpack.c.h.b16 %v5938
    %v7376 = vunpack.c.l.b16 %v5939
    %v7377 = vunpack.c.h.b16 %v5939
    %v7378 = vunpack.c.l.b16 %v5940
    %v7379 = vunpack.c.h.b16 %v5940
    %v7380 = vunpack.c.l.b16 %v5941
    %v7381 = vunpack.c.h.b16 %v5941
    %v7382 = vunpack.c.l.b16 %v5942
    %v7383 = vunpack.c.h.b16 %v5942
    %v7384 = vunpack.c.l.b16 %v5943
    %v7385 = vunpack.c.l.b16 %v5944
    %v7386 = vunpack.c.h.b16 %v5944
    %v7387 = vunpack.c.l.b16 %v5945
    %v7388 = vunpack.c.h.b16 %v5945
    %v7389 = vunpack.c.l.b16 %v5946
    %v7390 = vunpack.c.h.b16 %v5946
    %v7391 = vunpack.c.l.b16 %v5947
    %v7392 = vunpack.c.h.b16 %v5947
    %v7393 = vunpack.c.l.b16 %v5948
    %v7394 = vunpack.c.h.b16 %v5948
    %v7395 = vunpack.c.l.b16 %v5949
    %v7396 = vunpack.c.h.b16 %v5949
    %v7397 = vunpack.c.l.b16 %v5950
    %v7398 = vunpack.c.h.b16 %v5950
    %v7399 = vunpack.c.l.b16 %v5951
    %v7400 = vunpack.c.h.b16 %v5951
    %v7401 = vunpack.c.l.b16 %v5952
    %v7402 = vunpack.c.h.b16 %v5952
    %v7403 = vunpack.c.l.b16 %v5953
    %v7404 = vunpack.c.l.b16 %v5954
    %v7405 = vunpack.c.h.b16 %v5954
    %v7406 = vunpack.c.l.b16 %v5955
    %v7407 = vunpack.c.h.b16 %v5955
    %v7408 = vunpack.c.l.b16 %v5956
    %v7409 = vunpack.c.h.b16 %v5956
    %v7410 = vunpack.c.l.b16 %v5957
    %v7411 = vunpack.c.h.b16 %v5957
    %v7412 = vunpack.c.l.b16 %v5958
    %v7413 = vunpack.c.h.b16 %v5958
    %v7414 = vunpack.c.l.b16 %v5959
    %v7415 = vunpack.c.h.b16 %v5959
    %v7416 = vunpack.c.l.b16 %v5960
    %v7417 = vunpack.c.h.b16 %v5960
    %v7418 = vunpack.c.l.b16 %v5961
    %v7419 = vunpack.c.h.b16 %v5961
    %v7420 = vunpack.c.l.b16 %v5962
    %v7421 = vunpack.c.h.b16 %v5962
    %v7422 = vunpack.c.l.b16 %v5963
    %v7423 = vunpack.c.l.b16 %v5964
    %v7424 = vunpack.c.h.b16 %v5964
    %v7425 = vunpack.c.l.b16 %v5965
    %v7426 = vunpack.c.h.b16 %v5965
    %v7427 = vunpack.c.l.b16 %v5966
    %v7428 = vunpack.c.h.b16 %v5966
    %v7429 = vunpack.c.l.b16 %v5967
    %v7430 = vunpack.c.h.b16 %v5967
    %v7431 = vunpack.c.l.b16 %v5968
    %v7432 = vunpack.c.h.b16 %v5968
    %v7433 = vunpack.c.l.b16 %v5969
    %v7434 = vunpack.c.h.b16 %v5969
    %v7435 = vunpack.c.l.b16 %v5970
    %v7436 = vunpack.c.h.b16 %v5970
    %v7437 = vunpack.c.l.b16 %v5971
    %v7438 = vunpack.c.h.b16 %v5971
    %v7439 = vunpack.c.l.b16 %v5972
    %v7440 = vunpack.c.h.b16 %v5972
    %v7441 = vunpack.c.l.b16 %v5973
    %v7442 = vunpack.c.l.b16 %v5974
    %v7443 = vunpack.c.h.b16 %v5974
    %v7444 = vunpack.c.l.b16 %v5975
    %v7445 = vunpack.c.h.b16 %v5975
    %v7446 = vunpack.c.l.b16 %v5976
    %v7447 = vunpack.c.h.b16 %v5976
    %v7448 = vunpack.c.l.b16 %v5977
    %v7449 = vunpack.c.h.b16 %v5977
    %v7450 = vunpack.c.l.b16 %v5978
    %v7451 = vunpack.c.h.b16 %v5978
    %v7452 = vunpack.c.l.b16 %v5979
    %v7453 = vunpack.c.h.b16 %v5979
    %v7454 = vunpack.c.l.b16 %v5980
    %v7455 = vunpack.c.h.b16 %v5980
    %v7456 = vunpack.c.l.b16 %v5981
    %v7457 = vunpack.c.h.b16 %v5981
    %v7458 = vunpack.c.l.b16 %v5982
    %v7459 = vunpack.c.h.b16 %v5982
    %v7460 = vunpack.c.l.b16 %v5983
    %v7461 = vunpack.c.l.b16 %v5984
    %v7462 = vunpack.c.h.b16 %v5984
    %v7463 = vunpack.c.l.b16 %v5985
    %v7464 = vunpack.c.h.b16 %v5985
    %v7465 = vunpack.c.l.b16 %v5986
    %v7466 = vunpack.c.h.b16 %v5986
    %v7467 = vunpack.c.l.b16 %v5987
    %v7468 = vunpack.c.h.b16 %v5987
    %v7469 = vunpack.c.l.b16 %v5988
    %v7470 = vunpack.c.h.b16 %v5988
    %v7471 = vunpack.c.l.b16 %v5989
    %v7472 = vunpack.c.h.b16 %v5989
    %v7473 = vunpack.c.l.b16 %v5990
    %v7474 = vunpack.c.h.b16 %v5990
    %v7475 = vunpack.c.l.b16 %v5991
    %v7476 = vunpack.c.h.b16 %v5991
    %v7477 = vunpack.c.l.b16 %v5992
    %v7478 = vunpack.c.h.b16 %v5992
    %v7479 = vunpack.c.l.b16 %v5993
    %v7480 = vunpack.c.l.b16 %v5994
    %v7481 = vunpack.c.h.b16 %v5994
    %v7482 = vunpack.c.l.b16 %v5995
    %v7483 = vunpack.c.h.b16 %v5995
    %v7484 = vunpack.c.l.b16 %v5996
    %v7485 = vunpack.c.h.b16 %v5996
    %v7486 = vunpack.c.l.b16 %v5997
    %v7487 = vunpack.c.h.b16 %v5997
    %v7488 = vunpack.c.l.b16 %v5998
    %v7489 = vunpack.c.h.b16 %v5998
    %v7490 = vunpack.c.l.b16 %v5999
    %v7491 = vunpack.c.h.b16 %v5999
    %v7492 = vunpack.c.l.b16 %v6000
    %v7493 = vunpack.c.h.b16 %v6000
    %v7494 = vunpack.c.l.b16 %v6001
    %v7495 = vunpack.c.h.b16 %v6001
    %v7496 = vunpack.c.l.b16 %v6002
    %v7497 = vunpack.c.h.b16 %v6002
    %v7498 = vunpack.c.l.b16 %v6003
    %v7499 = vunpack.c.l.b16 %v6004
    %v7500 = vunpack.c.h.b16 %v6004
    %v7501 = vunpack.c.l.b16 %v6005
    %v7502 = vunpack.c.h.b16 %v6005
    %v7503 = vunpack.c.l.b16 %v6006
    %v7504 = vunpack.c.h.b16 %v6006
    %v7505 = vunpack.c.l.b16 %v6007
    %v7506 = vunpack.c.h.b16 %v6007
    %v7507 = vunpack.c.l.b16 %v6008
    %v7508 = vunpack.c.h.b16 %v6008
    %v7509 = vunpack.c.l.b16 %v6009
    %v7510 = vunpack.c.h.b16 %v6009
    %v7511 = vunpack.c.l.b16 %v6010
    %v7512 = vunpack.c.h.b16 %v6010
    %v7513 = vunpack.c.l.b16 %v6011
    %v7514 = vunpack.c.h.b16 %v6011
    %v7515 = vunpack.c.l.b16 %v6012
    %v7516 = vunpack.c.h.b16 %v6012
    %v7517 = vunpack.c.l.b16 %v6013
    %v7518 = vunpack.c.l.b16 %v6014
    %v7519 = vunpack.c.h.b16 %v6014
    %v7520 = vunpack.c.l.b16 %v6015
    %v7521 = vunpack.c.h.b16 %v6015
    %v7522 = vunpack.c.l.b16 %v6016
    %v7523 = vunpack.c.h.b16 %v6016
    %v7524 = vunpack.c.l.b16 %v6017
    %v7525 = vunpack.c.h.b16 %v6017
    %v7526 = vunpack.c.l.b16 %v6018
    %v7527 = vunpack.c.h.b16 %v6018
    %v7528 = vunpack.c.l.b16 %v6019
    %v7529 = vunpack.c.h.b16 %v6019
    %v7530 = vunpack.c.l.b16 %v6020
    %v7531 = vunpack.c.h.b16 %v6020
    %v7532 = vunpack.c.l.b16 %v6021
    %v7533 = vunpack.c.h.b16 %v6021
    %v7534 = vunpack.c.l.b16 %v6022
    %v7535 = vunpack.c.h.b16 %v6022
    %v7536 = vunpack.c.l.b16 %v6023
    %v7537 = vunpack.c.l.b16 %v6024
    %v7538 = vunpack.c.h.b16 %v6024
    %v7539 = vunpack.c.l.b16 %v6025
    %v7540 = vunpack.c.h.b16 %v6025
    %v7541 = vunpack.c.l.b16 %v6026
    %v7542 = vunpack.c.h.b16 %v6026
    %v7543 = vunpack.c.l.b16 %v6027
    %v7544 = vunpack.c.h.b16 %v6027
    %v7545 = vunpack.c.l.b16 %v6028
    %v7546 = vunpack.c.h.b16 %v6028
    %v7547 = vunpack.c.l.b16 %v6029
    %v7548 = vunpack.c.h.b16 %v6029
    %v7549 = vunpack.c.l.b16 %v6030
    %v7550 = vunpack.c.h.b16 %v6030
    %v7551 = vunpack.c.l.b16 %v6031
    %v7552 = vunpack.c.h.b16 %v6031
    %v7553 = vunpack.c.l.b16 %v6032
    %v7554 = vunpack.c.h.b16 %v6032
    %v7555 = vunpack.c.l.b16 %v6033
    %v7556 = vunpack.c.l.b16 %v6034
    %v7557 = vunpack.c.h.b16 %v6034
    %v7558 = vunpack.c.l.b16 %v6035
    %v7559 = vunpack.c.h.b16 %v6035
    %v7560 = vunpack.c.l.b16 %v6036
    %v7561 = vunpack.c.h.b16 %v6036
    %v7562 = vunpack.c.l.b16 %v6037
    %v7563 = vunpack.c.h.b16 %v6037
    %v7564 = vunpack.c.l.b16 %v6038
    %v7565 = vunpack.c.h.b16 %v6038
    %v7566 = vunpack.c.l.b16 %v6039
    %v7567 = vunpack.c.h.b16 %v6039
    %v7568 = vunpack.c.l.b16 %v6040
    %v7569 = vunpack.c.h.b16 %v6040
    %v7570 = vunpack.c.l.b16 %v6041
    %v7571 = vunpack.c.h.b16 %v6041
    %v7572 = vunpack.c.l.b16 %v6042
    %v7573 = vunpack.c.h.b16 %v6042
    %v7574 = vunpack.c.l.b16 %v6043
    %v7575 = vunpack.c.l.b16 %v6044
    %v7576 = vunpack.c.h.b16 %v6044
    %v7577 = vunpack.c.l.b16 %v6045
    %v7578 = vunpack.c.h.b16 %v6045
    %v7579 = vunpack.c.l.b16 %v6046
    %v7580 = vunpack.c.h.b16 %v6046
    %v7581 = vunpack.c.l.b16 %v6047
    %v7582 = vunpack.c.h.b16 %v6047
    %v7583 = vunpack.c.l.b16 %v6048
    %v7584 = vunpack.c.h.b16 %v6048
    %v7585 = vunpack.c.l.b16 %v6049
    %v7586 = vunpack.c.h.b16 %v6049
    %v7587 = vunpack.c.l.b16 %v6050
    %v7588 = vunpack.c.h.b16 %v6050
    %v7589 = vunpack.c.l.b16 %v6051
    %v7590 = vunpack.c.h.b16 %v6051
    %v7591 = vunpack.c.l.b16 %v6052
    %v7592 = vunpack.c.h.b16 %v6052
    %v7593 = vunpack.c.l.b16 %v6053
    %v7594 = vunpack.c.l.b16 %v6054
    %v7595 = vunpack.c.h.b16 %v6054
    %v7596 = vunpack.c.l.b16 %v6055
    %v7597 = vunpack.c.h.b16 %v6055
    %v7598 = vunpack.c.l.b16 %v6056
    %v7599 = vunpack.c.h.b16 %v6056
    %v7600 = vunpack.c.l.b16 %v6057
    %v7601 = vunpack.c.h.b16 %v6057
    %v7602 = vunpack.c.l.b16 %v6058
    %v7603 = vunpack.c.h.b16 %v6058
    %v7604 = vunpack.c.l.b16 %v6059
    %v7605 = vunpack.c.h.b16 %v6059
    %v7606 = vunpack.c.l.b16 %v6060
    %v7607 = vunpack.c.h.b16 %v6060
    %v7608 = vunpack.c.l.b16 %v6061
    %v7609 = vunpack.c.h.b16 %v6061
    %v7610 = vunpack.c.l.b16 %v6062
    %v7611 = vunpack.c.h.b16 %v6062
    %v7612 = vunpack.c.l.b16 %v6063
    %v7613 = vunpack.c.l.b16 %v6064
    %v7614 = vunpack.c.h.b16 %v6064
    %v7615 = vunpack.c.l.b16 %v6065
    %v7616 = vunpack.c.h.b16 %v6065
    %v7617 = vunpack.c.l.b16 %v6066
    %v7618 = vunpack.c.h.b16 %v6066
    %v7619 = vunpack.c.l.b16 %v6067
    %v7620 = vunpack.c.h.b16 %v6067
    %v7621 = vunpack.c.l.b16 %v6068
    %v7622 = vunpack.c.h.b16 %v6068
    %v7623 = vunpack.c.l.b16 %v6069
    %v7624 = vunpack.c.h.b16 %v6069
    %v7625 = vunpack.c.l.b16 %v6070
    %v7626 = vunpack.c.h.b16 %v6070
    %v7627 = vunpack.c.l.b16 %v6071
    %v7628 = vunpack.c.h.b16 %v6071
    %v7629 = vunpack.c.l.b16 %v6072
    %v7630 = vunpack.c.h.b16 %v6072
    %v7631 = vunpack.c.l.b16 %v6073
    %v7632 = vunpack.c.l.b16 %v6074
    %v7633 = vunpack.c.h.b16 %v6074
    %v7634 = vunpack.c.l.b16 %v6075
    %v7635 = vunpack.c.h.b16 %v6075
    %v7636 = vunpack.c.l.b16 %v6076
    %v7637 = vunpack.c.h.b16 %v6076
    %v7638 = vunpack.c.l.b16 %v6077
    %v7639 = vunpack.c.h.b16 %v6077
    %v7640 = vunpack.c.l.b16 %v6078
    %v7641 = vunpack.c.h.b16 %v6078
    %v7642 = vunpack.c.l.b16 %v6079
    %v7643 = vunpack.c.h.b16 %v6079
    %v7644 = vunpack.c.l.b16 %v6080
    %v7645 = vunpack.c.h.b16 %v6080
    %v7646 = vunpack.c.l.b16 %v6081
    %v7647 = vunpack.c.h.b16 %v6081
    %v7648 = vunpack.c.l.b16 %v6082
    %v7649 = vunpack.c.h.b16 %v6082
    %v7650 = vunpack.c.l.b16 %v6083
    %v7651 = vunpack.c.l.b16 %v6084
    %v7652 = vunpack.c.h.b16 %v6084
    %v7653 = vunpack.c.l.b16 %v6085
    %v7654 = vunpack.c.h.b16 %v6085
    %v7655 = vunpack.c.l.b16 %v6086
    %v7656 = vunpack.c.h.b16 %v6086
    %v7657 = vunpack.c.l.b16 %v6087
    %v7658 = vunpack.c.h.b16 %v6087
    %v7659 = vunpack.c.l.b16 %v6088
    %v7660 = vunpack.c.h.b16 %v6088
    %v7661 = vunpack.c.l.b16 %v6089
    %v7662 = vunpack.c.h.b16 %v6089
    %v7663 = vunpack.c.l.b16 %v6090
    %v7664 = vunpack.c.h.b16 %v6090
    %v7665 = vunpack.c.l.b16 %v6091
    %v7666 = vunpack.c.h.b16 %v6091
    %v7667 = vunpack.c.l.b16 %v6092
    %v7668 = vunpack.c.h.b16 %v6092
    %v7669 = vunpack.c.l.b16 %v6093
    %v7670 = vunpack.c.l.b16 %v6094
    %v7671 = vunpack.c.h.b16 %v6094
    %v7672 = vunpack.c.l.b16 %v6095
    %v7673 = vunpack.c.h.b16 %v6095
    %v7674 = vunpack.c.l.b16 %v6096
    %v7675 = vunpack.c.h.b16 %v6096
    %v7676 = vunpack.c.l.b16 %v6097
    %v7677 = vunpack.c.h.b16 %v6097
    %v7678 = vunpack.c.l.b16 %v6098
    %v7679 = vunpack.c.h.b16 %v6098
    %v7680 = vunpack.c.l.b16 %v6099
    %v7681 = vunpack.c.h.b16 %v6099
    %v7682 = vunpack.c.l.b16 %v6100
    %v7683 = vunpack.c.h.b16 %v6100
    %v7684 = vunpack.c.l.b16 %v6101
    %v7685 = vunpack.c.h.b16 %v6101
    %v7686 = vunpack.c.l.b16 %v6102
    %v7687 = vunpack.c.h.b16 %v6102
    %v7688 = vunpack.c.l.b16 %v6103
    %v7689 = vunpack.c.l.b16 %v6104
    %v7690 = vunpack.c.h.b16 %v6104
    %v7691 = vunpack.c.l.b16 %v6105
    %v7692 = vunpack.c.h.b16 %v6105
    %v7693 = vunpack.c.l.b16 %v6106
    %v7694 = vunpack.c.h.b16 %v6106
    %v7695 = vunpack.c.l.b16 %v6107
    %v7696 = vunpack.c.h.b16 %v6107
    %v7697 = vunpack.c.l.b16 %v6108
    %v7698 = vunpack.c.h.b16 %v6108
    %v7699 = vunpack.c.l.b16 %v6109
    %v7700 = vunpack.c.h.b16 %v6109
    %v7701 = vunpack.c.l.b16 %v6110
    %v7702 = vunpack.c.h.b16 %v6110
    %v7703 = vunpack.c.l.b16 %v6111
    %v7704 = vunpack.c.h.b16 %v6111
    %v7705 = vunpack.c.l.b16 %v6112
    %v7706 = vunpack.c.h.b16 %v6112
    %v7707 = vunpack.c.l.b16 %v6113
    %v7708 = vunpack.c.l.b16 %v6114
    %v7709 = vunpack.c.h.b16 %v6114
    %v7710 = vunpack.c.l.b16 %v6115
    %v7711 = vunpack.c.h.b16 %v6115
    %v7712 = vunpack.c.l.b16 %v6116
    %v7713 = vunpack.c.h.b16 %v6116
    %v7714 = vunpack.c.l.b16 %v6117
    %v7715 = vunpack.c.h.b16 %v6117
    %v7716 = vunpack.c.l.b16 %v6118
    %v7717 = vunpack.c.h.b16 %v6118
    %v7718 = vunpack.c.l.b16 %v6119
    %v7719 = vunpack.c.h.b16 %v6119
    %v7720 = vunpack.c.l.b16 %v6120
    %v7721 = vunpack.c.h.b16 %v6120
    %v7722 = vunpack.c.l.b16 %v6121
    %v7723 = vunpack.c.h.b16 %v6121
    %v7724 = vunpack.c.l.b16 %v6122
    %v7725 = vunpack.c.h.b16 %v6122
    %v7726 = vunpack.c.l.b16 %v6123
    %v7727 = vunpack.c.l.b16 %v6124
    %v7728 = vunpack.c.h.b16 %v6124
    %v7729 = vunpack.c.l.b16 %v6125
    %v7730 = vunpack.c.h.b16 %v6125
    %v7731 = vunpack.c.l.b16 %v6126
    %v7732 = vunpack.c.h.b16 %v6126
    %v7733 = vunpack.c.l.b16 %v6127
    %v7734 = vunpack.c.h.b16 %v6127
    %v7735 = vunpack.c.l.b16 %v6128
    %v7736 = vunpack.c.h.b16 %v6128
    %v7737 = vunpack.c.l.b16 %v6129
    %v7738 = vunpack.c.h.b16 %v6129
    %v7739 = vunpack.c.l.b16 %v6130
    %v7740 = vunpack.c.h.b16 %v6130
    %v7741 = vunpack.c.l.b16 %v6131
    %v7742 = vunpack.c.h.b16 %v6131
    %v7743 = vunpack.c.l.b16 %v6132
    %v7744 = vunpack.c.h.b16 %v6132
    %v7745 = vunpack.c.l.b16 %v6133
    %v7746 = vunpack.c.l.b16 %v6134
    %v7747 = vunpack.c.h.b16 %v6134
    %v7748 = vunpack.c.l.b16 %v6135
    %v7749 = vunpack.c.h.b16 %v6135
    %v7750 = vunpack.c.l.b16 %v6136
    %v7751 = vunpack.c.h.b16 %v6136
    %v7752 = vunpack.c.l.b16 %v6137
    %v7753 = vunpack.c.h.b16 %v6137
    %v7754 = vunpack.c.l.b16 %v6138
    %v7755 = vunpack.c.h.b16 %v6138
    %v7756 = vunpack.c.l.b16 %v6139
    %v7757 = vunpack.c.h.b16 %v6139
    %v7758 = vunpack.c.l.b16 %v6140
    %v7759 = vunpack.c.h.b16 %v6140
    %v7760 = vunpack.c.l.b16 %v6141
    %v7761 = vunpack.c.h.b16 %v6141
    %v7762 = vunpack.c.l.b16 %v6142
    %v7763 = vunpack.c.h.b16 %v6142
    %v7764 = vunpack.c.l.b16 %v6143
    %v7765 = vunpack.c.l.b16 %v6144
    %v7766 = vunpack.c.h.b16 %v6144
    %v7767 = vunpack.c.l.b16 %v6145
    %v7768 = vunpack.c.h.b16 %v6145
    %v7769 = vunpack.c.l.b16 %v6146
    %v7770 = vunpack.c.h.b16 %v6146
    %v7771 = vunpack.c.l.b16 %v6147
    %v7772 = vunpack.c.h.b16 %v6147
    %v7773 = vunpack.c.l.b16 %v6148
    %v7774 = vunpack.c.h.b16 %v6148
    %v7775 = vunpack.c.l.b16 %v6149
    %v7776 = vunpack.c.h.b16 %v6149
    %v7777 = vunpack.c.l.b16 %v6150
    %v7778 = vunpack.c.h.b16 %v6150
    %v7779 = vunpack.c.l.b16 %v6151
    %v7780 = vunpack.c.h.b16 %v6151
    %v7781 = vunpack.c.l.b16 %v6152
    %v7782 = vunpack.c.h.b16 %v6152
    %v7783 = vunpack.c.l.b16 %v6153
    %v7784 = vunpack.c.l.b16 %v6154
    %v7785 = vunpack.c.h.b16 %v6154
    %v7786 = vunpack.c.l.b16 %v6155
    %v7787 = vunpack.c.h.b16 %v6155
    %v7788 = vunpack.c.l.b16 %v6156
    %v7789 = vunpack.c.h.b16 %v6156
    %v7790 = vunpack.c.l.b16 %v6157
    %v7791 = vunpack.c.h.b16 %v6157
    %v7792 = vunpack.c.l.b16 %v6158
    %v7793 = vunpack.c.h.b16 %v6158
    %v7794 = vunpack.c.l.b16 %v6159
    %v7795 = vunpack.c.h.b16 %v6159
    %v7796 = vunpack.c.l.b16 %v6160
    %v7797 = vunpack.c.h.b16 %v6160
    %v7798 = vunpack.c.l.b16 %v6161
    %v7799 = vunpack.c.h.b16 %v6161
    %v7800 = vunpack.c.l.b16 %v6162
    %v7801 = vunpack.c.h.b16 %v6162
    %v7802 = vunpack.c.l.b16 %v6163
    %v7803 = vunpack.c.l.b16 %v6164
    %v7804 = vunpack.c.h.b16 %v6164
    %v7805 = vunpack.c.l.b16 %v6165
    %v7806 = vunpack.c.h.b16 %v6165
    %v7807 = vunpack.c.l.b16 %v6166
    %v7808 = vunpack.c.h.b16 %v6166
    %v7809 = vunpack.c.l.b16 %v6167
    %v7810 = vunpack.c.h.b16 %v6167
    %v7811 = vunpack.c.l.b16 %v6168
    %v7812 = vunpack.c.h.b16 %v6168
    %v7813 = vunpack.c.l.b16 %v6169
    %v7814 = vunpack.c.h.b16 %v6169
    %v7815 = vunpack.c.l.b16 %v6170
    %v7816 = vunpack.c.h.b16 %v6170
    %v7817 = vunpack.c.l.b16 %v6171
    %v7818 = vunpack.c.h.b16 %v6171
    %v7819 = vunpack.c.l.b16 %v6172
    %v7820 = vunpack.c.h.b16 %v6172
    %v7821 = vunpack.c.l.b16 %v6173
    %v7822 = vunpack.c.l.b16 %v6174
    %v7823 = vunpack.c.h.b16 %v6174
    %v7824 = vunpack.c.l.b16 %v6175
    %v7825 = vunpack.c.h.b16 %v6175
    %v7826 = vunpack.c.l.b16 %v6176
    %v7827 = vunpack.c.h.b16 %v6176
    %v7828 = vunpack.c.l.b16 %v6177
    %v7829 = vunpack.c.h.b16 %v6177
    %v7830 = vunpack.c.l.b16 %v6178
    %v7831 = vunpack.c.h.b16 %v6178
    %v7832 = vunpack.c.l.b16 %v6179
    %v7833 = vunpack.c.h.b16 %v6179
    %v7834 = vunpack.c.l.b16 %v6180
    %v7835 = vunpack.c.h.b16 %v6180
    %v7836 = vunpack.c.l.b16 %v6181
    %v7837 = vunpack.c.h.b16 %v6181
    %v7838 = vunpack.c.l.b16 %v6182
    %v7839 = vunpack.c.h.b16 %v6182
    %v7840 = vunpack.c.l.b16 %v6183
    %v7841 = vunpack.c.l.b16 %v6184
    %v7842 = vunpack.c.h.b16 %v6184
    %v7843 = vunpack.c.l.b16 %v6185
    %v7844 = vunpack.c.h.b16 %v6185
    %v7845 = vunpack.c.l.b16 %v6186
    %v7846 = vunpack.c.h.b16 %v6186
    %v7847 = vunpack.c.l.b16 %v6187
    %v7848 = vunpack.c.h.b16 %v6187
    %v7849 = vunpack.c.l.b16 %v6188
    %v7850 = vunpack.c.h.b16 %v6188
    %v7851 = vunpack.c.l.b16 %v6189
    %v7852 = vunpack.c.h.b16 %v6189
    %v7853 = vunpack.c.l.b16 %v6190
    %v7854 = vunpack.c.h.b16 %v6190
    %v7855 = vunpack.c.l.b16 %v6191
    %v7856 = vunpack.c.h.b16 %v6191
    %v7857 = vunpack.c.l.b16 %v6192
    %v7858 = vunpack.c.h.b16 %v6192
    %v7859 = vunpack.c.l.b16 %v6193
    %v7860 = vunpack.c.l.b16 %v6194
    %v7861 = vunpack.c.h.b16 %v6194
    %v7862 = vunpack.c.l.b16 %v6195
    %v7863 = vunpack.c.h.b16 %v6195
    %v7864 = vunpack.c.l.b16 %v6196
    %v7865 = vunpack.c.h.b16 %v6196
    %v7866 = vunpack.c.l.b16 %v6197
    %v7867 = vunpack.c.h.b16 %v6197
    %v7868 = vunpack.c.l.b16 %v6198
    %v7869 = vunpack.c.h.b16 %v6198
    %v7870 = vunpack.c.l.b16 %v6199
    %v7871 = vunpack.c.h.b16 %v6199
    %v7872 = vunpack.c.l.b16 %v6200
    %v7873 = vunpack.c.h.b16 %v6200
    %v7874 = vunpack.c.l.b16 %v6201
    %v7875 = vunpack.c.h.b16 %v6201
    %v7876 = vunpack.c.l.b16 %v6202
    %v7877 = vunpack.c.h.b16 %v6202
    %v7878 = vunpack.c.l.b16 %v6203
    %v7879 = vunpack.c.l.b16 %v6204
    %v7880 = vunpack.c.h.b16 %v6204
    %v7881 = vunpack.c.l.b16 %v6205
    %v7882 = vunpack.c.h.b16 %v6205
    %v7883 = vunpack.c.l.b16 %v6206
    %v7884 = vunpack.c.h.b16 %v6206
    %v7885 = vunpack.c.l.b16 %v6207
    %v7886 = vunpack.c.h.b16 %v6207
    %v7887 = vunpack.c.l.b16 %v6208
    %v7888 = vunpack.c.h.b16 %v6208
    %v7889 = vunpack.c.l.b16 %v6209
    %v7890 = vunpack.c.h.b16 %v6209
    %v7891 = vunpack.c.l.b16 %v6210
    %v7892 = vunpack.c.h.b16 %v6210
    %v7893 = vunpack.c.l.b16 %v6211
    %v7894 = vunpack.c.h.b16 %v6211
    %v7895 = vunpack.c.l.b16 %v6212
    %v7896 = vunpack.c.h.b16 %v6212
    %v7897 = vunpack.c.l.b16 %v6213
    %v7898 = vunpack.c.l.b16 %v6214
    %v7899 = vunpack.c.h.b16 %v6214
    %v7900 = vunpack.c.l.b16 %v6215
    %v7901 = vunpack.c.h.b16 %v6215
    %v7902 = vunpack.c.l.b16 %v6216
    %v7903 = vunpack.c.h.b16 %v6216
    %v7904 = vunpack.c.l.b16 %v6217
    %v7905 = vunpack.c.h.b16 %v6217
    %v7906 = vunpack.c.l.b16 %v6218
    %v7907 = vunpack.c.h.b16 %v6218
    %v7908 = vunpack.c.l.b16 %v6219
    %v7909 = vunpack.c.h.b16 %v6219
    %v7910 = vunpack.c.l.b16 %v6220
    %v7911 = vunpack.c.h.b16 %v6220
    %v7912 = vunpack.c.l.b16 %v6221
    %v7913 = vunpack.c.h.b16 %v6221
    %v7914 = vunpack.c.l.b16 %v6222
    %v7915 = vunpack.c.h.b16 %v6222
    %v7916 = vunpack.c.l.b16 %v6223
    %v7917 = vunpack.c.l.b16 %v6224
    %v7918 = vunpack.c.h.b16 %v6224
    %v7919 = vunpack.c.l.b16 %v6225
    %v7920 = vunpack.c.h.b16 %v6225
    %v7921 = vunpack.c.l.b16 %v6226
    %v7922 = vunpack.c.h.b16 %v6226
    %v7923 = vunpack.c.l.b16 %v6227
    %v7924 = vunpack.c.h.b16 %v6227
    %v7925 = vunpack.c.l.b16 %v6228
    %v7926 = vunpack.c.h.b16 %v6228
    %v7927 = vunpack.c.l.b16 %v6229
    %v7928 = vunpack.c.h.b16 %v6229
    %v7929 = vunpack.c.l.b16 %v6230
    %v7930 = vunpack.c.h.b16 %v6230
    %v7931 = vunpack.c.l.b16 %v6231
    %v7932 = vunpack.c.h.b16 %v6231
    %v7933 = vunpack.c.l.b16 %v6232
    %v7934 = vunpack.c.h.b16 %v6232
    %v7935 = vunpack.c.l.b16 %v6233
    %v7936 = vunpack.c.l.b16 %v6234
    %v7937 = vunpack.c.h.b16 %v6234
    %v7938 = vunpack.c.l.b16 %v6235
    %v7939 = vunpack.c.h.b16 %v6235
    %v7940 = vunpack.c.l.b16 %v6236
    %v7941 = vunpack.c.h.b16 %v6236
    %v7942 = vunpack.c.l.b16 %v6237
    %v7943 = vunpack.c.h.b16 %v6237
    %v7944 = vunpack.c.l.b16 %v6238
    %v7945 = vunpack.c.h.b16 %v6238
    %v7946 = vunpack.c.l.b16 %v6239
    %v7947 = vunpack.c.h.b16 %v6239
    %v7948 = vunpack.c.l.b16 %v6240
    %v7949 = vunpack.c.h.b16 %v6240
    %v7950 = vunpack.c.l.b16 %v6241
    %v7951 = vunpack.c.h.b16 %v6241
    %v7952 = vunpack.c.l.b16 %v6242
    %v7953 = vunpack.c.h.b16 %v6242
    %v7954 = vunpack.c.l.b16 %v6243
    %v7955 = vunpack.c.l.b16 %v6244
    %v7956 = vunpack.c.h.b16 %v6244
    %v7957 = vunpack.c.l.b16 %v6245
    %v7958 = vunpack.c.h.b16 %v6245
    %v7959 = vunpack.c.l.b16 %v6246
    %v7960 = vunpack.c.h.b16 %v6246
    %v7961 = vunpack.c.l.b16 %v6247
    %v7962 = vunpack.c.h.b16 %v6247
    %v7963 = vunpack.c.l.b16 %v6248
    %v7964 = vunpack.c.h.b16 %v6248
    %v7965 = vunpack.c.l.b16 %v6249
    %v7966 = vunpack.c.h.b16 %v6249
    %v7967 = vunpack.c.l.b16 %v6250
    %v7968 = vunpack.c.h.b16 %v6250
    %v7969 = vunpack.c.l.b16 %v6251
    %v7970 = vunpack.c.h.b16 %v6251
    %v7971 = vunpack.c.l.b16 %v6252
    %v7972 = vunpack.c.h.b16 %v6252
    %v7973 = vunpack.c.l.b16 %v6253
    %v7974 = vunpack.c.l.b16 %v6254
    %v7975 = vunpack.c.h.b16 %v6254
    %v7976 = vunpack.c.l.b16 %v6255
    %v7977 = vunpack.c.h.b16 %v6255
    %v7978 = vunpack.c.l.b16 %v6256
    %v7979 = vunpack.c.h.b16 %v6256
    %v7980 = vunpack.c.l.b16 %v6257
    %v7981 = vunpack.c.h.b16 %v6257
    %v7982 = vunpack.c.l.b16 %v6258
    %v7983 = vunpack.c.h.b16 %v6258
    %v7984 = vunpack.c.l.b16 %v6259
    %v7985 = vunpack.c.h.b16 %v6259
    %v7986 = vunpack.c.l.b16 %v6260
    %v7987 = vunpack.c.h.b16 %v6260
    %v7988 = vunpack.c.l.b16 %v6261
    %v7989 = vunpack.c.h.b16 %v6261
    %v7990 = vunpack.c.l.b16 %v6262
    %v7991 = vunpack.c.h.b16 %v6262
    %v7992 = vunpack.c.l.b16 %v6263
    %v7993 = vunpack.c.l.b16 %v6264
    %v7994 = vunpack.c.h.b16 %v6264
    %v7995 = vunpack.c.l.b16 %v6265
    %v7996 = vunpack.c.h.b16 %v6265
    %v7997 = vunpack.c.l.b16 %v6266
    %v7998 = vunpack.c.h.b16 %v6266
    %v7999 = vunpack.c.l.b16 %v6267
    %v8000 = vunpack.c.h.b16 %v6267
    %v8001 = vunpack.c.l.b16 %v6268
    %v8002 = vunpack.c.h.b16 %v6268
    %v8003 = vunpack.c.l.b16 %v6269
    %v8004 = vunpack.c.h.b16 %v6269
    %v8005 = vunpack.c.l.b16 %v6270
    %v8006 = vunpack.c.h.b16 %v6270
    %v8007 = vunpack.c.l.b16 %v6271
    %v8008 = vunpack.c.h.b16 %v6271
    %v8009 = vunpack.c.l.b16 %v6272
    %v8010 = vunpack.c.h.b16 %v6272
    %v8011 = vunpack.c.l.b16 %v6273
    %v8012 = vunpack.c.l.b16 %v6274
    %v8013 = vunpack.c.h.b16 %v6274
    %v8014 = vunpack.c.l.b16 %v6275
    %v8015 = vunpack.c.h.b16 %v6275
    %v8016 = vunpack.c.l.b16 %v6276
    %v8017 = vunpack.c.h.b16 %v6276
    %v8018 = vunpack.c.l.b16 %v6277
    %v8019 = vunpack.c.h.b16 %v6277
    %v8020 = vunpack.c.l.b16 %v6278
    %v8021 = vunpack.c.h.b16 %v6278
    %v8022 = vunpack.c.l.b16 %v6279
    %v8023 = vunpack.c.h.b16 %v6279
    %v8024 = vunpack.c.l.b16 %v6280
    %v8025 = vunpack.c.h.b16 %v6280
    %v8026 = vunpack.c.l.b16 %v6281
    %v8027 = vunpack.c.h.b16 %v6281
    %v8028 = vunpack.c.l.b16 %v6282
    %v8029 = vunpack.c.h.b16 %v6282
    %v8030 = vunpack.c.l.b16 %v6283
    %v8031 = vunpack.c.l.b16 %v6284
    %v8032 = vunpack.c.h.b16 %v6284
    %v8033 = vunpack.c.l.b16 %v6285
    %v8034 = vunpack.c.h.b16 %v6285
    %v8035 = vunpack.c.l.b16 %v6286
    %v8036 = vunpack.c.h.b16 %v6286
    %v8037 = vunpack.c.l.b16 %v6287
    %v8038 = vunpack.c.h.b16 %v6287
    %v8039 = vunpack.c.l.b16 %v6288
    %v8040 = vunpack.c.h.b16 %v6288
    %v8041 = vunpack.c.l.b16 %v6289
    %v8042 = vunpack.c.h.b16 %v6289
    %v8043 = vunpack.c.l.b16 %v6290
    %v8044 = vunpack.c.h.b16 %v6290
    %v8045 = vunpack.c.l.b16 %v6291
    %v8046 = vunpack.c.h.b16 %v6291
    %v8047 = vunpack.c.l.b16 %v6292
    %v8048 = vunpack.c.h.b16 %v6292
    %v8049 = vunpack.c.l.b16 %v6293
    %v8050 = vunpack.c.l.b16 %v6294
    %v8051 = vunpack.c.h.b16 %v6294
    %v8052 = vunpack.c.l.b16 %v6295
    %v8053 = vunpack.c.h.b16 %v6295
    %v8054 = vunpack.c.l.b16 %v6296
    %v8055 = vunpack.c.h.b16 %v6296
    %v8056 = vunpack.c.l.b16 %v6297
    %v8057 = vunpack.c.h.b16 %v6297
    %v8058 = vunpack.c.l.b16 %v6298
    %v8059 = vunpack.c.h.b16 %v6298
    %v8060 = vunpack.c.l.b16 %v6299
    %v8061 = vunpack.c.h.b16 %v6299
    %v8062 = vunpack.c.l.b16 %v6300
    %v8063 = vunpack.c.h.b16 %v6300
    %v8064 = vunpack.c.l.b16 %v6301
    %v8065 = vunpack.c.h.b16 %v6301
    %v8066 = vunpack.c.l.b16 %v6302
    %v8067 = vunpack.c.h.b16 %v6302
    %v8068 = vunpack.c.l.b16 %v6303
    %v8069 = vunpack.c.l.b16 %v6304
    %v8070 = vunpack.c.h.b16 %v6304
    %v8071 = vunpack.c.l.b16 %v6305
    %v8072 = vunpack.c.h.b16 %v6305
    %v8073 = vunpack.c.l.b16 %v6306
    %v8074 = vunpack.c.h.b16 %v6306
    %v8075 = vunpack.c.l.b16 %v6307
    %v8076 = vunpack.c.h.b16 %v6307
    %v8077 = vunpack.c.l.b16 %v6308
    %v8078 = vunpack.c.h.b16 %v6308
    %v8079 = vunpack.c.l.b16 %v6309
    %v8080 = vunpack.c.h.b16 %v6309
    %v8081 = vunpack.c.l.b16 %v6310
    %v8082 = vunpack.c.h.b16 %v6310
    %v8083 = vunpack.c.l.b16 %v6311
    %v8084 = vunpack.c.h.b16 %v6311
    %v8085 = vunpack.c.l.b16 %v6312
    %v8086 = vunpack.c.h.b16 %v6312
    %v8087 = vunpack.c.l.b16 %v6313
    %v8088 = vunpack.c.l.b16 %v6314
    %v8089 = vunpack.c.h.b16 %v6314
    %v8090 = vunpack.c.l.b16 %v6315
    %v8091 = vunpack.c.h.b16 %v6315
    %v8092 = vunpack.c.l.b16 %v6316
    %v8093 = vunpack.c.h.b16 %v6316
    %v8094 = vunpack.c.l.b16 %v6317
    %v8095 = vunpack.c.h.b16 %v6317
    %v8096 = vunpack.c.l.b16 %v6318
    %v8097 = vunpack.c.h.b16 %v6318
    %v8098 = vunpack.c.l.b16 %v6319
    %v8099 = vunpack.c.h.b16 %v6319
    %v8100 = vunpack.c.l.b16 %v6320
    %v8101 = vunpack.c.h.b16 %v6320
    %v8102 = vunpack.c.l.b16 %v6321
    %v8103 = vunpack.c.h.b16 %v6321
    %v8104 = vunpack.c.l.b16 %v6322
    %v8105 = vunpack.c.h.b16 %v6322
    %v8106 = vunpack.c.l.b16 %v6323
    %v8107 = vunpack.c.l.b16 %v6324
    %v8108 = vunpack.c.h.b16 %v6324
    %v8109 = vunpack.c.l.b16 %v6325
    %v8110 = vunpack.c.h.b16 %v6325
    %v8111 = vunpack.c.l.b16 %v6326
    %v8112 = vunpack.c.h.b16 %v6326
    %v8113 = vunpack.c.l.b16 %v6327
    %v8114 = vunpack.c.h.b16 %v6327
    %v8115 = vunpack.c.l.b16 %v6328
    %v8116 = vunpack.c.h.b16 %v6328
    %v8117 = vunpack.c.l.b16 %v6329
    %v8118 = vunpack.c.h.b16 %v6329
    %v8119 = vunpack.c.l.b16 %v6330
    %v8120 = vunpack.c.h.b16 %v6330
    %v8121 = vunpack.c.l.b16 %v6331
    %v8122 = vunpack.c.h.b16 %v6331
    %v8123 = vunpack.c.l.b16 %v6332
    %v8124 = vunpack.c.h.b16 %v6332
    %v8125 = vunpack.c.l.b16 %v6333
    %v8126 = vunpack.c.l.b16 %v6334
    %v8127 = vunpack.c.h.b16 %v6334
    %v8128 = vunpack.c.l.b16 %v6335
    %v8129 = vunpack.c.h.b16 %v6335
    %v8130 = vunpack.c.l.b16 %v6336
    %v8131 = vunpack.c.h.b16 %v6336
    %v8132 = vunpack.c.l.b16 %v6337
    %v8133 = vunpack.c.h.b16 %v6337
    %v8134 = vunpack.c.l.b16 %v6338
    %v8135 = vunpack.c.h.b16 %v6338
    %v8136 = vunpack.c.l.b16 %v6339
    %v8137 = vunpack.c.h.b16 %v6339
    %v8138 = vunpack.c.l.b16 %v6340
    %v8139 = vunpack.c.h.b16 %v6340
    %v8140 = vunpack.c.l.b16 %v6341
    %v8141 = vunpack.c.h.b16 %v6341
    %v8142 = vunpack.c.l.b16 %v6342
    %v8143 = vunpack.c.h.b16 %v6342
    %v8144 = vunpack.c.l.b16 %v6343
    %v8145 = vunpack.c.l.b16 %v6344
    %v8146 = vunpack.c.h.b16 %v6344
    %v8147 = vunpack.c.l.b16 %v6345
    %v8148 = vunpack.c.h.b16 %v6345
    %v8149 = vunpack.c.l.b16 %v6346
    %v8150 = vunpack.c.h.b16 %v6346
    %v8151 = vunpack.c.l.b16 %v6347
    %v8152 = vunpack.c.h.b16 %v6347
    %v8153 = vunpack.c.l.b16 %v6348
    %v8154 = vunpack.c.h.b16 %v6348
    %v8155 = vunpack.c.l.b16 %v6349
    %v8156 = vunpack.c.h.b16 %v6349
    %v8157 = vunpack.c.l.b16 %v6350
    %v8158 = vunpack.c.h.b16 %v6350
    %v8159 = vunpack.c.l.b16 %v6351
    %v8160 = vunpack.c.h.b16 %v6351
    %v8161 = vunpack.c.l.b16 %v6352
    %v8162 = vunpack.c.h.b16 %v6352
    %v8163 = vunpack.c.l.b16 %v6353
    %v8164 = vunpack.c.l.b16 %v6354
    %v8165 = vunpack.c.h.b16 %v6354
    %v8166 = vunpack.c.l.b16 %v6355
    %v8167 = vunpack.c.h.b16 %v6355
    %v8168 = vunpack.c.l.b16 %v6356
    %v8169 = vunpack.c.h.b16 %v6356
    %v8170 = vunpack.c.l.b16 %v6357
    %v8171 = vunpack.c.h.b16 %v6357
    %v8172 = vunpack.c.l.b16 %v6358
    %v8173 = vunpack.c.h.b16 %v6358
    %v8174 = vunpack.c.l.b16 %v6359
    %v8175 = vunpack.c.h.b16 %v6359
    %v8176 = vunpack.c.l.b16 %v6360
    %v8177 = vunpack.c.h.b16 %v6360
    %v8178 = vunpack.c.l.b16 %v6361
    %v8179 = vunpack.c.h.b16 %v6361
    %v8180 = vunpack.c.l.b16 %v6362
    %v8181 = vunpack.c.h.b16 %v6362
    %v8182 = vunpack.c.l.b16 %v6363
    %v8183 = vunpack.c.l.b16 %v6364
    %v8184 = vunpack.c.h.b16 %v6364
    %v8185 = vunpack.c.l.b16 %v6365
    %v8186 = vunpack.c.h.b16 %v6365
    %v8187 = vunpack.c.l.b16 %v6366
    %v8188 = vunpack.c.h.b16 %v6366
    %v8189 = vunpack.c.l.b16 %v6367
    %v8190 = vunpack.c.h.b16 %v6367
    %v8191 = vunpack.c.l.b16 %v6368
    %v8192 = vunpack.c.h.b16 %v6368
    %v8193 = vunpack.c.l.b16 %v6369
    %v8194 = vunpack.c.h.b16 %v6369
    %v8195 = vunpack.c.l.b16 %v6370
    %v8196 = vunpack.c.h.b16 %v6370
    %v8197 = vunpack.c.l.b16 %v6371
    %v8198 = vunpack.c.h.b16 %v6371
    %v8199 = vunpack.c.l.b16 %v6372
    %v8200 = vunpack.c.h.b16 %v6372
    %v8201 = vunpack.c.l.b16 %v6373
    %v8202 = vunpack.c.l.b16 %v6374
    %v8203 = vunpack.c.h.b16 %v6374
    %v8204 = vunpack.c.l.b16 %v6375
    %v8205 = vunpack.c.h.b16 %v6375
    %v8206 = vunpack.c.l.b16 %v6376
    %v8207 = vunpack.c.h.b16 %v6376
    %v8208 = vunpack.c.l.b16 %v6377
    %v8209 = vunpack.c.h.b16 %v6377
    %v8210 = vunpack.c.l.b16 %v6378
    %v8211 = vunpack.c.h.b16 %v6378
    %v8212 = vunpack.c.l.b16 %v6379
    %v8213 = vunpack.c.h.b16 %v6379
    %v8214 = vunpack.c.l.b16 %v6380
    %v8215 = vunpack.c.h.b16 %v6380
    %v8216 = vunpack.c.l.b16 %v6381
    %v8217 = vunpack.c.h.b16 %v6381
    %v8218 = vunpack.c.l.b16 %v6382
    %v8219 = vunpack.c.h.b16 %v6382
    %v8220 = vunpack.c.l.b16 %v6383
    %v8221 = vunpack.c.l.b16 %v6384
    %v8222 = vunpack.c.h.b16 %v6384
    %v8223 = vunpack.c.l.b16 %v6385
    %v8224 = vunpack.c.h.b16 %v6385
    %v8225 = vunpack.c.l.b16 %v6386
    %v8226 = vunpack.c.h.b16 %v6386
    %v8227 = vunpack.c.l.b16 %v6387
    %v8228 = vunpack.c.h.b16 %v6387
    %v8229 = vunpack.c.l.b16 %v6388
    %v8230 = vunpack.c.h.b16 %v6388
    %v8231 = vunpack.c.l.b16 %v6389
    %v8232 = vunpack.c.h.b16 %v6389
    %v8233 = vunpack.c.l.b16 %v6390
    %v8234 = vunpack.c.h.b16 %v6390
    %v8235 = vunpack.c.l.b16 %v6391
    %v8236 = vunpack.c.h.b16 %v6391
    %v8237 = vunpack.c.l.b16 %v6392
    %v8238 = vunpack.c.h.b16 %v6392
    %v8239 = vunpack.c.l.b16 %v6393
    %v8240 = vunpack.c.l.b16 %v6394
    %v8241 = vunpack.c.h.b16 %v6394
    %v8242 = vunpack.c.l.b16 %v6395
    %v8243 = vunpack.c.h.b16 %v6395
    %v8244 = vunpack.c.l.b16 %v6396
    %v8245 = vunpack.c.h.b16 %v6396
    %v8246 = vunpack.c.l.b16 %v6397
    %v8247 = vunpack.c.h.b16 %v6397
    %v8248 = vunpack.c.l.b16 %v6398
    %v8249 = vunpack.c.h.b16 %v6398
    %v8250 = vunpack.c.l.b16 %v6399
    %v8251 = vunpack.c.h.b16 %v6399
    %v8252 = vunpack.c.l.b16 %v6400
    %v8253 = vunpack.c.h.b16 %v6400
    %v8254 = vunpack.c.l.b16 %v6401
    %v8255 = vunpack.c.h.b16 %v6401
    %v8256 = vunpack.c.l.b16 %v6402
    %v8257 = vunpack.c.h.b16 %v6402
    %v8258 = vunpack.c.l.b16 %v6403
    %v8259 = vunpack.c.l.b16 %v6404
    %v8260 = vunpack.c.h.b16 %v6404
    %v8261 = vunpack.c.l.b16 %v6405
    %v8262 = vunpack.c.h.b16 %v6405
    %v8263 = vunpack.c.l.b16 %v6406
    %v8264 = vunpack.c.h.b16 %v6406
    %v8265 = vunpack.c.l.b16 %v6407
    %v8266 = vunpack.c.h.b16 %v6407
    %v8267 = vunpack.c.l.b16 %v6408
    %v8268 = vunpack.c.h.b16 %v6408
    %v8269 = vunpack.c.l.b16 %v6409
    %v8270 = vunpack.c.h.b16 %v6409
    %v8271 = vunpack.c.l.b16 %v6410
    %v8272 = vunpack.c.h.b16 %v6410
    %v8273 = vunpack.c.l.b16 %v6411
    %v8274 = vunpack.c.h.b16 %v6411
    %v8275 = vunpack.c.l.b16 %v6412
    %v8276 = vunpack.c.h.b16 %v6412
    %v8277 = vunpack.c.l.b16 %v6413
    %v8278 = vunpack.c.l.b16 %v6414
    %v8279 = vunpack.c.h.b16 %v6414
    %v8280 = vunpack.c.l.b16 %v6415
    %v8281 = vunpack.c.h.b16 %v6415
    %v8282 = vunpack.c.l.b16 %v6416
    %v8283 = vunpack.c.h.b16 %v6416
    %v8284 = vunpack.c.l.b16 %v6417
    %v8285 = vunpack.c.h.b16 %v6417
    %v8286 = vunpack.c.l.b16 %v6418
    %v8287 = vunpack.c.h.b16 %v6418
    %v8288 = vunpack.c.l.b16 %v6419
    %v8289 = vunpack.c.h.b16 %v6419
    %v8290 = vunpack.c.l.b16 %v6420
    %v8291 = vunpack.c.h.b16 %v6420
    %v8292 = vunpack.c.l.b16 %v6421
    %v8293 = vunpack.c.h.b16 %v6421
    %v8294 = vunpack.c.l.b16 %v6422
    %v8295 = vunpack.c.h.b16 %v6422
    %v8296 = vunpack.c.l.b16 %v6423
    %v8297 = vunpack.c.l.b16 %v6424
    %v8298 = vunpack.c.h.b16 %v6424
    %v8299 = vunpack.c.l.b16 %v6425
    %v8300 = vunpack.c.h.b16 %v6425
    %v8301 = vunpack.c.l.b16 %v6426
    %v8302 = vunpack.c.h.b16 %v6426
    %v8303 = vunpack.c.l.b16 %v6427
    %v8304 = vunpack.c.h.b16 %v6427
    %v8305 = vunpack.c.l.b16 %v6428
    %v8306 = vunpack.c.h.b16 %v6428
    %v8307 = vunpack.c.l.b16 %v6429
    %v8308 = vunpack.c.h.b16 %v6429
    %v8309 = vunpack.c.l.b16 %v6430
    %v8310 = vunpack.c.h.b16 %v6430
    %v8311 = vunpack.c.l.b16 %v6431
    %v8312 = vunpack.c.h.b16 %v6431
    %v8313 = vunpack.c.l.b16 %v6432
    %v8314 = vunpack.c.h.b16 %v6432
    %v8315 = vunpack.c.l.b16 %v6433
    %v8316 = vunpack.c.l.b16 %v6434
    %v8317 = vunpack.c.h.b16 %v6434
    %v8318 = vunpack.c.l.b16 %v6435
    %v8319 = vunpack.c.h.b16 %v6435
    %v8320 = vunpack.c.l.b16 %v6436
    %v8321 = vunpack.c.h.b16 %v6436
    %v8322 = vunpack.c.l.b16 %v6437
    %v8323 = vunpack.c.h.b16 %v6437
    %v8324 = vunpack.c.l.b16 %v6438
    %v8325 = vunpack.c.h.b16 %v6438
    %v8326 = vunpack.c.l.b16 %v6439
    %v8327 = vunpack.c.h.b16 %v6439
    %v8328 = vunpack.c.l.b16 %v6440
    %v8329 = vunpack.c.h.b16 %v6440
    %v8330 = vunpack.c.l.b16 %v6441
    %v8331 = vunpack.c.h.b16 %v6441
    %v8332 = vunpack.c.l.b16 %v6442
    %v8333 = vunpack.c.h.b16 %v6442
    %v8334 = vunpack.c.l.b16 %v6443
    %v8335 = vunpack.c.l.b16 %v6444
    %v8336 = vunpack.c.h.b16 %v6444
    %v8337 = vunpack.c.l.b16 %v6445
    %v8338 = vunpack.c.h.b16 %v6445
    %v8339 = vunpack.c.l.b16 %v6446
    %v8340 = vunpack.c.h.b16 %v6446
    %v8341 = vunpack.c.l.b16 %v6447
    %v8342 = vunpack.c.h.b16 %v6447
    %v8343 = vunpack.c.l.b16 %v6448
    %v8344 = vunpack.c.h.b16 %v6448
    %v8345 = vunpack.c.l.b16 %v6449
    %v8346 = vunpack.c.h.b16 %v6449
    %v8347 = vunpack.c.l.b16 %v6450
    %v8348 = vunpack.c.h.b16 %v6450
    %v8349 = vunpack.c.l.b16 %v6451
    %v8350 = vunpack.c.h.b16 %v6451
    %v8351 = vunpack.c.l.b16 %v6452
    %v8352 = vunpack.c.h.b16 %v6452
    %v8353 = vunpack.c.l.b16 %v6453
    %v8354 = vpack.c.b16 %v7157, %v7138
    %v8355 = vpack.c.b16 %v7158, %v7139
    %v8356 = vpack.c.b16 %v7159, %v7140
    %v8357 = vpack.c.b16 %v7160, %v7141
    %v8358 = vpack.c.b16 %v7161, %v7142
    %v8359 = vpack.c.b16 %v7162, %v7143
    %v8360 = vpack.c.b16 %v7163, %v7144
    %v8361 = vpack.c.b16 %v7164, %v7145
    %v8362 = vpack.c.b16 %v7165, %v7146
    %v8363 = vpack.c.b16 %v7166, %v7147
    %v8364 = vpack.c.b16 %v7167, %v7148
    %v8365 = vpack.c.b16 %v7168, %v7149
    %v8366 = vpack.c.b16 %v7169, %v7150
    %v8367 = vpack.c.b16 %v7170, %v7151
    %v8368 = vpack.c.b16 %v7171, %v7152
    %v8369 = vpack.c.b16 %v7172, %v7153
    %v8370 = vpack.c.b16 %v7173, %v7154
    %v8371 = vpack.c.b16 %v7174, %v7155
    %v8372 = vpack.c.b16 %v7175, %v7156
    %v8373 = vpack.c.b16 %v7195, %v7176
    %v8374 = vpack.c.b16 %v7196, %v7177
    %v8375 = vpack.c.b16 %v7197, %v7178
    %v8376 = vpack.c.b16 %v7198, %v7179
    %v8377 = vpack.c.b16 %v7199, %v7180
    %v8378 = vpack.c.b16 %v7200, %v7181
    %v8379 = vpack.c.b16 %v7201, %v7182
    %v8380 = vpack.c.b16 %v7202, %v7183
    %v8381 = vpack.c.b16 %v7203, %v7184
    %v8382 = vpack.c.b16 %v7204, %v7185
    %v8383 = vpack.c.b16 %v7205, %v7186
    %v8384 = vpack.c.b16 %v7206, %v7187
    %v8385 = vpack.c.b16 %v7207, %v7188
    %v8386 = vpack.c.b16 %v7208, %v7189
    %v8387 = vpack.c.b16 %v7209, %v7190
    %v8388 = vpack.c.b16 %v7210, %v7191
    %v8389 = vpack.c.b16 %v7211, %v7192
    %v8390 = vpack.c.b16 %v7212, %v7193
    %v8391 = vpack.c.b16 %v7213, %v7194
    %v8392 = vpack.c.b16 %v7233, %v7214
    %v8393 = vpack.c.b16 %v7234, %v7215
    %v8394 = vpack.c.b16 %v7235, %v7216
    %v8395 = vpack.c.b16 %v7236, %v7217
    %v8396 = vpack.c.b16 %v7237, %v7218
    %v8397 = vpack.c.b16 %v7238, %v7219
    %v8398 = vpack.c.b16 %v7239, %v7220
    %v8399 = vpack.c.b16 %v7240, %v7221
    %v8400 = vpack.c.b16 %v7241, %v7222
    %v8401 = vpack.c.b16 %v7242, %v7223
    %v8402 = vpack.c.b16 %v7243, %v7224
    %v8403 = vpack.c.b16 %v7244, %v7225
    %v8404 = vpack.c.b16 %v7245, %v7226
    %v8405 = vpack.c.b16 %v7246, %v7227
    %v8406 = vpack.c.b16 %v7247, %v7228
    %v8407 = vpack.c.b16 %v7248, %v7229
    %v8408 = vpack.c.b16 %v7249, %v7230
    %v8409 = vpack.c.b16 %v7250, %v7231
    %v8410 = vpack.c.b16 %v7251, %v7232
    %v8411 = vpack.c.b16 %v7271, %v7252
    %v8412 = vpack.c.b16 %v7272, %v7253
    %v8413 = vpack.c.b16 %v7273, %v7254
    %v8414 = vpack.c.b16 %v7274, %v7255
    %v8415 = vpack.c.b16 %v7275, %v7256
    %v8416 = vpack.c.b16 %v7276, %v7257
    %v8417 = vpack.c.b16 %v7277, %v7258
    %v8418 = vpack.c.b16 %v7278, %v7259
    %v8419 = vpack.c.b16 %v7279, %v7260
    %v8420 = vpack.c.b16 %v7280, %v7261
    %v8421 = vpack.c.b16 %v7281, %v7262
    %v8422 = vpack.c.b16 %v7282, %v7263
    %v8423 = vpack.c.b16 %v7283, %v7264
    %v8424 = vpack.c.b16 %v7284, %v7265
    %v8425 = vpack.c.b16 %v7285, %v7266
    %v8426 = vpack.c.b16 %v7286, %v7267
    %v8427 = vpack.c.b16 %v7287, %v7268
    %v8428 = vpack.c.b16 %v7288, %v7269
    %v8429 = vpack.c.b16 %v7289, %v7270
    %v8430 = vpack.c.b16 %v7309, %v7290
    %v8431 = vpack.c.b16 %v7310, %v7291
    %v8432 = vpack.c.b16 %v7311, %v7292
    %v8433 = vpack.c.b16 %v7312, %v7293
    %v8434 = vpack.c.b16 %v7313, %v7294
    %v8435 = vpack.c.b16 %v7314, %v7295
    %v8436 = vpack.c.b16 %v7315, %v7296
    %v8437 = vpack.c.b16 %v7316, %v7297
    %v8438 = vpack.c.b16 %v7317, %v7298
    %v8439 = vpack.c.b16 %v7318, %v7299
    %v8440 = vpack.c.b16 %v7319, %v7300
    %v8441 = vpack.c.b16 %v7320, %v7301
    %v8442 = vpack.c.b16 %v7321, %v7302
    %v8443 = vpack.c.b16 %v7322, %v7303
    %v8444 = vpack.c.b16 %v7323, %v7304
    %v8445 = vpack.c.b16 %v7324, %v7305
    %v8446 = vpack.c.b16 %v7325, %v7306
    %v8447 = vpack.c.b16 %v7326, %v7307
    %v8448 = vpack.c.b16 %v7327, %v7308
    %v8449 = vpack.c.b16 %v7347, %v7328
    %v8450 = vpack.c.b16 %v7348, %v7329
    %v8451 = vpack.c.b16 %v7349, %v7330
    %v8452 = vpack.c.b16 %v7350, %v7331
    %v8453 = vpack.c.b16 %v7351, %v7332
    %v8454 = vpack.c.b16 %v7352, %v7333
    %v8455 = vpack.c.b16 %v7353, %v7334
    %v8456 = vpack.c.b16 %v7354, %v7335
    %v8457 = vpack.c.b16 %v7355, %v7336
    %v8458 = vpack.c.b16 %v7356, %v7337
    %v8459 = vpack.c.b16 %v7357, %v7338
    %v8460 = vpack.c.b16 %v7358, %v7339
    %v8461 = vpack.c.b16 %v7359, %v7340
    %v8462 = vpack.c.b16 %v7360, %v7341
    %v8463 = vpack.c.b16 %v7361, %v7342
    %v8464 = vpack.c.b16 %v7362, %v7343
    %v8465 = vpack.c.b16 %v7363, %v7344
    %v8466 = vpack.c.b16 %v7364, %v7345
    %v8467 = vpack.c.b16 %v7365, %v7346
    %v8468 = vpack.c.b16 %v7385, %v7366
    %v8469 = vpack.c.b16 %v7386, %v7367
    %v8470 = vpack.c.b16 %v7387, %v7368
    %v8471 = vpack.c.b16 %v7388, %v7369
    %v8472 = vpack.c.b16 %v7389, %v7370
    %v8473 = vpack.c.b16 %v7390, %v7371
    %v8474 = vpack.c.b16 %v7391, %v7372
    %v8475 = vpack.c.b16 %v7392, %v7373
    %v8476 = vpack.c.b16 %v7393, %v7374
    %v8477 = vpack.c.b16 %v7394, %v7375
    %v8478 = vpack.c.b16 %v7395, %v7376
    %v8479 = vpack.c.b16 %v7396, %v7377
    %v8480 = vpack.c.b16 %v7397, %v7378
    %v8481 = vpack.c.b16 %v7398, %v7379
    %v8482 = vpack.c.b16 %v7399, %v7380
    %v8483 = vpack.c.b16 %v7400, %v7381
    %v8484 = vpack.c.b16 %v7401, %v7382
    %v8485 = vpack.c.b16 %v7402, %v7383
    %v8486 = vpack.c.b16 %v7403, %v7384
    %v8487 = vpack.c.b16 %v7423, %v7404
    %v8488 = vpack.c.b16 %v7424, %v7405
    %v8489 = vpack.c.b16 %v7425, %v7406
    %v8490 = vpack.c.b16 %v7426, %v7407
    %v8491 = vpack.c.b16 %v7427, %v7408
    %v8492 = vpack.c.b16 %v7428, %v7409
    %v8493 = vpack.c.b16 %v7429, %v7410
    %v8494 = vpack.c.b16 %v7430, %v7411
    %v8495 = vpack.c.b16 %v7431, %v7412
    %v8496 = vpack.c.b16 %v7432, %v7413
    %v8497 = vpack.c.b16 %v7433, %v7414
    %v8498 = vpack.c.b16 %v7434, %v7415
    %v8499 = vpack.c.b16 %v7435, %v7416
    %v8500 = vpack.c.b16 %v7436, %v7417
    %v8501 = vpack.c.b16 %v7437, %v7418
    %v8502 = vpack.c.b16 %v7438, %v7419
    %v8503 = vpack.c.b16 %v7439, %v7420
    %v8504 = vpack.c.b16 %v7440, %v7421
    %v8505 = vpack.c.b16 %v7441, %v7422
    %v8506 = vpack.c.b16 %v7461, %v7442
    %v8507 = vpack.c.b16 %v7462, %v7443
    %v8508 = vpack.c.b16 %v7463, %v7444
    %v8509 = vpack.c.b16 %v7464, %v7445
    %v8510 = vpack.c.b16 %v7465, %v7446
    %v8511 = vpack.c.b16 %v7466, %v7447
    %v8512 = vpack.c.b16 %v7467, %v7448
    %v8513 = vpack.c.b16 %v7468, %v7449
    %v8514 = vpack.c.b16 %v7469, %v7450
    %v8515 = vpack.c.b16 %v7470, %v7451
    %v8516 = vpack.c.b16 %v7471, %v7452
    %v8517 = vpack.c.b16 %v7472, %v7453
    %v8518 = vpack.c.b16 %v7473, %v7454
    %v8519 = vpack.c.b16 %v7474, %v7455
    %v8520 = vpack.c.b16 %v7475, %v7456
    %v8521 = vpack.c.b16 %v7476, %v7457
    %v8522 = vpack.c.b16 %v7477, %v7458
    %v8523 = vpack.c.b16 %v7478, %v7459
    %v8524 = vpack.c.b16 %v7479, %v7460
    %v8525 = vpack.c.b16 %v7499, %v7480
    %v8526 = vpack.c.b16 %v7500, %v7481
    %v8527 = vpack.c.b16 %v7501, %v7482
    %v8528 = vpack.c.b16 %v7502, %v7483
    %v8529 = vpack.c.b16 %v7503, %v7484
    %v8530 = vpack.c.b16 %v7504, %v7485
    %v8531 = vpack.c.b16 %v7505, %v7486
    %v8532 = vpack.c.b16 %v7506, %v7487
    %v8533 = vpack.c.b16 %v7507, %v7488
    %v8534 = vpack.c.b16 %v7508, %v7489
    %v8535 = vpack.c.b16 %v7509, %v7490
    %v8536 = vpack.c.b16 %v7510, %v7491
    %v8537 = vpack.c.b16 %v7511, %v7492
    %v8538 = vpack.c.b16 %v7512, %v7493
    %v8539 = vpack.c.b16 %v7513, %v7494
    %v8540 = vpack.c.b16 %v7514, %v7495
    %v8541 = vpack.c.b16 %v7515, %v7496
    %v8542 = vpack.c.b16 %v7516, %v7497
    %v8543 = vpack.c.b16 %v7517, %v7498
    %v8544 = vpack.c.b16 %v7537, %v7518
    %v8545 = vpack.c.b16 %v7538, %v7519
    %v8546 = vpack.c.b16 %v7539, %v7520
    %v8547 = vpack.c.b16 %v7540, %v7521
    %v8548 = vpack.c.b16 %v7541, %v7522
    %v8549 = vpack.c.b16 %v7542, %v7523
    %v8550 = vpack.c.b16 %v7543, %v7524
    %v8551 = vpack.c.b16 %v7544, %v7525
    %v8552 = vpack.c.b16 %v7545, %v7526
    %v8553 = vpack.c.b16 %v7546, %v7527
    %v8554 = vpack.c.b16 %v7547, %v7528
    %v8555 = vpack.c.b16 %v7548, %v7529
    %v8556 = vpack.c.b16 %v7549, %v7530
    %v8557 = vpack.c.b16 %v7550, %v7531
    %v8558 = vpack.c.b16 %v7551, %v7532
    %v8559 = vpack.c.b16 %v7552, %v7533
    %v8560 = vpack.c.b16 %v7553, %v7534
    %v8561 = vpack.c.b16 %v7554, %v7535
    %v8562 = vpack.c.b16 %v7555, %v7536
    %v8563 = vpack.c.b16 %v7575, %v7556
    %v8564 = vpack.c.b16 %v7576, %v7557
    %v8565 = vpack.c.b16 %v7577, %v7558
    %v8566 = vpack.c.b16 %v7578, %v7559
    %v8567 = vpack.c.b16 %v7579, %v7560
    %v8568 = vpack.c.b16 %v7580, %v7561
    %v8569 = vpack.c.b16 %v7581, %v7562
    %v8570 = vpack.c.b16 %v7582, %v7563
    %v8571 = vpack.c.b16 %v7583, %v7564
    %v8572 = vpack.c.b16 %v7584, %v7565
    %v8573 = vpack.c.b16 %v7585, %v7566
    %v8574 = vpack.c.b16 %v7586, %v7567
    %v8575 = vpack.c.b16 %v7587, %v7568
    %v8576 = vpack.c.b16 %v7588, %v7569
    %v8577 = vpack.c.b16 %v7589, %v7570
    %v8578 = vpack.c.b16 %v7590, %v7571
    %v8579 = vpack.c.b16 %v7591, %v7572
    %v8580 = vpack.c.b16 %v7592, %v7573
    %v8581 = vpack.c.b16 %v7593, %v7574
    %v8582 = vpack.c.b16 %v7613, %v7594
    %v8583 = vpack.c.b16 %v7614, %v7595
    %v8584 = vpack.c.b16 %v7615, %v7596
    %v8585 = vpack.c.b16 %v7616, %v7597
    %v8586 = vpack.c.b16 %v7617, %v7598
    %v8587 = vpack.c.b16 %v7618, %v7599
    %v8588 = vpack.c.b16 %v7619, %v7600
    %v8589 = vpack.c.b16 %v7620, %v7601
    %v8590 = vpack.c.b16 %v7621, %v7602
    %v8591 = vpack.c.b16 %v7622, %v7603
    %v8592 = vpack.c.b16 %v7623, %v7604
    %v8593 = vpack.c.b16 %v7624, %v7605
    %v8594 = vpack.c.b16 %v7625, %v7606
    %v8595 = vpack.c.b16 %v7626, %v7607
    %v8596 = vpack.c.b16 %v7627, %v7608
    %v8597 = vpack.c.b16 %v7628, %v7609
    %v8598 = vpack.c.b16 %v7629, %v7610
    %v8599 = vpack.c.b16 %v7630, %v7611
    %v8600 = vpack.c.b16 %v7631, %v7612
    %v8601 = vpack.c.b16 %v7651, %v7632
    %v8602 = vpack.c.b16 %v7652, %v7633
    %v8603 = vpack.c.b16 %v7653, %v7634
    %v8604 = vpack.c.b16 %v7654, %v7635
    %v8605 = vpack.c.b16 %v7655, %v7636
    %v8606 = vpack.c.b16 %v7656, %v7637
    %v8607 = vpack.c.b16 %v7657, %v7638
    %v8608 = vpack.c.b16 %v7658, %v7639
    %v8609 = vpack.c.b16 %v7659, %v7640
    %v8610 = vpack.c.b16 %v7660, %v7641
    %v8611 = vpack.c.b16 %v7661, %v7642
    %v8612 = vpack.c.b16 %v7662, %v7643
    %v8613 = vpack.c.b16 %v7663, %v7644
    %v8614 = vpack.c.b16 %v7664, %v7645
    %v8615 = vpack.c.b16 %v7665, %v7646
    %v8616 = vpack.c.b16 %v7666, %v7647
    %v8617 = vpack.c.b16 %v7667, %v7648
    %v8618 = vpack.c.b16 %v7668, %v7649
    %v8619 = vpack.c.b16 %v7669, %v7650
    %v8620 = vpack.c.b16 %v7689, %v7670
    %v8621 = vpack.c.b16 %v7690, %v7671
    %v8622 = vpack.c.b16 %v7691, %v7672
    %v8623 = vpack.c.b16 %v7692, %v7673
    %v8624 = vpack.c.b16 %v7693, %v7674
    %v8625 = vpack.c.b16 %v7694, %v7675
    %v8626 = vpack.c.b16 %v7695, %v7676
    %v8627 = vpack.c.b16 %v7696, %v7677
    %v8628 = vpack.c.b16 %v7697, %v7678
    %v8629 = vpack.c.b16 %v7698, %v7679
    %v8630 = vpack.c.b16 %v7699, %v7680
    %v8631 = vpack.c.b16 %v7700, %v7681
    %v8632 = vpack.c.b16 %v7701, %v7682
    %v8633 = vpack.c.b16 %v7702, %v7683
    %v8634 = vpack.c.b16 %v7703, %v7684
    %v8635 = vpack.c.b16 %v7704, %v7685
    %v8636 = vpack.c.b16 %v7705, %v7686
    %v8637 = vpack.c.b16 %v7706, %v7687
    %v8638 = vpack.c.b16 %v7707, %v7688
    %v8639 = vpack.c.b16 %v7727, %v7708
    %v8640 = vpack.c.b16 %v7728, %v7709
    %v8641 = vpack.c.b16 %v7729, %v7710
    %v8642 = vpack.c.b16 %v7730, %v7711
    %v8643 = vpack.c.b16 %v7731, %v7712
    %v8644 = vpack.c.b16 %v7732, %v7713
    %v8645 = vpack.c.b16 %v7733, %v7714
    %v8646 = vpack.c.b16 %v7734, %v7715
    %v8647 = vpack.c.b16 %v7735, %v7716
    %v8648 = vpack.c.b16 %v7736, %v7717
    %v8649 = vpack.c.b16 %v7737, %v7718
    %v8650 = vpack.c.b16 %v7738, %v7719
    %v8651 = vpack.c.b16 %v7739, %v7720
    %v8652 = vpack.c.b16 %v7740, %v7721
    %v8653 = vpack.c.b16 %v7741, %v7722
    %v8654 = vpack.c.b16 %v7742, %v7723
    %v8655 = vpack.c.b16 %v7743, %v7724
    %v8656 = vpack.c.b16 %v7744, %v7725
    %v8657 = vpack.c.b16 %v7745, %v7726
    %v8658 = vpack.c.b16 %v7765, %v7746
    %v8659 = vpack.c.b16 %v7766, %v7747
    %v8660 = vpack.c.b16 %v7767, %v7748
    %v8661 = vpack.c.b16 %v7768, %v7749
    %v8662 = vpack.c.b16 %v7769, %v7750
    %v8663 = vpack.c.b16 %v7770, %v7751
    %v8664 = vpack.c.b16 %v7771, %v7752
    %v8665 = vpack.c.b16 %v7772, %v7753
    %v8666 = vpack.c.b16 %v7773, %v7754
    %v8667 = vpack.c.b16 %v7774, %v7755
    %v8668 = vpack.c.b16 %v7775, %v7756
    %v8669 = vpack.c.b16 %v7776, %v7757
    %v8670 = vpack.c.b16 %v7777, %v7758
    %v8671 = vpack.c.b16 %v7778, %v7759
    %v8672 = vpack.c.b16 %v7779, %v7760
    %v8673 = vpack.c.b16 %v7780, %v7761
    %v8674 = vpack.c.b16 %v7781, %v7762
    %v8675 = vpack.c.b16 %v7782, %v7763
    %v8676 = vpack.c.b16 %v7783, %v7764
    %v8677 = vpack.c.b16 %v7803, %v7784
    %v8678 = vpack.c.b16 %v7804, %v7785
    %v8679 = vpack.c.b16 %v7805, %v7786
    %v8680 = vpack.c.b16 %v7806, %v7787
    %v8681 = vpack.c.b16 %v7807, %v7788
    %v8682 = vpack.c.b16 %v7808, %v7789
    %v8683 = vpack.c.b16 %v7809, %v7790
    %v8684 = vpack.c.b16 %v7810, %v7791
    %v8685 = vpack.c.b16 %v7811, %v7792
    %v8686 = vpack.c.b16 %v7812, %v7793
    %v8687 = vpack.c.b16 %v7813, %v7794
    %v8688 = vpack.c.b16 %v7814, %v7795
    %v8689 = vpack.c.b16 %v7815, %v7796
    %v8690 = vpack.c.b16 %v7816, %v7797
    %v8691 = vpack.c.b16 %v7817, %v7798
    %v8692 = vpack.c.b16 %v7818, %v7799
    %v8693 = vpack.c.b16 %v7819, %v7800
    %v8694 = vpack.c.b16 %v7820, %v7801
    %v8695 = vpack.c.b16 %v7821, %v7802
    %v8696 = vpack.c.b16 %v7841, %v7822
    %v8697 = vpack.c.b16 %v7842, %v7823
    %v8698 = vpack.c.b16 %v7843, %v7824
    %v8699 = vpack.c.b16 %v7844, %v7825
    %v8700 = vpack.c.b16 %v7845, %v7826
    %v8701 = vpack.c.b16 %v7846, %v7827
    %v8702 = vpack.c.b16 %v7847, %v7828
    %v8703 = vpack.c.b16 %v7848, %v7829
    %v8704 = vpack.c.b16 %v7849, %v7830
    %v8705 = vpack.c.b16 %v7850, %v7831
    %v8706 = vpack.c.b16 %v7851, %v7832
    %v8707 = vpack.c.b16 %v7852, %v7833
    %v8708 = vpack.c.b16 %v7853, %v7834
    %v8709 = vpack.c.b16 %v7854, %v7835
    %v8710 = vpack.c.b16 %v7855, %v7836
    %v8711 = vpack.c.b16 %v7856, %v7837
    %v8712 = vpack.c.b16 %v7857, %v7838
    %v8713 = vpack.c.b16 %v7858, %v7839
    %v8714 = vpack.c.b16 %v7859, %v7840
    %v8715 = vpack.c.b16 %v7879, %v7860
    %v8716 = vpack.c.b16 %v7880, %v7861
    %v8717 = vpack.c.b16 %v7881, %v7862
    %v8718 = vpack.c.b16 %v7882, %v7863
    %v8719 = vpack.c.b16 %v7883, %v7864
    %v8720 = vpack.c.b16 %v7884, %v7865
    %v8721 = vpack.c.b16 %v7885, %v7866
    %v8722 = vpack.c.b16 %v7886, %v7867
    %v8723 = vpack.c.b16 %v7887, %v7868
    %v8724 = vpack.c.b16 %v7888, %v7869
    %v8725 = vpack.c.b16 %v7889, %v7870
    %v8726 = vpack.c.b16 %v7890, %v7871
    %v8727 = vpack.c.b16 %v7891, %v7872
    %v8728 = vpack.c.b16 %v7892, %v7873
    %v8729 = vpack.c.b16 %v7893, %v7874
    %v8730 = vpack.c.b16 %v7894, %v7875
    %v8731 = vpack.c.b16 %v7895, %v7876
    %v8732 = vpack.c.b16 %v7896, %v7877
    %v8733 = vpack.c.b16 %v7897, %v7878
    %v8734 = vpack.c.b16 %v7917, %v7898
    %v8735 = vpack.c.b16 %v7918, %v7899
    %v8736 = vpack.c.b16 %v7919, %v7900
    %v8737 = vpack.c.b16 %v7920, %v7901
    %v8738 = vpack.c.b16 %v7921, %v7902
    %v8739 = vpack.c.b16 %v7922, %v7903
    %v8740 = vpack.c.b16 %v7923, %v7904
    %v8741 = vpack.c.b16 %v7924, %v7905
    %v8742 = vpack.c.b16 %v7925, %v7906
    %v8743 = vpack.c.b16 %v7926, %v7907
    %v8744 = vpack.c.b16 %v7927, %v7908
    %v8745 = vpack.c.b16 %v7928, %v7909
    %v8746 = vpack.c.b16 %v7929, %v7910
    %v8747 = vpack.c.b16 %v7930, %v7911
    %v8748 = vpack.c.b16 %v7931, %v7912
    %v8749 = vpack.c.b16 %v7932, %v7913
    %v8750 = vpack.c.b16 %v7933, %v7914
    %v8751 = vpack.c.b16 %v7934, %v7915
    %v8752 = vpack.c.b16 %v7935, %v7916
    %v8753 = vpack.c.b16 %v7955, %v7936
    %v8754 = vpack.c.b16 %v7956, %v7937
    %v8755 = vpack.c.b16 %v7957, %v7938
    %v8756 = vpack.c.b16 %v7958, %v7939
    %v8757 = vpack.c.b16 %v7959, %v7940
    %v8758 = vpack.c.b16 %v7960, %v7941
    %v8759 = vpack.c.b16 %v7961, %v7942
    %v8760 = vpack.c.b16 %v7962, %v7943
    %v8761 = vpack.c.b16 %v7963, %v7944
    %v8762 = vpack.c.b16 %v7964, %v7945
    %v8763 = vpack.c.b16 %v7965, %v7946
    %v8764 = vpack.c.b16 %v7966, %v7947
    %v8765 = vpack.c.b16 %v7967, %v7948
    %v8766 = vpack.c.b16 %v7968, %v7949
    %v8767 = vpack.c.b16 %v7969, %v7950
    %v8768 = vpack.c.b16 %v7970, %v7951
    %v8769 = vpack.c.b16 %v7971, %v7952
    %v8770 = vpack.c.b16 %v7972, %v7953
    %v8771 = vpack.c.b16 %v7973, %v7954
    %v8772 = vpack.c.b16 %v7993, %v7974
    %v8773 = vpack.c.b16 %v7994, %v7975
    %v8774 = vpack.c.b16 %v7995, %v7976
    %v8775 = vpack.c.b16 %v7996, %v7977
    %v8776 = vpack.c.b16 %v7997, %v7978
    %v8777 = vpack.c.b16 %v7998, %v7979
    %v8778 = vpack.c.b16 %v7999, %v7980
    %v8779 = vpack.c.b16 %v8000, %v7981
    %v8780 = vpack.c.b16 %v8001, %v7982
    %v8781 = vpack.c.b16 %v8002, %v7983
    %v8782 = vpack.c.b16 %v8003, %v7984
    %v8783 = vpack.c.b16 %v8004, %v7985
    %v8784 = vpack.c.b16 %v8005, %v7986
    %v8785 = vpack.c.b16 %v8006, %v7987
    %v8786 = vpack.c.b16 %v8007, %v7988
    %v8787 = vpack.c.b16 %v8008, %v7989
    %v8788 = vpack.c.b16 %v8009, %v7990
    %v8789 = vpack.c.b16 %v8010, %v7991
    %v8790 = vpack.c.b16 %v8011, %v7992
    %v8791 = vpack.c.b16 %v8031, %v8012
    %v8792 = vpack.c.b16 %v8032, %v8013
    %v8793 = vpack.c.b16 %v8033, %v8014
    %v8794 = vpack.c.b16 %v8034, %v8015
    %v8795 = vpack.c.b16 %v8035, %v8016
    %v8796 = vpack.c.b16 %v8036, %v8017
    %v8797 = vpack.c.b16 %v8037, %v8018
    %v8798 = vpack.c.b16 %v8038, %v8019
    %v8799 = vpack.c.b16 %v8039, %v8020
    %v8800 = vpack.c.b16 %v8040, %v8021
    %v8801 = vpack.c.b16 %v8041, %v8022
    %v8802 = vpack.c.b16 %v8042, %v8023
    %v8803 = vpack.c.b16 %v8043, %v8024
    %v8804 = vpack.c.b16 %v8044, %v8025
    %v8805 = vpack.c.b16 %v8045, %v8026
    %v8806 = vpack.c.b16 %v8046, %v8027
    %v8807 = vpack.c.b16 %v8047, %v8028
    %v8808 = vpack.c.b16 %v8048, %v8029
    %v8809 = vpack.c.b16 %v8049, %v8030
    %v8810 = vpack.c.b16 %v8069, %v8050
    %v8811 = vpack.c.b16 %v8070, %v8051
    %v8812 = vpack.c.b16 %v8071, %v8052
    %v8813 = vpack.c.b16 %v8072, %v8053
    %v8814 = vpack.c.b16 %v8073, %v8054
    %v8815 = vpack.c.b16 %v8074, %v8055
    %v8816 = vpack.c.b16 %v8075, %v8056
    %v8817 = vpack.c.b16 %v8076, %v8057
    %v8818 = vpack.c.b16 %v8077, %v8058
    %v8819 = vpack.c.b16 %v8078, %v8059
    %v8820 = vpack.c.b16 %v8079, %v8060
    %v8821 = vpack.c.b16 %v8080, %v8061
    %v8822 = vpack.c.b16 %v8081, %v8062
    %v8823 = vpack.c.b16 %v8082, %v8063
    %v8824 = vpack.c.b16 %v8083, %v8064
    %v8825 = vpack.c.b16 %v8084, %v8065
    %v8826 = vpack.c.b16 %v8085, %v8066
    %v8827 = vpack.c.b16 %v8086, %v8067
    %v8828 = vpack.c.b16 %v8087, %v8068
    %v8829 = vpack.c.b16 %v8107, %v8088
    %v8830 = vpack.c.b16 %v8108, %v8089
    %v8831 = vpack.c.b16 %v8109, %v8090
    %v8832 = vpack.c.b16 %v8110, %v8091
    %v8833 = vpack.c.b16 %v8111, %v8092
    %v8834 = vpack.c.b16 %v8112, %v8093
    %v8835 = vpack.c.b16 %v8113, %v8094
    %v8836 = vpack.c.b16 %v8114, %v8095
    %v8837 = vpack.c.b16 %v8115, %v8096
    %v8838 = vpack.c.b16 %v8116, %v8097
    %v8839 = vpack.c.b16 %v8117, %v8098
    %v8840 = vpack.c.b16 %v8118, %v8099
    %v8841 = vpack.c.b16 %v8119, %v8100
    %v8842 = vpack.c.b16 %v8120, %v8101
    %v8843 = vpack.c.b16 %v8121, %v8102
    %v8844 = vpack.c.b16 %v8122, %v8103
    %v8845 = vpack.c.b16 %v8123, %v8104
    %v8846 = vpack.c.b16 %v8124, %v8105
    %v8847 = vpack.c.b16 %v8125, %v8106
    %v8848 = vpack.c.b16 %v8145, %v8126
    %v8849 = vpack.c.b16 %v8146, %v8127
    %v8850 = vpack.c.b16 %v8147, %v8128
    %v8851 = vpack.c.b16 %v8148, %v8129
    %v8852 = vpack.c.b16 %v8149, %v8130
    %v8853 = vpack.c.b16 %v8150, %v8131
    %v8854 = vpack.c.b16 %v8151, %v8132
    %v8855 = vpack.c.b16 %v8152, %v8133
    %v8856 = vpack.c.b16 %v8153, %v8134
    %v8857 = vpack.c.b16 %v8154, %v8135
    %v8858 = vpack.c.b16 %v8155, %v8136
    %v8859 = vpack.c.b16 %v8156, %v8137
    %v8860 = vpack.c.b16 %v8157, %v8138
    %v8861 = vpack.c.b16 %v8158, %v8139
    %v8862 = vpack.c.b16 %v8159, %v8140
    %v8863 = vpack.c.b16 %v8160, %v8141
    %v8864 = vpack.c.b16 %v8161, %v8142
    %v8865 = vpack.c.b16 %v8162, %v8143
    %v8866 = vpack.c.b16 %v8163, %v8144
    %v8867 = vpack.c.b16 %v8183, %v8164
    %v8868 = vpack.c.b16 %v8184, %v8165
    %v8869 = vpack.c.b16 %v8185, %v8166
    %v8870 = vpack.c.b16 %v8186, %v8167
    %v8871 = vpack.c.b16 %v8187, %v8168
    %v8872 = vpack.c.b16 %v8188, %v8169
    %v8873 = vpack.c.b16 %v8189, %v8170
    %v8874 = vpack.c.b16 %v8190, %v8171
    %v8875 = vpack.c.b16 %v8191, %v8172
    %v8876 = vpack.c.b16 %v8192, %v8173
    %v8877 = vpack.c.b16 %v8193, %v8174
    %v8878 = vpack.c.b16 %v8194, %v8175
    %v8879 = vpack.c.b16 %v8195, %v8176
    %v8880 = vpack.c.b16 %v8196, %v8177
    %v8881 = vpack.c.b16 %v8197, %v8178
    %v8882 = vpack.c.b16 %v8198, %v8179
    %v8883 = vpack.c.b16 %v8199, %v8180
    %v8884 = vpack.c.b16 %v8200, %v8181
    %v8885 = vpack.c.b16 %v8201, %v8182
    %v8886 = vpack.c.b16 %v8221, %v8202
    %v8887 = vpack.c.b16 %v8222, %v8203
    %v8888 = vpack.c.b16 %v8223, %v8204
    %v8889 = vpack.c.b16 %v8224, %v8205
    %v8890 = vpack.c.b16 %v8225, %v8206
    %v8891 = vpack.c.b16 %v8226, %v8207
    %v8892 = vpack.c.b16 %v8227, %v8208
    %v8893 = vpack.c.b16 %v8228, %v8209
    %v8894 = vpack.c.b16 %v8229, %v8210
    %v8895 = vpack.c.b16 %v8230, %v8211
    %v8896 = vpack.c.b16 %v8231, %v8212
    %v8897 = vpack.c.b16 %v8232, %v8213
    %v8898 = vpack.c.b16 %v8233, %v8214
    %v8899 = vpack.c.b16 %v8234, %v8215
    %v8900 = vpack.c.b16 %v8235, %v8216
    %v8901 = vpack.c.b16 %v8236, %v8217
    %v8902 = vpack.c.b16 %v8237, %v8218
    %v8903 = vpack.c.b16 %v8238, %v8219
    %v8904 = vpack.c.b16 %v8239, %v8220
    %v8905 = vpack.c.b16 %v8259, %v8240
    %v8906 = vpack.c.b16 %v8260, %v8241
    %v8907 = vpack.c.b16 %v8261, %v8242
    %v8908 = vpack.c.b16 %v8262, %v8243
    %v8909 = vpack.c.b16 %v8263, %v8244
    %v8910 = vpack.c.b16 %v8264, %v8245
    %v8911 = vpack.c.b16 %v8265, %v8246
    %v8912 = vpack.c.b16 %v8266, %v8247
    %v8913 = vpack.c.b16 %v8267, %v8248
    %v8914 = vpack.c.b16 %v8268, %v8249
    %v8915 = vpack.c.b16 %v8269, %v8250
    %v8916 = vpack.c.b16 %v8270, %v8251
    %v8917 = vpack.c.b16 %v8271, %v8252
    %v8918 = vpack.c.b16 %v8272, %v8253
    %v8919 = vpack.c.b16 %v8273, %v8254
    %v8920 = vpack.c.b16 %v8274, %v8255
    %v8921 = vpack.c.b16 %v8275, %v8256
    %v8922 = vpack.c.b16 %v8276, %v8257
    %v8923 = vpack.c.b16 %v8277, %v8258
    %v8924 = vpack.c.b16 %v8297, %v8278
    %v8925 = vpack.c.b16 %v8298, %v8279
    %v8926 = vpack.c.b16 %v8299, %v8280
    %v8927 = vpack.c.b16 %v8300, %v8281
    %v8928 = vpack.c.b16 %v8301, %v8282
    %v8929 = vpack.c.b16 %v8302, %v8283
    %v8930 = vpack.c.b16 %v8303, %v8284
    %v8931 = vpack.c.b16 %v8304, %v8285
    %v8932 = vpack.c.b16 %v8305, %v8286
    %v8933 = vpack.c.b16 %v8306, %v8287
    %v8934 = vpack.c.b16 %v8307, %v8288
    %v8935 = vpack.c.b16 %v8308, %v8289
    %v8936 = vpack.c.b16 %v8309, %v8290
    %v8937 = vpack.c.b16 %v8310, %v8291
    %v8938 = vpack.c.b16 %v8311, %v8292
    %v8939 = vpack.c.b16 %v8312, %v8293
    %v8940 = vpack.c.b16 %v8313, %v8294
    %v8941 = vpack.c.b16 %v8314, %v8295
    %v8942 = vpack.c.b16 %v8315, %v8296
    %v8943 = vpack.c.b16 %v8335, %v8316
    %v8944 = vpack.c.b16 %v8336, %v8317
    %v8945 = vpack.c.b16 %v8337, %v8318
    %v8946 = vpack.c.b16 %v8338, %v8319
    %v8947 = vpack.c.b16 %v8339, %v8320
    %v8948 = vpack.c.b16 %v8340, %v8321
    %v8949 = vpack.c.b16 %v8341, %v8322
    %v8950 = vpack.c.b16 %v8342, %v8323
    %v8951 = vpack.c.b16 %v8343, %v8324
    %v8952 = vpack.c.b16 %v8344, %v8325
    %v8953 = vpack.c.b16 %v8345, %v8326
    %v8954 = vpack.c.b16 %v8346, %v8327
    %v8955 = vpack.c.b16 %v8347, %v8328
    %v8956 = vpack.c.b16 %v8348, %v8329
    %v8957 = vpack.c.b16 %v8349, %v8330
    %v8958 = vpack.c.b16 %v8350, %v8331
    %v8959 = vpack.c.b16 %v8351, %v8332
    %v8960 = vpack.c.b16 %v8352, %v8333
    %v8961 = vpack.c.b16 %v8353, %v8334
    %9570 = vmatpush.bf16.msra.mxu0 %v8487
    %9571 = vmatpush.bf16.msra.mxu0 %v8468
    %9572 = vmatpush.bf16.msra.mxu0 %v8449
    %9573 = vmatpush.bf16.msra.mxu0 %v8430
    %9574 = vmatpush.bf16.msra.mxu0 %v8411
    %9575 = vmatpush.bf16.msra.mxu0 %v8392
    %9576 = vmatpush.bf16.msra.mxu0 %v8373
    %9577 = vmatpush.bf16.msra.mxu0 %v8354
    %9578 = vmatmul.bf16.gmra.mxu0 %v5810
    %v9579 = vpop.f32.mrf.mxu0
    %v9580 = vadd.f32 %v6460, %v9579
    %v9581 = vpop.f32.mrf.mxu0
    %v9582 = vadd.f32 %v6460, %v9581
    %9583 = vdwg.mxu0
    %9584 = vmatpush.bf16.msra.mxu0 %v8639
    %9585 = vmatpush.bf16.msra.mxu0 %v8620
    %9586 = vmatpush.bf16.msra.mxu0 %v8601
    %9587 = vmatpush.bf16.msra.mxu0 %v8582
    %9588 = vmatpush.bf16.msra.mxu0 %v8563
    %9589 = vmatpush.bf16.msra.mxu0 %v8544
    %9590 = vmatpush.bf16.msra.mxu0 %v8525
    %9591 = vmatpush.bf16.msra.mxu0 %v8506
    %9592 = vmatmul.bf16.gmra.mxu0 %v5811
    %v9593 = vpop.f32.mrf.mxu0
    %v9594 = vadd.f32 %v9580, %v9593
    %v9595 = vpop.f32.mrf.mxu0
    %v9596 = vadd.f32 %v9582, %v9595
    %9597 = vdwg.mxu0
    %9598 = vmatpush.bf16.msra.mxu0 %v8791
    %9599 = vmatpush.bf16.msra.mxu0 %v8772
    %9600 = vmatpush.bf16.msra.mxu0 %v8753
    %9601 = vmatpush.bf16.msra.mxu0 %v8734
    %9602 = vmatpush.bf16.msra.mxu0 %v8715
    %9603 = vmatpush.bf16.msra.mxu0 %v8696
    %9604 = vmatpush.bf16.msra.mxu0 %v8677
    %9605 = vmatpush.bf16.msra.mxu0 %v8658
    %9606 = vmatmul.bf16.gmra.mxu0 %v5812
    %v9607 = vpop.f32.mrf.mxu0
    %v9608 = vadd.f32 %v9594, %v9607
    %v9609 = vpop.f32.mrf.mxu0
    %v9610 = vadd.f32 %v9596, %v9609
    %9611 = vdwg.mxu0
    %9612 = vmatpush.bf16.msra.mxu0 %v8943
    %9613 = vmatpush.bf16.msra.mxu0 %v8924
    %9614 = vmatpush.bf16.msra.mxu0 %v8905
    %9615 = vmatpush.bf16.msra.mxu0 %v8886
    %9616 = vmatpush.bf16.msra.mxu0 %v8867
    %9617 = vmatpush.bf16.msra.mxu0 %v8848
    %9618 = vmatpush.bf16.msra.mxu0 %v8829
    %9619 = vmatpush.bf16.msra.mxu0 %v8810
    %9620 = vmatmul.bf16.gmra.mxu0 %v5813
    %v9621 = vpop.f32.mrf.mxu0
    %v9622 = vadd.f32 %v9608, %v9621
    %v9623 = vpop.f32.mrf.mxu0
    %v9624 = vadd.f32 %v9610, %v9623
    %9625 = vdwg.mxu0
    %9626 = vmatpush.bf16.msra.mxu0 %v8488
    %9627 = vmatpush.bf16.msra.mxu0 %v8469
    %9628 = vmatpush.bf16.msra.mxu0 %v8450
    %9629 = vmatpush.bf16.msra.mxu0 %v8431
    %9630 = vmatpush.bf16.msra.mxu0 %v8412
    %9631 = vmatpush.bf16.msra.mxu0 %v8393
    %9632 = vmatpush.bf16.msra.mxu0 %v8374
    %9633 = vmatpush.bf16.msra.mxu0 %v8355
    %9634 = vmatmul.bf16.gmra.mxu0 %v5810
    %v9635 = vpop.f32.mrf.mxu0
    %v9636 = vadd.f32 %v6461, %v9635
    %v9637 = vpop.f32.mrf.mxu0
    %v9638 = vadd.f32 %v6461, %v9637
    %9639 = vdwg.mxu0
    %9640 = vmatpush.bf16.msra.mxu0 %v8640
    %9641 = vmatpush.bf16.msra.mxu0 %v8621
    %9642 = vmatpush.bf16.msra.mxu0 %v8602
    %9643 = vmatpush.bf16.msra.mxu0 %v8583
    %9644 = vmatpush.bf16.msra.mxu0 %v8564
    %9645 = vmatpush.bf16.msra.mxu0 %v8545
    %9646 = vmatpush.bf16.msra.mxu0 %v8526
    %9647 = vmatpush.bf16.msra.mxu0 %v8507
    %9648 = vmatmul.bf16.gmra.mxu0 %v5811
    %v9649 = vpop.f32.mrf.mxu0
    %v9650 = vadd.f32 %v9636, %v9649
    %v9651 = vpop.f32.mrf.mxu0
    %v9652 = vadd.f32 %v9638, %v9651
    %9653 = vdwg.mxu0
    %9654 = vmatpush.bf16.msra.mxu0 %v8792
    %9655 = vmatpush.bf16.msra.mxu0 %v8773
    %9656 = vmatpush.bf16.msra.mxu0 %v8754
    %9657 = vmatpush.bf16.msra.mxu0 %v8735
    %9658 = vmatpush.bf16.msra.mxu0 %v8716
    %9659 = vmatpush.bf16.msra.mxu0 %v8697
    %9660 = vmatpush.bf16.msra.mxu0 %v8678
    %9661 = vmatpush.bf16.msra.mxu0 %v8659
    %9662 = vmatmul.bf16.gmra.mxu0 %v5812
    %v9663 = vpop.f32.mrf.mxu0
    %v9664 = vadd.f32 %v9650, %v9663
    %v9665 = vpop.f32.mrf.mxu0
    %v9666 = vadd.f32 %v9652, %v9665
    %9667 = vdwg.mxu0
    %9668 = vmatpush.bf16.msra.mxu0 %v8944
    %9669 = vmatpush.bf16.msra.mxu0 %v8925
    %9670 = vmatpush.bf16.msra.mxu0 %v8906
    %9671 = vmatpush.bf16.msra.mxu0 %v8887
    %9672 = vmatpush.bf16.msra.mxu0 %v8868
    %9673 = vmatpush.bf16.msra.mxu0 %v8849
    %9674 = vmatpush.bf16.msra.mxu0 %v8830
    %9675 = vmatpush.bf16.msra.mxu0 %v8811
    %9676 = vmatmul.bf16.gmra.mxu0 %v5813
    %v9677 = vpop.f32.mrf.mxu0
    %v9678 = vadd.f32 %v9664, %v9677
    %v9679 = vpop.f32.mrf.mxu0
    %v9680 = vadd.f32 %v9666, %v9679
    %9681 = vdwg.mxu0
    %9682 = vmatpush.bf16.msra.mxu0 %v8489
    %9683 = vmatpush.bf16.msra.mxu0 %v8470
    %9684 = vmatpush.bf16.msra.mxu0 %v8451
    %9685 = vmatpush.bf16.msra.mxu0 %v8432
    %9686 = vmatpush.bf16.msra.mxu0 %v8413
    %9687 = vmatpush.bf16.msra.mxu0 %v8394
    %9688 = vmatpush.bf16.msra.mxu0 %v8375
    %9689 = vmatpush.bf16.msra.mxu0 %v8356
    %9690 = vmatmul.bf16.gmra.mxu0 %v5810
    %v9691 = vpop.f32.mrf.mxu0
    %v9692 = vadd.f32 %v6462, %v9691
    %v9693 = vpop.f32.mrf.mxu0
    %v9694 = vadd.f32 %v6462, %v9693
    %9695 = vdwg.mxu0
    %9696 = vmatpush.bf16.msra.mxu0 %v8641
    %9697 = vmatpush.bf16.msra.mxu0 %v8622
    %9698 = vmatpush.bf16.msra.mxu0 %v8603
    %9699 = vmatpush.bf16.msra.mxu0 %v8584
    %9700 = vmatpush.bf16.msra.mxu0 %v8565
    %9701 = vmatpush.bf16.msra.mxu0 %v8546
    %9702 = vmatpush.bf16.msra.mxu0 %v8527
    %9703 = vmatpush.bf16.msra.mxu0 %v8508
    %9704 = vmatmul.bf16.gmra.mxu0 %v5811
    %v9705 = vpop.f32.mrf.mxu0
    %v9706 = vadd.f32 %v9692, %v9705
    %v9707 = vpop.f32.mrf.mxu0
    %v9708 = vadd.f32 %v9694, %v9707
    %9709 = vdwg.mxu0
    %9710 = vmatpush.bf16.msra.mxu0 %v8793
    %9711 = vmatpush.bf16.msra.mxu0 %v8774
    %9712 = vmatpush.bf16.msra.mxu0 %v8755
    %9713 = vmatpush.bf16.msra.mxu0 %v8736
    %9714 = vmatpush.bf16.msra.mxu0 %v8717
    %9715 = vmatpush.bf16.msra.mxu0 %v8698
    %9716 = vmatpush.bf16.msra.mxu0 %v8679
    %9717 = vmatpush.bf16.msra.mxu0 %v8660
    %9718 = vmatmul.bf16.gmra.mxu0 %v5812
    %v9719 = vpop.f32.mrf.mxu0
    %v9720 = vadd.f32 %v9706, %v9719
    %v9721 = vpop.f32.mrf.mxu0
    %v9722 = vadd.f32 %v9708, %v9721
    %9723 = vdwg.mxu0
    %9724 = vmatpush.bf16.msra.mxu0 %v8945
    %9725 = vmatpush.bf16.msra.mxu0 %v8926
    %9726 = vmatpush.bf16.msra.mxu0 %v8907
    %9727 = vmatpush.bf16.msra.mxu0 %v8888
    %9728 = vmatpush.bf16.msra.mxu0 %v8869
    %9729 = vmatpush.bf16.msra.mxu0 %v8850
    %9730 = vmatpush.bf16.msra.mxu0 %v8831
    %9731 = vmatpush.bf16.msra.mxu0 %v8812
    %9732 = vmatmul.bf16.gmra.mxu0 %v5813
    %v9733 = vpop.f32.mrf.mxu0
    %v9734 = vadd.f32 %v9720, %v9733
    %v9735 = vpop.f32.mrf.mxu0
    %v9736 = vadd.f32 %v9722, %v9735
    %9737 = vdwg.mxu0
    %9738 = vmatpush.bf16.msra.mxu0 %v8490
    %9739 = vmatpush.bf16.msra.mxu0 %v8471
    %9740 = vmatpush.bf16.msra.mxu0 %v8452
    %9741 = vmatpush.bf16.msra.mxu0 %v8433
    %9742 = vmatpush.bf16.msra.mxu0 %v8414
    %9743 = vmatpush.bf16.msra.mxu0 %v8395
    %9744 = vmatpush.bf16.msra.mxu0 %v8376
    %9745 = vmatpush.bf16.msra.mxu0 %v8357
    %9746 = vmatmul.bf16.gmra.mxu0 %v5810
    %v9747 = vpop.f32.mrf.mxu0
    %v9748 = vadd.f32 %v6463, %v9747
    %v9749 = vpop.f32.mrf.mxu0
    %v9750 = vadd.f32 %v6463, %v9749
    %9751 = vdwg.mxu0
    %9752 = vmatpush.bf16.msra.mxu0 %v8642
    %9753 = vmatpush.bf16.msra.mxu0 %v8623
    %9754 = vmatpush.bf16.msra.mxu0 %v8604
    %9755 = vmatpush.bf16.msra.mxu0 %v8585
    %9756 = vmatpush.bf16.msra.mxu0 %v8566
    %9757 = vmatpush.bf16.msra.mxu0 %v8547
    %9758 = vmatpush.bf16.msra.mxu0 %v8528
    %9759 = vmatpush.bf16.msra.mxu0 %v8509
    %9760 = vmatmul.bf16.gmra.mxu0 %v5811
    %v9761 = vpop.f32.mrf.mxu0
    %v9762 = vadd.f32 %v9748, %v9761
    %v9763 = vpop.f32.mrf.mxu0
    %v9764 = vadd.f32 %v9750, %v9763
    %9765 = vdwg.mxu0
    %9766 = vmatpush.bf16.msra.mxu0 %v8794
    %9767 = vmatpush.bf16.msra.mxu0 %v8775
    %9768 = vmatpush.bf16.msra.mxu0 %v8756
    %9769 = vmatpush.bf16.msra.mxu0 %v8737
    %9770 = vmatpush.bf16.msra.mxu0 %v8718
    %9771 = vmatpush.bf16.msra.mxu0 %v8699
    %9772 = vmatpush.bf16.msra.mxu0 %v8680
    %9773 = vmatpush.bf16.msra.mxu0 %v8661
    %9774 = vmatmul.bf16.gmra.mxu0 %v5812
    %v9775 = vpop.f32.mrf.mxu0
    %v9776 = vadd.f32 %v9762, %v9775
    %v9777 = vpop.f32.mrf.mxu0
    %v9778 = vadd.f32 %v9764, %v9777
    %9779 = vdwg.mxu0
    %9780 = vmatpush.bf16.msra.mxu0 %v8946
    %9781 = vmatpush.bf16.msra.mxu0 %v8927
    %9782 = vmatpush.bf16.msra.mxu0 %v8908
    %9783 = vmatpush.bf16.msra.mxu0 %v8889
    %9784 = vmatpush.bf16.msra.mxu0 %v8870
    %9785 = vmatpush.bf16.msra.mxu0 %v8851
    %9786 = vmatpush.bf16.msra.mxu0 %v8832
    %9787 = vmatpush.bf16.msra.mxu0 %v8813
    %9788 = vmatmul.bf16.gmra.mxu0 %v5813
    %v9789 = vpop.f32.mrf.mxu0
    %v9790 = vadd.f32 %v9776, %v9789
    %v9791 = vpop.f32.mrf.mxu0
    %v9792 = vadd.f32 %v9778, %v9791
    %9793 = vdwg.mxu0
    %9794 = vmatpush.bf16.msra.mxu0 %v8491
    %9795 = vmatpush.bf16.msra.mxu0 %v8472
    %9796 = vmatpush.bf16.msra.mxu0 %v8453
    %9797 = vmatpush.bf16.msra.mxu0 %v8434
    %9798 = vmatpush.bf16.msra.mxu0 %v8415
    %9799 = vmatpush.bf16.msra.mxu0 %v8396
    %9800 = vmatpush.bf16.msra.mxu0 %v8377
    %9801 = vmatpush.bf16.msra.mxu0 %v8358
    %9802 = vmatmul.bf16.gmra.mxu0 %v5810
    %v9803 = vpop.f32.mrf.mxu0
    %v9804 = vadd.f32 %v6464, %v9803
    %v9805 = vpop.f32.mrf.mxu0
    %v9806 = vadd.f32 %v6464, %v9805
    %9807 = vdwg.mxu0
    %9808 = vmatpush.bf16.msra.mxu0 %v8643
    %9809 = vmatpush.bf16.msra.mxu0 %v8624
    %9810 = vmatpush.bf16.msra.mxu0 %v8605
    %9811 = vmatpush.bf16.msra.mxu0 %v8586
    %9812 = vmatpush.bf16.msra.mxu0 %v8567
    %9813 = vmatpush.bf16.msra.mxu0 %v8548
    %9814 = vmatpush.bf16.msra.mxu0 %v8529
    %9815 = vmatpush.bf16.msra.mxu0 %v8510
    %9816 = vmatmul.bf16.gmra.mxu0 %v5811
    %v9817 = vpop.f32.mrf.mxu0
    %v9818 = vadd.f32 %v9804, %v9817
    %v9819 = vpop.f32.mrf.mxu0
    %v9820 = vadd.f32 %v9806, %v9819
    %9821 = vdwg.mxu0
    %9822 = vmatpush.bf16.msra.mxu0 %v8795
    %9823 = vmatpush.bf16.msra.mxu0 %v8776
    %9824 = vmatpush.bf16.msra.mxu0 %v8757
    %9825 = vmatpush.bf16.msra.mxu0 %v8738
    %9826 = vmatpush.bf16.msra.mxu0 %v8719
    %9827 = vmatpush.bf16.msra.mxu0 %v8700
    %9828 = vmatpush.bf16.msra.mxu0 %v8681
    %9829 = vmatpush.bf16.msra.mxu0 %v8662
    %9830 = vmatmul.bf16.gmra.mxu0 %v5812
    %v9831 = vpop.f32.mrf.mxu0
    %v9832 = vadd.f32 %v9818, %v9831
    %v9833 = vpop.f32.mrf.mxu0
    %v9834 = vadd.f32 %v9820, %v9833
    %9835 = vdwg.mxu0
    %9836 = vmatpush.bf16.msra.mxu0 %v8947
    %9837 = vmatpush.bf16.msra.mxu0 %v8928
    %9838 = vmatpush.bf16.msra.mxu0 %v8909
    %9839 = vmatpush.bf16.msra.mxu0 %v8890
    %9840 = vmatpush.bf16.msra.mxu0 %v8871
    %9841 = vmatpush.bf16.msra.mxu0 %v8852
    %9842 = vmatpush.bf16.msra.mxu0 %v8833
    %9843 = vmatpush.bf16.msra.mxu0 %v8814
    %9844 = vmatmul.bf16.gmra.mxu0 %v5813
    %v9845 = vpop.f32.mrf.mxu0
    %v9846 = vadd.f32 %v9832, %v9845
    %v9847 = vpop.f32.mrf.mxu0
    %v9848 = vadd.f32 %v9834, %v9847
    %9849 = vdwg.mxu0
    %9850 = vmatpush.bf16.msra.mxu0 %v8492
    %9851 = vmatpush.bf16.msra.mxu0 %v8473
    %9852 = vmatpush.bf16.msra.mxu0 %v8454
    %9853 = vmatpush.bf16.msra.mxu0 %v8435
    %9854 = vmatpush.bf16.msra.mxu0 %v8416
    %9855 = vmatpush.bf16.msra.mxu0 %v8397
    %9856 = vmatpush.bf16.msra.mxu0 %v8378
    %9857 = vmatpush.bf16.msra.mxu0 %v8359
    %9858 = vmatmul.bf16.gmra.mxu0 %v5810
    %v9859 = vpop.f32.mrf.mxu0
    %v9860 = vadd.f32 %v6465, %v9859
    %v9861 = vpop.f32.mrf.mxu0
    %v9862 = vadd.f32 %v6465, %v9861
    %9863 = vdwg.mxu0
    %9864 = vmatpush.bf16.msra.mxu0 %v8644
    %9865 = vmatpush.bf16.msra.mxu0 %v8625
    %9866 = vmatpush.bf16.msra.mxu0 %v8606
    %9867 = vmatpush.bf16.msra.mxu0 %v8587
    %9868 = vmatpush.bf16.msra.mxu0 %v8568
    %9869 = vmatpush.bf16.msra.mxu0 %v8549
    %9870 = vmatpush.bf16.msra.mxu0 %v8530
    %9871 = vmatpush.bf16.msra.mxu0 %v8511
    %9872 = vmatmul.bf16.gmra.mxu0 %v5811
    %v9873 = vpop.f32.mrf.mxu0
    %v9874 = vadd.f32 %v9860, %v9873
    %v9875 = vpop.f32.mrf.mxu0
    %v9876 = vadd.f32 %v9862, %v9875
    %9877 = vdwg.mxu0
    %9878 = vmatpush.bf16.msra.mxu0 %v8796
    %9879 = vmatpush.bf16.msra.mxu0 %v8777
    %9880 = vmatpush.bf16.msra.mxu0 %v8758
    %9881 = vmatpush.bf16.msra.mxu0 %v8739
    %9882 = vmatpush.bf16.msra.mxu0 %v8720
    %9883 = vmatpush.bf16.msra.mxu0 %v8701
    %9884 = vmatpush.bf16.msra.mxu0 %v8682
    %9885 = vmatpush.bf16.msra.mxu0 %v8663
    %9886 = vmatmul.bf16.gmra.mxu0 %v5812
    %v9887 = vpop.f32.mrf.mxu0
    %v9888 = vadd.f32 %v9874, %v9887
    %v9889 = vpop.f32.mrf.mxu0
    %v9890 = vadd.f32 %v9876, %v9889
    %9891 = vdwg.mxu0
    %9892 = vmatpush.bf16.msra.mxu0 %v8948
    %9893 = vmatpush.bf16.msra.mxu0 %v8929
    %9894 = vmatpush.bf16.msra.mxu0 %v8910
    %9895 = vmatpush.bf16.msra.mxu0 %v8891
    %9896 = vmatpush.bf16.msra.mxu0 %v8872
    %9897 = vmatpush.bf16.msra.mxu0 %v8853
    %9898 = vmatpush.bf16.msra.mxu0 %v8834
    %9899 = vmatpush.bf16.msra.mxu0 %v8815
    %9900 = vmatmul.bf16.gmra.mxu0 %v5813
    %v9901 = vpop.f32.mrf.mxu0
    %v9902 = vadd.f32 %v9888, %v9901
    %v9903 = vpop.f32.mrf.mxu0
    %v9904 = vadd.f32 %v9890, %v9903
    %9905 = vdwg.mxu0
    %9906 = vmatpush.bf16.msra.mxu0 %v8493
    %9907 = vmatpush.bf16.msra.mxu0 %v8474
    %9908 = vmatpush.bf16.msra.mxu0 %v8455
    %9909 = vmatpush.bf16.msra.mxu0 %v8436
    %9910 = vmatpush.bf16.msra.mxu0 %v8417
    %9911 = vmatpush.bf16.msra.mxu0 %v8398
    %9912 = vmatpush.bf16.msra.mxu0 %v8379
    %9913 = vmatpush.bf16.msra.mxu0 %v8360
    %9914 = vmatmul.bf16.gmra.mxu0 %v5810
    %v9915 = vpop.f32.mrf.mxu0
    %v9916 = vadd.f32 %v6466, %v9915
    %v9917 = vpop.f32.mrf.mxu0
    %v9918 = vadd.f32 %v6466, %v9917
    %9919 = vdwg.mxu0
    %9920 = vmatpush.bf16.msra.mxu0 %v8645
    %9921 = vmatpush.bf16.msra.mxu0 %v8626
    %9922 = vmatpush.bf16.msra.mxu0 %v8607
    %9923 = vmatpush.bf16.msra.mxu0 %v8588
    %9924 = vmatpush.bf16.msra.mxu0 %v8569
    %9925 = vmatpush.bf16.msra.mxu0 %v8550
    %9926 = vmatpush.bf16.msra.mxu0 %v8531
    %9927 = vmatpush.bf16.msra.mxu0 %v8512
    %9928 = vmatmul.bf16.gmra.mxu0 %v5811
    %v9929 = vpop.f32.mrf.mxu0
    %v9930 = vadd.f32 %v9916, %v9929
    %v9931 = vpop.f32.mrf.mxu0
    %v9932 = vadd.f32 %v9918, %v9931
    %9933 = vdwg.mxu0
    %9934 = vmatpush.bf16.msra.mxu0 %v8797
    %9935 = vmatpush.bf16.msra.mxu0 %v8778
    %9936 = vmatpush.bf16.msra.mxu0 %v8759
    %9937 = vmatpush.bf16.msra.mxu0 %v8740
    %9938 = vmatpush.bf16.msra.mxu0 %v8721
    %9939 = vmatpush.bf16.msra.mxu0 %v8702
    %9940 = vmatpush.bf16.msra.mxu0 %v8683
    %9941 = vmatpush.bf16.msra.mxu0 %v8664
    %9942 = vmatmul.bf16.gmra.mxu0 %v5812
    %v9943 = vpop.f32.mrf.mxu0
    %v9944 = vadd.f32 %v9930, %v9943
    %v9945 = vpop.f32.mrf.mxu0
    %v9946 = vadd.f32 %v9932, %v9945
    %9947 = vdwg.mxu0
    %9948 = vmatpush.bf16.msra.mxu0 %v8949
    %9949 = vmatpush.bf16.msra.mxu0 %v8930
    %9950 = vmatpush.bf16.msra.mxu0 %v8911
    %9951 = vmatpush.bf16.msra.mxu0 %v8892
    %9952 = vmatpush.bf16.msra.mxu0 %v8873
    %9953 = vmatpush.bf16.msra.mxu0 %v8854
    %9954 = vmatpush.bf16.msra.mxu0 %v8835
    %9955 = vmatpush.bf16.msra.mxu0 %v8816
    %9956 = vmatmul.bf16.gmra.mxu0 %v5813
    %v9957 = vpop.f32.mrf.mxu0
    %v9958 = vadd.f32 %v9944, %v9957
    %v9959 = vpop.f32.mrf.mxu0
    %v9960 = vadd.f32 %v9946, %v9959
    %9961 = vdwg.mxu0
    %9962 = vmatpush.bf16.msra.mxu0 %v8494
    %9963 = vmatpush.bf16.msra.mxu0 %v8475
    %9964 = vmatpush.bf16.msra.mxu0 %v8456
    %9965 = vmatpush.bf16.msra.mxu0 %v8437
    %9966 = vmatpush.bf16.msra.mxu0 %v8418
    %9967 = vmatpush.bf16.msra.mxu0 %v8399
    %9968 = vmatpush.bf16.msra.mxu0 %v8380
    %9969 = vmatpush.bf16.msra.mxu0 %v8361
    %9970 = vmatmul.bf16.gmra.mxu0 %v5810
    %v9971 = vpop.f32.mrf.mxu0
    %v9972 = vadd.f32 %v6467, %v9971
    %v9973 = vpop.f32.mrf.mxu0
    %v9974 = vadd.f32 %v6467, %v9973
    %9975 = vdwg.mxu0
    %9976 = vmatpush.bf16.msra.mxu0 %v8646
    %9977 = vmatpush.bf16.msra.mxu0 %v8627
    %9978 = vmatpush.bf16.msra.mxu0 %v8608
    %9979 = vmatpush.bf16.msra.mxu0 %v8589
    %9980 = vmatpush.bf16.msra.mxu0 %v8570
    %9981 = vmatpush.bf16.msra.mxu0 %v8551
    %9982 = vmatpush.bf16.msra.mxu0 %v8532
    %9983 = vmatpush.bf16.msra.mxu0 %v8513
    %9984 = vmatmul.bf16.gmra.mxu0 %v5811
    %v9985 = vpop.f32.mrf.mxu0
    %v9986 = vadd.f32 %v9972, %v9985
    %v9987 = vpop.f32.mrf.mxu0
    %v9988 = vadd.f32 %v9974, %v9987
    %9989 = vdwg.mxu0
    %9990 = vmatpush.bf16.msra.mxu0 %v8798
    %9991 = vmatpush.bf16.msra.mxu0 %v8779
    %9992 = vmatpush.bf16.msra.mxu0 %v8760
    %9993 = vmatpush.bf16.msra.mxu0 %v8741
    %9994 = vmatpush.bf16.msra.mxu0 %v8722
    %9995 = vmatpush.bf16.msra.mxu0 %v8703
    %9996 = vmatpush.bf16.msra.mxu0 %v8684
    %9997 = vmatpush.bf16.msra.mxu0 %v8665
    %9998 = vmatmul.bf16.gmra.mxu0 %v5812
    %v9999 = vpop.f32.mrf.mxu0
    %v10000 = vadd.f32 %v9986, %v9999
    %v10001 = vpop.f32.mrf.mxu0
    %v10002 = vadd.f32 %v9988, %v10001
    %10003 = vdwg.mxu0
    %10004 = vmatpush.bf16.msra.mxu0 %v8950
    %10005 = vmatpush.bf16.msra.mxu0 %v8931
    %10006 = vmatpush.bf16.msra.mxu0 %v8912
    %10007 = vmatpush.bf16.msra.mxu0 %v8893
    %10008 = vmatpush.bf16.msra.mxu0 %v8874
    %10009 = vmatpush.bf16.msra.mxu0 %v8855
    %10010 = vmatpush.bf16.msra.mxu0 %v8836
    %10011 = vmatpush.bf16.msra.mxu0 %v8817
    %10012 = vmatmul.bf16.gmra.mxu0 %v5813
    %v10013 = vpop.f32.mrf.mxu0
    %v10014 = vadd.f32 %v10000, %v10013
    %v10015 = vpop.f32.mrf.mxu0
    %v10016 = vadd.f32 %v10002, %v10015
    %10017 = vdwg.mxu0
    %10018 = vmatpush.bf16.msra.mxu0 %v8495
    %10019 = vmatpush.bf16.msra.mxu0 %v8476
    %10020 = vmatpush.bf16.msra.mxu0 %v8457
    %10021 = vmatpush.bf16.msra.mxu0 %v8438
    %10022 = vmatpush.bf16.msra.mxu0 %v8419
    %10023 = vmatpush.bf16.msra.mxu0 %v8400
    %10024 = vmatpush.bf16.msra.mxu0 %v8381
    %10025 = vmatpush.bf16.msra.mxu0 %v8362
    %10026 = vmatmul.bf16.gmra.mxu0 %v5810
    %v10027 = vpop.f32.mrf.mxu0
    %v10028 = vadd.f32 %v6468, %v10027
    %v10029 = vpop.f32.mrf.mxu0
    %v10030 = vadd.f32 %v6468, %v10029
    %10031 = vdwg.mxu0
    %10032 = vmatpush.bf16.msra.mxu0 %v8647
    %10033 = vmatpush.bf16.msra.mxu0 %v8628
    %10034 = vmatpush.bf16.msra.mxu0 %v8609
    %10035 = vmatpush.bf16.msra.mxu0 %v8590
    %10036 = vmatpush.bf16.msra.mxu0 %v8571
    %10037 = vmatpush.bf16.msra.mxu0 %v8552
    %10038 = vmatpush.bf16.msra.mxu0 %v8533
    %10039 = vmatpush.bf16.msra.mxu0 %v8514
    %10040 = vmatmul.bf16.gmra.mxu0 %v5811
    %v10041 = vpop.f32.mrf.mxu0
    %v10042 = vadd.f32 %v10028, %v10041
    %v10043 = vpop.f32.mrf.mxu0
    %v10044 = vadd.f32 %v10030, %v10043
    %10045 = vdwg.mxu0
    %10046 = vmatpush.bf16.msra.mxu0 %v8799
    %10047 = vmatpush.bf16.msra.mxu0 %v8780
    %10048 = vmatpush.bf16.msra.mxu0 %v8761
    %10049 = vmatpush.bf16.msra.mxu0 %v8742
    %10050 = vmatpush.bf16.msra.mxu0 %v8723
    %10051 = vmatpush.bf16.msra.mxu0 %v8704
    %10052 = vmatpush.bf16.msra.mxu0 %v8685
    %10053 = vmatpush.bf16.msra.mxu0 %v8666
    %10054 = vmatmul.bf16.gmra.mxu0 %v5812
    %v10055 = vpop.f32.mrf.mxu0
    %v10056 = vadd.f32 %v10042, %v10055
    %v10057 = vpop.f32.mrf.mxu0
    %v10058 = vadd.f32 %v10044, %v10057
    %10059 = vdwg.mxu0
    %10060 = vmatpush.bf16.msra.mxu0 %v8951
    %10061 = vmatpush.bf16.msra.mxu0 %v8932
    %10062 = vmatpush.bf16.msra.mxu0 %v8913
    %10063 = vmatpush.bf16.msra.mxu0 %v8894
    %10064 = vmatpush.bf16.msra.mxu0 %v8875
    %10065 = vmatpush.bf16.msra.mxu0 %v8856
    %10066 = vmatpush.bf16.msra.mxu0 %v8837
    %10067 = vmatpush.bf16.msra.mxu0 %v8818
    %10068 = vmatmul.bf16.gmra.mxu0 %v5813
    %v10069 = vpop.f32.mrf.mxu0
    %v10070 = vadd.f32 %v10056, %v10069
    %v10071 = vpop.f32.mrf.mxu0
    %v10072 = vadd.f32 %v10058, %v10071
    %10073 = vdwg.mxu0
    %10074 = vmatpush.bf16.msra.mxu0 %v8496
    %10075 = vmatpush.bf16.msra.mxu0 %v8477
    %10076 = vmatpush.bf16.msra.mxu0 %v8458
    %10077 = vmatpush.bf16.msra.mxu0 %v8439
    %10078 = vmatpush.bf16.msra.mxu0 %v8420
    %10079 = vmatpush.bf16.msra.mxu0 %v8401
    %10080 = vmatpush.bf16.msra.mxu0 %v8382
    %10081 = vmatpush.bf16.msra.mxu0 %v8363
    %10082 = vmatmul.bf16.gmra.mxu0 %v5810
    %v10083 = vpop.f32.mrf.mxu0
    %v10084 = vadd.f32 %v6469, %v10083
    %v10085 = vpop.f32.mrf.mxu0
    %v10086 = vadd.f32 %v6469, %v10085
    %10087 = vdwg.mxu0
    %10088 = vmatpush.bf16.msra.mxu0 %v8648
    %10089 = vmatpush.bf16.msra.mxu0 %v8629
    %10090 = vmatpush.bf16.msra.mxu0 %v8610
    %10091 = vmatpush.bf16.msra.mxu0 %v8591
    %10092 = vmatpush.bf16.msra.mxu0 %v8572
    %10093 = vmatpush.bf16.msra.mxu0 %v8553
    %10094 = vmatpush.bf16.msra.mxu0 %v8534
    %10095 = vmatpush.bf16.msra.mxu0 %v8515
    %10096 = vmatmul.bf16.gmra.mxu0 %v5811
    %v10097 = vpop.f32.mrf.mxu0
    %v10098 = vadd.f32 %v10084, %v10097
    %v10099 = vpop.f32.mrf.mxu0
    %v10100 = vadd.f32 %v10086, %v10099
    %10101 = vdwg.mxu0
    %10102 = vmatpush.bf16.msra.mxu0 %v8800
    %10103 = vmatpush.bf16.msra.mxu0 %v8781
    %10104 = vmatpush.bf16.msra.mxu0 %v8762
    %10105 = vmatpush.bf16.msra.mxu0 %v8743
    %10106 = vmatpush.bf16.msra.mxu0 %v8724
    %10107 = vmatpush.bf16.msra.mxu0 %v8705
    %10108 = vmatpush.bf16.msra.mxu0 %v8686
    %10109 = vmatpush.bf16.msra.mxu0 %v8667
    %10110 = vmatmul.bf16.gmra.mxu0 %v5812
    %v10111 = vpop.f32.mrf.mxu0
    %v10112 = vadd.f32 %v10098, %v10111
    %v10113 = vpop.f32.mrf.mxu0
    %v10114 = vadd.f32 %v10100, %v10113
    %10115 = vdwg.mxu0
    %10116 = vmatpush.bf16.msra.mxu0 %v8952
    %10117 = vmatpush.bf16.msra.mxu0 %v8933
    %10118 = vmatpush.bf16.msra.mxu0 %v8914
    %10119 = vmatpush.bf16.msra.mxu0 %v8895
    %10120 = vmatpush.bf16.msra.mxu0 %v8876
    %10121 = vmatpush.bf16.msra.mxu0 %v8857
    %10122 = vmatpush.bf16.msra.mxu0 %v8838
    %10123 = vmatpush.bf16.msra.mxu0 %v8819
    %10124 = vmatmul.bf16.gmra.mxu0 %v5813
    %v10125 = vpop.f32.mrf.mxu0
    %v10126 = vadd.f32 %v10112, %v10125
    %v10127 = vpop.f32.mrf.mxu0
    %v10128 = vadd.f32 %v10114, %v10127
    %10129 = vdwg.mxu0
    %10130 = vmatpush.bf16.msra.mxu0 %v8497
    %10131 = vmatpush.bf16.msra.mxu0 %v8478
    %10132 = vmatpush.bf16.msra.mxu0 %v8459
    %10133 = vmatpush.bf16.msra.mxu0 %v8440
    %10134 = vmatpush.bf16.msra.mxu0 %v8421
    %10135 = vmatpush.bf16.msra.mxu0 %v8402
    %10136 = vmatpush.bf16.msra.mxu0 %v8383
    %10137 = vmatpush.bf16.msra.mxu0 %v8364
    %10138 = vmatmul.bf16.gmra.mxu0 %v5810
    %v10139 = vpop.f32.mrf.mxu0
    %v10140 = vadd.f32 %v6470, %v10139
    %v10141 = vpop.f32.mrf.mxu0
    %v10142 = vadd.f32 %v6470, %v10141
    %10143 = vdwg.mxu0
    %10144 = vmatpush.bf16.msra.mxu0 %v8649
    %10145 = vmatpush.bf16.msra.mxu0 %v8630
    %10146 = vmatpush.bf16.msra.mxu0 %v8611
    %10147 = vmatpush.bf16.msra.mxu0 %v8592
    %10148 = vmatpush.bf16.msra.mxu0 %v8573
    %10149 = vmatpush.bf16.msra.mxu0 %v8554
    %10150 = vmatpush.bf16.msra.mxu0 %v8535
    %10151 = vmatpush.bf16.msra.mxu0 %v8516
    %10152 = vmatmul.bf16.gmra.mxu0 %v5811
    %v10153 = vpop.f32.mrf.mxu0
    %v10154 = vadd.f32 %v10140, %v10153
    %v10155 = vpop.f32.mrf.mxu0
    %v10156 = vadd.f32 %v10142, %v10155
    %10157 = vdwg.mxu0
    %10158 = vmatpush.bf16.msra.mxu0 %v8801
    %10159 = vmatpush.bf16.msra.mxu0 %v8782
    %10160 = vmatpush.bf16.msra.mxu0 %v8763
    %10161 = vmatpush.bf16.msra.mxu0 %v8744
    %10162 = vmatpush.bf16.msra.mxu0 %v8725
    %10163 = vmatpush.bf16.msra.mxu0 %v8706
    %10164 = vmatpush.bf16.msra.mxu0 %v8687
    %10165 = vmatpush.bf16.msra.mxu0 %v8668
    %10166 = vmatmul.bf16.gmra.mxu0 %v5812
    %v10167 = vpop.f32.mrf.mxu0
    %v10168 = vadd.f32 %v10154, %v10167
    %v10169 = vpop.f32.mrf.mxu0
    %v10170 = vadd.f32 %v10156, %v10169
    %10171 = vdwg.mxu0
    %10172 = vmatpush.bf16.msra.mxu0 %v8953
    %10173 = vmatpush.bf16.msra.mxu0 %v8934
    %10174 = vmatpush.bf16.msra.mxu0 %v8915
    %10175 = vmatpush.bf16.msra.mxu0 %v8896
    %10176 = vmatpush.bf16.msra.mxu0 %v8877
    %10177 = vmatpush.bf16.msra.mxu0 %v8858
    %10178 = vmatpush.bf16.msra.mxu0 %v8839
    %10179 = vmatpush.bf16.msra.mxu0 %v8820
    %10180 = vmatmul.bf16.gmra.mxu0 %v5813
    %v10181 = vpop.f32.mrf.mxu0
    %v10182 = vadd.f32 %v10168, %v10181
    %v10183 = vpop.f32.mrf.mxu0
    %v10184 = vadd.f32 %v10170, %v10183
    %10185 = vdwg.mxu0
    %10186 = vmatpush.bf16.msra.mxu0 %v8498
    %10187 = vmatpush.bf16.msra.mxu0 %v8479
    %10188 = vmatpush.bf16.msra.mxu0 %v8460
    %10189 = vmatpush.bf16.msra.mxu0 %v8441
    %10190 = vmatpush.bf16.msra.mxu0 %v8422
    %10191 = vmatpush.bf16.msra.mxu0 %v8403
    %10192 = vmatpush.bf16.msra.mxu0 %v8384
    %10193 = vmatpush.bf16.msra.mxu0 %v8365
    %10194 = vmatmul.bf16.gmra.mxu0 %v5810
    %v10195 = vpop.f32.mrf.mxu0
    %v10196 = vadd.f32 %v6471, %v10195
    %v10197 = vpop.f32.mrf.mxu0
    %v10198 = vadd.f32 %v6471, %v10197
    %10199 = vdwg.mxu0
    %10200 = vmatpush.bf16.msra.mxu0 %v8650
    %10201 = vmatpush.bf16.msra.mxu0 %v8631
    %10202 = vmatpush.bf16.msra.mxu0 %v8612
    %10203 = vmatpush.bf16.msra.mxu0 %v8593
    %10204 = vmatpush.bf16.msra.mxu0 %v8574
    %10205 = vmatpush.bf16.msra.mxu0 %v8555
    %10206 = vmatpush.bf16.msra.mxu0 %v8536
    %10207 = vmatpush.bf16.msra.mxu0 %v8517
    %10208 = vmatmul.bf16.gmra.mxu0 %v5811
    %v10209 = vpop.f32.mrf.mxu0
    %v10210 = vadd.f32 %v10196, %v10209
    %v10211 = vpop.f32.mrf.mxu0
    %v10212 = vadd.f32 %v10198, %v10211
    %10213 = vdwg.mxu0
    %10214 = vmatpush.bf16.msra.mxu0 %v8802
    %10215 = vmatpush.bf16.msra.mxu0 %v8783
    %10216 = vmatpush.bf16.msra.mxu0 %v8764
    %10217 = vmatpush.bf16.msra.mxu0 %v8745
    %10218 = vmatpush.bf16.msra.mxu0 %v8726
    %10219 = vmatpush.bf16.msra.mxu0 %v8707
    %10220 = vmatpush.bf16.msra.mxu0 %v8688
    %10221 = vmatpush.bf16.msra.mxu0 %v8669
    %10222 = vmatmul.bf16.gmra.mxu0 %v5812
    %v10223 = vpop.f32.mrf.mxu0
    %v10224 = vadd.f32 %v10210, %v10223
    %v10225 = vpop.f32.mrf.mxu0
    %v10226 = vadd.f32 %v10212, %v10225
    %10227 = vdwg.mxu0
    %10228 = vmatpush.bf16.msra.mxu0 %v8954
    %10229 = vmatpush.bf16.msra.mxu0 %v8935
    %10230 = vmatpush.bf16.msra.mxu0 %v8916
    %10231 = vmatpush.bf16.msra.mxu0 %v8897
    %10232 = vmatpush.bf16.msra.mxu0 %v8878
    %10233 = vmatpush.bf16.msra.mxu0 %v8859
    %10234 = vmatpush.bf16.msra.mxu0 %v8840
    %10235 = vmatpush.bf16.msra.mxu0 %v8821
    %10236 = vmatmul.bf16.gmra.mxu0 %v5813
    %v10237 = vpop.f32.mrf.mxu0
    %v10238 = vadd.f32 %v10224, %v10237
    %v10239 = vpop.f32.mrf.mxu0
    %v10240 = vadd.f32 %v10226, %v10239
    %10241 = vdwg.mxu0
    %10242 = vmatpush.bf16.msra.mxu0 %v8499
    %10243 = vmatpush.bf16.msra.mxu0 %v8480
    %10244 = vmatpush.bf16.msra.mxu0 %v8461
    %10245 = vmatpush.bf16.msra.mxu0 %v8442
    %10246 = vmatpush.bf16.msra.mxu0 %v8423
    %10247 = vmatpush.bf16.msra.mxu0 %v8404
    %10248 = vmatpush.bf16.msra.mxu0 %v8385
    %10249 = vmatpush.bf16.msra.mxu0 %v8366
    %10250 = vmatmul.bf16.gmra.mxu0 %v5810
    %v10251 = vpop.f32.mrf.mxu0
    %v10252 = vadd.f32 %v6472, %v10251
    %v10253 = vpop.f32.mrf.mxu0
    %v10254 = vadd.f32 %v6472, %v10253
    %10255 = vdwg.mxu0
    %10256 = vmatpush.bf16.msra.mxu0 %v8651
    %10257 = vmatpush.bf16.msra.mxu0 %v8632
    %10258 = vmatpush.bf16.msra.mxu0 %v8613
    %10259 = vmatpush.bf16.msra.mxu0 %v8594
    %10260 = vmatpush.bf16.msra.mxu0 %v8575
    %10261 = vmatpush.bf16.msra.mxu0 %v8556
    %10262 = vmatpush.bf16.msra.mxu0 %v8537
    %10263 = vmatpush.bf16.msra.mxu0 %v8518
    %10264 = vmatmul.bf16.gmra.mxu0 %v5811
    %v10265 = vpop.f32.mrf.mxu0
    %v10266 = vadd.f32 %v10252, %v10265
    %v10267 = vpop.f32.mrf.mxu0
    %v10268 = vadd.f32 %v10254, %v10267
    %10269 = vdwg.mxu0
    %10270 = vmatpush.bf16.msra.mxu0 %v8803
    %10271 = vmatpush.bf16.msra.mxu0 %v8784
    %10272 = vmatpush.bf16.msra.mxu0 %v8765
    %10273 = vmatpush.bf16.msra.mxu0 %v8746
    %10274 = vmatpush.bf16.msra.mxu0 %v8727
    %10275 = vmatpush.bf16.msra.mxu0 %v8708
    %10276 = vmatpush.bf16.msra.mxu0 %v8689
    %10277 = vmatpush.bf16.msra.mxu0 %v8670
    %10278 = vmatmul.bf16.gmra.mxu0 %v5812
    %v10279 = vpop.f32.mrf.mxu0
    %v10280 = vadd.f32 %v10266, %v10279
    %v10281 = vpop.f32.mrf.mxu0
    %v10282 = vadd.f32 %v10268, %v10281
    %10283 = vdwg.mxu0
    %10284 = vmatpush.bf16.msra.mxu0 %v8955
    %10285 = vmatpush.bf16.msra.mxu0 %v8936
    %10286 = vmatpush.bf16.msra.mxu0 %v8917
    %10287 = vmatpush.bf16.msra.mxu0 %v8898
    %10288 = vmatpush.bf16.msra.mxu0 %v8879
    %10289 = vmatpush.bf16.msra.mxu0 %v8860
    %10290 = vmatpush.bf16.msra.mxu0 %v8841
    %10291 = vmatpush.bf16.msra.mxu0 %v8822
    %10292 = vmatmul.bf16.gmra.mxu0 %v5813
    %v10293 = vpop.f32.mrf.mxu0
    %v10294 = vadd.f32 %v10280, %v10293
    %v10295 = vpop.f32.mrf.mxu0
    %v10296 = vadd.f32 %v10282, %v10295
    %10297 = vdwg.mxu0
    %10298 = vmatpush.bf16.msra.mxu0 %v8500
    %10299 = vmatpush.bf16.msra.mxu0 %v8481
    %10300 = vmatpush.bf16.msra.mxu0 %v8462
    %10301 = vmatpush.bf16.msra.mxu0 %v8443
    %10302 = vmatpush.bf16.msra.mxu0 %v8424
    %10303 = vmatpush.bf16.msra.mxu0 %v8405
    %10304 = vmatpush.bf16.msra.mxu0 %v8386
    %10305 = vmatpush.bf16.msra.mxu0 %v8367
    %10306 = vmatmul.bf16.gmra.mxu0 %v5810
    %v10307 = vpop.f32.mrf.mxu0
    %v10308 = vadd.f32 %v6473, %v10307
    %v10309 = vpop.f32.mrf.mxu0
    %v10310 = vadd.f32 %v6473, %v10309
    %10311 = vdwg.mxu0
    %10312 = vmatpush.bf16.msra.mxu0 %v8652
    %10313 = vmatpush.bf16.msra.mxu0 %v8633
    %10314 = vmatpush.bf16.msra.mxu0 %v8614
    %10315 = vmatpush.bf16.msra.mxu0 %v8595
    %10316 = vmatpush.bf16.msra.mxu0 %v8576
    %10317 = vmatpush.bf16.msra.mxu0 %v8557
    %10318 = vmatpush.bf16.msra.mxu0 %v8538
    %10319 = vmatpush.bf16.msra.mxu0 %v8519
    %10320 = vmatmul.bf16.gmra.mxu0 %v5811
    %v10321 = vpop.f32.mrf.mxu0
    %v10322 = vadd.f32 %v10308, %v10321
    %v10323 = vpop.f32.mrf.mxu0
    %v10324 = vadd.f32 %v10310, %v10323
    %10325 = vdwg.mxu0
    %10326 = vmatpush.bf16.msra.mxu0 %v8804
    %10327 = vmatpush.bf16.msra.mxu0 %v8785
    %10328 = vmatpush.bf16.msra.mxu0 %v8766
    %10329 = vmatpush.bf16.msra.mxu0 %v8747
    %10330 = vmatpush.bf16.msra.mxu0 %v8728
    %10331 = vmatpush.bf16.msra.mxu0 %v8709
    %10332 = vmatpush.bf16.msra.mxu0 %v8690
    %10333 = vmatpush.bf16.msra.mxu0 %v8671
    %10334 = vmatmul.bf16.gmra.mxu0 %v5812
    %v10335 = vpop.f32.mrf.mxu0
    %v10336 = vadd.f32 %v10322, %v10335
    %v10337 = vpop.f32.mrf.mxu0
    %v10338 = vadd.f32 %v10324, %v10337
    %10339 = vdwg.mxu0
    %10340 = vmatpush.bf16.msra.mxu0 %v8956
    %10341 = vmatpush.bf16.msra.mxu0 %v8937
    %10342 = vmatpush.bf16.msra.mxu0 %v8918
    %10343 = vmatpush.bf16.msra.mxu0 %v8899
    %10344 = vmatpush.bf16.msra.mxu0 %v8880
    %10345 = vmatpush.bf16.msra.mxu0 %v8861
    %10346 = vmatpush.bf16.msra.mxu0 %v8842
    %10347 = vmatpush.bf16.msra.mxu0 %v8823
    %10348 = vmatmul.bf16.gmra.mxu0 %v5813
    %v10349 = vpop.f32.mrf.mxu0
    %v10350 = vadd.f32 %v10336, %v10349
    %v10351 = vpop.f32.mrf.mxu0
    %v10352 = vadd.f32 %v10338, %v10351
    %10353 = vdwg.mxu0
    %10354 = vmatpush.bf16.msra.mxu0 %v8501
    %10355 = vmatpush.bf16.msra.mxu0 %v8482
    %10356 = vmatpush.bf16.msra.mxu0 %v8463
    %10357 = vmatpush.bf16.msra.mxu0 %v8444
    %10358 = vmatpush.bf16.msra.mxu0 %v8425
    %10359 = vmatpush.bf16.msra.mxu0 %v8406
    %10360 = vmatpush.bf16.msra.mxu0 %v8387
    %10361 = vmatpush.bf16.msra.mxu0 %v8368
    %10362 = vmatmul.bf16.gmra.mxu0 %v5810
    %v10363 = vpop.f32.mrf.mxu0
    %v10364 = vadd.f32 %v6474, %v10363
    %v10365 = vpop.f32.mrf.mxu0
    %v10366 = vadd.f32 %v6474, %v10365
    %10367 = vdwg.mxu0
    %10368 = vmatpush.bf16.msra.mxu0 %v8653
    %10369 = vmatpush.bf16.msra.mxu0 %v8634
    %10370 = vmatpush.bf16.msra.mxu0 %v8615
    %10371 = vmatpush.bf16.msra.mxu0 %v8596
    %10372 = vmatpush.bf16.msra.mxu0 %v8577
    %10373 = vmatpush.bf16.msra.mxu0 %v8558
    %10374 = vmatpush.bf16.msra.mxu0 %v8539
    %10375 = vmatpush.bf16.msra.mxu0 %v8520
    %10376 = vmatmul.bf16.gmra.mxu0 %v5811
    %v10377 = vpop.f32.mrf.mxu0
    %v10378 = vadd.f32 %v10364, %v10377
    %v10379 = vpop.f32.mrf.mxu0
    %v10380 = vadd.f32 %v10366, %v10379
    %10381 = vdwg.mxu0
    %10382 = vmatpush.bf16.msra.mxu0 %v8805
    %10383 = vmatpush.bf16.msra.mxu0 %v8786
    %10384 = vmatpush.bf16.msra.mxu0 %v8767
    %10385 = vmatpush.bf16.msra.mxu0 %v8748
    %10386 = vmatpush.bf16.msra.mxu0 %v8729
    %10387 = vmatpush.bf16.msra.mxu0 %v8710
    %10388 = vmatpush.bf16.msra.mxu0 %v8691
    %10389 = vmatpush.bf16.msra.mxu0 %v8672
    %10390 = vmatmul.bf16.gmra.mxu0 %v5812
    %v10391 = vpop.f32.mrf.mxu0
    %v10392 = vadd.f32 %v10378, %v10391
    %v10393 = vpop.f32.mrf.mxu0
    %v10394 = vadd.f32 %v10380, %v10393
    %10395 = vdwg.mxu0
    %10396 = vmatpush.bf16.msra.mxu0 %v8957
    %10397 = vmatpush.bf16.msra.mxu0 %v8938
    %10398 = vmatpush.bf16.msra.mxu0 %v8919
    %10399 = vmatpush.bf16.msra.mxu0 %v8900
    %10400 = vmatpush.bf16.msra.mxu0 %v8881
    %10401 = vmatpush.bf16.msra.mxu0 %v8862
    %10402 = vmatpush.bf16.msra.mxu0 %v8843
    %10403 = vmatpush.bf16.msra.mxu0 %v8824
    %10404 = vmatmul.bf16.gmra.mxu0 %v5813
    %v10405 = vpop.f32.mrf.mxu0
    %v10406 = vadd.f32 %v10392, %v10405
    %v10407 = vpop.f32.mrf.mxu0
    %v10408 = vadd.f32 %v10394, %v10407
    %10409 = vdwg.mxu0
    %10410 = vmatpush.bf16.msra.mxu0 %v8502
    %10411 = vmatpush.bf16.msra.mxu0 %v8483
    %10412 = vmatpush.bf16.msra.mxu0 %v8464
    %10413 = vmatpush.bf16.msra.mxu0 %v8445
    %10414 = vmatpush.bf16.msra.mxu0 %v8426
    %10415 = vmatpush.bf16.msra.mxu0 %v8407
    %10416 = vmatpush.bf16.msra.mxu0 %v8388
    %10417 = vmatpush.bf16.msra.mxu0 %v8369
    %10418 = vmatmul.bf16.gmra.mxu0 %v5810
    %v10419 = vpop.f32.mrf.mxu0
    %v10420 = vadd.f32 %v6475, %v10419
    %v10421 = vpop.f32.mrf.mxu0
    %v10422 = vadd.f32 %v6475, %v10421
    %10423 = vdwg.mxu0
    %10424 = vmatpush.bf16.msra.mxu0 %v8654
    %10425 = vmatpush.bf16.msra.mxu0 %v8635
    %10426 = vmatpush.bf16.msra.mxu0 %v8616
    %10427 = vmatpush.bf16.msra.mxu0 %v8597
    %10428 = vmatpush.bf16.msra.mxu0 %v8578
    %10429 = vmatpush.bf16.msra.mxu0 %v8559
    %10430 = vmatpush.bf16.msra.mxu0 %v8540
    %10431 = vmatpush.bf16.msra.mxu0 %v8521
    %10432 = vmatmul.bf16.gmra.mxu0 %v5811
    %v10433 = vpop.f32.mrf.mxu0
    %v10434 = vadd.f32 %v10420, %v10433
    %v10435 = vpop.f32.mrf.mxu0
    %v10436 = vadd.f32 %v10422, %v10435
    %10437 = vdwg.mxu0
    %10438 = vmatpush.bf16.msra.mxu0 %v8806
    %10439 = vmatpush.bf16.msra.mxu0 %v8787
    %10440 = vmatpush.bf16.msra.mxu0 %v8768
    %10441 = vmatpush.bf16.msra.mxu0 %v8749
    %10442 = vmatpush.bf16.msra.mxu0 %v8730
    %10443 = vmatpush.bf16.msra.mxu0 %v8711
    %10444 = vmatpush.bf16.msra.mxu0 %v8692
    %10445 = vmatpush.bf16.msra.mxu0 %v8673
    %10446 = vmatmul.bf16.gmra.mxu0 %v5812
    %v10447 = vpop.f32.mrf.mxu0
    %v10448 = vadd.f32 %v10434, %v10447
    %v10449 = vpop.f32.mrf.mxu0
    %v10450 = vadd.f32 %v10436, %v10449
    %10451 = vdwg.mxu0
    %10452 = vmatpush.bf16.msra.mxu0 %v8958
    %10453 = vmatpush.bf16.msra.mxu0 %v8939
    %10454 = vmatpush.bf16.msra.mxu0 %v8920
    %10455 = vmatpush.bf16.msra.mxu0 %v8901
    %10456 = vmatpush.bf16.msra.mxu0 %v8882
    %10457 = vmatpush.bf16.msra.mxu0 %v8863
    %10458 = vmatpush.bf16.msra.mxu0 %v8844
    %10459 = vmatpush.bf16.msra.mxu0 %v8825
    %10460 = vmatmul.bf16.gmra.mxu0 %v5813
    %v10461 = vpop.f32.mrf.mxu0
    %v10462 = vadd.f32 %v10448, %v10461
    %v10463 = vpop.f32.mrf.mxu0
    %v10464 = vadd.f32 %v10450, %v10463
    %10465 = vdwg.mxu0
    %10466 = vmatpush.bf16.msra.mxu0 %v8503
    %10467 = vmatpush.bf16.msra.mxu0 %v8484
    %10468 = vmatpush.bf16.msra.mxu0 %v8465
    %10469 = vmatpush.bf16.msra.mxu0 %v8446
    %10470 = vmatpush.bf16.msra.mxu0 %v8427
    %10471 = vmatpush.bf16.msra.mxu0 %v8408
    %10472 = vmatpush.bf16.msra.mxu0 %v8389
    %10473 = vmatpush.bf16.msra.mxu0 %v8370
    %10474 = vmatmul.bf16.gmra.mxu0 %v5810
    %v10475 = vpop.f32.mrf.mxu0
    %v10476 = vadd.f32 %v6476, %v10475
    %v10477 = vpop.f32.mrf.mxu0
    %v10478 = vadd.f32 %v6476, %v10477
    %10479 = vdwg.mxu0
    %10480 = vmatpush.bf16.msra.mxu0 %v8655
    %10481 = vmatpush.bf16.msra.mxu0 %v8636
    %10482 = vmatpush.bf16.msra.mxu0 %v8617
    %10483 = vmatpush.bf16.msra.mxu0 %v8598
    %10484 = vmatpush.bf16.msra.mxu0 %v8579
    %10485 = vmatpush.bf16.msra.mxu0 %v8560
    %10486 = vmatpush.bf16.msra.mxu0 %v8541
    %10487 = vmatpush.bf16.msra.mxu0 %v8522
    %10488 = vmatmul.bf16.gmra.mxu0 %v5811
    %v10489 = vpop.f32.mrf.mxu0
    %v10490 = vadd.f32 %v10476, %v10489
    %v10491 = vpop.f32.mrf.mxu0
    %v10492 = vadd.f32 %v10478, %v10491
    %10493 = vdwg.mxu0
    %10494 = vmatpush.bf16.msra.mxu0 %v8807
    %10495 = vmatpush.bf16.msra.mxu0 %v8788
    %10496 = vmatpush.bf16.msra.mxu0 %v8769
    %10497 = vmatpush.bf16.msra.mxu0 %v8750
    %10498 = vmatpush.bf16.msra.mxu0 %v8731
    %10499 = vmatpush.bf16.msra.mxu0 %v8712
    %10500 = vmatpush.bf16.msra.mxu0 %v8693
    %10501 = vmatpush.bf16.msra.mxu0 %v8674
    %10502 = vmatmul.bf16.gmra.mxu0 %v5812
    %v10503 = vpop.f32.mrf.mxu0
    %v10504 = vadd.f32 %v10490, %v10503
    %v10505 = vpop.f32.mrf.mxu0
    %v10506 = vadd.f32 %v10492, %v10505
    %10507 = vdwg.mxu0
    %10508 = vmatpush.bf16.msra.mxu0 %v8959
    %10509 = vmatpush.bf16.msra.mxu0 %v8940
    %10510 = vmatpush.bf16.msra.mxu0 %v8921
    %10511 = vmatpush.bf16.msra.mxu0 %v8902
    %10512 = vmatpush.bf16.msra.mxu0 %v8883
    %10513 = vmatpush.bf16.msra.mxu0 %v8864
    %10514 = vmatpush.bf16.msra.mxu0 %v8845
    %10515 = vmatpush.bf16.msra.mxu0 %v8826
    %10516 = vmatmul.bf16.gmra.mxu0 %v5813
    %v10517 = vpop.f32.mrf.mxu0
    %v10518 = vadd.f32 %v10504, %v10517
    %v10519 = vpop.f32.mrf.mxu0
    %v10520 = vadd.f32 %v10506, %v10519
    %10521 = vdwg.mxu0
    %10522 = vmatpush.bf16.msra.mxu0 %v8504
    %10523 = vmatpush.bf16.msra.mxu0 %v8485
    %10524 = vmatpush.bf16.msra.mxu0 %v8466
    %10525 = vmatpush.bf16.msra.mxu0 %v8447
    %10526 = vmatpush.bf16.msra.mxu0 %v8428
    %10527 = vmatpush.bf16.msra.mxu0 %v8409
    %10528 = vmatpush.bf16.msra.mxu0 %v8390
    %10529 = vmatpush.bf16.msra.mxu0 %v8371
    %10530 = vmatmul.bf16.gmra.mxu0 %v5810
    %v10531 = vpop.f32.mrf.mxu0
    %v10532 = vadd.f32 %v6477, %v10531
    %v10533 = vpop.f32.mrf.mxu0
    %v10534 = vadd.f32 %v6477, %v10533
    %10535 = vdwg.mxu0
    %10536 = vmatpush.bf16.msra.mxu0 %v8656
    %10537 = vmatpush.bf16.msra.mxu0 %v8637
    %10538 = vmatpush.bf16.msra.mxu0 %v8618
    %10539 = vmatpush.bf16.msra.mxu0 %v8599
    %10540 = vmatpush.bf16.msra.mxu0 %v8580
    %10541 = vmatpush.bf16.msra.mxu0 %v8561
    %10542 = vmatpush.bf16.msra.mxu0 %v8542
    %10543 = vmatpush.bf16.msra.mxu0 %v8523
    %10544 = vmatmul.bf16.gmra.mxu0 %v5811
    %v10545 = vpop.f32.mrf.mxu0
    %v10546 = vadd.f32 %v10532, %v10545
    %v10547 = vpop.f32.mrf.mxu0
    %v10548 = vadd.f32 %v10534, %v10547
    %10549 = vdwg.mxu0
    %10550 = vmatpush.bf16.msra.mxu0 %v8808
    %10551 = vmatpush.bf16.msra.mxu0 %v8789
    %10552 = vmatpush.bf16.msra.mxu0 %v8770
    %10553 = vmatpush.bf16.msra.mxu0 %v8751
    %10554 = vmatpush.bf16.msra.mxu0 %v8732
    %10555 = vmatpush.bf16.msra.mxu0 %v8713
    %10556 = vmatpush.bf16.msra.mxu0 %v8694
    %10557 = vmatpush.bf16.msra.mxu0 %v8675
    %10558 = vmatmul.bf16.gmra.mxu0 %v5812
    %v10559 = vpop.f32.mrf.mxu0
    %v10560 = vadd.f32 %v10546, %v10559
    %v10561 = vpop.f32.mrf.mxu0
    %v10562 = vadd.f32 %v10548, %v10561
    %10563 = vdwg.mxu0
    %10564 = vmatpush.bf16.msra.mxu0 %v8960
    %10565 = vmatpush.bf16.msra.mxu0 %v8941
    %10566 = vmatpush.bf16.msra.mxu0 %v8922
    %10567 = vmatpush.bf16.msra.mxu0 %v8903
    %10568 = vmatpush.bf16.msra.mxu0 %v8884
    %10569 = vmatpush.bf16.msra.mxu0 %v8865
    %10570 = vmatpush.bf16.msra.mxu0 %v8846
    %10571 = vmatpush.bf16.msra.mxu0 %v8827
    %10572 = vmatmul.bf16.gmra.mxu0 %v5813
    %v10573 = vpop.f32.mrf.mxu0
    %v10574 = vadd.f32 %v10560, %v10573
    %v10575 = vpop.f32.mrf.mxu0
    %v10576 = vadd.f32 %v10562, %v10575
    %10577 = vdwg.mxu0
    %10578 = vmatpush.bf16.msra.mxu0 %v8505
    %10579 = vmatpush.bf16.msra.mxu0 %v8486
    %10580 = vmatpush.bf16.msra.mxu0 %v8467
    %10581 = vmatpush.bf16.msra.mxu0 %v8448
    %10582 = vmatpush.bf16.msra.mxu0 %v8429
    %10583 = vmatpush.bf16.msra.mxu0 %v8410
    %10584 = vmatpush.bf16.msra.mxu0 %v8391
    %10585 = vmatpush.bf16.msra.mxu0 %v8372
    %10586 = vmatmul.bf16.gmra.mxu0 %v5810
    %v10587 = vpop.f32.mrf.mxu0
    %v10588 = vadd.f32 %v6478, %v10587
    %v10589 = vpop.f32.mrf.mxu0
    %v10590 = vadd.f32 %v6478, %v10589
    %10591 = vdwg.mxu0
    %10592 = vmatpush.bf16.msra.mxu0 %v8657
    %10593 = vmatpush.bf16.msra.mxu0 %v8638
    %10594 = vmatpush.bf16.msra.mxu0 %v8619
    %10595 = vmatpush.bf16.msra.mxu0 %v8600
    %10596 = vmatpush.bf16.msra.mxu0 %v8581
    %10597 = vmatpush.bf16.msra.mxu0 %v8562
    %10598 = vmatpush.bf16.msra.mxu0 %v8543
    %10599 = vmatpush.bf16.msra.mxu0 %v8524
    %10600 = vmatmul.bf16.gmra.mxu0 %v5811
    %v10601 = vpop.f32.mrf.mxu0
    %v10602 = vadd.f32 %v10588, %v10601
    %v10603 = vpop.f32.mrf.mxu0
    %v10604 = vadd.f32 %v10590, %v10603
    %10605 = vdwg.mxu0
    %10606 = vmatpush.bf16.msra.mxu0 %v8809
    %10607 = vmatpush.bf16.msra.mxu0 %v8790
    %10608 = vmatpush.bf16.msra.mxu0 %v8771
    %10609 = vmatpush.bf16.msra.mxu0 %v8752
    %10610 = vmatpush.bf16.msra.mxu0 %v8733
    %10611 = vmatpush.bf16.msra.mxu0 %v8714
    %10612 = vmatpush.bf16.msra.mxu0 %v8695
    %10613 = vmatpush.bf16.msra.mxu0 %v8676
    %10614 = vmatmul.bf16.gmra.mxu0 %v5812
    %v10615 = vpop.f32.mrf.mxu0
    %v10616 = vadd.f32 %v10602, %v10615
    %v10617 = vpop.f32.mrf.mxu0
    %v10618 = vadd.f32 %v10604, %v10617
    %10619 = vdwg.mxu0
    %10620 = vmatpush.bf16.msra.mxu0 %v8961
    %10621 = vmatpush.bf16.msra.mxu0 %v8942
    %10622 = vmatpush.bf16.msra.mxu0 %v8923
    %10623 = vmatpush.bf16.msra.mxu0 %v8904
    %10624 = vmatpush.bf16.msra.mxu0 %v8885
    %10625 = vmatpush.bf16.msra.mxu0 %v8866
    %10626 = vmatpush.bf16.msra.mxu0 %v8847
    %10627 = vmatpush.bf16.msra.mxu0 %v8828
    %10628 = vmatmul.bf16.gmra.mxu0 %v5813
    %v10629 = vpop.f32.mrf.mxu0
    %v10630 = vadd.f32 %v10616, %v10629
    %v10631 = vpop.f32.mrf.mxu0
    %v10632 = vadd.f32 %v10618, %v10631
    %10633 = vdwg.mxu0
    %v10634 = vxor.u32 %v9622, 2147483648
    %v10635 = vxor.u32 %v9678, 2147483648
    %v10636 = vxor.u32 %v9734, 2147483648
    %v10637 = vxor.u32 %v9790, 2147483648
    %v10638 = vxor.u32 %v9846, 2147483648
    %v10639 = vxor.u32 %v9902, 2147483648
    %v10640 = vxor.u32 %v9958, 2147483648
    %v10641 = vxor.u32 %v10014, 2147483648
    %v10642 = vxor.u32 %v10070, 2147483648
    %v10643 = vxor.u32 %v10126, 2147483648
    %v10644 = vxor.u32 %v10182, 2147483648
    %v10645 = vxor.u32 %v10238, 2147483648
    %v10646 = vxor.u32 %v10294, 2147483648
    %v10647 = vxor.u32 %v10350, 2147483648
    %v10648 = vxor.u32 %v10406, 2147483648
    %v10649 = vxor.u32 %v10462, 2147483648
    %v10650 = vxor.u32 %v10518, 2147483648
    %v10651 = vxor.u32 %v10574, 2147483648
    %v10652 = vxor.u32 %v10630, 2147483648
    %v10653 = vxor.u32 %v9624, 2147483648
    %v10654 = vxor.u32 %v9680, 2147483648
    %v10655 = vxor.u32 %v9736, 2147483648
    %v10656 = vxor.u32 %v9792, 2147483648
    %v10657 = vxor.u32 %v9848, 2147483648
    %v10658 = vxor.u32 %v9904, 2147483648
    %v10659 = vxor.u32 %v9960, 2147483648
    %v10660 = vxor.u32 %v10016, 2147483648
    %v10661 = vxor.u32 %v10072, 2147483648
    %v10662 = vxor.u32 %v10128, 2147483648
    %v10663 = vxor.u32 %v10184, 2147483648
    %v10664 = vxor.u32 %v10240, 2147483648
    %v10665 = vxor.u32 %v10296, 2147483648
    %v10666 = vxor.u32 %v10352, 2147483648
    %v10667 = vxor.u32 %v10408, 2147483648
    %v10668 = vxor.u32 %v10464, 2147483648
    %v10669 = vxor.u32 %v10520, 2147483648
    %v10670 = vxor.u32 %v10576, 2147483648
    %v10671 = vxor.u32 %v10632, 2147483648
    %v10672 = vmul.f32 %v10634, 1.442695
    %v10673 = vpow.pop %v10672
    %v10674 = vmul.f32 %v10635, 1.442695
    %v10675 = vpow.pop %v10674
    %v10676 = vmul.f32 %v10636, 1.442695
    %v10677 = vpow.pop %v10676
    %v10678 = vmul.f32 %v10637, 1.442695
    %v10679 = vpow.pop %v10678
    %v10680 = vmul.f32 %v10638, 1.442695
    %v10681 = vpow.pop %v10680
    %v10682 = vmul.f32 %v10639, 1.442695
    %v10683 = vpow.pop %v10682
    %v10684 = vmul.f32 %v10640, 1.442695
    %v10685 = vpow.pop %v10684
    %v10686 = vmul.f32 %v10641, 1.442695
    %v10687 = vpow.pop %v10686
    %v10688 = vmul.f32 %v10642, 1.442695
    %v10689 = vpow.pop %v10688
    %v10690 = vmul.f32 %v10643, 1.442695
    %v10691 = vpow.pop %v10690
    %v10692 = vmul.f32 %v10644, 1.442695
    %v10693 = vpow.pop %v10692
    %v10694 = vmul.f32 %v10645, 1.442695
    %v10695 = vpow.pop %v10694
    %v10696 = vmul.f32 %v10646, 1.442695
    %v10697 = vpow.pop %v10696
    %v10698 = vmul.f32 %v10647, 1.442695
    %v10699 = vpow.pop %v10698
    %v10700 = vmul.f32 %v10648, 1.442695
    %v10701 = vpow.pop %v10700
    %v10702 = vmul.f32 %v10649, 1.442695
    %v10703 = vpow.pop %v10702
    %v10704 = vmul.f32 %v10650, 1.442695
    %v10705 = vpow.pop %v10704
    %v10706 = vmul.f32 %v10651, 1.442695
    %v10707 = vpow.pop %v10706
    %v10708 = vmul.f32 %v10652, 1.442695
    %v10709 = vpow.pop %v10708
    %v10710 = vmul.f32 %v10653, 1.442695
    %v10711 = vpow.pop %v10710
    %v10712 = vmul.f32 %v10654, 1.442695
    %v10713 = vpow.pop %v10712
    %v10714 = vmul.f32 %v10655, 1.442695
    %v10715 = vpow.pop %v10714
    %v10716 = vmul.f32 %v10656, 1.442695
    %v10717 = vpow.pop %v10716
    %v10718 = vmul.f32 %v10657, 1.442695
    %v10719 = vpow.pop %v10718
    %v10720 = vmul.f32 %v10658, 1.442695
    %v10721 = vpow.pop %v10720
    %v10722 = vmul.f32 %v10659, 1.442695
    %v10723 = vpow.pop %v10722
    %v10724 = vmul.f32 %v10660, 1.442695
    %v10725 = vpow.pop %v10724
    %v10726 = vmul.f32 %v10661, 1.442695
    %v10727 = vpow.pop %v10726
    %v10728 = vmul.f32 %v10662, 1.442695
    %v10729 = vpow.pop %v10728
    %v10730 = vmul.f32 %v10663, 1.442695
    %v10731 = vpow.pop %v10730
    %v10732 = vmul.f32 %v10664, 1.442695
    %v10733 = vpow.pop %v10732
    %v10734 = vmul.f32 %v10665, 1.442695
    %v10735 = vpow.pop %v10734
    %v10736 = vmul.f32 %v10666, 1.442695
    %v10737 = vpow.pop %v10736
    %v10738 = vmul.f32 %v10667, 1.442695
    %v10739 = vpow.pop %v10738
    %v10740 = vmul.f32 %v10668, 1.442695
    %v10741 = vpow.pop %v10740
    %v10742 = vmul.f32 %v10669, 1.442695
    %v10743 = vpow.pop %v10742
    %v10744 = vmul.f32 %v10670, 1.442695
    %v10745 = vpow.pop %v10744
    %v10746 = vmul.f32 %v10671, 1.442695
    %v10747 = vpow.pop %v10746
    %v10748 = vadd.f32 %v10673, 1.0
    %v10749 = vadd.f32 %v10675, 1.0
    %v10750 = vadd.f32 %v10677, 1.0
    %v10751 = vadd.f32 %v10679, 1.0
    %v10752 = vadd.f32 %v10681, 1.0
    %v10753 = vadd.f32 %v10683, 1.0
    %v10754 = vadd.f32 %v10685, 1.0
    %v10755 = vadd.f32 %v10687, 1.0
    %v10756 = vadd.f32 %v10689, 1.0
    %v10757 = vadd.f32 %v10691, 1.0
    %v10758 = vadd.f32 %v10693, 1.0
    %v10759 = vadd.f32 %v10695, 1.0
    %v10760 = vadd.f32 %v10697, 1.0
    %v10761 = vadd.f32 %v10699, 1.0
    %v10762 = vadd.f32 %v10701, 1.0
    %v10763 = vadd.f32 %v10703, 1.0
    %v10764 = vadd.f32 %v10705, 1.0
    %v10765 = vadd.f32 %v10707, 1.0
    %v10766 = vadd.f32 %v10709, 1.0
    %v10767 = vadd.f32 %v10711, 1.0
    %v10768 = vadd.f32 %v10713, 1.0
    %v10769 = vadd.f32 %v10715, 1.0
    %v10770 = vadd.f32 %v10717, 1.0
    %v10771 = vadd.f32 %v10719, 1.0
    %v10772 = vadd.f32 %v10721, 1.0
    %v10773 = vadd.f32 %v10723, 1.0
    %v10774 = vadd.f32 %v10725, 1.0
    %v10775 = vadd.f32 %v10727, 1.0
    %v10776 = vadd.f32 %v10729, 1.0
    %v10777 = vadd.f32 %v10731, 1.0
    %v10778 = vadd.f32 %v10733, 1.0
    %v10779 = vadd.f32 %v10735, 1.0
    %v10780 = vadd.f32 %v10737, 1.0
    %v10781 = vadd.f32 %v10739, 1.0
    %v10782 = vadd.f32 %v10741, 1.0
    %v10783 = vadd.f32 %v10743, 1.0
    %v10784 = vadd.f32 %v10745, 1.0
    %v10785 = vadd.f32 %v10747, 1.0
    %v10786 = vrcp.pop %v10748
    %v10787 = vmul.f32 %v10748, %v10786
    %v10788 = vsub.f32 1.0, %v10787
    %v10789 = vmul.f32 %v10786, %v10788
    %v10790 = vadd.f32 %v10786, %v10789
    %vm10791 = vweird.f32 %v10748
    %vm10792 = vweird.f32 %v10786
    %vm10793 = vmor %vm10791, %vm10792
    %v10794 = vsel %vm10793, %v10786, %v10790
    %v10795 = vand.u32 2147483647, %v10748
    %vm10796 = vcmp.eq.f32.partialorder %v10795, 8.507059e+37
    %v10797 = vand.u32 %v10748, 2147483648
    %v10798 = vor.u32 1.1754944e-38, %v10797
    %v10799 = vsel %vm10796, %v10798, %v10794
    %v10800 = vmul.f32 1.0, %v10799
    %v10801 = vrcp.pop %v10749
    %v10802 = vmul.f32 %v10749, %v10801
    %v10803 = vsub.f32 1.0, %v10802
    %v10804 = vmul.f32 %v10801, %v10803
    %v10805 = vadd.f32 %v10801, %v10804
    %vm10806 = vweird.f32 %v10749
    %vm10807 = vweird.f32 %v10801
    %vm10808 = vmor %vm10806, %vm10807
    %v10809 = vsel %vm10808, %v10801, %v10805
    %v10810 = vand.u32 2147483647, %v10749
    %vm10811 = vcmp.eq.f32.partialorder %v10810, 8.507059e+37
    %v10812 = vand.u32 %v10749, 2147483648
    %v10813 = vor.u32 1.1754944e-38, %v10812
    %v10814 = vsel %vm10811, %v10813, %v10809
    %v10815 = vmul.f32 1.0, %v10814
    %v10816 = vrcp.pop %v10750
    %v10817 = vmul.f32 %v10750, %v10816
    %v10818 = vsub.f32 1.0, %v10817
    %v10819 = vmul.f32 %v10816, %v10818
    %v10820 = vadd.f32 %v10816, %v10819
    %vm10821 = vweird.f32 %v10750
    %vm10822 = vweird.f32 %v10816
    %vm10823 = vmor %vm10821, %vm10822
    %v10824 = vsel %vm10823, %v10816, %v10820
    %v10825 = vand.u32 2147483647, %v10750
    %vm10826 = vcmp.eq.f32.partialorder %v10825, 8.507059e+37
    %v10827 = vand.u32 %v10750, 2147483648
    %v10828 = vor.u32 1.1754944e-38, %v10827
    %v10829 = vsel %vm10826, %v10828, %v10824
    %v10830 = vmul.f32 1.0, %v10829
    %v10831 = vrcp.pop %v10751
    %v10832 = vmul.f32 %v10751, %v10831
    %v10833 = vsub.f32 1.0, %v10832
    %v10834 = vmul.f32 %v10831, %v10833
    %v10835 = vadd.f32 %v10831, %v10834
    %vm10836 = vweird.f32 %v10751
    %vm10837 = vweird.f32 %v10831
    %vm10838 = vmor %vm10836, %vm10837
    %v10839 = vsel %vm10838, %v10831, %v10835
    %v10840 = vand.u32 2147483647, %v10751
    %vm10841 = vcmp.eq.f32.partialorder %v10840, 8.507059e+37
    %v10842 = vand.u32 %v10751, 2147483648
    %v10843 = vor.u32 1.1754944e-38, %v10842
    %v10844 = vsel %vm10841, %v10843, %v10839
    %v10845 = vmul.f32 1.0, %v10844
    %v10846 = vrcp.pop %v10752
    %v10847 = vmul.f32 %v10752, %v10846
    %v10848 = vsub.f32 1.0, %v10847
    %v10849 = vmul.f32 %v10846, %v10848
    %v10850 = vadd.f32 %v10846, %v10849
    %vm10851 = vweird.f32 %v10752
    %vm10852 = vweird.f32 %v10846
    %vm10853 = vmor %vm10851, %vm10852
    %v10854 = vsel %vm10853, %v10846, %v10850
    %v10855 = vand.u32 2147483647, %v10752
    %vm10856 = vcmp.eq.f32.partialorder %v10855, 8.507059e+37
    %v10857 = vand.u32 %v10752, 2147483648
    %v10858 = vor.u32 1.1754944e-38, %v10857
    %v10859 = vsel %vm10856, %v10858, %v10854
    %v10860 = vmul.f32 1.0, %v10859
    %v10861 = vrcp.pop %v10753
    %v10862 = vmul.f32 %v10753, %v10861
    %v10863 = vsub.f32 1.0, %v10862
    %v10864 = vmul.f32 %v10861, %v10863
    %v10865 = vadd.f32 %v10861, %v10864
    %vm10866 = vweird.f32 %v10753
    %vm10867 = vweird.f32 %v10861
    %vm10868 = vmor %vm10866, %vm10867
    %v10869 = vsel %vm10868, %v10861, %v10865
    %v10870 = vand.u32 2147483647, %v10753
    %vm10871 = vcmp.eq.f32.partialorder %v10870, 8.507059e+37
    %v10872 = vand.u32 %v10753, 2147483648
    %v10873 = vor.u32 1.1754944e-38, %v10872
    %v10874 = vsel %vm10871, %v10873, %v10869
    %v10875 = vmul.f32 1.0, %v10874
    %v10876 = vrcp.pop %v10754
    %v10877 = vmul.f32 %v10754, %v10876
    %v10878 = vsub.f32 1.0, %v10877
    %v10879 = vmul.f32 %v10876, %v10878
    %v10880 = vadd.f32 %v10876, %v10879
    %vm10881 = vweird.f32 %v10754
    %vm10882 = vweird.f32 %v10876
    %vm10883 = vmor %vm10881, %vm10882
    %v10884 = vsel %vm10883, %v10876, %v10880
    %v10885 = vand.u32 2147483647, %v10754
    %vm10886 = vcmp.eq.f32.partialorder %v10885, 8.507059e+37
    %v10887 = vand.u32 %v10754, 2147483648
    %v10888 = vor.u32 1.1754944e-38, %v10887
    %v10889 = vsel %vm10886, %v10888, %v10884
    %v10890 = vmul.f32 1.0, %v10889
    %v10891 = vrcp.pop %v10755
    %v10892 = vmul.f32 %v10755, %v10891
    %v10893 = vsub.f32 1.0, %v10892
    %v10894 = vmul.f32 %v10891, %v10893
    %v10895 = vadd.f32 %v10891, %v10894
    %vm10896 = vweird.f32 %v10755
    %vm10897 = vweird.f32 %v10891
    %vm10898 = vmor %vm10896, %vm10897
    %v10899 = vsel %vm10898, %v10891, %v10895
    %v10900 = vand.u32 2147483647, %v10755
    %vm10901 = vcmp.eq.f32.partialorder %v10900, 8.507059e+37
    %v10902 = vand.u32 %v10755, 2147483648
    %v10903 = vor.u32 1.1754944e-38, %v10902
    %v10904 = vsel %vm10901, %v10903, %v10899
    %v10905 = vmul.f32 1.0, %v10904
    %v10906 = vrcp.pop %v10756
    %v10907 = vmul.f32 %v10756, %v10906
    %v10908 = vsub.f32 1.0, %v10907
    %v10909 = vmul.f32 %v10906, %v10908
    %v10910 = vadd.f32 %v10906, %v10909
    %vm10911 = vweird.f32 %v10756
    %vm10912 = vweird.f32 %v10906
    %vm10913 = vmor %vm10911, %vm10912
    %v10914 = vsel %vm10913, %v10906, %v10910
    %v10915 = vand.u32 2147483647, %v10756
    %vm10916 = vcmp.eq.f32.partialorder %v10915, 8.507059e+37
    %v10917 = vand.u32 %v10756, 2147483648
    %v10918 = vor.u32 1.1754944e-38, %v10917
    %v10919 = vsel %vm10916, %v10918, %v10914
    %v10920 = vmul.f32 1.0, %v10919
    %v10921 = vrcp.pop %v10757
    %v10922 = vmul.f32 %v10757, %v10921
    %v10923 = vsub.f32 1.0, %v10922
    %v10924 = vmul.f32 %v10921, %v10923
    %v10925 = vadd.f32 %v10921, %v10924
    %vm10926 = vweird.f32 %v10757
    %vm10927 = vweird.f32 %v10921
    %vm10928 = vmor %vm10926, %vm10927
    %v10929 = vsel %vm10928, %v10921, %v10925
    %v10930 = vand.u32 2147483647, %v10757
    %vm10931 = vcmp.eq.f32.partialorder %v10930, 8.507059e+37
    %v10932 = vand.u32 %v10757, 2147483648
    %v10933 = vor.u32 1.1754944e-38, %v10932
    %v10934 = vsel %vm10931, %v10933, %v10929
    %v10935 = vmul.f32 1.0, %v10934
    %v10936 = vrcp.pop %v10758
    %v10937 = vmul.f32 %v10758, %v10936
    %v10938 = vsub.f32 1.0, %v10937
    %v10939 = vmul.f32 %v10936, %v10938
    %v10940 = vadd.f32 %v10936, %v10939
    %vm10941 = vweird.f32 %v10758
    %vm10942 = vweird.f32 %v10936
    %vm10943 = vmor %vm10941, %vm10942
    %v10944 = vsel %vm10943, %v10936, %v10940
    %v10945 = vand.u32 2147483647, %v10758
    %vm10946 = vcmp.eq.f32.partialorder %v10945, 8.507059e+37
    %v10947 = vand.u32 %v10758, 2147483648
    %v10948 = vor.u32 1.1754944e-38, %v10947
    %v10949 = vsel %vm10946, %v10948, %v10944
    %v10950 = vmul.f32 1.0, %v10949
    %v10951 = vrcp.pop %v10759
    %v10952 = vmul.f32 %v10759, %v10951
    %v10953 = vsub.f32 1.0, %v10952
    %v10954 = vmul.f32 %v10951, %v10953
    %v10955 = vadd.f32 %v10951, %v10954
    %vm10956 = vweird.f32 %v10759
    %vm10957 = vweird.f32 %v10951
    %vm10958 = vmor %vm10956, %vm10957
    %v10959 = vsel %vm10958, %v10951, %v10955
    %v10960 = vand.u32 2147483647, %v10759
    %vm10961 = vcmp.eq.f32.partialorder %v10960, 8.507059e+37
    %v10962 = vand.u32 %v10759, 2147483648
    %v10963 = vor.u32 1.1754944e-38, %v10962
    %v10964 = vsel %vm10961, %v10963, %v10959
    %v10965 = vmul.f32 1.0, %v10964
    %v10966 = vrcp.pop %v10760
    %v10967 = vmul.f32 %v10760, %v10966
    %v10968 = vsub.f32 1.0, %v10967
    %v10969 = vmul.f32 %v10966, %v10968
    %v10970 = vadd.f32 %v10966, %v10969
    %vm10971 = vweird.f32 %v10760
    %vm10972 = vweird.f32 %v10966
    %vm10973 = vmor %vm10971, %vm10972
    %v10974 = vsel %vm10973, %v10966, %v10970
    %v10975 = vand.u32 2147483647, %v10760
    %vm10976 = vcmp.eq.f32.partialorder %v10975, 8.507059e+37
    %v10977 = vand.u32 %v10760, 2147483648
    %v10978 = vor.u32 1.1754944e-38, %v10977
    %v10979 = vsel %vm10976, %v10978, %v10974
    %v10980 = vmul.f32 1.0, %v10979
    %v10981 = vrcp.pop %v10761
    %v10982 = vmul.f32 %v10761, %v10981
    %v10983 = vsub.f32 1.0, %v10982
    %v10984 = vmul.f32 %v10981, %v10983
    %v10985 = vadd.f32 %v10981, %v10984
    %vm10986 = vweird.f32 %v10761
    %vm10987 = vweird.f32 %v10981
    %vm10988 = vmor %vm10986, %vm10987
    %v10989 = vsel %vm10988, %v10981, %v10985
    %v10990 = vand.u32 2147483647, %v10761
    %vm10991 = vcmp.eq.f32.partialorder %v10990, 8.507059e+37
    %v10992 = vand.u32 %v10761, 2147483648
    %v10993 = vor.u32 1.1754944e-38, %v10992
    %v10994 = vsel %vm10991, %v10993, %v10989
    %v10995 = vmul.f32 1.0, %v10994
    %v10996 = vrcp.pop %v10762
    %v10997 = vmul.f32 %v10762, %v10996
    %v10998 = vsub.f32 1.0, %v10997
    %v10999 = vmul.f32 %v10996, %v10998
    %v11000 = vadd.f32 %v10996, %v10999
    %vm11001 = vweird.f32 %v10762
    %vm11002 = vweird.f32 %v10996
    %vm11003 = vmor %vm11001, %vm11002
    %v11004 = vsel %vm11003, %v10996, %v11000
    %v11005 = vand.u32 2147483647, %v10762
    %vm11006 = vcmp.eq.f32.partialorder %v11005, 8.507059e+37
    %v11007 = vand.u32 %v10762, 2147483648
    %v11008 = vor.u32 1.1754944e-38, %v11007
    %v11009 = vsel %vm11006, %v11008, %v11004
    %v11010 = vmul.f32 1.0, %v11009
    %v11011 = vrcp.pop %v10763
    %v11012 = vmul.f32 %v10763, %v11011
    %v11013 = vsub.f32 1.0, %v11012
    %v11014 = vmul.f32 %v11011, %v11013
    %v11015 = vadd.f32 %v11011, %v11014
    %vm11016 = vweird.f32 %v10763
    %vm11017 = vweird.f32 %v11011
    %vm11018 = vmor %vm11016, %vm11017
    %v11019 = vsel %vm11018, %v11011, %v11015
    %v11020 = vand.u32 2147483647, %v10763
    %vm11021 = vcmp.eq.f32.partialorder %v11020, 8.507059e+37
    %v11022 = vand.u32 %v10763, 2147483648
    %v11023 = vor.u32 1.1754944e-38, %v11022
    %v11024 = vsel %vm11021, %v11023, %v11019
    %v11025 = vmul.f32 1.0, %v11024
    %v11026 = vrcp.pop %v10764
    %v11027 = vmul.f32 %v10764, %v11026
    %v11028 = vsub.f32 1.0, %v11027
    %v11029 = vmul.f32 %v11026, %v11028
    %v11030 = vadd.f32 %v11026, %v11029
    %vm11031 = vweird.f32 %v10764
    %vm11032 = vweird.f32 %v11026
    %vm11033 = vmor %vm11031, %vm11032
    %v11034 = vsel %vm11033, %v11026, %v11030
    %v11035 = vand.u32 2147483647, %v10764
    %vm11036 = vcmp.eq.f32.partialorder %v11035, 8.507059e+37
    %v11037 = vand.u32 %v10764, 2147483648
    %v11038 = vor.u32 1.1754944e-38, %v11037
    %v11039 = vsel %vm11036, %v11038, %v11034
    %v11040 = vmul.f32 1.0, %v11039
    %v11041 = vrcp.pop %v10765
    %v11042 = vmul.f32 %v10765, %v11041
    %v11043 = vsub.f32 1.0, %v11042
    %v11044 = vmul.f32 %v11041, %v11043
    %v11045 = vadd.f32 %v11041, %v11044
    %vm11046 = vweird.f32 %v10765
    %vm11047 = vweird.f32 %v11041
    %vm11048 = vmor %vm11046, %vm11047
    %v11049 = vsel %vm11048, %v11041, %v11045
    %v11050 = vand.u32 2147483647, %v10765
    %vm11051 = vcmp.eq.f32.partialorder %v11050, 8.507059e+37
    %v11052 = vand.u32 %v10765, 2147483648
    %v11053 = vor.u32 1.1754944e-38, %v11052
    %v11054 = vsel %vm11051, %v11053, %v11049
    %v11055 = vmul.f32 1.0, %v11054
    %v11056 = vrcp.pop %v10766
    %v11057 = vmul.f32 %v10766, %v11056
    %v11058 = vsub.f32 1.0, %v11057
    %v11059 = vmul.f32 %v11056, %v11058
    %v11060 = vadd.f32 %v11056, %v11059
    %vm11061 = vweird.f32 %v10766
    %vm11062 = vweird.f32 %v11056
    %vm11063 = vmor %vm11061, %vm11062
    %v11064 = vsel %vm11063, %v11056, %v11060
    %v11065 = vand.u32 2147483647, %v10766
    %vm11066 = vcmp.eq.f32.partialorder %v11065, 8.507059e+37
    %v11067 = vand.u32 %v10766, 2147483648
    %v11068 = vor.u32 1.1754944e-38, %v11067
    %v11069 = vsel %vm11066, %v11068, %v11064
    %v11070 = vmul.f32 1.0, %v11069
    %v11071 = vrcp.pop %v10767
    %v11072 = vmul.f32 %v10767, %v11071
    %v11073 = vsub.f32 1.0, %v11072
    %v11074 = vmul.f32 %v11071, %v11073
    %v11075 = vadd.f32 %v11071, %v11074
    %vm11076 = vweird.f32 %v10767
    %vm11077 = vweird.f32 %v11071
    %vm11078 = vmor %vm11076, %vm11077
    %v11079 = vsel %vm11078, %v11071, %v11075
    %v11080 = vand.u32 2147483647, %v10767
    %vm11081 = vcmp.eq.f32.partialorder %v11080, 8.507059e+37
    %v11082 = vand.u32 %v10767, 2147483648
    %v11083 = vor.u32 1.1754944e-38, %v11082
    %v11084 = vsel %vm11081, %v11083, %v11079
    %v11085 = vmul.f32 1.0, %v11084
    %v11086 = vrcp.pop %v10768
    %v11087 = vmul.f32 %v10768, %v11086
    %v11088 = vsub.f32 1.0, %v11087
    %v11089 = vmul.f32 %v11086, %v11088
    %v11090 = vadd.f32 %v11086, %v11089
    %vm11091 = vweird.f32 %v10768
    %vm11092 = vweird.f32 %v11086
    %vm11093 = vmor %vm11091, %vm11092
    %v11094 = vsel %vm11093, %v11086, %v11090
    %v11095 = vand.u32 2147483647, %v10768
    %vm11096 = vcmp.eq.f32.partialorder %v11095, 8.507059e+37
    %v11097 = vand.u32 %v10768, 2147483648
    %v11098 = vor.u32 1.1754944e-38, %v11097
    %v11099 = vsel %vm11096, %v11098, %v11094
    %v11100 = vmul.f32 1.0, %v11099
    %v11101 = vrcp.pop %v10769
    %v11102 = vmul.f32 %v10769, %v11101
    %v11103 = vsub.f32 1.0, %v11102
    %v11104 = vmul.f32 %v11101, %v11103
    %v11105 = vadd.f32 %v11101, %v11104
    %vm11106 = vweird.f32 %v10769
    %vm11107 = vweird.f32 %v11101
    %vm11108 = vmor %vm11106, %vm11107
    %v11109 = vsel %vm11108, %v11101, %v11105
    %v11110 = vand.u32 2147483647, %v10769
    %vm11111 = vcmp.eq.f32.partialorder %v11110, 8.507059e+37
    %v11112 = vand.u32 %v10769, 2147483648
    %v11113 = vor.u32 1.1754944e-38, %v11112
    %v11114 = vsel %vm11111, %v11113, %v11109
    %v11115 = vmul.f32 1.0, %v11114
    %v11116 = vrcp.pop %v10770
    %v11117 = vmul.f32 %v10770, %v11116
    %v11118 = vsub.f32 1.0, %v11117
    %v11119 = vmul.f32 %v11116, %v11118
    %v11120 = vadd.f32 %v11116, %v11119
    %vm11121 = vweird.f32 %v10770
    %vm11122 = vweird.f32 %v11116
    %vm11123 = vmor %vm11121, %vm11122
    %v11124 = vsel %vm11123, %v11116, %v11120
    %v11125 = vand.u32 2147483647, %v10770
    %vm11126 = vcmp.eq.f32.partialorder %v11125, 8.507059e+37
    %v11127 = vand.u32 %v10770, 2147483648
    %v11128 = vor.u32 1.1754944e-38, %v11127
    %v11129 = vsel %vm11126, %v11128, %v11124
    %v11130 = vmul.f32 1.0, %v11129
    %v11131 = vrcp.pop %v10771
    %v11132 = vmul.f32 %v10771, %v11131
    %v11133 = vsub.f32 1.0, %v11132
    %v11134 = vmul.f32 %v11131, %v11133
    %v11135 = vadd.f32 %v11131, %v11134
    %vm11136 = vweird.f32 %v10771
    %vm11137 = vweird.f32 %v11131
    %vm11138 = vmor %vm11136, %vm11137
    %v11139 = vsel %vm11138, %v11131, %v11135
    %v11140 = vand.u32 2147483647, %v10771
    %vm11141 = vcmp.eq.f32.partialorder %v11140, 8.507059e+37
    %v11142 = vand.u32 %v10771, 2147483648
    %v11143 = vor.u32 1.1754944e-38, %v11142
    %v11144 = vsel %vm11141, %v11143, %v11139
    %v11145 = vmul.f32 1.0, %v11144
    %v11146 = vrcp.pop %v10772
    %v11147 = vmul.f32 %v10772, %v11146
    %v11148 = vsub.f32 1.0, %v11147
    %v11149 = vmul.f32 %v11146, %v11148
    %v11150 = vadd.f32 %v11146, %v11149
    %vm11151 = vweird.f32 %v10772
    %vm11152 = vweird.f32 %v11146
    %vm11153 = vmor %vm11151, %vm11152
    %v11154 = vsel %vm11153, %v11146, %v11150
    %v11155 = vand.u32 2147483647, %v10772
    %vm11156 = vcmp.eq.f32.partialorder %v11155, 8.507059e+37
    %v11157 = vand.u32 %v10772, 2147483648
    %v11158 = vor.u32 1.1754944e-38, %v11157
    %v11159 = vsel %vm11156, %v11158, %v11154
    %v11160 = vmul.f32 1.0, %v11159
    %v11161 = vrcp.pop %v10773
    %v11162 = vmul.f32 %v10773, %v11161
    %v11163 = vsub.f32 1.0, %v11162
    %v11164 = vmul.f32 %v11161, %v11163
    %v11165 = vadd.f32 %v11161, %v11164
    %vm11166 = vweird.f32 %v10773
    %vm11167 = vweird.f32 %v11161
    %vm11168 = vmor %vm11166, %vm11167
    %v11169 = vsel %vm11168, %v11161, %v11165
    %v11170 = vand.u32 2147483647, %v10773
    %vm11171 = vcmp.eq.f32.partialorder %v11170, 8.507059e+37
    %v11172 = vand.u32 %v10773, 2147483648
    %v11173 = vor.u32 1.1754944e-38, %v11172
    %v11174 = vsel %vm11171, %v11173, %v11169
    %v11175 = vmul.f32 1.0, %v11174
    %v11176 = vrcp.pop %v10774
    %v11177 = vmul.f32 %v10774, %v11176
    %v11178 = vsub.f32 1.0, %v11177
    %v11179 = vmul.f32 %v11176, %v11178
    %v11180 = vadd.f32 %v11176, %v11179
    %vm11181 = vweird.f32 %v10774
    %vm11182 = vweird.f32 %v11176
    %vm11183 = vmor %vm11181, %vm11182
    %v11184 = vsel %vm11183, %v11176, %v11180
    %v11185 = vand.u32 2147483647, %v10774
    %vm11186 = vcmp.eq.f32.partialorder %v11185, 8.507059e+37
    %v11187 = vand.u32 %v10774, 2147483648
    %v11188 = vor.u32 1.1754944e-38, %v11187
    %v11189 = vsel %vm11186, %v11188, %v11184
    %v11190 = vmul.f32 1.0, %v11189
    %v11191 = vrcp.pop %v10775
    %v11192 = vmul.f32 %v10775, %v11191
    %v11193 = vsub.f32 1.0, %v11192
    %v11194 = vmul.f32 %v11191, %v11193
    %v11195 = vadd.f32 %v11191, %v11194
    %vm11196 = vweird.f32 %v10775
    %vm11197 = vweird.f32 %v11191
    %vm11198 = vmor %vm11196, %vm11197
    %v11199 = vsel %vm11198, %v11191, %v11195
    %v11200 = vand.u32 2147483647, %v10775
    %vm11201 = vcmp.eq.f32.partialorder %v11200, 8.507059e+37
    %v11202 = vand.u32 %v10775, 2147483648
    %v11203 = vor.u32 1.1754944e-38, %v11202
    %v11204 = vsel %vm11201, %v11203, %v11199
    %v11205 = vmul.f32 1.0, %v11204
    %v11206 = vrcp.pop %v10776
    %v11207 = vmul.f32 %v10776, %v11206
    %v11208 = vsub.f32 1.0, %v11207
    %v11209 = vmul.f32 %v11206, %v11208
    %v11210 = vadd.f32 %v11206, %v11209
    %vm11211 = vweird.f32 %v10776
    %vm11212 = vweird.f32 %v11206
    %vm11213 = vmor %vm11211, %vm11212
    %v11214 = vsel %vm11213, %v11206, %v11210
    %v11215 = vand.u32 2147483647, %v10776
    %vm11216 = vcmp.eq.f32.partialorder %v11215, 8.507059e+37
    %v11217 = vand.u32 %v10776, 2147483648
    %v11218 = vor.u32 1.1754944e-38, %v11217
    %v11219 = vsel %vm11216, %v11218, %v11214
    %v11220 = vmul.f32 1.0, %v11219
    %v11221 = vrcp.pop %v10777
    %v11222 = vmul.f32 %v10777, %v11221
    %v11223 = vsub.f32 1.0, %v11222
    %v11224 = vmul.f32 %v11221, %v11223
    %v11225 = vadd.f32 %v11221, %v11224
    %vm11226 = vweird.f32 %v10777
    %vm11227 = vweird.f32 %v11221
    %vm11228 = vmor %vm11226, %vm11227
    %v11229 = vsel %vm11228, %v11221, %v11225
    %v11230 = vand.u32 2147483647, %v10777
    %vm11231 = vcmp.eq.f32.partialorder %v11230, 8.507059e+37
    %v11232 = vand.u32 %v10777, 2147483648
    %v11233 = vor.u32 1.1754944e-38, %v11232
    %v11234 = vsel %vm11231, %v11233, %v11229
    %v11235 = vmul.f32 1.0, %v11234
    %v11236 = vrcp.pop %v10778
    %v11237 = vmul.f32 %v10778, %v11236
    %v11238 = vsub.f32 1.0, %v11237
    %v11239 = vmul.f32 %v11236, %v11238
    %v11240 = vadd.f32 %v11236, %v11239
    %vm11241 = vweird.f32 %v10778
    %vm11242 = vweird.f32 %v11236
    %vm11243 = vmor %vm11241, %vm11242
    %v11244 = vsel %vm11243, %v11236, %v11240
    %v11245 = vand.u32 2147483647, %v10778
    %vm11246 = vcmp.eq.f32.partialorder %v11245, 8.507059e+37
    %v11247 = vand.u32 %v10778, 2147483648
    %v11248 = vor.u32 1.1754944e-38, %v11247
    %v11249 = vsel %vm11246, %v11248, %v11244
    %v11250 = vmul.f32 1.0, %v11249
    %v11251 = vrcp.pop %v10779
    %v11252 = vmul.f32 %v10779, %v11251
    %v11253 = vsub.f32 1.0, %v11252
    %v11254 = vmul.f32 %v11251, %v11253
    %v11255 = vadd.f32 %v11251, %v11254
    %vm11256 = vweird.f32 %v10779
    %vm11257 = vweird.f32 %v11251
    %vm11258 = vmor %vm11256, %vm11257
    %v11259 = vsel %vm11258, %v11251, %v11255
    %v11260 = vand.u32 2147483647, %v10779
    %vm11261 = vcmp.eq.f32.partialorder %v11260, 8.507059e+37
    %v11262 = vand.u32 %v10779, 2147483648
    %v11263 = vor.u32 1.1754944e-38, %v11262
    %v11264 = vsel %vm11261, %v11263, %v11259
    %v11265 = vmul.f32 1.0, %v11264
    %v11266 = vrcp.pop %v10780
    %v11267 = vmul.f32 %v10780, %v11266
    %v11268 = vsub.f32 1.0, %v11267
    %v11269 = vmul.f32 %v11266, %v11268
    %v11270 = vadd.f32 %v11266, %v11269
    %vm11271 = vweird.f32 %v10780
    %vm11272 = vweird.f32 %v11266
    %vm11273 = vmor %vm11271, %vm11272
    %v11274 = vsel %vm11273, %v11266, %v11270
    %v11275 = vand.u32 2147483647, %v10780
    %vm11276 = vcmp.eq.f32.partialorder %v11275, 8.507059e+37
    %v11277 = vand.u32 %v10780, 2147483648
    %v11278 = vor.u32 1.1754944e-38, %v11277
    %v11279 = vsel %vm11276, %v11278, %v11274
    %v11280 = vmul.f32 1.0, %v11279
    %v11281 = vrcp.pop %v10781
    %v11282 = vmul.f32 %v10781, %v11281
    %v11283 = vsub.f32 1.0, %v11282
    %v11284 = vmul.f32 %v11281, %v11283
    %v11285 = vadd.f32 %v11281, %v11284
    %vm11286 = vweird.f32 %v10781
    %vm11287 = vweird.f32 %v11281
    %vm11288 = vmor %vm11286, %vm11287
    %v11289 = vsel %vm11288, %v11281, %v11285
    %v11290 = vand.u32 2147483647, %v10781
    %vm11291 = vcmp.eq.f32.partialorder %v11290, 8.507059e+37
    %v11292 = vand.u32 %v10781, 2147483648
    %v11293 = vor.u32 1.1754944e-38, %v11292
    %v11294 = vsel %vm11291, %v11293, %v11289
    %v11295 = vmul.f32 1.0, %v11294
    %v11296 = vrcp.pop %v10782
    %v11297 = vmul.f32 %v10782, %v11296
    %v11298 = vsub.f32 1.0, %v11297
    %v11299 = vmul.f32 %v11296, %v11298
    %v11300 = vadd.f32 %v11296, %v11299
    %vm11301 = vweird.f32 %v10782
    %vm11302 = vweird.f32 %v11296
    %vm11303 = vmor %vm11301, %vm11302
    %v11304 = vsel %vm11303, %v11296, %v11300
    %v11305 = vand.u32 2147483647, %v10782
    %vm11306 = vcmp.eq.f32.partialorder %v11305, 8.507059e+37
    %v11307 = vand.u32 %v10782, 2147483648
    %v11308 = vor.u32 1.1754944e-38, %v11307
    %v11309 = vsel %vm11306, %v11308, %v11304
    %v11310 = vmul.f32 1.0, %v11309
    %v11311 = vrcp.pop %v10783
    %v11312 = vmul.f32 %v10783, %v11311
    %v11313 = vsub.f32 1.0, %v11312
    %v11314 = vmul.f32 %v11311, %v11313
    %v11315 = vadd.f32 %v11311, %v11314
    %vm11316 = vweird.f32 %v10783
    %vm11317 = vweird.f32 %v11311
    %vm11318 = vmor %vm11316, %vm11317
    %v11319 = vsel %vm11318, %v11311, %v11315
    %v11320 = vand.u32 2147483647, %v10783
    %vm11321 = vcmp.eq.f32.partialorder %v11320, 8.507059e+37
    %v11322 = vand.u32 %v10783, 2147483648
    %v11323 = vor.u32 1.1754944e-38, %v11322
    %v11324 = vsel %vm11321, %v11323, %v11319
    %v11325 = vmul.f32 1.0, %v11324
    %v11326 = vrcp.pop %v10784
    %v11327 = vmul.f32 %v10784, %v11326
    %v11328 = vsub.f32 1.0, %v11327
    %v11329 = vmul.f32 %v11326, %v11328
    %v11330 = vadd.f32 %v11326, %v11329
    %vm11331 = vweird.f32 %v10784
    %vm11332 = vweird.f32 %v11326
    %vm11333 = vmor %vm11331, %vm11332
    %v11334 = vsel %vm11333, %v11326, %v11330
    %v11335 = vand.u32 2147483647, %v10784
    %vm11336 = vcmp.eq.f32.partialorder %v11335, 8.507059e+37
    %v11337 = vand.u32 %v10784, 2147483648
    %v11338 = vor.u32 1.1754944e-38, %v11337
    %v11339 = vsel %vm11336, %v11338, %v11334
    %v11340 = vmul.f32 1.0, %v11339
    %v11341 = vrcp.pop %v10785
    %v11342 = vmul.f32 %v10785, %v11341
    %v11343 = vsub.f32 1.0, %v11342
    %v11344 = vmul.f32 %v11341, %v11343
    %v11345 = vadd.f32 %v11341, %v11344
    %vm11346 = vweird.f32 %v10785
    %vm11347 = vweird.f32 %v11341
    %vm11348 = vmor %vm11346, %vm11347
    %v11349 = vsel %vm11348, %v11341, %v11345
    %v11350 = vand.u32 2147483647, %v10785
    %vm11351 = vcmp.eq.f32.partialorder %v11350, 8.507059e+37
    %v11352 = vand.u32 %v10785, 2147483648
    %v11353 = vor.u32 1.1754944e-38, %v11352
    %v11354 = vsel %vm11351, %v11353, %v11349
    %v11355 = vmul.f32 1.0, %v11354
    %v11356 = vpack.c.bf16 %v10815, %v10800
    %v11357 = vpack.c.bf16 %v10845, %v10830
    %v11358 = vpack.c.bf16 %v10875, %v10860
    %v11359 = vpack.c.bf16 %v10905, %v10890
    %v11360 = vpack.c.bf16 %v10935, %v10920
    %v11361 = vpack.c.bf16 %v10965, %v10950
    %v11362 = vpack.c.bf16 %v10995, %v10980
    %v11363 = vpack.c.bf16 %v11025, %v11010
    %v11364 = vpack.c.bf16 %v11055, %v11040
    %v11365 = vpack.c.bf16 %v11070, %v11070
    %v11366 = vpack.c.bf16 %v11100, %v11085
    %v11367 = vpack.c.bf16 %v11130, %v11115
    %v11368 = vpack.c.bf16 %v11160, %v11145
    %v11369 = vpack.c.bf16 %v11190, %v11175
    %v11370 = vpack.c.bf16 %v11220, %v11205
    %v11371 = vpack.c.bf16 %v11250, %v11235
    %v11372 = vpack.c.bf16 %v11280, %v11265
    %v11373 = vpack.c.bf16 %v11310, %v11295
    %v11374 = vpack.c.bf16 %v11340, %v11325
    %v11375 = vpack.c.bf16 %v11355, %v11355
    %11376 = vst [vmem:[%s10] sm:$0xff] %v11356
    %11377 = vst [vmem:[%s10 + $0x8] sm:$0xff] %v11357
    %11378 = vst [vmem:[%s10 + $0x10] sm:$0xff] %v11358
    %11379 = vst [vmem:[%s10 + $0x18] sm:$0xff] %v11359
    %11380 = vst [vmem:[%s10 + $0x20] sm:$0xff] %v11360
    %11381 = vst [vmem:[%s10 + $0x28] sm:$0xff] %v11361
    %11382 = vst [vmem:[%s10 + $0x30] sm:$0xff] %v11362
    %11383 = vst [vmem:[%s10 + $0x38] sm:$0xff] %v11363
    %11384 = vst [vmem:[%s10 + $0x40] sm:$0xff] %v11364
    %11385 = vst [vmem:[%s10 + $0x48] sm:$0xf] %v11365
    %11386 = vst [vmem:[%s10 + $0x4c] sm:$0xff] %v11366
    %11387 = vst [vmem:[%s10 + $0x54] sm:$0xff] %v11367
    %11388 = vst [vmem:[%s10 + $0x5c] sm:$0xff] %v11368
    %11389 = vst [vmem:[%s10 + $0x64] sm:$0xff] %v11369
    %11390 = vst [vmem:[%s10 + $0x6c] sm:$0xff] %v11370
    %11391 = vst [vmem:[%s10 + $0x74] sm:$0xff] %v11371
    %11392 = vst [vmem:[%s10 + $0x7c] sm:$0xff] %v11372
    %11393 = vst [vmem:[%s10 + $0x84] sm:$0xff] %v11373
    %11394 = vst [vmem:[%s10 + $0x8c] sm:$0xff] %v11374
    %11395 = vst [vmem:[%s10 + $0x94] sm:$0xf] %v11375
    // Predicated region
    $region74: #{_lambda_.1} parent=1 // pred_check
      _
    $region75: #{_lambda_.1} parent=1 // pred_check_branch
      %11397 = sbr.rel (0) target = $region77
    $region76: #{_lambda_.1} parent=1 // pred_region
      _
    $region77: #{_lambda_.1} parent=1 // pred_fallthru
      _
    // Predicated region
    $region78: #{_lambda_.1} parent=1 // pred_check
      _
    $region79: #{_lambda_.1} parent=1 // pred_check_branch
      %11399 = sbr.rel (0) target = $region81
    $region80: #{_lambda_.1} parent=1 // pred_region
      _
    $region81: #{_lambda_.1} parent=1 // pred_fallthru
      _
    // Predicated region
    $region82: #{_lambda_.1} parent=1 // pred_check
      _
    $region83: #{_lambda_.1} parent=1 // pred_check_branch
      %11401 = sbr.rel (0) target = $region85
    $region84: #{_lambda_.1} parent=1 // pred_region
      _
    $region85: #{_lambda_.1} parent=1 // pred_fallthru
      _
    // Predicated region
    $region86: #{_lambda_.1} parent=1 // pred_check
      _
    $region87: #{_lambda_.1} parent=1 // pred_check_branch
      %11403 = sbr.rel (0) target = $region89
    $region88: #{_lambda_.1} parent=1 // pred_region
      _
    $region89: #{_lambda_.1} parent=1 // pred_fallthru
      _
    %11404 = vsyncpa [#allocation3], 1
    %11405 = vsyncpa [#allocation5], 1
    %11406 = vsyncpa [#allocation8], 1
    %11407 = vsyncpa [#allocation11], 1
    %11408 = vsyncpa [#allocation14], 1

</llo_original>
